<compile_context>
chip_gen: v7x
topology: tpu7x:2x2x1
jax: 0.10.0
libtpu: 0.0.40
codegen_flags: <defaults>
</compile_context>

<pallas_src>
import functools

import jax
import jax.numpy as jnp
from jax.experimental import pallas as pl
from jax.experimental.pallas import tpu as pltpu

# ---- static sizes implied by the module -------------------------------------
KH = KW = 10            # conv kernel
C1 = 200                # conv output channels
C1_PAD = 256            # padded to a lane-dense multiple of 128
PH = PW = 9             # pooled spatial (28 - 10 + 1 = 19 -> floor(19/2) = 9)
NP = PH * PW            # 81 pooled positions
NP_PAD = 88             # padded to a multiple of 8 (sublane tile)
KSZ = KH * KW           # 100 (1 input channel)
KSZ_PAD = 128           # padded window axis
F1 = C1 * NP            # 16200 torch-flatten features
F1P = NP_PAD * C1_PAD   # 22528 padded features fed to fc1 (multiple of 128)
H1 = 400                # fc1 hidden (logical)
H1_PAD = 512            # lane-dense fc1 hidden
NCLS = 964              # fc2 outputs
NCLS_PAD = 1024         # lane-dense output width
TK = 2816               # fc1 reduction tile: 22528 / 2816 = 8 K steps
B_TILE_MAX = 32         # images per conv grid step (adaptive for small batch)
TM_MAX = 512            # max batch rows per MLP grid step


def _round_up(x, m):
    return ((x + m - 1) // m) * m


def _vmem_limit_bytes():
    # Generation-aware scoped-VMEM limit (64 MiB physical on v7x, 128 MiB on
    # v5e/v6e); cap at 48 MiB which comfortably covers the ~20-27 MiB working
    # sets of both kernels while leaving double-buffer headroom everywhere.
    try:
        cap = int(pltpu.get_tpu_info().vmem_capacity_bytes)
    except Exception:
        cap = 64 * 1024 * 1024
    return int(min(cap * 3 // 4, 48 * 1024 * 1024))


VMEM_LIMIT = _vmem_limit_bytes()


# ---- im2col via static strided window slices (no gather HLO) -----------------
def _im2col_pool_patches(x2):
    """x2: (n, 28, 28) bf16 -> (n*4*NP_PAD, KSZ_PAD) bf16 patch matrix.

    Row order is (image, pool branch d=(di,dj), pooled position p=i*9+j); the
    window axis q=kh*10+kw is zero-padded 100 -> 128.  For each (kh, kw) the
    18x18 window x2[:, kh:kh+18, kw:kw+18] reshaped to (9,2,9,2) yields all
    four pool branches at once — pure static slices/reshapes/transposes.
    """
    n = x2.shape[0]
    cols = []
    for kh in range(KH):
        for kw in range(KW):
            win = x2[:, kh:kh + 2 * PH, kw:kw + 2 * PW]     # (n, 18, 18)
            cols.append(win.reshape(n, PH, 2, PW, 2))        # [n, i, di, j, dj]
    pat = jnp.stack(cols, axis=-1)                           # (n, 9, 2, 9, 2, 100)
    pat = pat.transpose(0, 2, 4, 1, 3, 5)                    # (n, di, dj, i, j, q)
    pat = pat.reshape(n, 4, NP, KSZ)
    pat = jnp.pad(pat, ((0, 0), (0, 0), (0, NP_PAD - NP), (0, KSZ_PAD - KSZ)))
    return pat.reshape(n * 4 * NP_PAD, KSZ_PAD)


# ---- kernel 1: conv (one fused matmul) + 2x2 max-pool + bias + ReLU ----------
def conv_pool_kernel(p_ref, w_ref, b_ref, o_ref, *, bt):
    # p_ref: (bt*4*88, 128) bf16   w_ref: (128, 256) bf16
    # b_ref: (1, 256) f32          o_ref: (bt, 88, 256) bf16
    s = jnp.dot(p_ref[...], w_ref[...], preferred_element_type=jnp.float32)
    s = s.reshape(bt, 4, NP_PAD, C1_PAD)
    # max over the 4 members of each 2x2 pooling window, then bias + ReLU.
    m = jnp.maximum(jnp.maximum(s[:, 0], s[:, 1]),
                    jnp.maximum(s[:, 2], s[:, 3]))
    b = b_ref[...].reshape(1, 1, C1_PAD)
    o_ref[...] = jnp.maximum(m + b, 0.0).astype(o_ref.dtype)


def conv_pool(patches, wc, bc, n_pad, bt):
    rows = bt * 4 * NP_PAD
    return pl.pallas_call(
        functools.partial(conv_pool_kernel, bt=bt),
        out_shape=jax.ShapeDtypeStruct((n_pad, NP_PAD, C1_PAD), jnp.bfloat16),
        grid_spec=pltpu.PrefetchScalarGridSpec(
            num_scalar_prefetch=0,
            grid=(n_pad // bt,),
            in_specs=[
                pl.BlockSpec((rows, KSZ_PAD), lambda i: (i, 0)),
                pl.BlockSpec((KSZ_PAD, C1_PAD), lambda i: (0, 0)),
                pl.BlockSpec((1, C1_PAD), lambda i: (0, 0)),
            ],
            out_specs=pl.BlockSpec((bt, NP_PAD, C1_PAD), lambda i: (i, 0, 0)),
        ),
        compiler_params=pltpu.CompilerParams(
            dimension_semantics=("parallel",),
            vmem_limit_bytes=VMEM_LIMIT),
    )(patches, wc, bc)


# ---- kernel 2: fc1 + ReLU + (dropout=identity) + fc2 -------------------------
# grid = (M batch tiles [parallel], K reduction tiles [arbitrary, innermost])
def mlp_kernel(x_ref, w1_ref, b1_ref, w2_ref, b2_ref, o_ref, acc_ref):
    k = pl.program_id(1)

    @pl.when(k == 0)
    def _():
        acc_ref[...] = jnp.zeros_like(acc_ref)

    acc_ref[...] += jnp.dot(x_ref[...], w1_ref[...],
                            preferred_element_type=jnp.float32)

    @pl.when(k == pl.num_programs(1) - 1)
    def _():
        h = jnp.maximum(acc_ref[...] + b1_ref[...], 0.0)
        # TODO(synk): Dropout(p=0.5) is identity at inference; PyTorch's
        # train-mode RNG mask is not reproduced here.
        o_ref[...] = (jnp.dot(h.astype(w2_ref.dtype), w2_ref[...],
                              preferred_element_type=jnp.float32)
                      + b2_ref[...]).astype(o_ref.dtype)


def mlp(feat, w1, b1, w2, b2, tm):
    n_pad = feat.shape[0]
    return pl.pallas_call(
        mlp_kernel,
        out_shape=jax.ShapeDtypeStruct((n_pad, NCLS_PAD), jnp.bfloat16),
        grid_spec=pltpu.PrefetchScalarGridSpec(
            num_scalar_prefetch=0,
            grid=(n_pad // tm, F1P // TK),
            in_specs=[
                pl.BlockSpec((tm, TK), lambda m, k: (m, k)),
                pl.BlockSpec((TK, H1_PAD), lambda m, k: (k, 0)),
                pl.BlockSpec((1, H1_PAD), lambda m, k: (0, 0)),
                pl.BlockSpec((H1_PAD, NCLS_PAD), lambda m, k: (0, 0)),
                pl.BlockSpec((1, NCLS_PAD), lambda m, k: (0, 0)),
            ],
            out_specs=pl.BlockSpec((tm, NCLS_PAD), lambda m, k: (m, 0)),
            scratch_shapes=[pltpu.VMEM((tm, H1_PAD), jnp.float32)],
        ),
        compiler_params=pltpu.CompilerParams(
            dimension_semantics=("parallel", "arbitrary"),
            vmem_limit_bytes=VMEM_LIMIT),
    )(feat, w1, b1, w2, b2)


# ---- parameters (deterministic synthetic init, PyTorch shapes) ---------------
def init_params(key):
    k = jax.random.split(key, 6)
    return dict(
        conv_w=jax.random.normal(k[0], (C1, 1, KH, KW), jnp.float32) * 0.05,
        conv_b=jax.random.normal(k[1], (C1,), jnp.float32) * 0.05,
        fc1_w=jax.random.normal(k[2], (H1, F1), jnp.float32) * 0.01,
        fc1_b=jax.random.normal(k[3], (H1,), jnp.float32) * 0.01,
        fc2_w=jax.random.normal(k[4], (NCLS, H1), jnp.float32) * 0.02,
        fc2_b=jax.random.normal(k[5], (NCLS,), jnp.float32) * 0.02,
    )


# ---- one-time weight packing (outside the jitted forward) --------------------
def pack_params(params):
    wc = params["conv_w"].reshape(C1, KSZ).T                               # (100, 200)
    wc = jnp.pad(wc, ((0, KSZ_PAD - KSZ), (0, C1_PAD - C1))).astype(jnp.bfloat16)
    bc = jnp.pad(params["conv_b"], (0, C1_PAD - C1)).reshape(1, C1_PAD)    # f32

    # torch's flatten is channel-major (index = c*81 + p); the kernels use
    # (p, c) with both dims padded, so permute + zero-pad the fc1 rows; the
    # hidden dim is also padded 400 -> 512 (lane-dense accumulator / MXU N).
    w1 = params["fc1_w"].T.reshape(C1, NP, H1)                             # (200, 81, 400)
    w1 = jnp.pad(w1, ((0, C1_PAD - C1), (0, NP_PAD - NP), (0, H1_PAD - H1)))
    w1 = w1.transpose(1, 0, 2).reshape(F1P, H1_PAD).astype(jnp.bfloat16)   # (22528, 512)
    b1 = jnp.pad(params["fc1_b"], (0, H1_PAD - H1)).reshape(1, H1_PAD)     # f32

    w2 = jnp.pad(params["fc2_w"].T,
                 ((0, H1_PAD - H1), (0, NCLS_PAD - NCLS))).astype(jnp.bfloat16)  # (512, 1024)
    b2 = jnp.pad(params["fc2_b"], (0, NCLS_PAD - NCLS)).reshape(1, NCLS_PAD)
    return dict(wc=wc, bc=bc, w1=w1, b1=b1, w2=w2, b2=b2)


# ---- tiling choices -----------------------------------------------------------
def _pick_tiles(n):
    # conv batch tile: up to 32, never padding more than the tile itself
    bt = min(B_TILE_MAX, _round_up(n, 8))
    n_pad = _round_up(n, bt)
    # MLP batch tile: largest multiple of 8 <= TM_MAX that divides n_pad
    tm = bt
    for cand in range(min(TM_MAX, n_pad), 7, -8):
        if n_pad % cand == 0:
            tm = cand
            break
    return bt, tm, n_pad


# ---- full forward pass --------------------------------------------------------
def _forward(x, packed):
    n = x.shape[0]
    bt, tm, n_pad = _pick_tiles(n)

    xp = jnp.pad(x, ((0, n_pad - n), (0, 0), (0, 0), (0, 0))).astype(jnp.bfloat16)
    # im2col via static strided slices (no gather), rows (image, branch, pos)
    patches = _im2col_pool_patches(xp[:, 0])                 # (n_pad*4*88, 128)

    # TODO(synk): the patches / pooled tensors still round-trip HBM between
    # pallas_calls; a fused conv->fc1 kernel (emit_pipeline over w1 K chunks)
    # would remove that traffic at large batch.
    pooled = conv_pool(patches, packed["wc"], packed["bc"], n_pad, bt)  # (n_pad, 88, 256)
    feat = pooled.reshape(n_pad, F1P)                         # free reshape, already padded

    out = mlp(feat, packed["w1"], packed["b1"], packed["w2"], packed["b2"], tm)
    return out[:n, :NCLS].astype(jnp.float32)


lake_thesis_cnn_forward = jax.jit(_forward)


# ---- plain-JAX reference reproducing the PyTorch forward (eval mode) ----------
def torch_reference(x, params):
    out = jax.lax.conv_general_dilated(
        x, params["conv_w"], window_strides=(1, 1), padding="VALID",
        dimension_numbers=("NCHW", "OIHW", "NCHW"))
    out = out + params["conv_b"][None, :, None, None]
    out = jnp.maximum(out, 0.0)
    out = jax.lax.reduce_window(out, -jnp.inf, jax.lax.max,
                                (1, 1, 2, 2), (1, 1, 2, 2), "VALID")
    out = out.reshape(out.shape[0], -1)
    out = jnp.maximum(out @ params["fc1_w"].T + params["fc1_b"], 0.0)
    out = out @ params["fc2_w"].T + params["fc2_b"]
    return out


if __name__ == "__main__":
    key = jax.random.PRNGKey(0)
    kx, kp = jax.random.split(key)
    x = jax.random.normal(kx, (2, 1, 28, 28), jnp.float32)   # batch=2, NCHW
    params = init_params(kp)
    packed = pack_params(params)                             # once, outside jit

    out = lake_thesis_cnn_forward(x, packed)
    out = jax.block_until_ready(out)
    assert out.shape == (2, NCLS), out.shape

    ref = torch_reference(x, params)
    # bf16 weights/activations/output (f32 accumulation) vs f32 reference.
    if not jnp.allclose(out, ref, rtol=4e-2, atol=4e-2):
        max_err = float(jnp.max(jnp.abs(out - ref)))
        raise AssertionError(f"Pallas output mismatch vs reference, max|diff|={max_err}")

    print("KERNEL_OK")
</pallas_src>

<mosaic_0001>
module attributes {stable_mosaic.version = 11 : i64} {
  func.func @conv_pool_kernel(%arg0: i32, %arg1: memref<2816x128xbf16, #tpu.memory_space<vmem>>, %arg2: memref<128x256xbf16, #tpu.memory_space<vmem>>, %arg3: memref<1x256xf32, #tpu.memory_space<vmem>>, %arg4: memref<8x88x256xbf16, #tpu.memory_space<vmem>>) attributes {dimension_semantics = [#tpu.dimension_semantics<parallel>], iteration_bounds = array<i64: 1>, scalar_prefetch = 0 : i64, scratch_operands = 0 : i64, tpu.core_type = #tpu.core_type<tc>, window_params = [{transform_indices = @transform_0, window_bounds = array<i64: 2816, 128>}, {pipeline_mode = #tpu.pipeline_mode<synchronous>, transform_indices = @transform_1, window_bounds = array<i64: 128, 256>}, {pipeline_mode = #tpu.pipeline_mode<synchronous>, transform_indices = @transform_2, window_bounds = array<i64: 1, 256>}, {transform_indices = @transform_3, window_bounds = array<i64: 8, 88, 256>}]} {
    %c0 = arith.constant 0 : index
    %c0_0 = arith.constant 0 : index
    %0 = vector.load %arg1[%c0, %c0_0] : memref<2816x128xbf16, #tpu.memory_space<vmem>>, vector<2816x128xbf16>
    %c0_1 = arith.constant 0 : index
    %c0_2 = arith.constant 0 : index
    %1 = vector.load %arg2[%c0_1, %c0_2] : memref<128x256xbf16, #tpu.memory_space<vmem>>, vector<128x256xbf16>
    %cst = arith.constant dense<0.000000e+00> : vector<2816x256xf32>
    %2 = tpu.matmul %0, %1, %cst {dimension_numbers = #tpu.dot_dimension_numbers<[1], [0], [0], [1], [0, 0, 1, 1], [], []>} : vector<2816x128xbf16>, vector<128x256xbf16>, vector<2816x256xf32> -> vector<2816x256xf32>
    %3 = vector.shape_cast %2 : vector<2816x256xf32> to vector<8x4x88x256xf32>
    %4 = vector.extract_strided_slice %3 {offsets = [0, 0, 0, 0], sizes = [8, 1, 88, 256], strides = [1, 1, 1, 1]} : vector<8x4x88x256xf32> to vector<8x1x88x256xf32>
    %5 = vector.shape_cast %4 : vector<8x1x88x256xf32> to vector<8x88x256xf32>
    %6 = vector.extract_strided_slice %3 {offsets = [0, 1, 0, 0], sizes = [8, 1, 88, 256], strides = [1, 1, 1, 1]} : vector<8x4x88x256xf32> to vector<8x1x88x256xf32>
    %7 = vector.shape_cast %6 : vector<8x1x88x256xf32> to vector<8x88x256xf32>
    %8 = arith.maximumf %5, %7 : vector<8x88x256xf32>
    %9 = vector.extract_strided_slice %3 {offsets = [0, 2, 0, 0], sizes = [8, 1, 88, 256], strides = [1, 1, 1, 1]} : vector<8x4x88x256xf32> to vector<8x1x88x256xf32>
    %10 = vector.shape_cast %9 : vector<8x1x88x256xf32> to vector<8x88x256xf32>
    %11 = vector.extract_strided_slice %3 {offsets = [0, 3, 0, 0], sizes = [8, 1, 88, 256], strides = [1, 1, 1, 1]} : vector<8x4x88x256xf32> to vector<8x1x88x256xf32>
    %12 = vector.shape_cast %11 : vector<8x1x88x256xf32> to vector<8x88x256xf32>
    %13 = arith.maximumf %10, %12 : vector<8x88x256xf32>
    %14 = arith.maximumf %8, %13 : vector<8x88x256xf32>
    %c0_3 = arith.constant 0 : index
    %c0_4 = arith.constant 0 : index
    %15 = vector.load %arg3[%c0_3, %c0_4] : memref<1x256xf32, #tpu.memory_space<vmem>>, vector<1x256xf32>
    %16 = vector.shape_cast %15 : vector<1x256xf32> to vector<1x1x256xf32>
    %17 = vector.broadcast %16 : vector<1x1x256xf32> to vector<8x88x256xf32>
    %18 = arith.addf %14, %17 : vector<8x88x256xf32>
    %cst_5 = arith.constant 0.000000e+00 : f32
    %19 = vector.broadcast %cst_5 : f32 to vector<8x88x256xf32>
    %20 = arith.maximumf %18, %19 : vector<8x88x256xf32>
    %21 = arith.truncf %20 : vector<8x88x256xf32> to vector<8x88x256xbf16>
    %c0_6 = arith.constant 0 : index
    %c0_7 = arith.constant 0 : index
    %c0_8 = arith.constant 0 : index
    %22 = vector.load %arg4[%c0_6, %c0_7, %c0_8] : memref<8x88x256xbf16, #tpu.memory_space<vmem>>, vector<8x88x256xbf16>
    tpu.vector_store %arg4[%c0_6, %c0_7, %c0_8], %21 {strides = array<i32>} : memref<8x88x256xbf16, #tpu.memory_space<vmem>>, vector<8x88x256xbf16>,
    return
  }
  func.func @transform_0(%arg0: i32) -> (i32, i32) {
    %c0_i32 = arith.constant 0 : i32
    %c0_i32_0 = arith.constant 0 : i32
    return %arg0, %c0_i32 : i32, i32
  }
  func.func @transform_1(%arg0: i32) -> (i32, i32) {
    %c0_i32 = arith.constant 0 : i32
    %c0_i32_0 = arith.constant 0 : i32
    %c0_i32_1 = arith.constant 0 : i32
    return %c0_i32, %c0_i32_0 : i32, i32
  }
  func.func @transform_2(%arg0: i32) -> (i32, i32) {
    %c0_i32 = arith.constant 0 : i32
    %c0_i32_0 = arith.constant 0 : i32
    %c0_i32_1 = arith.constant 0 : i32
    return %c0_i32, %c0_i32_0 : i32, i32
  }
  func.func @transform_3(%arg0: i32) -> (i32, i32, i32) {
    %c0_i32 = arith.constant 0 : i32
    %c0_i32_0 = arith.constant 0 : i32
    %c0_i32_1 = arith.constant 0 : i32
    return %arg0, %c0_i32, %c0_i32_0 : i32, i32, i32
  }
}

module attributes {stable_mosaic.version = 11 : i64} {
  func.func @mlp_kernel(%arg0: i32, %arg1: i32, %arg2: memref<8x2816xbf16, #tpu.memory_space<vmem>>, %arg3: memref<2816x512xbf16, #tpu.memory_space<vmem>>, %arg4: memref<1x512xf32, #tpu.memory_space<vmem>>, %arg5: memref<512x1024xbf16, #tpu.memory_space<vmem>>, %arg6: memref<1x1024xf32, #tpu.memory_space<vmem>>, %arg7: memref<8x1024xbf16, #tpu.memory_space<vmem>>, %arg8: memref<8x512xf32, #tpu.memory_space<vmem>>) attributes {dimension_semantics = [#tpu.dimension_semantics<parallel>, #tpu.dimension_semantics<arbitrary>], iteration_bounds = array<i64: 1, 8>, scalar_prefetch = 0 : i64, scratch_operands = 1 : i64, tpu.core_type = #tpu.core_type<tc>, window_params = [{transform_indices = @transform_0, window_bounds = array<i64: 8, 2816>}, {transform_indices = @transform_1, window_bounds = array<i64: 2816, 512>}, {pipeline_mode = #tpu.pipeline_mode<synchronous>, transform_indices = @transform_2, window_bounds = array<i64: 1, 512>}, {pipeline_mode = #tpu.pipeline_mode<synchronous>, transform_indices = @transform_3, window_bounds = array<i64: 512, 1024>}, {pipeline_mode = #tpu.pipeline_mode<synchronous>, transform_indices = @transform_4, window_bounds = array<i64: 1, 1024>}, {transform_indices = @transform_5, window_bounds = array<i64: 8, 1024>}]} {
    %c0_i32 = arith.constant 0 : i32
    %0 = arith.cmpi eq, %arg1, %c0_i32 : i32
    %1 = arith.extui %0 : i1 to i32
    %c0_i32_0 = arith.constant 0 : i32
    %2 = arith.cmpi ne, %1, %c0_i32_0 : i32
    scf.if %2 {
      %cst_9 = arith.constant 0.000000e+00 : f32
      %12 = vector.broadcast %cst_9 : f32 to vector<8x512xf32>
      %c0_10 = arith.constant 0 : index
      %c0_11 = arith.constant 0 : index
      %13 = vector.load %arg8[%c0_10, %c0_11] : memref<8x512xf32, #tpu.memory_space<vmem>>, vector<8x512xf32>
      tpu.vector_store %arg8[%c0_10, %c0_11], %12 {strides = array<i32>} : memref<8x512xf32, #tpu.memory_space<vmem>>, vector<8x512xf32>,
    } else {
    }
    %c0 = arith.constant 0 : index
    %c0_1 = arith.constant 0 : index
    %3 = vector.load %arg8[%c0, %c0_1] : memref<8x512xf32, #tpu.memory_space<vmem>>, vector<8x512xf32>
    %c0_2 = arith.constant 0 : index
    %c0_3 = arith.constant 0 : index
    %4 = vector.load %arg2[%c0_2, %c0_3] : memref<8x2816xbf16, #tpu.memory_space<vmem>>, vector<8x2816xbf16>
    %c0_4 = arith.constant 0 : index
    %c0_5 = arith.constant 0 : index
    %5 = vector.load %arg3[%c0_4, %c0_5] : memref<2816x512xbf16, #tpu.memory_space<vmem>>, vector<2816x512xbf16>
    %cst = arith.constant dense<0.000000e+00> : vector<8x512xf32>
    %6 = tpu.matmul %4, %5, %cst {dimension_numbers = #tpu.dot_dimension_numbers<[1], [0], [0], [1], [0, 0, 1, 1], [], []>} : vector<8x2816xbf16>, vector<2816x512xbf16>, vector<8x512xf32> -> vector<8x512xf32>
    %7 = arith.addf %3, %6 : vector<8x512xf32>
    %c0_6 = arith.constant 0 : index
    %c0_7 = arith.constant 0 : index
    %8 = vector.load %arg8[%c0_6, %c0_7] : memref<8x512xf32, #tpu.memory_space<vmem>>, vector<8x512xf32>
    tpu.vector_store %arg8[%c0_6, %c0_7], %7 {strides = array<i32>} : memref<8x512xf32, #tpu.memory_space<vmem>>, vector<8x512xf32>,
    %c7_i32 = arith.constant 7 : i32
    %9 = arith.cmpi eq, %arg1, %c7_i32 : i32
    %10 = arith.extui %9 : i1 to i32
    %c0_i32_8 = arith.constant 0 : i32
    %11 = arith.cmpi ne, %10, %c0_i32_8 : i32
    scf.if %11 {
      %c0_9 = arith.constant 0 : index
      %c0_10 = arith.constant 0 : index
      %12 = vector.load %arg8[%c0_9, %c0_10] : memref<8x512xf32, #tpu.memory_space<vmem>>, vector<8x512xf32>
      %c0_11 = arith.constant 0 : index
      %c0_12 = arith.constant 0 : index
      %13 = vector.load %arg4[%c0_11, %c0_12] : memref<1x512xf32, #tpu.memory_space<vmem>>, vector<1x512xf32>
      %14 = vector.broadcast %13 : vector<1x512xf32> to vector<8x512xf32>
      %15 = arith.addf %12, %14 : vector<8x512xf32>
      %cst_13 = arith.constant 0.000000e+00 : f32
      %16 = vector.broadcast %cst_13 : f32 to vector<8x512xf32>
      %17 = arith.maximumf %15, %16 : vector<8x512xf32>
      %18 = arith.truncf %17 : vector<8x512xf32> to vector<8x512xbf16>
      %c0_14 = arith.constant 0 : index
      %c0_15 = arith.constant 0 : index
      %19 = vector.load %arg5[%c0_14, %c0_15] : memref<512x1024xbf16, #tpu.memory_space<vmem>>, vector<512x1024xbf16>
      %cst_16 = arith.constant dense<0.000000e+00> : vector<8x1024xf32>
      %20 = tpu.matmul %18, %19, %cst_16 {dimension_numbers = #tpu.dot_dimension_numbers<[1], [0], [0], [1], [0, 0, 1, 1], [], []>} : vector<8x512xbf16>, vector<512x1024xbf16>, vector<8x1024xf32> -> vector<8x1024xf32>
      %c0_17 = arith.constant 0 : index
      %c0_18 = arith.constant 0 : index
      %21 = vector.load %arg6[%c0_17, %c0_18] : memref<1x1024xf32, #tpu.memory_space<vmem>>, vector<1x1024xf32>
      %22 = vector.broadcast %21 : vector<1x1024xf32> to vector<8x1024xf32>
      %23 = arith.addf %20, %22 : vector<8x1024xf32>
      %24 = arith.truncf %23 : vector<8x1024xf32> to vector<8x1024xbf16>
      %c0_19 = arith.constant 0 : index
      %c0_20 = arith.constant 0 : index
      %25 = vector.load %arg7[%c0_19, %c0_20] : memref<8x1024xbf16, #tpu.memory_space<vmem>>, vector<8x1024xbf16>
      tpu.vector_store %arg7[%c0_19, %c0_20], %24 {strides = array<i32>} : memref<8x1024xbf16, #tpu.memory_space<vmem>>, vector<8x1024xbf16>,
    } else {
    }
    return
  }
  func.func @transform_0(%arg0: i32, %arg1: i32) -> (i32, i32) {
    %c0_i32 = arith.constant 0 : i32
    return %arg0, %arg1 : i32, i32
  }
  func.func @transform_1(%arg0: i32, %arg1: i32) -> (i32, i32) {
    %c0_i32 = arith.constant 0 : i32
    %c0_i32_0 = arith.constant 0 : i32
    return %arg1, %c0_i32 : i32, i32
  }
  func.func @transform_2(%arg0: i32, %arg1: i32) -> (i32, i32) {
    %c0_i32 = arith.constant 0 : i32
    %c0_i32_0 = arith.constant 0 : i32
    %c0_i32_1 = arith.constant 0 : i32
    return %c0_i32, %c0_i32_0 : i32, i32
  }
  func.func @transform_3(%arg0: i32, %arg1: i32) -> (i32, i32) {
    %c0_i32 = arith.constant 0 : i32
    %c0_i32_0 = arith.constant 0 : i32
    %c0_i32_1 = arith.constant 0 : i32
    return %c0_i32, %c0_i32_0 : i32, i32
  }
  func.func @transform_4(%arg0: i32, %arg1: i32) -> (i32, i32) {
    %c0_i32 = arith.constant 0 : i32
    %c0_i32_0 = arith.constant 0 : i32
    %c0_i32_1 = arith.constant 0 : i32
    return %c0_i32, %c0_i32_0 : i32, i32
  }
  func.func @transform_5(%arg0: i32, %arg1: i32) -> (i32, i32) {
    %c0_i32 = arith.constant 0 : i32
    %c0_i32_0 = arith.constant 0 : i32
    return %arg0, %c0_i32 : i32, i32
  }
}

</mosaic_0001>

<llo_original>
// kernel: _forward.2
$region0: #{_forward.2}
  #allocation0 [shape = 'u32[]', space=smem, size = 0x4, offset = 0x4, fixed_abs, tag = 'smem constant byte address 0x4 - core index']
  #allocation1 [shape = 'u32[144,128]{1,0:T(1,128)}', space=vmem, size = 0x12000, scoped, tag = 'internal scratch']
  %s0 = inlined_call_operand.vmem [shape: bf16[2816,128], index: 0, kind: input, shape index: {}]
  %s1 = inlined_call_operand.vmem [shape: bf16[128,256], index: 1, kind: input, shape index: {}]
  %s2 = inlined_call_operand.vmem [shape: f32[1,256], index: 2, kind: input, shape index: {}]
  %s3 = inlined_call_operand.vmem [shape: bf16[8,88,256], index: 3, kind: output, shape index: {}]
  %s4 = sld [smem:[#allocation0]]
  $region22: #{_forward.2} parent=0
    _
  %s6 = ssub.s32 1, %s4
  %s7 = scalar_select 0, %s6, %s4
  // Predicated region
  $region2: #{_forward.2} parent=0 // pred_check
    _
  $region3: #{_forward.2} parent=0 // pred_check_branch
    %9 = sbr.rel (0) target = $region5
  $region4: #{_forward.2} parent=0 // pred_region
    _
  $region5: #{_forward.2} parent=0 // pred_fallthru
    _
  // Predicated region
  $region6: #{_forward.2} parent=0 // pred_check
    _
  $region7: #{_forward.2} parent=0 // pred_check_branch
    %11 = sbr.rel (0) target = $region9
  $region8: #{_forward.2} parent=0 // pred_region
    _
  $region9: #{_forward.2} parent=0 // pred_fallthru
    _
  // Predicated region
  $region10: #{_forward.2} parent=0 // pred_check
    _
  $region11: #{_forward.2} parent=0 // pred_check_branch
    %13 = sbr.rel (0) target = $region13
  $region12: #{_forward.2} parent=0 // pred_region
    _
  $region13: #{_forward.2} parent=0 // pred_fallthru
    _
  %v15 = vld [vmem:[%s0] sm:$0xf]
  %v16 = vld [vmem:[%s0 + $0x4] sm:$0xf]
  %v17 = vld [vmem:[%s0 + $0x8] sm:$0xf]
  %v18 = vld [vmem:[%s0 + $0xc] sm:$0xf]
  %v19 = vld [vmem:[%s0 + $0x10] sm:$0xf]
  %v20 = vld [vmem:[%s0 + $0x14] sm:$0xf]
  %v21 = vld [vmem:[%s0 + $0x18] sm:$0xf]
  %v22 = vld [vmem:[%s0 + $0x1c] sm:$0xf]
  %v23 = vld [vmem:[%s0 + $0x20] sm:$0xf]
  %v24 = vld [vmem:[%s0 + $0x24] sm:$0xf]
  %v25 = vld [vmem:[%s0 + $0x28] sm:$0xf]
  %v26 = vld [vmem:[%s0 + $0x2c] sm:$0xf]
  %v27 = vld [vmem:[%s0 + $0x30] sm:$0xf]
  %v28 = vld [vmem:[%s0 + $0x34] sm:$0xf]
  %v29 = vld [vmem:[%s0 + $0x38] sm:$0xf]
  %v30 = vld [vmem:[%s0 + $0x3c] sm:$0xf]
  %v31 = vld [vmem:[%s0 + $0x40] sm:$0xf]
  %v32 = vld [vmem:[%s0 + $0x44] sm:$0xf]
  %v33 = vld [vmem:[%s0 + $0x48] sm:$0xf]
  %v34 = vld [vmem:[%s0 + $0x4c] sm:$0xf]
  %v35 = vld [vmem:[%s0 + $0x50] sm:$0xf]
  %v36 = vld [vmem:[%s0 + $0x54] sm:$0xf]
  %v37 = vld [vmem:[%s0 + $0x58] sm:$0xf]
  %v38 = vld [vmem:[%s0 + $0x5c] sm:$0xf]
  %v39 = vld [vmem:[%s0 + $0x60] sm:$0xf]
  %v40 = vld [vmem:[%s0 + $0x64] sm:$0xf]
  %v41 = vld [vmem:[%s0 + $0x68] sm:$0xf]
  %v42 = vld [vmem:[%s0 + $0x6c] sm:$0xf]
  %v43 = vld [vmem:[%s0 + $0x70] sm:$0xf]
  %v44 = vld [vmem:[%s0 + $0x74] sm:$0xf]
  %v45 = vld [vmem:[%s0 + $0x78] sm:$0xf]
  %v46 = vld [vmem:[%s0 + $0x7c] sm:$0xf]
  %v47 = vld [vmem:[%s0 + $0x80] sm:$0xf]
  %v48 = vld [vmem:[%s0 + $0x84] sm:$0xf]
  %v49 = vld [vmem:[%s0 + $0x88] sm:$0xf]
  %v50 = vld [vmem:[%s0 + $0x8c] sm:$0xf]
  %v51 = vld [vmem:[%s0 + $0x90] sm:$0xf]
  %v52 = vld [vmem:[%s0 + $0x94] sm:$0xf]
  %v53 = vld [vmem:[%s0 + $0x98] sm:$0xf]
  %v54 = vld [vmem:[%s0 + $0x9c] sm:$0xf]
  %v55 = vld [vmem:[%s0 + $0xa0] sm:$0xf]
  %v56 = vld [vmem:[%s0 + $0xa4] sm:$0xf]
  %v57 = vld [vmem:[%s0 + $0xa8] sm:$0xf]
  %v58 = vld [vmem:[%s0 + $0xac] sm:$0xf]
  %v59 = vld [vmem:[%s0 + $0xb0] sm:$0xf]
  %v60 = vld [vmem:[%s0 + $0xb4] sm:$0xf]
  %v61 = vld [vmem:[%s0 + $0xb8] sm:$0xf]
  %v62 = vld [vmem:[%s0 + $0xbc] sm:$0xf]
  %v63 = vld [vmem:[%s0 + $0xc0] sm:$0xf]
  %v64 = vld [vmem:[%s0 + $0xc4] sm:$0xf]
  %v65 = vld [vmem:[%s0 + $0xc8] sm:$0xf]
  %v66 = vld [vmem:[%s0 + $0xcc] sm:$0xf]
  %v67 = vld [vmem:[%s0 + $0xd0] sm:$0xf]
  %v68 = vld [vmem:[%s0 + $0xd4] sm:$0xf]
  %v69 = vld [vmem:[%s0 + $0xd8] sm:$0xf]
  %v70 = vld [vmem:[%s0 + $0xdc] sm:$0xf]
  %v71 = vld [vmem:[%s0 + $0xe0] sm:$0xf]
  %v72 = vld [vmem:[%s0 + $0xe4] sm:$0xf]
  %v73 = vld [vmem:[%s0 + $0xe8] sm:$0xf]
  %v74 = vld [vmem:[%s0 + $0xec] sm:$0xf]
  %v75 = vld [vmem:[%s0 + $0xf0] sm:$0xf]
  %v76 = vld [vmem:[%s0 + $0xf4] sm:$0xf]
  %v77 = vld [vmem:[%s0 + $0xf8] sm:$0xf]
  %v78 = vld [vmem:[%s0 + $0xfc] sm:$0xf]
  %v79 = vld [vmem:[%s0 + $0x100] sm:$0xf]
  %v80 = vld [vmem:[%s0 + $0x104] sm:$0xf]
  %v81 = vld [vmem:[%s0 + $0x108] sm:$0xf]
  %v82 = vld [vmem:[%s0 + $0x10c] sm:$0xf]
  %v83 = vld [vmem:[%s0 + $0x110] sm:$0xf]
  %v84 = vld [vmem:[%s0 + $0x114] sm:$0xf]
  %v85 = vld [vmem:[%s0 + $0x118] sm:$0xf]
  %v86 = vld [vmem:[%s0 + $0x11c] sm:$0xf]
  %v87 = vld [vmem:[%s0 + $0x120] sm:$0xf]
  %v88 = vld [vmem:[%s0 + $0x124] sm:$0xf]
  %v89 = vld [vmem:[%s0 + $0x128] sm:$0xf]
  %v90 = vld [vmem:[%s0 + $0x12c] sm:$0xf]
  %v91 = vld [vmem:[%s0 + $0x130] sm:$0xf]
  %v92 = vld [vmem:[%s0 + $0x134] sm:$0xf]
  %v93 = vld [vmem:[%s0 + $0x138] sm:$0xf]
  %v94 = vld [vmem:[%s0 + $0x13c] sm:$0xf]
  %v95 = vld [vmem:[%s0 + $0x140] sm:$0xf]
  %v96 = vld [vmem:[%s0 + $0x144] sm:$0xf]
  %v97 = vld [vmem:[%s0 + $0x148] sm:$0xf]
  %v98 = vld [vmem:[%s0 + $0x14c] sm:$0xf]
  %v99 = vld [vmem:[%s0 + $0x150] sm:$0xf]
  %v100 = vld [vmem:[%s0 + $0x154] sm:$0xf]
  %v101 = vld [vmem:[%s0 + $0x158] sm:$0xf]
  %v102 = vld [vmem:[%s0 + $0x15c] sm:$0xf]
  %v103 = vld [vmem:[%s0 + $0x160] sm:$0xf]
  %v104 = vld [vmem:[%s0 + $0x164] sm:$0xf]
  %v105 = vld [vmem:[%s0 + $0x168] sm:$0xf]
  %v106 = vld [vmem:[%s0 + $0x16c] sm:$0xf]
  %v107 = vld [vmem:[%s0 + $0x170] sm:$0xf]
  %v108 = vld [vmem:[%s0 + $0x174] sm:$0xf]
  %v109 = vld [vmem:[%s0 + $0x178] sm:$0xf]
  %v110 = vld [vmem:[%s0 + $0x17c] sm:$0xf]
  %v111 = vld [vmem:[%s0 + $0x180] sm:$0xf]
  %v112 = vld [vmem:[%s0 + $0x184] sm:$0xf]
  %v113 = vld [vmem:[%s0 + $0x188] sm:$0xf]
  %v114 = vld [vmem:[%s0 + $0x18c] sm:$0xf]
  %v115 = vld [vmem:[%s0 + $0x190] sm:$0xf]
  %v116 = vld [vmem:[%s0 + $0x194] sm:$0xf]
  %v117 = vld [vmem:[%s0 + $0x198] sm:$0xf]
  %v118 = vld [vmem:[%s0 + $0x19c] sm:$0xf]
  %v119 = vld [vmem:[%s0 + $0x1a0] sm:$0xf]
  %v120 = vld [vmem:[%s0 + $0x1a4] sm:$0xf]
  %v121 = vld [vmem:[%s0 + $0x1a8] sm:$0xf]
  %v122 = vld [vmem:[%s0 + $0x1ac] sm:$0xf]
  %v123 = vld [vmem:[%s0 + $0x1b0] sm:$0xf]
  %v124 = vld [vmem:[%s0 + $0x1b4] sm:$0xf]
  %v125 = vld [vmem:[%s0 + $0x1b8] sm:$0xf]
  %v126 = vld [vmem:[%s0 + $0x1bc] sm:$0xf]
  %v127 = vld [vmem:[%s0 + $0x1c0] sm:$0xf]
  %v128 = vld [vmem:[%s0 + $0x1c4] sm:$0xf]
  %v129 = vld [vmem:[%s0 + $0x1c8] sm:$0xf]
  %v130 = vld [vmem:[%s0 + $0x1cc] sm:$0xf]
  %v131 = vld [vmem:[%s0 + $0x1d0] sm:$0xf]
  %v132 = vld [vmem:[%s0 + $0x1d4] sm:$0xf]
  %v133 = vld [vmem:[%s0 + $0x1d8] sm:$0xf]
  %v134 = vld [vmem:[%s0 + $0x1dc] sm:$0xf]
  %v135 = vld [vmem:[%s0 + $0x1e0] sm:$0xf]
  %v136 = vld [vmem:[%s0 + $0x1e4] sm:$0xf]
  %v137 = vld [vmem:[%s0 + $0x1e8] sm:$0xf]
  %v138 = vld [vmem:[%s0 + $0x1ec] sm:$0xf]
  %v139 = vld [vmem:[%s0 + $0x1f0] sm:$0xf]
  %v140 = vld [vmem:[%s0 + $0x1f4] sm:$0xf]
  %v141 = vld [vmem:[%s0 + $0x1f8] sm:$0xf]
  %v142 = vld [vmem:[%s0 + $0x1fc] sm:$0xf]
  %v143 = vld [vmem:[%s0 + $0x200] sm:$0xf]
  %v144 = vld [vmem:[%s0 + $0x204] sm:$0xf]
  %v145 = vld [vmem:[%s0 + $0x208] sm:$0xf]
  %v146 = vld [vmem:[%s0 + $0x20c] sm:$0xf]
  %v147 = vld [vmem:[%s0 + $0x210] sm:$0xf]
  %v148 = vld [vmem:[%s0 + $0x214] sm:$0xf]
  %v149 = vld [vmem:[%s0 + $0x218] sm:$0xf]
  %v150 = vld [vmem:[%s0 + $0x21c] sm:$0xf]
  %v151 = vld [vmem:[%s0 + $0x220] sm:$0xf]
  %v152 = vld [vmem:[%s0 + $0x224] sm:$0xf]
  %v153 = vld [vmem:[%s0 + $0x228] sm:$0xf]
  %v154 = vld [vmem:[%s0 + $0x22c] sm:$0xf]
  %v155 = vld [vmem:[%s0 + $0x230] sm:$0xf]
  %v156 = vld [vmem:[%s0 + $0x234] sm:$0xf]
  %v157 = vld [vmem:[%s0 + $0x238] sm:$0xf]
  %v158 = vld [vmem:[%s0 + $0x23c] sm:$0xf]
  %v159 = vld [vmem:[%s0 + $0x240] sm:$0xf]
  %v160 = vld [vmem:[%s0 + $0x244] sm:$0xf]
  %v161 = vld [vmem:[%s0 + $0x248] sm:$0xf]
  %v162 = vld [vmem:[%s0 + $0x24c] sm:$0xf]
  %v163 = vld [vmem:[%s0 + $0x250] sm:$0xf]
  %v164 = vld [vmem:[%s0 + $0x254] sm:$0xf]
  %v165 = vld [vmem:[%s0 + $0x258] sm:$0xf]
  %v166 = vld [vmem:[%s0 + $0x25c] sm:$0xf]
  %v167 = vld [vmem:[%s0 + $0x260] sm:$0xf]
  %v168 = vld [vmem:[%s0 + $0x264] sm:$0xf]
  %v169 = vld [vmem:[%s0 + $0x268] sm:$0xf]
  %v170 = vld [vmem:[%s0 + $0x26c] sm:$0xf]
  %v171 = vld [vmem:[%s0 + $0x270] sm:$0xf]
  %v172 = vld [vmem:[%s0 + $0x274] sm:$0xf]
  %v173 = vld [vmem:[%s0 + $0x278] sm:$0xf]
  %v174 = vld [vmem:[%s0 + $0x27c] sm:$0xf]
  %v175 = vld [vmem:[%s0 + $0x280] sm:$0xf]
  %v176 = vld [vmem:[%s0 + $0x284] sm:$0xf]
  %v177 = vld [vmem:[%s0 + $0x288] sm:$0xf]
  %v178 = vld [vmem:[%s0 + $0x28c] sm:$0xf]
  %v179 = vld [vmem:[%s0 + $0x290] sm:$0xf]
  %v180 = vld [vmem:[%s0 + $0x294] sm:$0xf]
  %v181 = vld [vmem:[%s0 + $0x298] sm:$0xf]
  %v182 = vld [vmem:[%s0 + $0x29c] sm:$0xf]
  %v183 = vld [vmem:[%s0 + $0x2a0] sm:$0xf]
  %v184 = vld [vmem:[%s0 + $0x2a4] sm:$0xf]
  %v185 = vld [vmem:[%s0 + $0x2a8] sm:$0xf]
  %v186 = vld [vmem:[%s0 + $0x2ac] sm:$0xf]
  %v187 = vld [vmem:[%s0 + $0x2b0] sm:$0xf]
  %v188 = vld [vmem:[%s0 + $0x2b4] sm:$0xf]
  %v189 = vld [vmem:[%s0 + $0x2b8] sm:$0xf]
  %v190 = vld [vmem:[%s0 + $0x2bc] sm:$0xf]
  %v191 = vld [vmem:[%s0 + $0x2c0] sm:$0xf]
  %v192 = vld [vmem:[%s0 + $0x2c4] sm:$0xf]
  %v193 = vld [vmem:[%s0 + $0x2c8] sm:$0xf]
  %v194 = vld [vmem:[%s0 + $0x2cc] sm:$0xf]
  %v195 = vld [vmem:[%s0 + $0x2d0] sm:$0xf]
  %v196 = vld [vmem:[%s0 + $0x2d4] sm:$0xf]
  %v197 = vld [vmem:[%s0 + $0x2d8] sm:$0xf]
  %v198 = vld [vmem:[%s0 + $0x2dc] sm:$0xf]
  %v199 = vld [vmem:[%s0 + $0x2e0] sm:$0xf]
  %v200 = vld [vmem:[%s0 + $0x2e4] sm:$0xf]
  %v201 = vld [vmem:[%s0 + $0x2e8] sm:$0xf]
  %v202 = vld [vmem:[%s0 + $0x2ec] sm:$0xf]
  %v203 = vld [vmem:[%s0 + $0x2f0] sm:$0xf]
  %v204 = vld [vmem:[%s0 + $0x2f4] sm:$0xf]
  %v205 = vld [vmem:[%s0 + $0x2f8] sm:$0xf]
  %v206 = vld [vmem:[%s0 + $0x2fc] sm:$0xf]
  %v207 = vld [vmem:[%s0 + $0x300] sm:$0xf]
  %v208 = vld [vmem:[%s0 + $0x304] sm:$0xf]
  %v209 = vld [vmem:[%s0 + $0x308] sm:$0xf]
  %v210 = vld [vmem:[%s0 + $0x30c] sm:$0xf]
  %v211 = vld [vmem:[%s0 + $0x310] sm:$0xf]
  %v212 = vld [vmem:[%s0 + $0x314] sm:$0xf]
  %v213 = vld [vmem:[%s0 + $0x318] sm:$0xf]
  %v214 = vld [vmem:[%s0 + $0x31c] sm:$0xf]
  %v215 = vld [vmem:[%s0 + $0x320] sm:$0xf]
  %v216 = vld [vmem:[%s0 + $0x324] sm:$0xf]
  %v217 = vld [vmem:[%s0 + $0x328] sm:$0xf]
  %v218 = vld [vmem:[%s0 + $0x32c] sm:$0xf]
  %v219 = vld [vmem:[%s0 + $0x330] sm:$0xf]
  %v220 = vld [vmem:[%s0 + $0x334] sm:$0xf]
  %v221 = vld [vmem:[%s0 + $0x338] sm:$0xf]
  %v222 = vld [vmem:[%s0 + $0x33c] sm:$0xf]
  %v223 = vld [vmem:[%s0 + $0x340] sm:$0xf]
  %v224 = vld [vmem:[%s0 + $0x344] sm:$0xf]
  %v225 = vld [vmem:[%s0 + $0x348] sm:$0xf]
  %v226 = vld [vmem:[%s0 + $0x34c] sm:$0xf]
  %v227 = vld [vmem:[%s0 + $0x350] sm:$0xf]
  %v228 = vld [vmem:[%s0 + $0x354] sm:$0xf]
  %v229 = vld [vmem:[%s0 + $0x358] sm:$0xf]
  %v230 = vld [vmem:[%s0 + $0x35c] sm:$0xf]
  %v231 = vld [vmem:[%s0 + $0x360] sm:$0xf]
  %v232 = vld [vmem:[%s0 + $0x364] sm:$0xf]
  %v233 = vld [vmem:[%s0 + $0x368] sm:$0xf]
  %v234 = vld [vmem:[%s0 + $0x36c] sm:$0xf]
  %v235 = vld [vmem:[%s0 + $0x370] sm:$0xf]
  %v236 = vld [vmem:[%s0 + $0x374] sm:$0xf]
  %v237 = vld [vmem:[%s0 + $0x378] sm:$0xf]
  %v238 = vld [vmem:[%s0 + $0x37c] sm:$0xf]
  %v239 = vld [vmem:[%s0 + $0x380] sm:$0xf]
  %v240 = vld [vmem:[%s0 + $0x384] sm:$0xf]
  %v241 = vld [vmem:[%s0 + $0x388] sm:$0xf]
  %v242 = vld [vmem:[%s0 + $0x38c] sm:$0xf]
  %v243 = vld [vmem:[%s0 + $0x390] sm:$0xf]
  %v244 = vld [vmem:[%s0 + $0x394] sm:$0xf]
  %v245 = vld [vmem:[%s0 + $0x398] sm:$0xf]
  %v246 = vld [vmem:[%s0 + $0x39c] sm:$0xf]
  %v247 = vld [vmem:[%s0 + $0x3a0] sm:$0xf]
  %v248 = vld [vmem:[%s0 + $0x3a4] sm:$0xf]
  %v249 = vld [vmem:[%s0 + $0x3a8] sm:$0xf]
  %v250 = vld [vmem:[%s0 + $0x3ac] sm:$0xf]
  %v251 = vld [vmem:[%s0 + $0x3b0] sm:$0xf]
  %v252 = vld [vmem:[%s0 + $0x3b4] sm:$0xf]
  %v253 = vld [vmem:[%s0 + $0x3b8] sm:$0xf]
  %v254 = vld [vmem:[%s0 + $0x3bc] sm:$0xf]
  %v255 = vld [vmem:[%s0 + $0x3c0] sm:$0xf]
  %v256 = vld [vmem:[%s0 + $0x3c4] sm:$0xf]
  %v257 = vld [vmem:[%s0 + $0x3c8] sm:$0xf]
  %v258 = vld [vmem:[%s0 + $0x3cc] sm:$0xf]
  %v259 = vld [vmem:[%s0 + $0x3d0] sm:$0xf]
  %v260 = vld [vmem:[%s0 + $0x3d4] sm:$0xf]
  %v261 = vld [vmem:[%s0 + $0x3d8] sm:$0xf]
  %v262 = vld [vmem:[%s0 + $0x3dc] sm:$0xf]
  %v263 = vld [vmem:[%s0 + $0x3e0] sm:$0xf]
  %v264 = vld [vmem:[%s0 + $0x3e4] sm:$0xf]
  %v265 = vld [vmem:[%s0 + $0x3e8] sm:$0xf]
  %v266 = vld [vmem:[%s0 + $0x3ec] sm:$0xf]
  %v267 = vld [vmem:[%s0 + $0x3f0] sm:$0xf]
  %v268 = vld [vmem:[%s0 + $0x3f4] sm:$0xf]
  %v269 = vld [vmem:[%s0 + $0x3f8] sm:$0xf]
  %v270 = vld [vmem:[%s0 + $0x3fc] sm:$0xf]
  %v271 = vld [vmem:[%s0 + $0x400] sm:$0xf]
  %v272 = vld [vmem:[%s0 + $0x404] sm:$0xf]
  %v273 = vld [vmem:[%s0 + $0x408] sm:$0xf]
  %v274 = vld [vmem:[%s0 + $0x40c] sm:$0xf]
  %v275 = vld [vmem:[%s0 + $0x410] sm:$0xf]
  %v276 = vld [vmem:[%s0 + $0x414] sm:$0xf]
  %v277 = vld [vmem:[%s0 + $0x418] sm:$0xf]
  %v278 = vld [vmem:[%s0 + $0x41c] sm:$0xf]
  %v279 = vld [vmem:[%s0 + $0x420] sm:$0xf]
  %v280 = vld [vmem:[%s0 + $0x424] sm:$0xf]
  %v281 = vld [vmem:[%s0 + $0x428] sm:$0xf]
  %v282 = vld [vmem:[%s0 + $0x42c] sm:$0xf]
  %v283 = vld [vmem:[%s0 + $0x430] sm:$0xf]
  %v284 = vld [vmem:[%s0 + $0x434] sm:$0xf]
  %v285 = vld [vmem:[%s0 + $0x438] sm:$0xf]
  %v286 = vld [vmem:[%s0 + $0x43c] sm:$0xf]
  %v287 = vld [vmem:[%s0 + $0x440] sm:$0xf]
  %v288 = vld [vmem:[%s0 + $0x444] sm:$0xf]
  %v289 = vld [vmem:[%s0 + $0x448] sm:$0xf]
  %v290 = vld [vmem:[%s0 + $0x44c] sm:$0xf]
  %v291 = vld [vmem:[%s0 + $0x450] sm:$0xf]
  %v292 = vld [vmem:[%s0 + $0x454] sm:$0xf]
  %v293 = vld [vmem:[%s0 + $0x458] sm:$0xf]
  %v294 = vld [vmem:[%s0 + $0x45c] sm:$0xf]
  %v295 = vld [vmem:[%s0 + $0x460] sm:$0xf]
  %v296 = vld [vmem:[%s0 + $0x464] sm:$0xf]
  %v297 = vld [vmem:[%s0 + $0x468] sm:$0xf]
  %v298 = vld [vmem:[%s0 + $0x46c] sm:$0xf]
  %v299 = vld [vmem:[%s0 + $0x470] sm:$0xf]
  %v300 = vld [vmem:[%s0 + $0x474] sm:$0xf]
  %v301 = vld [vmem:[%s0 + $0x478] sm:$0xf]
  %v302 = vld [vmem:[%s0 + $0x47c] sm:$0xf]
  %v303 = vld [vmem:[%s0 + $0x480] sm:$0xf]
  %v304 = vld [vmem:[%s0 + $0x484] sm:$0xf]
  %v305 = vld [vmem:[%s0 + $0x488] sm:$0xf]
  %v306 = vld [vmem:[%s0 + $0x48c] sm:$0xf]
  %v307 = vld [vmem:[%s0 + $0x490] sm:$0xf]
  %v308 = vld [vmem:[%s0 + $0x494] sm:$0xf]
  %v309 = vld [vmem:[%s0 + $0x498] sm:$0xf]
  %v310 = vld [vmem:[%s0 + $0x49c] sm:$0xf]
  %v311 = vld [vmem:[%s0 + $0x4a0] sm:$0xf]
  %v312 = vld [vmem:[%s0 + $0x4a4] sm:$0xf]
  %v313 = vld [vmem:[%s0 + $0x4a8] sm:$0xf]
  %v314 = vld [vmem:[%s0 + $0x4ac] sm:$0xf]
  %v315 = vld [vmem:[%s0 + $0x4b0] sm:$0xf]
  %v316 = vld [vmem:[%s0 + $0x4b4] sm:$0xf]
  %v317 = vld [vmem:[%s0 + $0x4b8] sm:$0xf]
  %v318 = vld [vmem:[%s0 + $0x4bc] sm:$0xf]
  %v319 = vld [vmem:[%s0 + $0x4c0] sm:$0xf]
  %v320 = vld [vmem:[%s0 + $0x4c4] sm:$0xf]
  %v321 = vld [vmem:[%s0 + $0x4c8] sm:$0xf]
  %v322 = vld [vmem:[%s0 + $0x4cc] sm:$0xf]
  %v323 = vld [vmem:[%s0 + $0x4d0] sm:$0xf]
  %v324 = vld [vmem:[%s0 + $0x4d4] sm:$0xf]
  %v325 = vld [vmem:[%s0 + $0x4d8] sm:$0xf]
  %v326 = vld [vmem:[%s0 + $0x4dc] sm:$0xf]
  %v327 = vld [vmem:[%s0 + $0x4e0] sm:$0xf]
  %v328 = vld [vmem:[%s0 + $0x4e4] sm:$0xf]
  %v329 = vld [vmem:[%s0 + $0x4e8] sm:$0xf]
  %v330 = vld [vmem:[%s0 + $0x4ec] sm:$0xf]
  %v331 = vld [vmem:[%s0 + $0x4f0] sm:$0xf]
  %v332 = vld [vmem:[%s0 + $0x4f4] sm:$0xf]
  %v333 = vld [vmem:[%s0 + $0x4f8] sm:$0xf]
  %v334 = vld [vmem:[%s0 + $0x4fc] sm:$0xf]
  %v335 = vld [vmem:[%s0 + $0x500] sm:$0xf]
  %v336 = vld [vmem:[%s0 + $0x504] sm:$0xf]
  %v337 = vld [vmem:[%s0 + $0x508] sm:$0xf]
  %v338 = vld [vmem:[%s0 + $0x50c] sm:$0xf]
  %v339 = vld [vmem:[%s0 + $0x510] sm:$0xf]
  %v340 = vld [vmem:[%s0 + $0x514] sm:$0xf]
  %v341 = vld [vmem:[%s0 + $0x518] sm:$0xf]
  %v342 = vld [vmem:[%s0 + $0x51c] sm:$0xf]
  %v343 = vld [vmem:[%s0 + $0x520] sm:$0xf]
  %v344 = vld [vmem:[%s0 + $0x524] sm:$0xf]
  %v345 = vld [vmem:[%s0 + $0x528] sm:$0xf]
  %v346 = vld [vmem:[%s0 + $0x52c] sm:$0xf]
  %v347 = vld [vmem:[%s0 + $0x530] sm:$0xf]
  %v348 = vld [vmem:[%s0 + $0x534] sm:$0xf]
  %v349 = vld [vmem:[%s0 + $0x538] sm:$0xf]
  %v350 = vld [vmem:[%s0 + $0x53c] sm:$0xf]
  %v351 = vld [vmem:[%s0 + $0x540] sm:$0xf]
  %v352 = vld [vmem:[%s0 + $0x544] sm:$0xf]
  %v353 = vld [vmem:[%s0 + $0x548] sm:$0xf]
  %v354 = vld [vmem:[%s0 + $0x54c] sm:$0xf]
  %v355 = vld [vmem:[%s0 + $0x550] sm:$0xf]
  %v356 = vld [vmem:[%s0 + $0x554] sm:$0xf]
  %v357 = vld [vmem:[%s0 + $0x558] sm:$0xf]
  %v358 = vld [vmem:[%s0 + $0x55c] sm:$0xf]
  %v359 = vld [vmem:[%s0 + $0x560] sm:$0xf]
  %v360 = vld [vmem:[%s0 + $0x564] sm:$0xf]
  %v361 = vld [vmem:[%s0 + $0x568] sm:$0xf]
  %v362 = vld [vmem:[%s0 + $0x56c] sm:$0xf]
  %v363 = vld [vmem:[%s0 + $0x570] sm:$0xf]
  %v364 = vld [vmem:[%s0 + $0x574] sm:$0xf]
  %v365 = vld [vmem:[%s0 + $0x578] sm:$0xf]
  %v366 = vld [vmem:[%s0 + $0x57c] sm:$0xf]
  %v367 = vld [vmem:[%s1] sm:$0xff]
  %v368 = vld [vmem:[%s1 + $0x8] sm:$0xff]
  %v369 = vld [vmem:[%s1 + $0x10] sm:$0xff]
  %v370 = vld [vmem:[%s1 + $0x18] sm:$0xff]
  %v371 = vld [vmem:[%s1 + $0x20] sm:$0xff]
  %v372 = vld [vmem:[%s1 + $0x28] sm:$0xff]
  %v373 = vld [vmem:[%s1 + $0x30] sm:$0xff]
  %v374 = vld [vmem:[%s1 + $0x38] sm:$0xff]
  %v375 = vld [vmem:[%s1 + $0x40] sm:$0xff]
  %v376 = vld [vmem:[%s1 + $0x48] sm:$0xff]
  %v377 = vld [vmem:[%s1 + $0x50] sm:$0xff]
  %v378 = vld [vmem:[%s1 + $0x58] sm:$0xff]
  %v379 = vld [vmem:[%s1 + $0x60] sm:$0xff]
  %v380 = vld [vmem:[%s1 + $0x68] sm:$0xff]
  %v381 = vld [vmem:[%s1 + $0x70] sm:$0xff]
  %v382 = vld [vmem:[%s1 + $0x78] sm:$0xff]
  %v735 = vunpack.c.l.b16 %v15
  %v736 = vunpack.c.l.b16 %v16
  %v737 = vunpack.c.l.b16 %v17
  %v738 = vunpack.c.l.b16 %v18
  %v739 = vunpack.c.l.b16 %v19
  %v740 = vunpack.c.l.b16 %v20
  %v741 = vunpack.c.l.b16 %v21
  %v742 = vunpack.c.l.b16 %v22
  %v743 = vunpack.c.l.b16 %v23
  %v744 = vunpack.c.l.b16 %v24
  %v745 = vunpack.c.l.b16 %v25
  %v746 = vunpack.c.l.b16 %v26
  %v747 = vunpack.c.l.b16 %v27
  %v748 = vunpack.c.l.b16 %v28
  %v749 = vunpack.c.l.b16 %v29
  %v750 = vunpack.c.l.b16 %v30
  %v751 = vunpack.c.l.b16 %v31
  %v752 = vunpack.c.l.b16 %v32
  %v753 = vunpack.c.l.b16 %v33
  %v754 = vunpack.c.l.b16 %v34
  %v755 = vunpack.c.l.b16 %v35
  %v756 = vunpack.c.l.b16 %v36
  %v757 = vunpack.c.l.b16 %v37
  %v758 = vunpack.c.l.b16 %v38
  %v759 = vunpack.c.l.b16 %v39
  %v760 = vunpack.c.l.b16 %v40
  %v761 = vunpack.c.l.b16 %v41
  %v762 = vunpack.c.l.b16 %v42
  %v763 = vunpack.c.l.b16 %v43
  %v764 = vunpack.c.l.b16 %v44
  %v765 = vunpack.c.l.b16 %v45
  %v766 = vunpack.c.l.b16 %v46
  %v767 = vunpack.c.l.b16 %v47
  %v768 = vunpack.c.l.b16 %v48
  %v769 = vunpack.c.l.b16 %v49
  %v770 = vunpack.c.l.b16 %v50
  %v771 = vunpack.c.l.b16 %v51
  %v772 = vunpack.c.l.b16 %v52
  %v773 = vunpack.c.l.b16 %v53
  %v774 = vunpack.c.l.b16 %v54
  %v775 = vunpack.c.l.b16 %v55
  %v776 = vunpack.c.l.b16 %v56
  %v777 = vunpack.c.l.b16 %v57
  %v778 = vunpack.c.l.b16 %v58
  %v779 = vunpack.c.l.b16 %v59
  %v780 = vunpack.c.l.b16 %v60
  %v781 = vunpack.c.l.b16 %v61
  %v782 = vunpack.c.l.b16 %v62
  %v783 = vunpack.c.l.b16 %v63
  %v784 = vunpack.c.l.b16 %v64
  %v785 = vunpack.c.l.b16 %v65
  %v786 = vunpack.c.l.b16 %v66
  %v787 = vunpack.c.l.b16 %v67
  %v788 = vunpack.c.l.b16 %v68
  %v789 = vunpack.c.l.b16 %v69
  %v790 = vunpack.c.l.b16 %v70
  %v791 = vunpack.c.l.b16 %v71
  %v792 = vunpack.c.l.b16 %v72
  %v793 = vunpack.c.l.b16 %v73
  %v794 = vunpack.c.l.b16 %v74
  %v795 = vunpack.c.l.b16 %v75
  %v796 = vunpack.c.l.b16 %v76
  %v797 = vunpack.c.l.b16 %v77
  %v798 = vunpack.c.l.b16 %v78
  %v799 = vunpack.c.l.b16 %v79
  %v800 = vunpack.c.l.b16 %v80
  %v801 = vunpack.c.l.b16 %v81
  %v802 = vunpack.c.l.b16 %v82
  %v803 = vunpack.c.l.b16 %v83
  %v804 = vunpack.c.l.b16 %v84
  %v805 = vunpack.c.l.b16 %v85
  %v806 = vunpack.c.l.b16 %v86
  %v807 = vunpack.c.l.b16 %v87
  %v808 = vunpack.c.l.b16 %v88
  %v809 = vunpack.c.l.b16 %v89
  %v810 = vunpack.c.l.b16 %v90
  %v811 = vunpack.c.l.b16 %v91
  %v812 = vunpack.c.l.b16 %v92
  %v813 = vunpack.c.l.b16 %v93
  %v814 = vunpack.c.l.b16 %v94
  %v815 = vunpack.c.l.b16 %v95
  %v816 = vunpack.c.l.b16 %v96
  %v817 = vunpack.c.l.b16 %v97
  %v818 = vunpack.c.l.b16 %v98
  %v819 = vunpack.c.l.b16 %v99
  %v820 = vunpack.c.l.b16 %v100
  %v821 = vunpack.c.l.b16 %v101
  %v822 = vunpack.c.l.b16 %v102
  %v823 = vunpack.c.l.b16 %v103
  %v824 = vunpack.c.l.b16 %v104
  %v825 = vunpack.c.l.b16 %v105
  %v826 = vunpack.c.l.b16 %v106
  %v827 = vunpack.c.l.b16 %v107
  %v828 = vunpack.c.l.b16 %v108
  %v829 = vunpack.c.l.b16 %v109
  %v830 = vunpack.c.l.b16 %v110
  %v831 = vunpack.c.l.b16 %v111
  %v832 = vunpack.c.l.b16 %v112
  %v833 = vunpack.c.l.b16 %v113
  %v834 = vunpack.c.l.b16 %v114
  %v835 = vunpack.c.l.b16 %v115
  %v836 = vunpack.c.l.b16 %v116
  %v837 = vunpack.c.l.b16 %v117
  %v838 = vunpack.c.l.b16 %v118
  %v839 = vunpack.c.l.b16 %v119
  %v840 = vunpack.c.l.b16 %v120
  %v841 = vunpack.c.l.b16 %v121
  %v842 = vunpack.c.l.b16 %v122
  %v843 = vunpack.c.l.b16 %v123
  %v844 = vunpack.c.l.b16 %v124
  %v845 = vunpack.c.l.b16 %v125
  %v846 = vunpack.c.l.b16 %v126
  %v847 = vunpack.c.l.b16 %v127
  %v848 = vunpack.c.l.b16 %v128
  %v849 = vunpack.c.l.b16 %v129
  %v850 = vunpack.c.l.b16 %v130
  %v851 = vunpack.c.l.b16 %v131
  %v852 = vunpack.c.l.b16 %v132
  %v853 = vunpack.c.l.b16 %v133
  %v854 = vunpack.c.l.b16 %v134
  %v855 = vunpack.c.l.b16 %v135
  %v856 = vunpack.c.l.b16 %v136
  %v857 = vunpack.c.l.b16 %v137
  %v858 = vunpack.c.l.b16 %v138
  %v859 = vunpack.c.l.b16 %v139
  %v860 = vunpack.c.l.b16 %v140
  %v861 = vunpack.c.l.b16 %v141
  %v862 = vunpack.c.l.b16 %v142
  %v863 = vunpack.c.l.b16 %v143
  %v864 = vunpack.c.l.b16 %v144
  %v865 = vunpack.c.l.b16 %v145
  %v866 = vunpack.c.l.b16 %v146
  %v867 = vunpack.c.l.b16 %v147
  %v868 = vunpack.c.l.b16 %v148
  %v869 = vunpack.c.l.b16 %v149
  %v870 = vunpack.c.l.b16 %v150
  %v871 = vunpack.c.l.b16 %v151
  %v872 = vunpack.c.l.b16 %v152
  %v873 = vunpack.c.l.b16 %v153
  %v874 = vunpack.c.l.b16 %v154
  %v875 = vunpack.c.l.b16 %v155
  %v876 = vunpack.c.l.b16 %v156
  %v877 = vunpack.c.l.b16 %v157
  %v878 = vunpack.c.l.b16 %v158
  %v879 = vunpack.c.l.b16 %v159
  %v880 = vunpack.c.l.b16 %v160
  %v881 = vunpack.c.l.b16 %v161
  %v882 = vunpack.c.l.b16 %v162
  %v883 = vunpack.c.l.b16 %v163
  %v884 = vunpack.c.l.b16 %v164
  %v885 = vunpack.c.l.b16 %v165
  %v886 = vunpack.c.l.b16 %v166
  %v887 = vunpack.c.l.b16 %v167
  %v888 = vunpack.c.l.b16 %v168
  %v889 = vunpack.c.l.b16 %v169
  %v890 = vunpack.c.l.b16 %v170
  %v891 = vunpack.c.l.b16 %v171
  %v892 = vunpack.c.l.b16 %v172
  %v893 = vunpack.c.l.b16 %v173
  %v894 = vunpack.c.l.b16 %v174
  %v895 = vunpack.c.l.b16 %v175
  %v896 = vunpack.c.l.b16 %v176
  %v897 = vunpack.c.l.b16 %v177
  %v898 = vunpack.c.l.b16 %v178
  %v899 = vunpack.c.l.b16 %v179
  %v900 = vunpack.c.l.b16 %v180
  %v901 = vunpack.c.l.b16 %v181
  %v902 = vunpack.c.l.b16 %v182
  %v903 = vunpack.c.l.b16 %v183
  %v904 = vunpack.c.l.b16 %v184
  %v905 = vunpack.c.l.b16 %v185
  %v906 = vunpack.c.l.b16 %v186
  %v907 = vunpack.c.l.b16 %v187
  %v908 = vunpack.c.l.b16 %v188
  %v909 = vunpack.c.l.b16 %v189
  %v910 = vunpack.c.l.b16 %v190
  %v911 = vunpack.c.l.b16 %v191
  %v912 = vunpack.c.l.b16 %v192
  %v913 = vunpack.c.l.b16 %v193
  %v914 = vunpack.c.l.b16 %v194
  %v915 = vunpack.c.l.b16 %v195
  %v916 = vunpack.c.l.b16 %v196
  %v917 = vunpack.c.l.b16 %v197
  %v918 = vunpack.c.l.b16 %v198
  %v919 = vunpack.c.l.b16 %v199
  %v920 = vunpack.c.l.b16 %v200
  %v921 = vunpack.c.l.b16 %v201
  %v922 = vunpack.c.l.b16 %v202
  %v923 = vunpack.c.l.b16 %v203
  %v924 = vunpack.c.l.b16 %v204
  %v925 = vunpack.c.l.b16 %v205
  %v926 = vunpack.c.l.b16 %v206
  %v927 = vunpack.c.l.b16 %v207
  %v928 = vunpack.c.l.b16 %v208
  %v929 = vunpack.c.l.b16 %v209
  %v930 = vunpack.c.l.b16 %v210
  %v931 = vunpack.c.l.b16 %v211
  %v932 = vunpack.c.l.b16 %v212
  %v933 = vunpack.c.l.b16 %v213
  %v934 = vunpack.c.l.b16 %v214
  %v935 = vunpack.c.l.b16 %v215
  %v936 = vunpack.c.l.b16 %v216
  %v937 = vunpack.c.l.b16 %v217
  %v938 = vunpack.c.l.b16 %v218
  %v939 = vunpack.c.l.b16 %v219
  %v940 = vunpack.c.l.b16 %v220
  %v941 = vunpack.c.l.b16 %v221
  %v942 = vunpack.c.l.b16 %v222
  %v943 = vunpack.c.l.b16 %v223
  %v944 = vunpack.c.l.b16 %v224
  %v945 = vunpack.c.l.b16 %v225
  %v946 = vunpack.c.l.b16 %v226
  %v947 = vunpack.c.l.b16 %v227
  %v948 = vunpack.c.l.b16 %v228
  %v949 = vunpack.c.l.b16 %v229
  %v950 = vunpack.c.l.b16 %v230
  %v951 = vunpack.c.l.b16 %v231
  %v952 = vunpack.c.l.b16 %v232
  %v953 = vunpack.c.l.b16 %v233
  %v954 = vunpack.c.l.b16 %v234
  %v955 = vunpack.c.l.b16 %v235
  %v956 = vunpack.c.l.b16 %v236
  %v957 = vunpack.c.l.b16 %v237
  %v958 = vunpack.c.l.b16 %v238
  %v959 = vunpack.c.l.b16 %v239
  %v960 = vunpack.c.l.b16 %v240
  %v961 = vunpack.c.l.b16 %v241
  %v962 = vunpack.c.l.b16 %v242
  %v963 = vunpack.c.l.b16 %v243
  %v964 = vunpack.c.l.b16 %v244
  %v965 = vunpack.c.l.b16 %v245
  %v966 = vunpack.c.l.b16 %v246
  %v967 = vunpack.c.l.b16 %v247
  %v968 = vunpack.c.l.b16 %v248
  %v969 = vunpack.c.l.b16 %v249
  %v970 = vunpack.c.l.b16 %v250
  %v971 = vunpack.c.l.b16 %v251
  %v972 = vunpack.c.l.b16 %v252
  %v973 = vunpack.c.l.b16 %v253
  %v974 = vunpack.c.l.b16 %v254
  %v975 = vunpack.c.l.b16 %v255
  %v976 = vunpack.c.l.b16 %v256
  %v977 = vunpack.c.l.b16 %v257
  %v978 = vunpack.c.l.b16 %v258
  %v979 = vunpack.c.l.b16 %v259
  %v980 = vunpack.c.l.b16 %v260
  %v981 = vunpack.c.l.b16 %v261
  %v982 = vunpack.c.l.b16 %v262
  %v983 = vunpack.c.l.b16 %v263
  %v984 = vunpack.c.l.b16 %v264
  %v985 = vunpack.c.l.b16 %v265
  %v986 = vunpack.c.l.b16 %v266
  %v987 = vunpack.c.l.b16 %v267
  %v988 = vunpack.c.l.b16 %v268
  %v989 = vunpack.c.l.b16 %v269
  %v990 = vunpack.c.l.b16 %v270
  %v991 = vunpack.c.l.b16 %v271
  %v992 = vunpack.c.l.b16 %v272
  %v993 = vunpack.c.l.b16 %v273
  %v994 = vunpack.c.l.b16 %v274
  %v995 = vunpack.c.l.b16 %v275
  %v996 = vunpack.c.l.b16 %v276
  %v997 = vunpack.c.l.b16 %v277
  %v998 = vunpack.c.l.b16 %v278
  %v999 = vunpack.c.l.b16 %v279
  %v1000 = vunpack.c.l.b16 %v280
  %v1001 = vunpack.c.l.b16 %v281
  %v1002 = vunpack.c.l.b16 %v282
  %v1003 = vunpack.c.l.b16 %v283
  %v1004 = vunpack.c.l.b16 %v284
  %v1005 = vunpack.c.l.b16 %v285
  %v1006 = vunpack.c.l.b16 %v286
  %v1007 = vunpack.c.l.b16 %v287
  %v1008 = vunpack.c.l.b16 %v288
  %v1009 = vunpack.c.l.b16 %v289
  %v1010 = vunpack.c.l.b16 %v290
  %v1011 = vunpack.c.l.b16 %v291
  %v1012 = vunpack.c.l.b16 %v292
  %v1013 = vunpack.c.l.b16 %v293
  %v1014 = vunpack.c.l.b16 %v294
  %v1015 = vunpack.c.l.b16 %v295
  %v1016 = vunpack.c.l.b16 %v296
  %v1017 = vunpack.c.l.b16 %v297
  %v1018 = vunpack.c.l.b16 %v298
  %v1019 = vunpack.c.l.b16 %v299
  %v1020 = vunpack.c.l.b16 %v300
  %v1021 = vunpack.c.l.b16 %v301
  %v1022 = vunpack.c.l.b16 %v302
  %v1023 = vunpack.c.l.b16 %v303
  %v1024 = vunpack.c.l.b16 %v304
  %v1025 = vunpack.c.l.b16 %v305
  %v1026 = vunpack.c.l.b16 %v306
  %v1027 = vunpack.c.l.b16 %v307
  %v1028 = vunpack.c.l.b16 %v308
  %v1029 = vunpack.c.l.b16 %v309
  %v1030 = vunpack.c.l.b16 %v310
  %v1031 = vunpack.c.l.b16 %v311
  %v1032 = vunpack.c.l.b16 %v312
  %v1033 = vunpack.c.l.b16 %v313
  %v1034 = vunpack.c.l.b16 %v314
  %v1035 = vunpack.c.l.b16 %v315
  %v1036 = vunpack.c.l.b16 %v316
  %v1037 = vunpack.c.l.b16 %v317
  %v1038 = vunpack.c.l.b16 %v318
  %v1039 = vunpack.c.l.b16 %v319
  %v1040 = vunpack.c.l.b16 %v320
  %v1041 = vunpack.c.l.b16 %v321
  %v1042 = vunpack.c.l.b16 %v322
  %v1043 = vunpack.c.l.b16 %v323
  %v1044 = vunpack.c.l.b16 %v324
  %v1045 = vunpack.c.l.b16 %v325
  %v1046 = vunpack.c.l.b16 %v326
  %v1047 = vunpack.c.l.b16 %v327
  %v1048 = vunpack.c.l.b16 %v328
  %v1049 = vunpack.c.l.b16 %v329
  %v1050 = vunpack.c.l.b16 %v330
  %v1051 = vunpack.c.l.b16 %v331
  %v1052 = vunpack.c.l.b16 %v332
  %v1053 = vunpack.c.l.b16 %v333
  %v1054 = vunpack.c.l.b16 %v334
  %v1055 = vunpack.c.l.b16 %v335
  %v1056 = vunpack.c.l.b16 %v336
  %v1057 = vunpack.c.l.b16 %v337
  %v1058 = vunpack.c.l.b16 %v338
  %v1059 = vunpack.c.l.b16 %v339
  %v1060 = vunpack.c.l.b16 %v340
  %v1061 = vunpack.c.l.b16 %v341
  %v1062 = vunpack.c.l.b16 %v342
  %v1063 = vunpack.c.l.b16 %v343
  %v1064 = vunpack.c.l.b16 %v344
  %v1065 = vunpack.c.l.b16 %v345
  %v1066 = vunpack.c.l.b16 %v346
  %v1067 = vunpack.c.l.b16 %v347
  %v1068 = vunpack.c.l.b16 %v348
  %v1069 = vunpack.c.l.b16 %v349
  %v1070 = vunpack.c.l.b16 %v350
  %v1071 = vunpack.c.l.b16 %v351
  %v1072 = vunpack.c.l.b16 %v352
  %v1073 = vunpack.c.l.b16 %v353
  %v1074 = vunpack.c.l.b16 %v354
  %v1075 = vunpack.c.l.b16 %v355
  %v1076 = vunpack.c.l.b16 %v356
  %v1077 = vunpack.c.l.b16 %v357
  %v1078 = vunpack.c.l.b16 %v358
  %v1079 = vunpack.c.l.b16 %v359
  %v1080 = vunpack.c.l.b16 %v360
  %v1081 = vunpack.c.l.b16 %v361
  %v1082 = vunpack.c.l.b16 %v362
  %v1083 = vunpack.c.l.b16 %v363
  %v1084 = vunpack.c.l.b16 %v364
  %v1085 = vunpack.c.l.b16 %v365
  %v1086 = vunpack.c.l.b16 %v366
  %v1087 = vpack.c.b16 %v736, %v735
  %v1088 = vpack.c.b16 %v738, %v737
  %v1089 = vpack.c.b16 %v740, %v739
  %v1090 = vpack.c.b16 %v742, %v741
  %v1091 = vpack.c.b16 %v744, %v743
  %v1092 = vpack.c.b16 %v746, %v745
  %v1093 = vpack.c.b16 %v748, %v747
  %v1094 = vpack.c.b16 %v750, %v749
  %v1095 = vpack.c.b16 %v752, %v751
  %v1096 = vpack.c.b16 %v754, %v753
  %v1097 = vpack.c.b16 %v756, %v755
  %v1098 = vpack.c.b16 %v758, %v757
  %v1099 = vpack.c.b16 %v760, %v759
  %v1100 = vpack.c.b16 %v762, %v761
  %v1101 = vpack.c.b16 %v764, %v763
  %v1102 = vpack.c.b16 %v766, %v765
  %v1103 = vpack.c.b16 %v768, %v767
  %v1104 = vpack.c.b16 %v770, %v769
  %v1105 = vpack.c.b16 %v772, %v771
  %v1106 = vpack.c.b16 %v774, %v773
  %v1107 = vpack.c.b16 %v776, %v775
  %v1108 = vpack.c.b16 %v778, %v777
  %v1109 = vpack.c.b16 %v780, %v779
  %v1110 = vpack.c.b16 %v782, %v781
  %v1111 = vpack.c.b16 %v784, %v783
  %v1112 = vpack.c.b16 %v786, %v785
  %v1113 = vpack.c.b16 %v788, %v787
  %v1114 = vpack.c.b16 %v790, %v789
  %v1115 = vpack.c.b16 %v792, %v791
  %v1116 = vpack.c.b16 %v794, %v793
  %v1117 = vpack.c.b16 %v796, %v795
  %v1118 = vpack.c.b16 %v798, %v797
  %v1119 = vpack.c.b16 %v800, %v799
  %v1120 = vpack.c.b16 %v802, %v801
  %v1121 = vpack.c.b16 %v804, %v803
  %v1122 = vpack.c.b16 %v806, %v805
  %v1123 = vpack.c.b16 %v808, %v807
  %v1124 = vpack.c.b16 %v810, %v809
  %v1125 = vpack.c.b16 %v812, %v811
  %v1126 = vpack.c.b16 %v814, %v813
  %v1127 = vpack.c.b16 %v816, %v815
  %v1128 = vpack.c.b16 %v818, %v817
  %v1129 = vpack.c.b16 %v820, %v819
  %v1130 = vpack.c.b16 %v822, %v821
  %v1131 = vpack.c.b16 %v824, %v823
  %v1132 = vpack.c.b16 %v826, %v825
  %v1133 = vpack.c.b16 %v828, %v827
  %v1134 = vpack.c.b16 %v830, %v829
  %v1135 = vpack.c.b16 %v832, %v831
  %v1136 = vpack.c.b16 %v834, %v833
  %v1137 = vpack.c.b16 %v836, %v835
  %v1138 = vpack.c.b16 %v838, %v837
  %v1139 = vpack.c.b16 %v840, %v839
  %v1140 = vpack.c.b16 %v842, %v841
  %v1141 = vpack.c.b16 %v844, %v843
  %v1142 = vpack.c.b16 %v846, %v845
  %v1143 = vpack.c.b16 %v848, %v847
  %v1144 = vpack.c.b16 %v850, %v849
  %v1145 = vpack.c.b16 %v852, %v851
  %v1146 = vpack.c.b16 %v854, %v853
  %v1147 = vpack.c.b16 %v856, %v855
  %v1148 = vpack.c.b16 %v858, %v857
  %v1149 = vpack.c.b16 %v860, %v859
  %v1150 = vpack.c.b16 %v862, %v861
  %v1151 = vpack.c.b16 %v864, %v863
  %v1152 = vpack.c.b16 %v866, %v865
  %v1153 = vpack.c.b16 %v868, %v867
  %v1154 = vpack.c.b16 %v870, %v869
  %v1155 = vpack.c.b16 %v872, %v871
  %v1156 = vpack.c.b16 %v874, %v873
  %v1157 = vpack.c.b16 %v876, %v875
  %v1158 = vpack.c.b16 %v878, %v877
  %v1159 = vpack.c.b16 %v880, %v879
  %v1160 = vpack.c.b16 %v882, %v881
  %v1161 = vpack.c.b16 %v884, %v883
  %v1162 = vpack.c.b16 %v886, %v885
  %v1163 = vpack.c.b16 %v888, %v887
  %v1164 = vpack.c.b16 %v890, %v889
  %v1165 = vpack.c.b16 %v892, %v891
  %v1166 = vpack.c.b16 %v894, %v893
  %v1167 = vpack.c.b16 %v896, %v895
  %v1168 = vpack.c.b16 %v898, %v897
  %v1169 = vpack.c.b16 %v900, %v899
  %v1170 = vpack.c.b16 %v902, %v901
  %v1171 = vpack.c.b16 %v904, %v903
  %v1172 = vpack.c.b16 %v906, %v905
  %v1173 = vpack.c.b16 %v908, %v907
  %v1174 = vpack.c.b16 %v910, %v909
  %v1175 = vpack.c.b16 %v912, %v911
  %v1176 = vpack.c.b16 %v914, %v913
  %v1177 = vpack.c.b16 %v916, %v915
  %v1178 = vpack.c.b16 %v918, %v917
  %v1179 = vpack.c.b16 %v920, %v919
  %v1180 = vpack.c.b16 %v922, %v921
  %v1181 = vpack.c.b16 %v924, %v923
  %v1182 = vpack.c.b16 %v926, %v925
  %v1183 = vpack.c.b16 %v928, %v927
  %v1184 = vpack.c.b16 %v930, %v929
  %v1185 = vpack.c.b16 %v932, %v931
  %v1186 = vpack.c.b16 %v934, %v933
  %v1187 = vpack.c.b16 %v936, %v935
  %v1188 = vpack.c.b16 %v938, %v937
  %v1189 = vpack.c.b16 %v940, %v939
  %v1190 = vpack.c.b16 %v942, %v941
  %v1191 = vpack.c.b16 %v944, %v943
  %v1192 = vpack.c.b16 %v946, %v945
  %v1193 = vpack.c.b16 %v948, %v947
  %v1194 = vpack.c.b16 %v950, %v949
  %v1195 = vpack.c.b16 %v952, %v951
  %v1196 = vpack.c.b16 %v954, %v953
  %v1197 = vpack.c.b16 %v956, %v955
  %v1198 = vpack.c.b16 %v958, %v957
  %v1199 = vpack.c.b16 %v960, %v959
  %v1200 = vpack.c.b16 %v962, %v961
  %v1201 = vpack.c.b16 %v964, %v963
  %v1202 = vpack.c.b16 %v966, %v965
  %v1203 = vpack.c.b16 %v968, %v967
  %v1204 = vpack.c.b16 %v970, %v969
  %v1205 = vpack.c.b16 %v972, %v971
  %v1206 = vpack.c.b16 %v974, %v973
  %v1207 = vpack.c.b16 %v976, %v975
  %v1208 = vpack.c.b16 %v978, %v977
  %v1209 = vpack.c.b16 %v980, %v979
  %v1210 = vpack.c.b16 %v982, %v981
  %v1211 = vpack.c.b16 %v984, %v983
  %v1212 = vpack.c.b16 %v986, %v985
  %v1213 = vpack.c.b16 %v988, %v987
  %v1214 = vpack.c.b16 %v990, %v989
  %v1215 = vpack.c.b16 %v992, %v991
  %v1216 = vpack.c.b16 %v994, %v993
  %v1217 = vpack.c.b16 %v996, %v995
  %v1218 = vpack.c.b16 %v998, %v997
  %v1219 = vpack.c.b16 %v1000, %v999
  %v1220 = vpack.c.b16 %v1002, %v1001
  %v1221 = vpack.c.b16 %v1004, %v1003
  %v1222 = vpack.c.b16 %v1006, %v1005
  %v1223 = vpack.c.b16 %v1008, %v1007
  %v1224 = vpack.c.b16 %v1010, %v1009
  %v1225 = vpack.c.b16 %v1012, %v1011
  %v1226 = vpack.c.b16 %v1014, %v1013
  %v1227 = vpack.c.b16 %v1016, %v1015
  %v1228 = vpack.c.b16 %v1018, %v1017
  %v1229 = vpack.c.b16 %v1020, %v1019
  %v1230 = vpack.c.b16 %v1022, %v1021
  %v1231 = vpack.c.b16 %v1024, %v1023
  %v1232 = vpack.c.b16 %v1026, %v1025
  %v1233 = vpack.c.b16 %v1028, %v1027
  %v1234 = vpack.c.b16 %v1030, %v1029
  %v1235 = vpack.c.b16 %v1032, %v1031
  %v1236 = vpack.c.b16 %v1034, %v1033
  %v1237 = vpack.c.b16 %v1036, %v1035
  %v1238 = vpack.c.b16 %v1038, %v1037
  %v1239 = vpack.c.b16 %v1040, %v1039
  %v1240 = vpack.c.b16 %v1042, %v1041
  %v1241 = vpack.c.b16 %v1044, %v1043
  %v1242 = vpack.c.b16 %v1046, %v1045
  %v1243 = vpack.c.b16 %v1048, %v1047
  %v1244 = vpack.c.b16 %v1050, %v1049
  %v1245 = vpack.c.b16 %v1052, %v1051
  %v1246 = vpack.c.b16 %v1054, %v1053
  %v1247 = vpack.c.b16 %v1056, %v1055
  %v1248 = vpack.c.b16 %v1058, %v1057
  %v1249 = vpack.c.b16 %v1060, %v1059
  %v1250 = vpack.c.b16 %v1062, %v1061
  %v1251 = vpack.c.b16 %v1064, %v1063
  %v1252 = vpack.c.b16 %v1066, %v1065
  %v1253 = vpack.c.b16 %v1068, %v1067
  %v1254 = vpack.c.b16 %v1070, %v1069
  %v1255 = vpack.c.b16 %v1072, %v1071
  %v1256 = vpack.c.b16 %v1074, %v1073
  %v1257 = vpack.c.b16 %v1076, %v1075
  %v1258 = vpack.c.b16 %v1078, %v1077
  %v1259 = vpack.c.b16 %v1080, %v1079
  %v1260 = vpack.c.b16 %v1082, %v1081
  %v1261 = vpack.c.b16 %v1084, %v1083
  %v1262 = vpack.c.b16 %v1086, %v1085
  %v1455 = vunpack.c.l.b16 %v367
  %v1456 = vunpack.c.h.b16 %v367
  %v1457 = vunpack.c.l.b16 %v368
  %v1458 = vunpack.c.h.b16 %v368
  %v1459 = vunpack.c.l.b16 %v369
  %v1460 = vunpack.c.h.b16 %v369
  %v1461 = vunpack.c.l.b16 %v370
  %v1462 = vunpack.c.h.b16 %v370
  %v1463 = vunpack.c.l.b16 %v371
  %v1464 = vunpack.c.h.b16 %v371
  %v1465 = vunpack.c.l.b16 %v372
  %v1466 = vunpack.c.h.b16 %v372
  %v1467 = vunpack.c.l.b16 %v373
  %v1468 = vunpack.c.h.b16 %v373
  %v1469 = vunpack.c.l.b16 %v374
  %v1470 = vunpack.c.h.b16 %v374
  %v1471 = vunpack.c.l.b16 %v375
  %v1472 = vunpack.c.h.b16 %v375
  %v1473 = vunpack.c.l.b16 %v376
  %v1474 = vunpack.c.h.b16 %v376
  %v1475 = vunpack.c.l.b16 %v377
  %v1476 = vunpack.c.h.b16 %v377
  %v1477 = vunpack.c.l.b16 %v378
  %v1478 = vunpack.c.h.b16 %v378
  %v1479 = vunpack.c.l.b16 %v379
  %v1480 = vunpack.c.h.b16 %v379
  %v1481 = vunpack.c.l.b16 %v380
  %v1482 = vunpack.c.h.b16 %v380
  %v1483 = vunpack.c.l.b16 %v381
  %v1484 = vunpack.c.h.b16 %v381
  %v1485 = vunpack.c.l.b16 %v382
  %v1486 = vunpack.c.h.b16 %v382
  %v1487 = vpack.c.b16 %v1457, %v1455
  %v1488 = vpack.c.b16 %v1458, %v1456
  %v1489 = vpack.c.b16 %v1461, %v1459
  %v1490 = vpack.c.b16 %v1462, %v1460
  %v1491 = vpack.c.b16 %v1465, %v1463
  %v1492 = vpack.c.b16 %v1466, %v1464
  %v1493 = vpack.c.b16 %v1469, %v1467
  %v1494 = vpack.c.b16 %v1470, %v1468
  %v1495 = vpack.c.b16 %v1473, %v1471
  %v1496 = vpack.c.b16 %v1474, %v1472
  %v1497 = vpack.c.b16 %v1477, %v1475
  %v1498 = vpack.c.b16 %v1478, %v1476
  %v1499 = vpack.c.b16 %v1481, %v1479
  %v1500 = vpack.c.b16 %v1482, %v1480
  %v1501 = vpack.c.b16 %v1485, %v1483
  %v1502 = vpack.c.b16 %v1486, %v1484
  %1519 = vmatprep.subr.bf16.mxu0 %v1488
  %1520 = vmatpush1.bf16.msra.mxu0 %v1487
  %1521 = vmatprep.subr.bf16.mxu0 %v1490
  %1522 = vmatpush1.bf16.msra.mxu0 %v1489
  %1523 = vmatprep.subr.bf16.mxu0 %v1492
  %1524 = vmatpush1.bf16.msra.mxu0 %v1491
  %1525 = vmatprep.subr.bf16.mxu0 %v1494
  %1526 = vmatpush1.bf16.msra.mxu0 %v1493
  %1527 = vmatprep.subr.bf16.mxu0 %v1496
  %1528 = vmatpush1.bf16.msra.mxu0 %v1495
  %1529 = vmatprep.subr.bf16.mxu0 %v1498
  %1530 = vmatpush1.bf16.msra.mxu0 %v1497
  %1531 = vmatprep.subr.bf16.mxu0 %v1500
  %1532 = vmatpush1.bf16.msra.mxu0 %v1499
  %1533 = vmatprep.subr.bf16.mxu0 %v1502
  %1534 = vmatpush1.bf16.msra.mxu0 %v1501
  %1535 = vmatprep.subr.bf16.mxu0 0
  %1536 = vmatpush1.bf16.msra.mxu0 0
  %1537 = vmatprep.subr.bf16.mxu0 0
  %1538 = vmatpush1.bf16.msra.mxu0 0
  %1539 = vmatprep.subr.bf16.mxu0 0
  %1540 = vmatpush1.bf16.msra.mxu0 0
  %1541 = vmatprep.subr.bf16.mxu0 0
  %1542 = vmatpush1.bf16.msra.mxu0 0
  %1543 = vmatprep.subr.bf16.mxu0 0
  %1544 = vmatpush1.bf16.msra.mxu0 0
  %1545 = vmatprep.subr.bf16.mxu0 0
  %1546 = vmatpush1.bf16.msra.mxu0 0
  %1547 = vmatprep.subr.bf16.mxu0 0
  %1548 = vmatpush1.bf16.msra.mxu0 0
  %1549 = vmatprep.subr.bf16.mxu0 0
  %1550 = vmatpush1.bf16.msra.mxu0 0
  %1551 = vmatprep.mubr.bf16.mxu0 0
  %1552 = vmatmul.mubr.bf16.gmra.mrb[0].mxu0 %v1087
  %v1553 = vpop.f32.mrb[0].mxu0
  %v1554 = vadd.f32 0.0, %v1553
  %v1555 = vpop.f32.mrb[0].mxu0
  %v1556 = vadd.f32 0.0, %v1555
  %v1557 = vpop.f32.mrb[0].mxu0
  %v1558 = vadd.f32 0.0, %v1557
  %v1559 = vpop.f32.mrb[0].mxu0
  %v1560 = vadd.f32 0.0, %v1559
  %1561 = vmatprep.mubr.bf16.mxu0 0
  %1562 = vmatmul.mubr.bf16.gmra.mrb[0].mxu0 %v1088
  %v1563 = vpop.f32.mrb[0].mxu0
  %v1564 = vadd.f32 0.0, %v1563
  %v1565 = vpop.f32.mrb[0].mxu0
  %v1566 = vadd.f32 0.0, %v1565
  %v1567 = vpop.f32.mrb[0].mxu0
  %v1568 = vadd.f32 0.0, %v1567
  %v1569 = vpop.f32.mrb[0].mxu0
  %v1570 = vadd.f32 0.0, %v1569
  %1571 = vmatprep.mubr.bf16.mxu0 0
  %1572 = vmatmul.mubr.bf16.gmra.mrb[0].mxu0 %v1089
  %v1573 = vpop.f32.mrb[0].mxu0
  %v1574 = vadd.f32 0.0, %v1573
  %v1575 = vpop.f32.mrb[0].mxu0
  %v1576 = vadd.f32 0.0, %v1575
  %v1577 = vpop.f32.mrb[0].mxu0
  %v1578 = vadd.f32 0.0, %v1577
  %v1579 = vpop.f32.mrb[0].mxu0
  %v1580 = vadd.f32 0.0, %v1579
  %1581 = vmatprep.mubr.bf16.mxu0 0
  %1582 = vmatmul.mubr.bf16.gmra.mrb[0].mxu0 %v1090
  %v1583 = vpop.f32.mrb[0].mxu0
  %v1584 = vadd.f32 0.0, %v1583
  %v1585 = vpop.f32.mrb[0].mxu0
  %v1586 = vadd.f32 0.0, %v1585
  %v1587 = vpop.f32.mrb[0].mxu0
  %v1588 = vadd.f32 0.0, %v1587
  %v1589 = vpop.f32.mrb[0].mxu0
  %v1590 = vadd.f32 0.0, %v1589
  %1591 = vmatprep.mubr.bf16.mxu0 0
  %1592 = vmatmul.mubr.bf16.gmra.mrb[0].mxu0 %v1091
  %v1593 = vpop.f32.mrb[0].mxu0
  %v1594 = vadd.f32 0.0, %v1593
  %v1595 = vpop.f32.mrb[0].mxu0
  %v1596 = vadd.f32 0.0, %v1595
  %v1597 = vpop.f32.mrb[0].mxu0
  %v1598 = vadd.f32 0.0, %v1597
  %v1599 = vpop.f32.mrb[0].mxu0
  %v1600 = vadd.f32 0.0, %v1599
  %1601 = vmatprep.mubr.bf16.mxu0 0
  %1602 = vmatmul.mubr.bf16.gmra.mrb[0].mxu0 %v1092
  %v1603 = vpop.f32.mrb[0].mxu0
  %v1604 = vadd.f32 0.0, %v1603
  %v1605 = vpop.f32.mrb[0].mxu0
  %v1606 = vadd.f32 0.0, %v1605
  %v1607 = vpop.f32.mrb[0].mxu0
  %v1608 = vadd.f32 0.0, %v1607
  %v1609 = vpop.f32.mrb[0].mxu0
  %v1610 = vadd.f32 0.0, %v1609
  %1611 = vmatprep.mubr.bf16.mxu0 0
  %1612 = vmatmul.mubr.bf16.gmra.mrb[0].mxu0 %v1093
  %v1613 = vpop.f32.mrb[0].mxu0
  %v1614 = vadd.f32 0.0, %v1613
  %v1615 = vpop.f32.mrb[0].mxu0
  %v1616 = vadd.f32 0.0, %v1615
  %v1617 = vpop.f32.mrb[0].mxu0
  %v1618 = vadd.f32 0.0, %v1617
  %v1619 = vpop.f32.mrb[0].mxu0
  %v1620 = vadd.f32 0.0, %v1619
  %1621 = vmatprep.mubr.bf16.mxu0 0
  %1622 = vmatmul.mubr.bf16.gmra.mrb[0].mxu0 %v1094
  %v1623 = vpop.f32.mrb[0].mxu0
  %v1624 = vadd.f32 0.0, %v1623
  %v1625 = vpop.f32.mrb[0].mxu0
  %v1626 = vadd.f32 0.0, %v1625
  %v1627 = vpop.f32.mrb[0].mxu0
  %v1628 = vadd.f32 0.0, %v1627
  %v1629 = vpop.f32.mrb[0].mxu0
  %v1630 = vadd.f32 0.0, %v1629
  %1631 = vmatprep.mubr.bf16.mxu0 0
  %1632 = vmatmul.mubr.bf16.gmra.mrb[0].mxu0 %v1095
  %v1633 = vpop.f32.mrb[0].mxu0
  %v1634 = vadd.f32 0.0, %v1633
  %v1635 = vpop.f32.mrb[0].mxu0
  %v1636 = vadd.f32 0.0, %v1635
  %v1637 = vpop.f32.mrb[0].mxu0
  %v1638 = vadd.f32 0.0, %v1637
  %v1639 = vpop.f32.mrb[0].mxu0
  %v1640 = vadd.f32 0.0, %v1639
  %1641 = vmatprep.mubr.bf16.mxu0 0
  %1642 = vmatmul.mubr.bf16.gmra.mrb[0].mxu0 %v1096
  %v1643 = vpop.f32.mrb[0].mxu0
  %v1644 = vadd.f32 0.0, %v1643
  %v1645 = vpop.f32.mrb[0].mxu0
  %v1646 = vadd.f32 0.0, %v1645
  %v1647 = vpop.f32.mrb[0].mxu0
  %v1648 = vadd.f32 0.0, %v1647
  %v1649 = vpop.f32.mrb[0].mxu0
  %v1650 = vadd.f32 0.0, %v1649
  %1651 = vmatprep.mubr.bf16.mxu0 0
  %1652 = vmatmul.mubr.bf16.gmra.mrb[0].mxu0 %v1097
  %v1653 = vpop.f32.mrb[0].mxu0
  %v1654 = vadd.f32 0.0, %v1653
  %v1655 = vpop.f32.mrb[0].mxu0
  %v1656 = vadd.f32 0.0, %v1655
  %v1657 = vpop.f32.mrb[0].mxu0
  %v1658 = vadd.f32 0.0, %v1657
  %v1659 = vpop.f32.mrb[0].mxu0
  %v1660 = vadd.f32 0.0, %v1659
  %1661 = vmatprep.mubr.bf16.mxu0 0
  %1662 = vmatmul.mubr.bf16.gmra.mrb[0].mxu0 %v1098
  %v1663 = vpop.f32.mrb[0].mxu0
  %v1664 = vadd.f32 0.0, %v1663
  %v1665 = vpop.f32.mrb[0].mxu0
  %v1666 = vadd.f32 0.0, %v1665
  %v1667 = vpop.f32.mrb[0].mxu0
  %v1668 = vadd.f32 0.0, %v1667
  %v1669 = vpop.f32.mrb[0].mxu0
  %v1670 = vadd.f32 0.0, %v1669
  %1671 = vmatprep.mubr.bf16.mxu0 0
  %1672 = vmatmul.mubr.bf16.gmra.mrb[0].mxu0 %v1099
  %v1673 = vpop.f32.mrb[0].mxu0
  %v1674 = vadd.f32 0.0, %v1673
  %v1675 = vpop.f32.mrb[0].mxu0
  %v1676 = vadd.f32 0.0, %v1675
  %v1677 = vpop.f32.mrb[0].mxu0
  %v1678 = vadd.f32 0.0, %v1677
  %v1679 = vpop.f32.mrb[0].mxu0
  %v1680 = vadd.f32 0.0, %v1679
  %1681 = vmatprep.mubr.bf16.mxu0 0
  %1682 = vmatmul.mubr.bf16.gmra.mrb[0].mxu0 %v1100
  %v1683 = vpop.f32.mrb[0].mxu0
  %v1684 = vadd.f32 0.0, %v1683
  %v1685 = vpop.f32.mrb[0].mxu0
  %v1686 = vadd.f32 0.0, %v1685
  %v1687 = vpop.f32.mrb[0].mxu0
  %v1688 = vadd.f32 0.0, %v1687
  %v1689 = vpop.f32.mrb[0].mxu0
  %v1690 = vadd.f32 0.0, %v1689
  %1691 = vmatprep.mubr.bf16.mxu0 0
  %1692 = vmatmul.mubr.bf16.gmra.mrb[0].mxu0 %v1101
  %v1693 = vpop.f32.mrb[0].mxu0
  %v1694 = vadd.f32 0.0, %v1693
  %v1695 = vpop.f32.mrb[0].mxu0
  %v1696 = vadd.f32 0.0, %v1695
  %v1697 = vpop.f32.mrb[0].mxu0
  %v1698 = vadd.f32 0.0, %v1697
  %v1699 = vpop.f32.mrb[0].mxu0
  %v1700 = vadd.f32 0.0, %v1699
  %1701 = vmatprep.mubr.bf16.mxu0 0
  %1702 = vmatmul.mubr.bf16.gmra.mrb[0].mxu0 %v1102
  %v1703 = vpop.f32.mrb[0].mxu0
  %v1704 = vadd.f32 0.0, %v1703
  %v1705 = vpop.f32.mrb[0].mxu0
  %v1706 = vadd.f32 0.0, %v1705
  %v1707 = vpop.f32.mrb[0].mxu0
  %v1708 = vadd.f32 0.0, %v1707
  %v1709 = vpop.f32.mrb[0].mxu0
  %v1710 = vadd.f32 0.0, %v1709
  %1711 = vmatprep.mubr.bf16.mxu0 0
  %1712 = vmatmul.mubr.bf16.gmra.mrb[0].mxu0 %v1103
  %v1713 = vpop.f32.mrb[0].mxu0
  %v1714 = vadd.f32 0.0, %v1713
  %v1715 = vpop.f32.mrb[0].mxu0
  %v1716 = vadd.f32 0.0, %v1715
  %v1717 = vpop.f32.mrb[0].mxu0
  %v1718 = vadd.f32 0.0, %v1717
  %v1719 = vpop.f32.mrb[0].mxu0
  %v1720 = vadd.f32 0.0, %v1719
  %1721 = vmatprep.mubr.bf16.mxu0 0
  %1722 = vmatmul.mubr.bf16.gmra.mrb[0].mxu0 %v1104
  %v1723 = vpop.f32.mrb[0].mxu0
  %v1724 = vadd.f32 0.0, %v1723
  %v1725 = vpop.f32.mrb[0].mxu0
  %v1726 = vadd.f32 0.0, %v1725
  %v1727 = vpop.f32.mrb[0].mxu0
  %v1728 = vadd.f32 0.0, %v1727
  %v1729 = vpop.f32.mrb[0].mxu0
  %v1730 = vadd.f32 0.0, %v1729
  %1731 = vmatprep.mubr.bf16.mxu0 0
  %1732 = vmatmul.mubr.bf16.gmra.mrb[0].mxu0 %v1105
  %v1733 = vpop.f32.mrb[0].mxu0
  %v1734 = vadd.f32 0.0, %v1733
  %v1735 = vpop.f32.mrb[0].mxu0
  %v1736 = vadd.f32 0.0, %v1735
  %v1737 = vpop.f32.mrb[0].mxu0
  %v1738 = vadd.f32 0.0, %v1737
  %v1739 = vpop.f32.mrb[0].mxu0
  %v1740 = vadd.f32 0.0, %v1739
  %1741 = vmatprep.mubr.bf16.mxu0 0
  %1742 = vmatmul.mubr.bf16.gmra.mrb[0].mxu0 %v1106
  %v1743 = vpop.f32.mrb[0].mxu0
  %v1744 = vadd.f32 0.0, %v1743
  %v1745 = vpop.f32.mrb[0].mxu0
  %v1746 = vadd.f32 0.0, %v1745
  %v1747 = vpop.f32.mrb[0].mxu0
  %v1748 = vadd.f32 0.0, %v1747
  %v1749 = vpop.f32.mrb[0].mxu0
  %v1750 = vadd.f32 0.0, %v1749
  %1751 = vmatprep.mubr.bf16.mxu0 0
  %1752 = vmatmul.mubr.bf16.gmra.mrb[0].mxu0 %v1107
  %v1753 = vpop.f32.mrb[0].mxu0
  %v1754 = vadd.f32 0.0, %v1753
  %v1755 = vpop.f32.mrb[0].mxu0
  %v1756 = vadd.f32 0.0, %v1755
  %v1757 = vpop.f32.mrb[0].mxu0
  %v1758 = vadd.f32 0.0, %v1757
  %v1759 = vpop.f32.mrb[0].mxu0
  %v1760 = vadd.f32 0.0, %v1759
  %1761 = vmatprep.mubr.bf16.mxu0 0
  %1762 = vmatmul.mubr.bf16.gmra.mrb[0].mxu0 %v1108
  %v1763 = vpop.f32.mrb[0].mxu0
  %v1764 = vadd.f32 0.0, %v1763
  %v1765 = vpop.f32.mrb[0].mxu0
  %v1766 = vadd.f32 0.0, %v1765
  %v1767 = vpop.f32.mrb[0].mxu0
  %v1768 = vadd.f32 0.0, %v1767
  %v1769 = vpop.f32.mrb[0].mxu0
  %v1770 = vadd.f32 0.0, %v1769
  %1771 = vmatprep.mubr.bf16.mxu0 0
  %1772 = vmatmul.mubr.bf16.gmra.mrb[0].mxu0 %v1109
  %v1773 = vpop.f32.mrb[0].mxu0
  %v1774 = vadd.f32 0.0, %v1773
  %v1775 = vpop.f32.mrb[0].mxu0
  %v1776 = vadd.f32 0.0, %v1775
  %v1777 = vpop.f32.mrb[0].mxu0
  %v1778 = vadd.f32 0.0, %v1777
  %v1779 = vpop.f32.mrb[0].mxu0
  %v1780 = vadd.f32 0.0, %v1779
  %1781 = vmatprep.mubr.bf16.mxu0 0
  %1782 = vmatmul.mubr.bf16.gmra.mrb[0].mxu0 %v1110
  %v1783 = vpop.f32.mrb[0].mxu0
  %v1784 = vadd.f32 0.0, %v1783
  %v1785 = vpop.f32.mrb[0].mxu0
  %v1786 = vadd.f32 0.0, %v1785
  %v1787 = vpop.f32.mrb[0].mxu0
  %v1788 = vadd.f32 0.0, %v1787
  %v1789 = vpop.f32.mrb[0].mxu0
  %v1790 = vadd.f32 0.0, %v1789
  %1791 = vmatprep.mubr.bf16.mxu0 0
  %1792 = vmatmul.mubr.bf16.gmra.mrb[0].mxu0 %v1111
  %v1793 = vpop.f32.mrb[0].mxu0
  %v1794 = vadd.f32 0.0, %v1793
  %v1795 = vpop.f32.mrb[0].mxu0
  %v1796 = vadd.f32 0.0, %v1795
  %v1797 = vpop.f32.mrb[0].mxu0
  %v1798 = vadd.f32 0.0, %v1797
  %v1799 = vpop.f32.mrb[0].mxu0
  %v1800 = vadd.f32 0.0, %v1799
  %1801 = vmatprep.mubr.bf16.mxu0 0
  %1802 = vmatmul.mubr.bf16.gmra.mrb[0].mxu0 %v1112
  %v1803 = vpop.f32.mrb[0].mxu0
  %v1804 = vadd.f32 0.0, %v1803
  %v1805 = vpop.f32.mrb[0].mxu0
  %v1806 = vadd.f32 0.0, %v1805
  %v1807 = vpop.f32.mrb[0].mxu0
  %v1808 = vadd.f32 0.0, %v1807
  %v1809 = vpop.f32.mrb[0].mxu0
  %v1810 = vadd.f32 0.0, %v1809
  %1811 = vmatprep.mubr.bf16.mxu0 0
  %1812 = vmatmul.mubr.bf16.gmra.mrb[0].mxu0 %v1113
  %v1813 = vpop.f32.mrb[0].mxu0
  %v1814 = vadd.f32 0.0, %v1813
  %v1815 = vpop.f32.mrb[0].mxu0
  %v1816 = vadd.f32 0.0, %v1815
  %v1817 = vpop.f32.mrb[0].mxu0
  %v1818 = vadd.f32 0.0, %v1817
  %v1819 = vpop.f32.mrb[0].mxu0
  %v1820 = vadd.f32 0.0, %v1819
  %1821 = vmatprep.mubr.bf16.mxu0 0
  %1822 = vmatmul.mubr.bf16.gmra.mrb[0].mxu0 %v1114
  %v1823 = vpop.f32.mrb[0].mxu0
  %v1824 = vadd.f32 0.0, %v1823
  %v1825 = vpop.f32.mrb[0].mxu0
  %v1826 = vadd.f32 0.0, %v1825
  %v1827 = vpop.f32.mrb[0].mxu0
  %v1828 = vadd.f32 0.0, %v1827
  %v1829 = vpop.f32.mrb[0].mxu0
  %v1830 = vadd.f32 0.0, %v1829
  %1831 = vmatprep.mubr.bf16.mxu0 0
  %1832 = vmatmul.mubr.bf16.gmra.mrb[0].mxu0 %v1115
  %v1833 = vpop.f32.mrb[0].mxu0
  %v1834 = vadd.f32 0.0, %v1833
  %v1835 = vpop.f32.mrb[0].mxu0
  %v1836 = vadd.f32 0.0, %v1835
  %v1837 = vpop.f32.mrb[0].mxu0
  %v1838 = vadd.f32 0.0, %v1837
  %v1839 = vpop.f32.mrb[0].mxu0
  %v1840 = vadd.f32 0.0, %v1839
  %1841 = vmatprep.mubr.bf16.mxu0 0
  %1842 = vmatmul.mubr.bf16.gmra.mrb[0].mxu0 %v1116
  %v1843 = vpop.f32.mrb[0].mxu0
  %v1844 = vadd.f32 0.0, %v1843
  %v1845 = vpop.f32.mrb[0].mxu0
  %v1846 = vadd.f32 0.0, %v1845
  %v1847 = vpop.f32.mrb[0].mxu0
  %v1848 = vadd.f32 0.0, %v1847
  %v1849 = vpop.f32.mrb[0].mxu0
  %v1850 = vadd.f32 0.0, %v1849
  %1851 = vmatprep.mubr.bf16.mxu0 0
  %1852 = vmatmul.mubr.bf16.gmra.mrb[0].mxu0 %v1117
  %v1853 = vpop.f32.mrb[0].mxu0
  %v1854 = vadd.f32 0.0, %v1853
  %v1855 = vpop.f32.mrb[0].mxu0
  %v1856 = vadd.f32 0.0, %v1855
  %v1857 = vpop.f32.mrb[0].mxu0
  %v1858 = vadd.f32 0.0, %v1857
  %v1859 = vpop.f32.mrb[0].mxu0
  %v1860 = vadd.f32 0.0, %v1859
  %1861 = vmatprep.mubr.bf16.mxu0 0
  %1862 = vmatmul.mubr.bf16.gmra.mrb[0].mxu0 %v1118
  %v1863 = vpop.f32.mrb[0].mxu0
  %v1864 = vadd.f32 0.0, %v1863
  %v1865 = vpop.f32.mrb[0].mxu0
  %v1866 = vadd.f32 0.0, %v1865
  %v1867 = vpop.f32.mrb[0].mxu0
  %v1868 = vadd.f32 0.0, %v1867
  %v1869 = vpop.f32.mrb[0].mxu0
  %v1870 = vadd.f32 0.0, %v1869
  %1871 = vmatprep.mubr.bf16.mxu0 0
  %1872 = vmatmul.mubr.bf16.gmra.mrb[0].mxu0 %v1119
  %v1873 = vpop.f32.mrb[0].mxu0
  %v1874 = vadd.f32 0.0, %v1873
  %v1875 = vpop.f32.mrb[0].mxu0
  %v1876 = vadd.f32 0.0, %v1875
  %v1877 = vpop.f32.mrb[0].mxu0
  %v1878 = vadd.f32 0.0, %v1877
  %v1879 = vpop.f32.mrb[0].mxu0
  %v1880 = vadd.f32 0.0, %v1879
  %1881 = vmatprep.mubr.bf16.mxu0 0
  %1882 = vmatmul.mubr.bf16.gmra.mrb[0].mxu0 %v1120
  %v1883 = vpop.f32.mrb[0].mxu0
  %v1884 = vadd.f32 0.0, %v1883
  %v1885 = vpop.f32.mrb[0].mxu0
  %v1886 = vadd.f32 0.0, %v1885
  %v1887 = vpop.f32.mrb[0].mxu0
  %v1888 = vadd.f32 0.0, %v1887
  %v1889 = vpop.f32.mrb[0].mxu0
  %v1890 = vadd.f32 0.0, %v1889
  %1891 = vmatprep.mubr.bf16.mxu0 0
  %1892 = vmatmul.mubr.bf16.gmra.mrb[0].mxu0 %v1121
  %v1893 = vpop.f32.mrb[0].mxu0
  %v1894 = vadd.f32 0.0, %v1893
  %v1895 = vpop.f32.mrb[0].mxu0
  %v1896 = vadd.f32 0.0, %v1895
  %v1897 = vpop.f32.mrb[0].mxu0
  %v1898 = vadd.f32 0.0, %v1897
  %v1899 = vpop.f32.mrb[0].mxu0
  %v1900 = vadd.f32 0.0, %v1899
  %1901 = vmatprep.mubr.bf16.mxu0 0
  %1902 = vmatmul.mubr.bf16.gmra.mrb[0].mxu0 %v1122
  %v1903 = vpop.f32.mrb[0].mxu0
  %v1904 = vadd.f32 0.0, %v1903
  %v1905 = vpop.f32.mrb[0].mxu0
  %v1906 = vadd.f32 0.0, %v1905
  %v1907 = vpop.f32.mrb[0].mxu0
  %v1908 = vadd.f32 0.0, %v1907
  %v1909 = vpop.f32.mrb[0].mxu0
  %v1910 = vadd.f32 0.0, %v1909
  %1911 = vmatprep.mubr.bf16.mxu0 0
  %1912 = vmatmul.mubr.bf16.gmra.mrb[0].mxu0 %v1123
  %v1913 = vpop.f32.mrb[0].mxu0
  %v1914 = vadd.f32 0.0, %v1913
  %v1915 = vpop.f32.mrb[0].mxu0
  %v1916 = vadd.f32 0.0, %v1915
  %v1917 = vpop.f32.mrb[0].mxu0
  %v1918 = vadd.f32 0.0, %v1917
  %v1919 = vpop.f32.mrb[0].mxu0
  %v1920 = vadd.f32 0.0, %v1919
  %1921 = vmatprep.mubr.bf16.mxu0 0
  %1922 = vmatmul.mubr.bf16.gmra.mrb[0].mxu0 %v1124
  %v1923 = vpop.f32.mrb[0].mxu0
  %v1924 = vadd.f32 0.0, %v1923
  %v1925 = vpop.f32.mrb[0].mxu0
  %v1926 = vadd.f32 0.0, %v1925
  %v1927 = vpop.f32.mrb[0].mxu0
  %v1928 = vadd.f32 0.0, %v1927
  %v1929 = vpop.f32.mrb[0].mxu0
  %v1930 = vadd.f32 0.0, %v1929
  %1931 = vmatprep.mubr.bf16.mxu0 0
  %1932 = vmatmul.mubr.bf16.gmra.mrb[0].mxu0 %v1125
  %v1933 = vpop.f32.mrb[0].mxu0
  %v1934 = vadd.f32 0.0, %v1933
  %v1935 = vpop.f32.mrb[0].mxu0
  %v1936 = vadd.f32 0.0, %v1935
  %v1937 = vpop.f32.mrb[0].mxu0
  %v1938 = vadd.f32 0.0, %v1937
  %v1939 = vpop.f32.mrb[0].mxu0
  %v1940 = vadd.f32 0.0, %v1939
  %1941 = vmatprep.mubr.bf16.mxu0 0
  %1942 = vmatmul.mubr.bf16.gmra.mrb[0].mxu0 %v1126
  %v1943 = vpop.f32.mrb[0].mxu0
  %v1944 = vadd.f32 0.0, %v1943
  %v1945 = vpop.f32.mrb[0].mxu0
  %v1946 = vadd.f32 0.0, %v1945
  %v1947 = vpop.f32.mrb[0].mxu0
  %v1948 = vadd.f32 0.0, %v1947
  %v1949 = vpop.f32.mrb[0].mxu0
  %v1950 = vadd.f32 0.0, %v1949
  %1951 = vmatprep.mubr.bf16.mxu0 0
  %1952 = vmatmul.mubr.bf16.gmra.mrb[0].mxu0 %v1127
  %v1953 = vpop.f32.mrb[0].mxu0
  %v1954 = vadd.f32 0.0, %v1953
  %v1955 = vpop.f32.mrb[0].mxu0
  %v1956 = vadd.f32 0.0, %v1955
  %v1957 = vpop.f32.mrb[0].mxu0
  %v1958 = vadd.f32 0.0, %v1957
  %v1959 = vpop.f32.mrb[0].mxu0
  %v1960 = vadd.f32 0.0, %v1959
  %1961 = vmatprep.mubr.bf16.mxu0 0
  %1962 = vmatmul.mubr.bf16.gmra.mrb[0].mxu0 %v1128
  %v1963 = vpop.f32.mrb[0].mxu0
  %v1964 = vadd.f32 0.0, %v1963
  %v1965 = vpop.f32.mrb[0].mxu0
  %v1966 = vadd.f32 0.0, %v1965
  %v1967 = vpop.f32.mrb[0].mxu0
  %v1968 = vadd.f32 0.0, %v1967
  %v1969 = vpop.f32.mrb[0].mxu0
  %v1970 = vadd.f32 0.0, %v1969
  %1971 = vmatprep.mubr.bf16.mxu0 0
  %1972 = vmatmul.mubr.bf16.gmra.mrb[0].mxu0 %v1129
  %v1973 = vpop.f32.mrb[0].mxu0
  %v1974 = vadd.f32 0.0, %v1973
  %v1975 = vpop.f32.mrb[0].mxu0
  %v1976 = vadd.f32 0.0, %v1975
  %v1977 = vpop.f32.mrb[0].mxu0
  %v1978 = vadd.f32 0.0, %v1977
  %v1979 = vpop.f32.mrb[0].mxu0
  %v1980 = vadd.f32 0.0, %v1979
  %1981 = vmatprep.mubr.bf16.mxu0 0
  %1982 = vmatmul.mubr.bf16.gmra.mrb[0].mxu0 %v1130
  %v1983 = vpop.f32.mrb[0].mxu0
  %v1984 = vadd.f32 0.0, %v1983
  %v1985 = vpop.f32.mrb[0].mxu0
  %v1986 = vadd.f32 0.0, %v1985
  %v1987 = vpop.f32.mrb[0].mxu0
  %v1988 = vadd.f32 0.0, %v1987
  %v1989 = vpop.f32.mrb[0].mxu0
  %v1990 = vadd.f32 0.0, %v1989
  %1991 = vmatprep.mubr.bf16.mxu0 0
  %1992 = vmatmul.mubr.bf16.gmra.mrb[0].mxu0 %v1131
  %v1993 = vpop.f32.mrb[0].mxu0
  %v1994 = vadd.f32 0.0, %v1993
  %v1995 = vpop.f32.mrb[0].mxu0
  %v1996 = vadd.f32 0.0, %v1995
  %v1997 = vpop.f32.mrb[0].mxu0
  %v1998 = vadd.f32 0.0, %v1997
  %v1999 = vpop.f32.mrb[0].mxu0
  %v2000 = vadd.f32 0.0, %v1999
  %2001 = vmatprep.mubr.bf16.mxu0 0
  %2002 = vmatmul.mubr.bf16.gmra.mrb[0].mxu0 %v1132
  %v2003 = vpop.f32.mrb[0].mxu0
  %v2004 = vadd.f32 0.0, %v2003
  %v2005 = vpop.f32.mrb[0].mxu0
  %v2006 = vadd.f32 0.0, %v2005
  %v2007 = vpop.f32.mrb[0].mxu0
  %v2008 = vadd.f32 0.0, %v2007
  %v2009 = vpop.f32.mrb[0].mxu0
  %v2010 = vadd.f32 0.0, %v2009
  %2011 = vmatprep.mubr.bf16.mxu0 0
  %2012 = vmatmul.mubr.bf16.gmra.mrb[0].mxu0 %v1133
  %v2013 = vpop.f32.mrb[0].mxu0
  %v2014 = vadd.f32 0.0, %v2013
  %v2015 = vpop.f32.mrb[0].mxu0
  %v2016 = vadd.f32 0.0, %v2015
  %v2017 = vpop.f32.mrb[0].mxu0
  %v2018 = vadd.f32 0.0, %v2017
  %v2019 = vpop.f32.mrb[0].mxu0
  %v2020 = vadd.f32 0.0, %v2019
  %2021 = vmatprep.mubr.bf16.mxu0 0
  %2022 = vmatmul.mubr.bf16.gmra.mrb[0].mxu0 %v1134
  %v2023 = vpop.f32.mrb[0].mxu0
  %v2024 = vadd.f32 0.0, %v2023
  %v2025 = vpop.f32.mrb[0].mxu0
  %v2026 = vadd.f32 0.0, %v2025
  %v2027 = vpop.f32.mrb[0].mxu0
  %v2028 = vadd.f32 0.0, %v2027
  %v2029 = vpop.f32.mrb[0].mxu0
  %v2030 = vadd.f32 0.0, %v2029
  %2031 = vmatprep.mubr.bf16.mxu0 0
  %2032 = vmatmul.mubr.bf16.gmra.mrb[0].mxu0 %v1135
  %v2033 = vpop.f32.mrb[0].mxu0
  %v2034 = vadd.f32 0.0, %v2033
  %v2035 = vpop.f32.mrb[0].mxu0
  %v2036 = vadd.f32 0.0, %v2035
  %v2037 = vpop.f32.mrb[0].mxu0
  %v2038 = vadd.f32 0.0, %v2037
  %v2039 = vpop.f32.mrb[0].mxu0
  %v2040 = vadd.f32 0.0, %v2039
  %2041 = vmatprep.mubr.bf16.mxu0 0
  %2042 = vmatmul.mubr.bf16.gmra.mrb[0].mxu0 %v1136
  %v2043 = vpop.f32.mrb[0].mxu0
  %v2044 = vadd.f32 0.0, %v2043
  %v2045 = vpop.f32.mrb[0].mxu0
  %v2046 = vadd.f32 0.0, %v2045
  %v2047 = vpop.f32.mrb[0].mxu0
  %v2048 = vadd.f32 0.0, %v2047
  %v2049 = vpop.f32.mrb[0].mxu0
  %v2050 = vadd.f32 0.0, %v2049
  %2051 = vmatprep.mubr.bf16.mxu0 0
  %2052 = vmatmul.mubr.bf16.gmra.mrb[0].mxu0 %v1137
  %v2053 = vpop.f32.mrb[0].mxu0
  %v2054 = vadd.f32 0.0, %v2053
  %v2055 = vpop.f32.mrb[0].mxu0
  %v2056 = vadd.f32 0.0, %v2055
  %v2057 = vpop.f32.mrb[0].mxu0
  %v2058 = vadd.f32 0.0, %v2057
  %v2059 = vpop.f32.mrb[0].mxu0
  %v2060 = vadd.f32 0.0, %v2059
  %2061 = vmatprep.mubr.bf16.mxu0 0
  %2062 = vmatmul.mubr.bf16.gmra.mrb[0].mxu0 %v1138
  %v2063 = vpop.f32.mrb[0].mxu0
  %v2064 = vadd.f32 0.0, %v2063
  %v2065 = vpop.f32.mrb[0].mxu0
  %v2066 = vadd.f32 0.0, %v2065
  %v2067 = vpop.f32.mrb[0].mxu0
  %v2068 = vadd.f32 0.0, %v2067
  %v2069 = vpop.f32.mrb[0].mxu0
  %v2070 = vadd.f32 0.0, %v2069
  %2071 = vmatprep.mubr.bf16.mxu0 0
  %2072 = vmatmul.mubr.bf16.gmra.mrb[0].mxu0 %v1139
  %v2073 = vpop.f32.mrb[0].mxu0
  %v2074 = vadd.f32 0.0, %v2073
  %v2075 = vpop.f32.mrb[0].mxu0
  %v2076 = vadd.f32 0.0, %v2075
  %v2077 = vpop.f32.mrb[0].mxu0
  %v2078 = vadd.f32 0.0, %v2077
  %v2079 = vpop.f32.mrb[0].mxu0
  %v2080 = vadd.f32 0.0, %v2079
  %2081 = vmatprep.mubr.bf16.mxu0 0
  %2082 = vmatmul.mubr.bf16.gmra.mrb[0].mxu0 %v1140
  %v2083 = vpop.f32.mrb[0].mxu0
  %v2084 = vadd.f32 0.0, %v2083
  %v2085 = vpop.f32.mrb[0].mxu0
  %v2086 = vadd.f32 0.0, %v2085
  %v2087 = vpop.f32.mrb[0].mxu0
  %v2088 = vadd.f32 0.0, %v2087
  %v2089 = vpop.f32.mrb[0].mxu0
  %v2090 = vadd.f32 0.0, %v2089
  %2091 = vmatprep.mubr.bf16.mxu0 0
  %2092 = vmatmul.mubr.bf16.gmra.mrb[0].mxu0 %v1141
  %v2093 = vpop.f32.mrb[0].mxu0
  %v2094 = vadd.f32 0.0, %v2093
  %v2095 = vpop.f32.mrb[0].mxu0
  %v2096 = vadd.f32 0.0, %v2095
  %v2097 = vpop.f32.mrb[0].mxu0
  %v2098 = vadd.f32 0.0, %v2097
  %v2099 = vpop.f32.mrb[0].mxu0
  %v2100 = vadd.f32 0.0, %v2099
  %2101 = vmatprep.mubr.bf16.mxu0 0
  %2102 = vmatmul.mubr.bf16.gmra.mrb[0].mxu0 %v1142
  %v2103 = vpop.f32.mrb[0].mxu0
  %v2104 = vadd.f32 0.0, %v2103
  %v2105 = vpop.f32.mrb[0].mxu0
  %v2106 = vadd.f32 0.0, %v2105
  %v2107 = vpop.f32.mrb[0].mxu0
  %v2108 = vadd.f32 0.0, %v2107
  %v2109 = vpop.f32.mrb[0].mxu0
  %v2110 = vadd.f32 0.0, %v2109
  %2111 = vmatprep.mubr.bf16.mxu0 0
  %2112 = vmatmul.mubr.bf16.gmra.mrb[0].mxu0 %v1143
  %v2113 = vpop.f32.mrb[0].mxu0
  %v2114 = vadd.f32 0.0, %v2113
  %v2115 = vpop.f32.mrb[0].mxu0
  %v2116 = vadd.f32 0.0, %v2115
  %v2117 = vpop.f32.mrb[0].mxu0
  %v2118 = vadd.f32 0.0, %v2117
  %v2119 = vpop.f32.mrb[0].mxu0
  %v2120 = vadd.f32 0.0, %v2119
  %2121 = vmatprep.mubr.bf16.mxu0 0
  %2122 = vmatmul.mubr.bf16.gmra.mrb[0].mxu0 %v1144
  %v2123 = vpop.f32.mrb[0].mxu0
  %v2124 = vadd.f32 0.0, %v2123
  %v2125 = vpop.f32.mrb[0].mxu0
  %v2126 = vadd.f32 0.0, %v2125
  %v2127 = vpop.f32.mrb[0].mxu0
  %v2128 = vadd.f32 0.0, %v2127
  %v2129 = vpop.f32.mrb[0].mxu0
  %v2130 = vadd.f32 0.0, %v2129
  %2131 = vmatprep.mubr.bf16.mxu0 0
  %2132 = vmatmul.mubr.bf16.gmra.mrb[0].mxu0 %v1145
  %v2133 = vpop.f32.mrb[0].mxu0
  %v2134 = vadd.f32 0.0, %v2133
  %v2135 = vpop.f32.mrb[0].mxu0
  %v2136 = vadd.f32 0.0, %v2135
  %v2137 = vpop.f32.mrb[0].mxu0
  %v2138 = vadd.f32 0.0, %v2137
  %v2139 = vpop.f32.mrb[0].mxu0
  %v2140 = vadd.f32 0.0, %v2139
  %2141 = vmatprep.mubr.bf16.mxu0 0
  %2142 = vmatmul.mubr.bf16.gmra.mrb[0].mxu0 %v1146
  %v2143 = vpop.f32.mrb[0].mxu0
  %v2144 = vadd.f32 0.0, %v2143
  %v2145 = vpop.f32.mrb[0].mxu0
  %v2146 = vadd.f32 0.0, %v2145
  %v2147 = vpop.f32.mrb[0].mxu0
  %v2148 = vadd.f32 0.0, %v2147
  %v2149 = vpop.f32.mrb[0].mxu0
  %v2150 = vadd.f32 0.0, %v2149
  %2151 = vmatprep.mubr.bf16.mxu0 0
  %2152 = vmatmul.mubr.bf16.gmra.mrb[0].mxu0 %v1147
  %v2153 = vpop.f32.mrb[0].mxu0
  %v2154 = vadd.f32 0.0, %v2153
  %v2155 = vpop.f32.mrb[0].mxu0
  %v2156 = vadd.f32 0.0, %v2155
  %v2157 = vpop.f32.mrb[0].mxu0
  %v2158 = vadd.f32 0.0, %v2157
  %v2159 = vpop.f32.mrb[0].mxu0
  %v2160 = vadd.f32 0.0, %v2159
  %2161 = vmatprep.mubr.bf16.mxu0 0
  %2162 = vmatmul.mubr.bf16.gmra.mrb[0].mxu0 %v1148
  %v2163 = vpop.f32.mrb[0].mxu0
  %v2164 = vadd.f32 0.0, %v2163
  %v2165 = vpop.f32.mrb[0].mxu0
  %v2166 = vadd.f32 0.0, %v2165
  %v2167 = vpop.f32.mrb[0].mxu0
  %v2168 = vadd.f32 0.0, %v2167
  %v2169 = vpop.f32.mrb[0].mxu0
  %v2170 = vadd.f32 0.0, %v2169
  %2171 = vmatprep.mubr.bf16.mxu0 0
  %2172 = vmatmul.mubr.bf16.gmra.mrb[0].mxu0 %v1149
  %v2173 = vpop.f32.mrb[0].mxu0
  %v2174 = vadd.f32 0.0, %v2173
  %v2175 = vpop.f32.mrb[0].mxu0
  %v2176 = vadd.f32 0.0, %v2175
  %v2177 = vpop.f32.mrb[0].mxu0
  %v2178 = vadd.f32 0.0, %v2177
  %v2179 = vpop.f32.mrb[0].mxu0
  %v2180 = vadd.f32 0.0, %v2179
  %2181 = vmatprep.mubr.bf16.mxu0 0
  %2182 = vmatmul.mubr.bf16.gmra.mrb[0].mxu0 %v1150
  %v2183 = vpop.f32.mrb[0].mxu0
  %v2184 = vadd.f32 0.0, %v2183
  %v2185 = vpop.f32.mrb[0].mxu0
  %v2186 = vadd.f32 0.0, %v2185
  %v2187 = vpop.f32.mrb[0].mxu0
  %v2188 = vadd.f32 0.0, %v2187
  %v2189 = vpop.f32.mrb[0].mxu0
  %v2190 = vadd.f32 0.0, %v2189
  %2191 = vmatprep.mubr.bf16.mxu0 0
  %2192 = vmatmul.mubr.bf16.gmra.mrb[0].mxu0 %v1151
  %v2193 = vpop.f32.mrb[0].mxu0
  %v2194 = vadd.f32 0.0, %v2193
  %v2195 = vpop.f32.mrb[0].mxu0
  %v2196 = vadd.f32 0.0, %v2195
  %v2197 = vpop.f32.mrb[0].mxu0
  %v2198 = vadd.f32 0.0, %v2197
  %v2199 = vpop.f32.mrb[0].mxu0
  %v2200 = vadd.f32 0.0, %v2199
  %2201 = vmatprep.mubr.bf16.mxu0 0
  %2202 = vmatmul.mubr.bf16.gmra.mrb[0].mxu0 %v1152
  %v2203 = vpop.f32.mrb[0].mxu0
  %v2204 = vadd.f32 0.0, %v2203
  %v2205 = vpop.f32.mrb[0].mxu0
  %v2206 = vadd.f32 0.0, %v2205
  %v2207 = vpop.f32.mrb[0].mxu0
  %v2208 = vadd.f32 0.0, %v2207
  %v2209 = vpop.f32.mrb[0].mxu0
  %v2210 = vadd.f32 0.0, %v2209
  %2211 = vmatprep.mubr.bf16.mxu0 0
  %2212 = vmatmul.mubr.bf16.gmra.mrb[0].mxu0 %v1153
  %v2213 = vpop.f32.mrb[0].mxu0
  %v2214 = vadd.f32 0.0, %v2213
  %v2215 = vpop.f32.mrb[0].mxu0
  %v2216 = vadd.f32 0.0, %v2215
  %v2217 = vpop.f32.mrb[0].mxu0
  %v2218 = vadd.f32 0.0, %v2217
  %v2219 = vpop.f32.mrb[0].mxu0
  %v2220 = vadd.f32 0.0, %v2219
  %2221 = vmatprep.mubr.bf16.mxu0 0
  %2222 = vmatmul.mubr.bf16.gmra.mrb[0].mxu0 %v1154
  %v2223 = vpop.f32.mrb[0].mxu0
  %v2224 = vadd.f32 0.0, %v2223
  %v2225 = vpop.f32.mrb[0].mxu0
  %v2226 = vadd.f32 0.0, %v2225
  %v2227 = vpop.f32.mrb[0].mxu0
  %v2228 = vadd.f32 0.0, %v2227
  %v2229 = vpop.f32.mrb[0].mxu0
  %v2230 = vadd.f32 0.0, %v2229
  %2231 = vmatprep.mubr.bf16.mxu0 0
  %2232 = vmatmul.mubr.bf16.gmra.mrb[0].mxu0 %v1155
  %v2233 = vpop.f32.mrb[0].mxu0
  %v2234 = vadd.f32 0.0, %v2233
  %v2235 = vpop.f32.mrb[0].mxu0
  %v2236 = vadd.f32 0.0, %v2235
  %v2237 = vpop.f32.mrb[0].mxu0
  %v2238 = vadd.f32 0.0, %v2237
  %v2239 = vpop.f32.mrb[0].mxu0
  %v2240 = vadd.f32 0.0, %v2239
  %2241 = vmatprep.mubr.bf16.mxu0 0
  %2242 = vmatmul.mubr.bf16.gmra.mrb[0].mxu0 %v1156
  %v2243 = vpop.f32.mrb[0].mxu0
  %v2244 = vadd.f32 0.0, %v2243
  %v2245 = vpop.f32.mrb[0].mxu0
  %v2246 = vadd.f32 0.0, %v2245
  %v2247 = vpop.f32.mrb[0].mxu0
  %v2248 = vadd.f32 0.0, %v2247
  %v2249 = vpop.f32.mrb[0].mxu0
  %v2250 = vadd.f32 0.0, %v2249
  %2251 = vmatprep.mubr.bf16.mxu0 0
  %2252 = vmatmul.mubr.bf16.gmra.mrb[0].mxu0 %v1157
  %v2253 = vpop.f32.mrb[0].mxu0
  %v2254 = vadd.f32 0.0, %v2253
  %v2255 = vpop.f32.mrb[0].mxu0
  %v2256 = vadd.f32 0.0, %v2255
  %v2257 = vpop.f32.mrb[0].mxu0
  %v2258 = vadd.f32 0.0, %v2257
  %v2259 = vpop.f32.mrb[0].mxu0
  %v2260 = vadd.f32 0.0, %v2259
  %2261 = vmatprep.mubr.bf16.mxu0 0
  %2262 = vmatmul.mubr.bf16.gmra.mrb[0].mxu0 %v1158
  %v2263 = vpop.f32.mrb[0].mxu0
  %v2264 = vadd.f32 0.0, %v2263
  %v2265 = vpop.f32.mrb[0].mxu0
  %v2266 = vadd.f32 0.0, %v2265
  %v2267 = vpop.f32.mrb[0].mxu0
  %v2268 = vadd.f32 0.0, %v2267
  %v2269 = vpop.f32.mrb[0].mxu0
  %v2270 = vadd.f32 0.0, %v2269
  %2271 = vmatprep.mubr.bf16.mxu0 0
  %2272 = vmatmul.mubr.bf16.gmra.mrb[0].mxu0 %v1159
  %v2273 = vpop.f32.mrb[0].mxu0
  %v2274 = vadd.f32 0.0, %v2273
  %v2275 = vpop.f32.mrb[0].mxu0
  %v2276 = vadd.f32 0.0, %v2275
  %v2277 = vpop.f32.mrb[0].mxu0
  %v2278 = vadd.f32 0.0, %v2277
  %v2279 = vpop.f32.mrb[0].mxu0
  %v2280 = vadd.f32 0.0, %v2279
  %2281 = vmatprep.mubr.bf16.mxu0 0
  %2282 = vmatmul.mubr.bf16.gmra.mrb[0].mxu0 %v1160
  %v2283 = vpop.f32.mrb[0].mxu0
  %v2284 = vadd.f32 0.0, %v2283
  %v2285 = vpop.f32.mrb[0].mxu0
  %v2286 = vadd.f32 0.0, %v2285
  %v2287 = vpop.f32.mrb[0].mxu0
  %v2288 = vadd.f32 0.0, %v2287
  %v2289 = vpop.f32.mrb[0].mxu0
  %v2290 = vadd.f32 0.0, %v2289
  %2291 = vmatprep.mubr.bf16.mxu0 0
  %2292 = vmatmul.mubr.bf16.gmra.mrb[0].mxu0 %v1161
  %v2293 = vpop.f32.mrb[0].mxu0
  %v2294 = vadd.f32 0.0, %v2293
  %v2295 = vpop.f32.mrb[0].mxu0
  %v2296 = vadd.f32 0.0, %v2295
  %v2297 = vpop.f32.mrb[0].mxu0
  %v2298 = vadd.f32 0.0, %v2297
  %v2299 = vpop.f32.mrb[0].mxu0
  %v2300 = vadd.f32 0.0, %v2299
  %2301 = vmatprep.mubr.bf16.mxu0 0
  %2302 = vmatmul.mubr.bf16.gmra.mrb[0].mxu0 %v1162
  %v2303 = vpop.f32.mrb[0].mxu0
  %v2304 = vadd.f32 0.0, %v2303
  %v2305 = vpop.f32.mrb[0].mxu0
  %v2306 = vadd.f32 0.0, %v2305
  %v2307 = vpop.f32.mrb[0].mxu0
  %v2308 = vadd.f32 0.0, %v2307
  %v2309 = vpop.f32.mrb[0].mxu0
  %v2310 = vadd.f32 0.0, %v2309
  %2311 = vmatprep.mubr.bf16.mxu0 0
  %2312 = vmatmul.mubr.bf16.gmra.mrb[0].mxu0 %v1163
  %v2313 = vpop.f32.mrb[0].mxu0
  %v2314 = vadd.f32 0.0, %v2313
  %v2315 = vpop.f32.mrb[0].mxu0
  %v2316 = vadd.f32 0.0, %v2315
  %v2317 = vpop.f32.mrb[0].mxu0
  %v2318 = vadd.f32 0.0, %v2317
  %v2319 = vpop.f32.mrb[0].mxu0
  %v2320 = vadd.f32 0.0, %v2319
  %2321 = vmatprep.mubr.bf16.mxu0 0
  %2322 = vmatmul.mubr.bf16.gmra.mrb[0].mxu0 %v1164
  %v2323 = vpop.f32.mrb[0].mxu0
  %v2324 = vadd.f32 0.0, %v2323
  %v2325 = vpop.f32.mrb[0].mxu0
  %v2326 = vadd.f32 0.0, %v2325
  %v2327 = vpop.f32.mrb[0].mxu0
  %v2328 = vadd.f32 0.0, %v2327
  %v2329 = vpop.f32.mrb[0].mxu0
  %v2330 = vadd.f32 0.0, %v2329
  %2331 = vmatprep.mubr.bf16.mxu0 0
  %2332 = vmatmul.mubr.bf16.gmra.mrb[0].mxu0 %v1165
  %v2333 = vpop.f32.mrb[0].mxu0
  %v2334 = vadd.f32 0.0, %v2333
  %v2335 = vpop.f32.mrb[0].mxu0
  %v2336 = vadd.f32 0.0, %v2335
  %v2337 = vpop.f32.mrb[0].mxu0
  %v2338 = vadd.f32 0.0, %v2337
  %v2339 = vpop.f32.mrb[0].mxu0
  %v2340 = vadd.f32 0.0, %v2339
  %2341 = vmatprep.mubr.bf16.mxu0 0
  %2342 = vmatmul.mubr.bf16.gmra.mrb[0].mxu0 %v1166
  %v2343 = vpop.f32.mrb[0].mxu0
  %v2344 = vadd.f32 0.0, %v2343
  %v2345 = vpop.f32.mrb[0].mxu0
  %v2346 = vadd.f32 0.0, %v2345
  %v2347 = vpop.f32.mrb[0].mxu0
  %v2348 = vadd.f32 0.0, %v2347
  %v2349 = vpop.f32.mrb[0].mxu0
  %v2350 = vadd.f32 0.0, %v2349
  %2351 = vmatprep.mubr.bf16.mxu0 0
  %2352 = vmatmul.mubr.bf16.gmra.mrb[0].mxu0 %v1167
  %v2353 = vpop.f32.mrb[0].mxu0
  %v2354 = vadd.f32 0.0, %v2353
  %v2355 = vpop.f32.mrb[0].mxu0
  %v2356 = vadd.f32 0.0, %v2355
  %v2357 = vpop.f32.mrb[0].mxu0
  %v2358 = vadd.f32 0.0, %v2357
  %v2359 = vpop.f32.mrb[0].mxu0
  %v2360 = vadd.f32 0.0, %v2359
  %2361 = vmatprep.mubr.bf16.mxu0 0
  %2362 = vmatmul.mubr.bf16.gmra.mrb[0].mxu0 %v1168
  %v2363 = vpop.f32.mrb[0].mxu0
  %v2364 = vadd.f32 0.0, %v2363
  %v2365 = vpop.f32.mrb[0].mxu0
  %v2366 = vadd.f32 0.0, %v2365
  %v2367 = vpop.f32.mrb[0].mxu0
  %v2368 = vadd.f32 0.0, %v2367
  %v2369 = vpop.f32.mrb[0].mxu0
  %v2370 = vadd.f32 0.0, %v2369
  %2371 = vmatprep.mubr.bf16.mxu0 0
  %2372 = vmatmul.mubr.bf16.gmra.mrb[0].mxu0 %v1169
  %v2373 = vpop.f32.mrb[0].mxu0
  %v2374 = vadd.f32 0.0, %v2373
  %v2375 = vpop.f32.mrb[0].mxu0
  %v2376 = vadd.f32 0.0, %v2375
  %v2377 = vpop.f32.mrb[0].mxu0
  %v2378 = vadd.f32 0.0, %v2377
  %v2379 = vpop.f32.mrb[0].mxu0
  %v2380 = vadd.f32 0.0, %v2379
  %2381 = vmatprep.mubr.bf16.mxu0 0
  %2382 = vmatmul.mubr.bf16.gmra.mrb[0].mxu0 %v1170
  %v2383 = vpop.f32.mrb[0].mxu0
  %v2384 = vadd.f32 0.0, %v2383
  %v2385 = vpop.f32.mrb[0].mxu0
  %v2386 = vadd.f32 0.0, %v2385
  %v2387 = vpop.f32.mrb[0].mxu0
  %v2388 = vadd.f32 0.0, %v2387
  %v2389 = vpop.f32.mrb[0].mxu0
  %v2390 = vadd.f32 0.0, %v2389
  %2391 = vmatprep.mubr.bf16.mxu0 0
  %2392 = vmatmul.mubr.bf16.gmra.mrb[0].mxu0 %v1171
  %v2393 = vpop.f32.mrb[0].mxu0
  %v2394 = vadd.f32 0.0, %v2393
  %v2395 = vpop.f32.mrb[0].mxu0
  %v2396 = vadd.f32 0.0, %v2395
  %v2397 = vpop.f32.mrb[0].mxu0
  %v2398 = vadd.f32 0.0, %v2397
  %v2399 = vpop.f32.mrb[0].mxu0
  %v2400 = vadd.f32 0.0, %v2399
  %2401 = vmatprep.mubr.bf16.mxu0 0
  %2402 = vmatmul.mubr.bf16.gmra.mrb[0].mxu0 %v1172
  %v2403 = vpop.f32.mrb[0].mxu0
  %v2404 = vadd.f32 0.0, %v2403
  %v2405 = vpop.f32.mrb[0].mxu0
  %v2406 = vadd.f32 0.0, %v2405
  %v2407 = vpop.f32.mrb[0].mxu0
  %v2408 = vadd.f32 0.0, %v2407
  %v2409 = vpop.f32.mrb[0].mxu0
  %v2410 = vadd.f32 0.0, %v2409
  %2411 = vmatprep.mubr.bf16.mxu0 0
  %2412 = vmatmul.mubr.bf16.gmra.mrb[0].mxu0 %v1173
  %v2413 = vpop.f32.mrb[0].mxu0
  %v2414 = vadd.f32 0.0, %v2413
  %v2415 = vpop.f32.mrb[0].mxu0
  %v2416 = vadd.f32 0.0, %v2415
  %v2417 = vpop.f32.mrb[0].mxu0
  %v2418 = vadd.f32 0.0, %v2417
  %v2419 = vpop.f32.mrb[0].mxu0
  %v2420 = vadd.f32 0.0, %v2419
  %2421 = vmatprep.mubr.bf16.mxu0 0
  %2422 = vmatmul.mubr.bf16.gmra.mrb[0].mxu0 %v1174
  %v2423 = vpop.f32.mrb[0].mxu0
  %v2424 = vadd.f32 0.0, %v2423
  %v2425 = vpop.f32.mrb[0].mxu0
  %v2426 = vadd.f32 0.0, %v2425
  %v2427 = vpop.f32.mrb[0].mxu0
  %v2428 = vadd.f32 0.0, %v2427
  %v2429 = vpop.f32.mrb[0].mxu0
  %v2430 = vadd.f32 0.0, %v2429
  %2431 = vmatprep.mubr.bf16.mxu0 0
  %2432 = vmatmul.mubr.bf16.gmra.mrb[0].mxu0 %v1175
  %v2433 = vpop.f32.mrb[0].mxu0
  %v2434 = vadd.f32 0.0, %v2433
  %v2435 = vpop.f32.mrb[0].mxu0
  %v2436 = vadd.f32 0.0, %v2435
  %v2437 = vpop.f32.mrb[0].mxu0
  %v2438 = vadd.f32 0.0, %v2437
  %v2439 = vpop.f32.mrb[0].mxu0
  %v2440 = vadd.f32 0.0, %v2439
  %2441 = vmatprep.mubr.bf16.mxu0 0
  %2442 = vmatmul.mubr.bf16.gmra.mrb[0].mxu0 %v1176
  %v2443 = vpop.f32.mrb[0].mxu0
  %v2444 = vadd.f32 0.0, %v2443
  %v2445 = vpop.f32.mrb[0].mxu0
  %v2446 = vadd.f32 0.0, %v2445
  %v2447 = vpop.f32.mrb[0].mxu0
  %v2448 = vadd.f32 0.0, %v2447
  %v2449 = vpop.f32.mrb[0].mxu0
  %v2450 = vadd.f32 0.0, %v2449
  %2451 = vmatprep.mubr.bf16.mxu0 0
  %2452 = vmatmul.mubr.bf16.gmra.mrb[0].mxu0 %v1177
  %v2453 = vpop.f32.mrb[0].mxu0
  %v2454 = vadd.f32 0.0, %v2453
  %v2455 = vpop.f32.mrb[0].mxu0
  %v2456 = vadd.f32 0.0, %v2455
  %v2457 = vpop.f32.mrb[0].mxu0
  %v2458 = vadd.f32 0.0, %v2457
  %v2459 = vpop.f32.mrb[0].mxu0
  %v2460 = vadd.f32 0.0, %v2459
  %2461 = vmatprep.mubr.bf16.mxu0 0
  %2462 = vmatmul.mubr.bf16.gmra.mrb[0].mxu0 %v1178
  %v2463 = vpop.f32.mrb[0].mxu0
  %v2464 = vadd.f32 0.0, %v2463
  %v2465 = vpop.f32.mrb[0].mxu0
  %v2466 = vadd.f32 0.0, %v2465
  %v2467 = vpop.f32.mrb[0].mxu0
  %v2468 = vadd.f32 0.0, %v2467
  %v2469 = vpop.f32.mrb[0].mxu0
  %v2470 = vadd.f32 0.0, %v2469
  %2471 = vmatprep.mubr.bf16.mxu0 0
  %2472 = vmatmul.mubr.bf16.gmra.mrb[0].mxu0 %v1179
  %v2473 = vpop.f32.mrb[0].mxu0
  %v2474 = vadd.f32 0.0, %v2473
  %v2475 = vpop.f32.mrb[0].mxu0
  %v2476 = vadd.f32 0.0, %v2475
  %v2477 = vpop.f32.mrb[0].mxu0
  %v2478 = vadd.f32 0.0, %v2477
  %v2479 = vpop.f32.mrb[0].mxu0
  %v2480 = vadd.f32 0.0, %v2479
  %2481 = vmatprep.mubr.bf16.mxu0 0
  %2482 = vmatmul.mubr.bf16.gmra.mrb[0].mxu0 %v1180
  %v2483 = vpop.f32.mrb[0].mxu0
  %v2484 = vadd.f32 0.0, %v2483
  %v2485 = vpop.f32.mrb[0].mxu0
  %v2486 = vadd.f32 0.0, %v2485
  %v2487 = vpop.f32.mrb[0].mxu0
  %v2488 = vadd.f32 0.0, %v2487
  %v2489 = vpop.f32.mrb[0].mxu0
  %v2490 = vadd.f32 0.0, %v2489
  %2491 = vmatprep.mubr.bf16.mxu0 0
  %2492 = vmatmul.mubr.bf16.gmra.mrb[0].mxu0 %v1181
  %v2493 = vpop.f32.mrb[0].mxu0
  %v2494 = vadd.f32 0.0, %v2493
  %v2495 = vpop.f32.mrb[0].mxu0
  %v2496 = vadd.f32 0.0, %v2495
  %v2497 = vpop.f32.mrb[0].mxu0
  %v2498 = vadd.f32 0.0, %v2497
  %v2499 = vpop.f32.mrb[0].mxu0
  %v2500 = vadd.f32 0.0, %v2499
  %2501 = vmatprep.mubr.bf16.mxu0 0
  %2502 = vmatmul.mubr.bf16.gmra.mrb[0].mxu0 %v1182
  %v2503 = vpop.f32.mrb[0].mxu0
  %v2504 = vadd.f32 0.0, %v2503
  %v2505 = vpop.f32.mrb[0].mxu0
  %v2506 = vadd.f32 0.0, %v2505
  %v2507 = vpop.f32.mrb[0].mxu0
  %v2508 = vadd.f32 0.0, %v2507
  %v2509 = vpop.f32.mrb[0].mxu0
  %v2510 = vadd.f32 0.0, %v2509
  %2511 = vmatprep.mubr.bf16.mxu0 0
  %2512 = vmatmul.mubr.bf16.gmra.mrb[0].mxu0 %v1183
  %v2513 = vpop.f32.mrb[0].mxu0
  %v2514 = vadd.f32 0.0, %v2513
  %v2515 = vpop.f32.mrb[0].mxu0
  %v2516 = vadd.f32 0.0, %v2515
  %v2517 = vpop.f32.mrb[0].mxu0
  %v2518 = vadd.f32 0.0, %v2517
  %v2519 = vpop.f32.mrb[0].mxu0
  %v2520 = vadd.f32 0.0, %v2519
  %2521 = vmatprep.mubr.bf16.mxu0 0
  %2522 = vmatmul.mubr.bf16.gmra.mrb[0].mxu0 %v1184
  %v2523 = vpop.f32.mrb[0].mxu0
  %v2524 = vadd.f32 0.0, %v2523
  %v2525 = vpop.f32.mrb[0].mxu0
  %v2526 = vadd.f32 0.0, %v2525
  %v2527 = vpop.f32.mrb[0].mxu0
  %v2528 = vadd.f32 0.0, %v2527
  %v2529 = vpop.f32.mrb[0].mxu0
  %v2530 = vadd.f32 0.0, %v2529
  %2531 = vmatprep.mubr.bf16.mxu0 0
  %2532 = vmatmul.mubr.bf16.gmra.mrb[0].mxu0 %v1185
  %v2533 = vpop.f32.mrb[0].mxu0
  %v2534 = vadd.f32 0.0, %v2533
  %v2535 = vpop.f32.mrb[0].mxu0
  %v2536 = vadd.f32 0.0, %v2535
  %v2537 = vpop.f32.mrb[0].mxu0
  %v2538 = vadd.f32 0.0, %v2537
  %v2539 = vpop.f32.mrb[0].mxu0
  %v2540 = vadd.f32 0.0, %v2539
  %2541 = vmatprep.mubr.bf16.mxu0 0
  %2542 = vmatmul.mubr.bf16.gmra.mrb[0].mxu0 %v1186
  %v2543 = vpop.f32.mrb[0].mxu0
  %v2544 = vadd.f32 0.0, %v2543
  %v2545 = vpop.f32.mrb[0].mxu0
  %v2546 = vadd.f32 0.0, %v2545
  %v2547 = vpop.f32.mrb[0].mxu0
  %v2548 = vadd.f32 0.0, %v2547
  %v2549 = vpop.f32.mrb[0].mxu0
  %v2550 = vadd.f32 0.0, %v2549
  %2551 = vmatprep.mubr.bf16.mxu0 0
  %2552 = vmatmul.mubr.bf16.gmra.mrb[0].mxu0 %v1187
  %v2553 = vpop.f32.mrb[0].mxu0
  %v2554 = vadd.f32 0.0, %v2553
  %v2555 = vpop.f32.mrb[0].mxu0
  %v2556 = vadd.f32 0.0, %v2555
  %v2557 = vpop.f32.mrb[0].mxu0
  %v2558 = vadd.f32 0.0, %v2557
  %v2559 = vpop.f32.mrb[0].mxu0
  %v2560 = vadd.f32 0.0, %v2559
  %2561 = vmatprep.mubr.bf16.mxu0 0
  %2562 = vmatmul.mubr.bf16.gmra.mrb[0].mxu0 %v1188
  %v2563 = vpop.f32.mrb[0].mxu0
  %v2564 = vadd.f32 0.0, %v2563
  %v2565 = vpop.f32.mrb[0].mxu0
  %v2566 = vadd.f32 0.0, %v2565
  %v2567 = vpop.f32.mrb[0].mxu0
  %v2568 = vadd.f32 0.0, %v2567
  %v2569 = vpop.f32.mrb[0].mxu0
  %v2570 = vadd.f32 0.0, %v2569
  %2571 = vmatprep.mubr.bf16.mxu0 0
  %2572 = vmatmul.mubr.bf16.gmra.mrb[0].mxu0 %v1189
  %v2573 = vpop.f32.mrb[0].mxu0
  %v2574 = vadd.f32 0.0, %v2573
  %v2575 = vpop.f32.mrb[0].mxu0
  %v2576 = vadd.f32 0.0, %v2575
  %v2577 = vpop.f32.mrb[0].mxu0
  %v2578 = vadd.f32 0.0, %v2577
  %v2579 = vpop.f32.mrb[0].mxu0
  %v2580 = vadd.f32 0.0, %v2579
  %2581 = vmatprep.mubr.bf16.mxu0 0
  %2582 = vmatmul.mubr.bf16.gmra.mrb[0].mxu0 %v1190
  %v2583 = vpop.f32.mrb[0].mxu0
  %v2584 = vadd.f32 0.0, %v2583
  %v2585 = vpop.f32.mrb[0].mxu0
  %v2586 = vadd.f32 0.0, %v2585
  %v2587 = vpop.f32.mrb[0].mxu0
  %v2588 = vadd.f32 0.0, %v2587
  %v2589 = vpop.f32.mrb[0].mxu0
  %v2590 = vadd.f32 0.0, %v2589
  %2591 = vmatprep.mubr.bf16.mxu0 0
  %2592 = vmatmul.mubr.bf16.gmra.mrb[0].mxu0 %v1191
  %v2593 = vpop.f32.mrb[0].mxu0
  %v2594 = vadd.f32 0.0, %v2593
  %v2595 = vpop.f32.mrb[0].mxu0
  %v2596 = vadd.f32 0.0, %v2595
  %v2597 = vpop.f32.mrb[0].mxu0
  %v2598 = vadd.f32 0.0, %v2597
  %v2599 = vpop.f32.mrb[0].mxu0
  %v2600 = vadd.f32 0.0, %v2599
  %2601 = vmatprep.mubr.bf16.mxu0 0
  %2602 = vmatmul.mubr.bf16.gmra.mrb[0].mxu0 %v1192
  %v2603 = vpop.f32.mrb[0].mxu0
  %v2604 = vadd.f32 0.0, %v2603
  %v2605 = vpop.f32.mrb[0].mxu0
  %v2606 = vadd.f32 0.0, %v2605
  %v2607 = vpop.f32.mrb[0].mxu0
  %v2608 = vadd.f32 0.0, %v2607
  %v2609 = vpop.f32.mrb[0].mxu0
  %v2610 = vadd.f32 0.0, %v2609
  %2611 = vmatprep.mubr.bf16.mxu0 0
  %2612 = vmatmul.mubr.bf16.gmra.mrb[0].mxu0 %v1193
  %v2613 = vpop.f32.mrb[0].mxu0
  %v2614 = vadd.f32 0.0, %v2613
  %v2615 = vpop.f32.mrb[0].mxu0
  %v2616 = vadd.f32 0.0, %v2615
  %v2617 = vpop.f32.mrb[0].mxu0
  %v2618 = vadd.f32 0.0, %v2617
  %v2619 = vpop.f32.mrb[0].mxu0
  %v2620 = vadd.f32 0.0, %v2619
  %2621 = vmatprep.mubr.bf16.mxu0 0
  %2622 = vmatmul.mubr.bf16.gmra.mrb[0].mxu0 %v1194
  %v2623 = vpop.f32.mrb[0].mxu0
  %v2624 = vadd.f32 0.0, %v2623
  %v2625 = vpop.f32.mrb[0].mxu0
  %v2626 = vadd.f32 0.0, %v2625
  %v2627 = vpop.f32.mrb[0].mxu0
  %v2628 = vadd.f32 0.0, %v2627
  %v2629 = vpop.f32.mrb[0].mxu0
  %v2630 = vadd.f32 0.0, %v2629
  %2631 = vmatprep.mubr.bf16.mxu0 0
  %2632 = vmatmul.mubr.bf16.gmra.mrb[0].mxu0 %v1195
  %v2633 = vpop.f32.mrb[0].mxu0
  %v2634 = vadd.f32 0.0, %v2633
  %v2635 = vpop.f32.mrb[0].mxu0
  %v2636 = vadd.f32 0.0, %v2635
  %v2637 = vpop.f32.mrb[0].mxu0
  %v2638 = vadd.f32 0.0, %v2637
  %v2639 = vpop.f32.mrb[0].mxu0
  %v2640 = vadd.f32 0.0, %v2639
  %2641 = vmatprep.mubr.bf16.mxu0 0
  %2642 = vmatmul.mubr.bf16.gmra.mrb[0].mxu0 %v1196
  %v2643 = vpop.f32.mrb[0].mxu0
  %v2644 = vadd.f32 0.0, %v2643
  %v2645 = vpop.f32.mrb[0].mxu0
  %v2646 = vadd.f32 0.0, %v2645
  %v2647 = vpop.f32.mrb[0].mxu0
  %v2648 = vadd.f32 0.0, %v2647
  %v2649 = vpop.f32.mrb[0].mxu0
  %v2650 = vadd.f32 0.0, %v2649
  %2651 = vmatprep.mubr.bf16.mxu0 0
  %2652 = vmatmul.mubr.bf16.gmra.mrb[0].mxu0 %v1197
  %v2653 = vpop.f32.mrb[0].mxu0
  %v2654 = vadd.f32 0.0, %v2653
  %v2655 = vpop.f32.mrb[0].mxu0
  %v2656 = vadd.f32 0.0, %v2655
  %v2657 = vpop.f32.mrb[0].mxu0
  %v2658 = vadd.f32 0.0, %v2657
  %v2659 = vpop.f32.mrb[0].mxu0
  %v2660 = vadd.f32 0.0, %v2659
  %2661 = vmatprep.mubr.bf16.mxu0 0
  %2662 = vmatmul.mubr.bf16.gmra.mrb[0].mxu0 %v1198
  %v2663 = vpop.f32.mrb[0].mxu0
  %v2664 = vadd.f32 0.0, %v2663
  %v2665 = vpop.f32.mrb[0].mxu0
  %v2666 = vadd.f32 0.0, %v2665
  %v2667 = vpop.f32.mrb[0].mxu0
  %v2668 = vadd.f32 0.0, %v2667
  %v2669 = vpop.f32.mrb[0].mxu0
  %v2670 = vadd.f32 0.0, %v2669
  %2671 = vmatprep.mubr.bf16.mxu0 0
  %2672 = vmatmul.mubr.bf16.gmra.mrb[0].mxu0 %v1199
  %v2673 = vpop.f32.mrb[0].mxu0
  %v2674 = vadd.f32 0.0, %v2673
  %v2675 = vpop.f32.mrb[0].mxu0
  %v2676 = vadd.f32 0.0, %v2675
  %v2677 = vpop.f32.mrb[0].mxu0
  %v2678 = vadd.f32 0.0, %v2677
  %v2679 = vpop.f32.mrb[0].mxu0
  %v2680 = vadd.f32 0.0, %v2679
  %2681 = vmatprep.mubr.bf16.mxu0 0
  %2682 = vmatmul.mubr.bf16.gmra.mrb[0].mxu0 %v1200
  %v2683 = vpop.f32.mrb[0].mxu0
  %v2684 = vadd.f32 0.0, %v2683
  %v2685 = vpop.f32.mrb[0].mxu0
  %v2686 = vadd.f32 0.0, %v2685
  %v2687 = vpop.f32.mrb[0].mxu0
  %v2688 = vadd.f32 0.0, %v2687
  %v2689 = vpop.f32.mrb[0].mxu0
  %v2690 = vadd.f32 0.0, %v2689
  %2691 = vmatprep.mubr.bf16.mxu0 0
  %2692 = vmatmul.mubr.bf16.gmra.mrb[0].mxu0 %v1201
  %v2693 = vpop.f32.mrb[0].mxu0
  %v2694 = vadd.f32 0.0, %v2693
  %v2695 = vpop.f32.mrb[0].mxu0
  %v2696 = vadd.f32 0.0, %v2695
  %v2697 = vpop.f32.mrb[0].mxu0
  %v2698 = vadd.f32 0.0, %v2697
  %v2699 = vpop.f32.mrb[0].mxu0
  %v2700 = vadd.f32 0.0, %v2699
  %2701 = vmatprep.mubr.bf16.mxu0 0
  %2702 = vmatmul.mubr.bf16.gmra.mrb[0].mxu0 %v1202
  %v2703 = vpop.f32.mrb[0].mxu0
  %v2704 = vadd.f32 0.0, %v2703
  %v2705 = vpop.f32.mrb[0].mxu0
  %v2706 = vadd.f32 0.0, %v2705
  %v2707 = vpop.f32.mrb[0].mxu0
  %v2708 = vadd.f32 0.0, %v2707
  %v2709 = vpop.f32.mrb[0].mxu0
  %v2710 = vadd.f32 0.0, %v2709
  %2711 = vmatprep.mubr.bf16.mxu0 0
  %2712 = vmatmul.mubr.bf16.gmra.mrb[0].mxu0 %v1203
  %v2713 = vpop.f32.mrb[0].mxu0
  %v2714 = vadd.f32 0.0, %v2713
  %v2715 = vpop.f32.mrb[0].mxu0
  %v2716 = vadd.f32 0.0, %v2715
  %v2717 = vpop.f32.mrb[0].mxu0
  %v2718 = vadd.f32 0.0, %v2717
  %v2719 = vpop.f32.mrb[0].mxu0
  %v2720 = vadd.f32 0.0, %v2719
  %2721 = vmatprep.mubr.bf16.mxu0 0
  %2722 = vmatmul.mubr.bf16.gmra.mrb[0].mxu0 %v1204
  %v2723 = vpop.f32.mrb[0].mxu0
  %v2724 = vadd.f32 0.0, %v2723
  %v2725 = vpop.f32.mrb[0].mxu0
  %v2726 = vadd.f32 0.0, %v2725
  %v2727 = vpop.f32.mrb[0].mxu0
  %v2728 = vadd.f32 0.0, %v2727
  %v2729 = vpop.f32.mrb[0].mxu0
  %v2730 = vadd.f32 0.0, %v2729
  %2731 = vmatprep.mubr.bf16.mxu0 0
  %2732 = vmatmul.mubr.bf16.gmra.mrb[0].mxu0 %v1205
  %v2733 = vpop.f32.mrb[0].mxu0
  %v2734 = vadd.f32 0.0, %v2733
  %v2735 = vpop.f32.mrb[0].mxu0
  %v2736 = vadd.f32 0.0, %v2735
  %v2737 = vpop.f32.mrb[0].mxu0
  %v2738 = vadd.f32 0.0, %v2737
  %v2739 = vpop.f32.mrb[0].mxu0
  %v2740 = vadd.f32 0.0, %v2739
  %2741 = vmatprep.mubr.bf16.mxu0 0
  %2742 = vmatmul.mubr.bf16.gmra.mrb[0].mxu0 %v1206
  %v2743 = vpop.f32.mrb[0].mxu0
  %v2744 = vadd.f32 0.0, %v2743
  %v2745 = vpop.f32.mrb[0].mxu0
  %v2746 = vadd.f32 0.0, %v2745
  %v2747 = vpop.f32.mrb[0].mxu0
  %v2748 = vadd.f32 0.0, %v2747
  %v2749 = vpop.f32.mrb[0].mxu0
  %v2750 = vadd.f32 0.0, %v2749
  %2751 = vmatprep.mubr.bf16.mxu0 0
  %2752 = vmatmul.mubr.bf16.gmra.mrb[0].mxu0 %v1207
  %v2753 = vpop.f32.mrb[0].mxu0
  %v2754 = vadd.f32 0.0, %v2753
  %v2755 = vpop.f32.mrb[0].mxu0
  %v2756 = vadd.f32 0.0, %v2755
  %v2757 = vpop.f32.mrb[0].mxu0
  %v2758 = vadd.f32 0.0, %v2757
  %v2759 = vpop.f32.mrb[0].mxu0
  %v2760 = vadd.f32 0.0, %v2759
  %2761 = vmatprep.mubr.bf16.mxu0 0
  %2762 = vmatmul.mubr.bf16.gmra.mrb[0].mxu0 %v1208
  %v2763 = vpop.f32.mrb[0].mxu0
  %v2764 = vadd.f32 0.0, %v2763
  %v2765 = vpop.f32.mrb[0].mxu0
  %v2766 = vadd.f32 0.0, %v2765
  %v2767 = vpop.f32.mrb[0].mxu0
  %v2768 = vadd.f32 0.0, %v2767
  %v2769 = vpop.f32.mrb[0].mxu0
  %v2770 = vadd.f32 0.0, %v2769
  %2771 = vmatprep.mubr.bf16.mxu0 0
  %2772 = vmatmul.mubr.bf16.gmra.mrb[0].mxu0 %v1209
  %v2773 = vpop.f32.mrb[0].mxu0
  %v2774 = vadd.f32 0.0, %v2773
  %v2775 = vpop.f32.mrb[0].mxu0
  %v2776 = vadd.f32 0.0, %v2775
  %v2777 = vpop.f32.mrb[0].mxu0
  %v2778 = vadd.f32 0.0, %v2777
  %v2779 = vpop.f32.mrb[0].mxu0
  %v2780 = vadd.f32 0.0, %v2779
  %2781 = vmatprep.mubr.bf16.mxu0 0
  %2782 = vmatmul.mubr.bf16.gmra.mrb[0].mxu0 %v1210
  %v2783 = vpop.f32.mrb[0].mxu0
  %v2784 = vadd.f32 0.0, %v2783
  %v2785 = vpop.f32.mrb[0].mxu0
  %v2786 = vadd.f32 0.0, %v2785
  %v2787 = vpop.f32.mrb[0].mxu0
  %v2788 = vadd.f32 0.0, %v2787
  %v2789 = vpop.f32.mrb[0].mxu0
  %v2790 = vadd.f32 0.0, %v2789
  %2791 = vmatprep.mubr.bf16.mxu0 0
  %2792 = vmatmul.mubr.bf16.gmra.mrb[0].mxu0 %v1211
  %v2793 = vpop.f32.mrb[0].mxu0
  %v2794 = vadd.f32 0.0, %v2793
  %v2795 = vpop.f32.mrb[0].mxu0
  %v2796 = vadd.f32 0.0, %v2795
  %v2797 = vpop.f32.mrb[0].mxu0
  %v2798 = vadd.f32 0.0, %v2797
  %v2799 = vpop.f32.mrb[0].mxu0
  %v2800 = vadd.f32 0.0, %v2799
  %2801 = vmatprep.mubr.bf16.mxu0 0
  %2802 = vmatmul.mubr.bf16.gmra.mrb[0].mxu0 %v1212
  %v2803 = vpop.f32.mrb[0].mxu0
  %v2804 = vadd.f32 0.0, %v2803
  %v2805 = vpop.f32.mrb[0].mxu0
  %v2806 = vadd.f32 0.0, %v2805
  %v2807 = vpop.f32.mrb[0].mxu0
  %v2808 = vadd.f32 0.0, %v2807
  %v2809 = vpop.f32.mrb[0].mxu0
  %v2810 = vadd.f32 0.0, %v2809
  %2811 = vmatprep.mubr.bf16.mxu0 0
  %2812 = vmatmul.mubr.bf16.gmra.mrb[0].mxu0 %v1213
  %v2813 = vpop.f32.mrb[0].mxu0
  %v2814 = vadd.f32 0.0, %v2813
  %v2815 = vpop.f32.mrb[0].mxu0
  %v2816 = vadd.f32 0.0, %v2815
  %v2817 = vpop.f32.mrb[0].mxu0
  %v2818 = vadd.f32 0.0, %v2817
  %v2819 = vpop.f32.mrb[0].mxu0
  %v2820 = vadd.f32 0.0, %v2819
  %2821 = vmatprep.mubr.bf16.mxu0 0
  %2822 = vmatmul.mubr.bf16.gmra.mrb[0].mxu0 %v1214
  %v2823 = vpop.f32.mrb[0].mxu0
  %v2824 = vadd.f32 0.0, %v2823
  %v2825 = vpop.f32.mrb[0].mxu0
  %v2826 = vadd.f32 0.0, %v2825
  %v2827 = vpop.f32.mrb[0].mxu0
  %v2828 = vadd.f32 0.0, %v2827
  %v2829 = vpop.f32.mrb[0].mxu0
  %v2830 = vadd.f32 0.0, %v2829
  %2831 = vmatprep.mubr.bf16.mxu0 0
  %2832 = vmatmul.mubr.bf16.gmra.mrb[0].mxu0 %v1215
  %v2833 = vpop.f32.mrb[0].mxu0
  %v2834 = vadd.f32 0.0, %v2833
  %v2835 = vpop.f32.mrb[0].mxu0
  %v2836 = vadd.f32 0.0, %v2835
  %v2837 = vpop.f32.mrb[0].mxu0
  %v2838 = vadd.f32 0.0, %v2837
  %v2839 = vpop.f32.mrb[0].mxu0
  %v2840 = vadd.f32 0.0, %v2839
  %2841 = vmatprep.mubr.bf16.mxu0 0
  %2842 = vmatmul.mubr.bf16.gmra.mrb[0].mxu0 %v1216
  %v2843 = vpop.f32.mrb[0].mxu0
  %v2844 = vadd.f32 0.0, %v2843
  %v2845 = vpop.f32.mrb[0].mxu0
  %v2846 = vadd.f32 0.0, %v2845
  %v2847 = vpop.f32.mrb[0].mxu0
  %v2848 = vadd.f32 0.0, %v2847
  %v2849 = vpop.f32.mrb[0].mxu0
  %v2850 = vadd.f32 0.0, %v2849
  %2851 = vmatprep.mubr.bf16.mxu0 0
  %2852 = vmatmul.mubr.bf16.gmra.mrb[0].mxu0 %v1217
  %v2853 = vpop.f32.mrb[0].mxu0
  %v2854 = vadd.f32 0.0, %v2853
  %v2855 = vpop.f32.mrb[0].mxu0
  %v2856 = vadd.f32 0.0, %v2855
  %v2857 = vpop.f32.mrb[0].mxu0
  %v2858 = vadd.f32 0.0, %v2857
  %v2859 = vpop.f32.mrb[0].mxu0
  %v2860 = vadd.f32 0.0, %v2859
  %2861 = vmatprep.mubr.bf16.mxu0 0
  %2862 = vmatmul.mubr.bf16.gmra.mrb[0].mxu0 %v1218
  %v2863 = vpop.f32.mrb[0].mxu0
  %v2864 = vadd.f32 0.0, %v2863
  %v2865 = vpop.f32.mrb[0].mxu0
  %v2866 = vadd.f32 0.0, %v2865
  %v2867 = vpop.f32.mrb[0].mxu0
  %v2868 = vadd.f32 0.0, %v2867
  %v2869 = vpop.f32.mrb[0].mxu0
  %v2870 = vadd.f32 0.0, %v2869
  %2871 = vmatprep.mubr.bf16.mxu0 0
  %2872 = vmatmul.mubr.bf16.gmra.mrb[0].mxu0 %v1219
  %v2873 = vpop.f32.mrb[0].mxu0
  %v2874 = vadd.f32 0.0, %v2873
  %v2875 = vpop.f32.mrb[0].mxu0
  %v2876 = vadd.f32 0.0, %v2875
  %v2877 = vpop.f32.mrb[0].mxu0
  %v2878 = vadd.f32 0.0, %v2877
  %v2879 = vpop.f32.mrb[0].mxu0
  %v2880 = vadd.f32 0.0, %v2879
  %2881 = vmatprep.mubr.bf16.mxu0 0
  %2882 = vmatmul.mubr.bf16.gmra.mrb[0].mxu0 %v1220
  %v2883 = vpop.f32.mrb[0].mxu0
  %v2884 = vadd.f32 0.0, %v2883
  %v2885 = vpop.f32.mrb[0].mxu0
  %v2886 = vadd.f32 0.0, %v2885
  %v2887 = vpop.f32.mrb[0].mxu0
  %v2888 = vadd.f32 0.0, %v2887
  %v2889 = vpop.f32.mrb[0].mxu0
  %v2890 = vadd.f32 0.0, %v2889
  %2891 = vmatprep.mubr.bf16.mxu0 0
  %2892 = vmatmul.mubr.bf16.gmra.mrb[0].mxu0 %v1221
  %v2893 = vpop.f32.mrb[0].mxu0
  %v2894 = vadd.f32 0.0, %v2893
  %v2895 = vpop.f32.mrb[0].mxu0
  %v2896 = vadd.f32 0.0, %v2895
  %v2897 = vpop.f32.mrb[0].mxu0
  %v2898 = vadd.f32 0.0, %v2897
  %v2899 = vpop.f32.mrb[0].mxu0
  %v2900 = vadd.f32 0.0, %v2899
  %2901 = vmatprep.mubr.bf16.mxu0 0
  %2902 = vmatmul.mubr.bf16.gmra.mrb[0].mxu0 %v1222
  %v2903 = vpop.f32.mrb[0].mxu0
  %v2904 = vadd.f32 0.0, %v2903
  %v2905 = vpop.f32.mrb[0].mxu0
  %v2906 = vadd.f32 0.0, %v2905
  %v2907 = vpop.f32.mrb[0].mxu0
  %v2908 = vadd.f32 0.0, %v2907
  %v2909 = vpop.f32.mrb[0].mxu0
  %v2910 = vadd.f32 0.0, %v2909
  %2911 = vmatprep.mubr.bf16.mxu0 0
  %2912 = vmatmul.mubr.bf16.gmra.mrb[0].mxu0 %v1223
  %v2913 = vpop.f32.mrb[0].mxu0
  %v2914 = vadd.f32 0.0, %v2913
  %v2915 = vpop.f32.mrb[0].mxu0
  %v2916 = vadd.f32 0.0, %v2915
  %v2917 = vpop.f32.mrb[0].mxu0
  %v2918 = vadd.f32 0.0, %v2917
  %v2919 = vpop.f32.mrb[0].mxu0
  %v2920 = vadd.f32 0.0, %v2919
  %2921 = vmatprep.mubr.bf16.mxu0 0
  %2922 = vmatmul.mubr.bf16.gmra.mrb[0].mxu0 %v1224
  %v2923 = vpop.f32.mrb[0].mxu0
  %v2924 = vadd.f32 0.0, %v2923
  %v2925 = vpop.f32.mrb[0].mxu0
  %v2926 = vadd.f32 0.0, %v2925
  %v2927 = vpop.f32.mrb[0].mxu0
  %v2928 = vadd.f32 0.0, %v2927
  %v2929 = vpop.f32.mrb[0].mxu0
  %v2930 = vadd.f32 0.0, %v2929
  %2931 = vmatprep.mubr.bf16.mxu0 0
  %2932 = vmatmul.mubr.bf16.gmra.mrb[0].mxu0 %v1225
  %v2933 = vpop.f32.mrb[0].mxu0
  %v2934 = vadd.f32 0.0, %v2933
  %v2935 = vpop.f32.mrb[0].mxu0
  %v2936 = vadd.f32 0.0, %v2935
  %v2937 = vpop.f32.mrb[0].mxu0
  %v2938 = vadd.f32 0.0, %v2937
  %v2939 = vpop.f32.mrb[0].mxu0
  %v2940 = vadd.f32 0.0, %v2939
  %2941 = vmatprep.mubr.bf16.mxu0 0
  %2942 = vmatmul.mubr.bf16.gmra.mrb[0].mxu0 %v1226
  %v2943 = vpop.f32.mrb[0].mxu0
  %v2944 = vadd.f32 0.0, %v2943
  %v2945 = vpop.f32.mrb[0].mxu0
  %v2946 = vadd.f32 0.0, %v2945
  %v2947 = vpop.f32.mrb[0].mxu0
  %v2948 = vadd.f32 0.0, %v2947
  %v2949 = vpop.f32.mrb[0].mxu0
  %v2950 = vadd.f32 0.0, %v2949
  %2951 = vmatprep.mubr.bf16.mxu0 0
  %2952 = vmatmul.mubr.bf16.gmra.mrb[0].mxu0 %v1227
  %v2953 = vpop.f32.mrb[0].mxu0
  %v2954 = vadd.f32 0.0, %v2953
  %v2955 = vpop.f32.mrb[0].mxu0
  %v2956 = vadd.f32 0.0, %v2955
  %v2957 = vpop.f32.mrb[0].mxu0
  %v2958 = vadd.f32 0.0, %v2957
  %v2959 = vpop.f32.mrb[0].mxu0
  %v2960 = vadd.f32 0.0, %v2959
  %2961 = vmatprep.mubr.bf16.mxu0 0
  %2962 = vmatmul.mubr.bf16.gmra.mrb[0].mxu0 %v1228
  %v2963 = vpop.f32.mrb[0].mxu0
  %v2964 = vadd.f32 0.0, %v2963
  %v2965 = vpop.f32.mrb[0].mxu0
  %v2966 = vadd.f32 0.0, %v2965
  %v2967 = vpop.f32.mrb[0].mxu0
  %v2968 = vadd.f32 0.0, %v2967
  %v2969 = vpop.f32.mrb[0].mxu0
  %v2970 = vadd.f32 0.0, %v2969
  %2971 = vmatprep.mubr.bf16.mxu0 0
  %2972 = vmatmul.mubr.bf16.gmra.mrb[0].mxu0 %v1229
  %v2973 = vpop.f32.mrb[0].mxu0
  %v2974 = vadd.f32 0.0, %v2973
  %v2975 = vpop.f32.mrb[0].mxu0
  %v2976 = vadd.f32 0.0, %v2975
  %v2977 = vpop.f32.mrb[0].mxu0
  %v2978 = vadd.f32 0.0, %v2977
  %v2979 = vpop.f32.mrb[0].mxu0
  %v2980 = vadd.f32 0.0, %v2979
  %2981 = vmatprep.mubr.bf16.mxu0 0
  %2982 = vmatmul.mubr.bf16.gmra.mrb[0].mxu0 %v1230
  %v2983 = vpop.f32.mrb[0].mxu0
  %v2984 = vadd.f32 0.0, %v2983
  %v2985 = vpop.f32.mrb[0].mxu0
  %v2986 = vadd.f32 0.0, %v2985
  %v2987 = vpop.f32.mrb[0].mxu0
  %v2988 = vadd.f32 0.0, %v2987
  %v2989 = vpop.f32.mrb[0].mxu0
  %v2990 = vadd.f32 0.0, %v2989
  %2991 = vmatprep.mubr.bf16.mxu0 0
  %2992 = vmatmul.mubr.bf16.gmra.mrb[0].mxu0 %v1231
  %v2993 = vpop.f32.mrb[0].mxu0
  %v2994 = vadd.f32 0.0, %v2993
  %v2995 = vpop.f32.mrb[0].mxu0
  %v2996 = vadd.f32 0.0, %v2995
  %v2997 = vpop.f32.mrb[0].mxu0
  %v2998 = vadd.f32 0.0, %v2997
  %v2999 = vpop.f32.mrb[0].mxu0
  %v3000 = vadd.f32 0.0, %v2999
  %3001 = vmatprep.mubr.bf16.mxu0 0
  %3002 = vmatmul.mubr.bf16.gmra.mrb[0].mxu0 %v1232
  %v3003 = vpop.f32.mrb[0].mxu0
  %v3004 = vadd.f32 0.0, %v3003
  %v3005 = vpop.f32.mrb[0].mxu0
  %v3006 = vadd.f32 0.0, %v3005
  %v3007 = vpop.f32.mrb[0].mxu0
  %v3008 = vadd.f32 0.0, %v3007
  %v3009 = vpop.f32.mrb[0].mxu0
  %v3010 = vadd.f32 0.0, %v3009
  %3011 = vmatprep.mubr.bf16.mxu0 0
  %3012 = vmatmul.mubr.bf16.gmra.mrb[0].mxu0 %v1233
  %v3013 = vpop.f32.mrb[0].mxu0
  %v3014 = vadd.f32 0.0, %v3013
  %v3015 = vpop.f32.mrb[0].mxu0
  %v3016 = vadd.f32 0.0, %v3015
  %v3017 = vpop.f32.mrb[0].mxu0
  %v3018 = vadd.f32 0.0, %v3017
  %v3019 = vpop.f32.mrb[0].mxu0
  %v3020 = vadd.f32 0.0, %v3019
  %3021 = vmatprep.mubr.bf16.mxu0 0
  %3022 = vmatmul.mubr.bf16.gmra.mrb[0].mxu0 %v1234
  %v3023 = vpop.f32.mrb[0].mxu0
  %v3024 = vadd.f32 0.0, %v3023
  %v3025 = vpop.f32.mrb[0].mxu0
  %v3026 = vadd.f32 0.0, %v3025
  %v3027 = vpop.f32.mrb[0].mxu0
  %v3028 = vadd.f32 0.0, %v3027
  %v3029 = vpop.f32.mrb[0].mxu0
  %v3030 = vadd.f32 0.0, %v3029
  %3031 = vmatprep.mubr.bf16.mxu0 0
  %3032 = vmatmul.mubr.bf16.gmra.mrb[0].mxu0 %v1235
  %v3033 = vpop.f32.mrb[0].mxu0
  %v3034 = vadd.f32 0.0, %v3033
  %v3035 = vpop.f32.mrb[0].mxu0
  %v3036 = vadd.f32 0.0, %v3035
  %v3037 = vpop.f32.mrb[0].mxu0
  %v3038 = vadd.f32 0.0, %v3037
  %v3039 = vpop.f32.mrb[0].mxu0
  %v3040 = vadd.f32 0.0, %v3039
  %3041 = vmatprep.mubr.bf16.mxu0 0
  %3042 = vmatmul.mubr.bf16.gmra.mrb[0].mxu0 %v1236
  %v3043 = vpop.f32.mrb[0].mxu0
  %v3044 = vadd.f32 0.0, %v3043
  %v3045 = vpop.f32.mrb[0].mxu0
  %v3046 = vadd.f32 0.0, %v3045
  %v3047 = vpop.f32.mrb[0].mxu0
  %v3048 = vadd.f32 0.0, %v3047
  %v3049 = vpop.f32.mrb[0].mxu0
  %v3050 = vadd.f32 0.0, %v3049
  %3051 = vmatprep.mubr.bf16.mxu0 0
  %3052 = vmatmul.mubr.bf16.gmra.mrb[0].mxu0 %v1237
  %v3053 = vpop.f32.mrb[0].mxu0
  %v3054 = vadd.f32 0.0, %v3053
  %v3055 = vpop.f32.mrb[0].mxu0
  %v3056 = vadd.f32 0.0, %v3055
  %v3057 = vpop.f32.mrb[0].mxu0
  %v3058 = vadd.f32 0.0, %v3057
  %v3059 = vpop.f32.mrb[0].mxu0
  %v3060 = vadd.f32 0.0, %v3059
  %3061 = vmatprep.mubr.bf16.mxu0 0
  %3062 = vmatmul.mubr.bf16.gmra.mrb[0].mxu0 %v1238
  %v3063 = vpop.f32.mrb[0].mxu0
  %v3064 = vadd.f32 0.0, %v3063
  %v3065 = vpop.f32.mrb[0].mxu0
  %v3066 = vadd.f32 0.0, %v3065
  %v3067 = vpop.f32.mrb[0].mxu0
  %v3068 = vadd.f32 0.0, %v3067
  %v3069 = vpop.f32.mrb[0].mxu0
  %v3070 = vadd.f32 0.0, %v3069
  %3071 = vmatprep.mubr.bf16.mxu0 0
  %3072 = vmatmul.mubr.bf16.gmra.mrb[0].mxu0 %v1239
  %v3073 = vpop.f32.mrb[0].mxu0
  %v3074 = vadd.f32 0.0, %v3073
  %v3075 = vpop.f32.mrb[0].mxu0
  %v3076 = vadd.f32 0.0, %v3075
  %v3077 = vpop.f32.mrb[0].mxu0
  %v3078 = vadd.f32 0.0, %v3077
  %v3079 = vpop.f32.mrb[0].mxu0
  %v3080 = vadd.f32 0.0, %v3079
  %3081 = vmatprep.mubr.bf16.mxu0 0
  %3082 = vmatmul.mubr.bf16.gmra.mrb[0].mxu0 %v1240
  %v3083 = vpop.f32.mrb[0].mxu0
  %v3084 = vadd.f32 0.0, %v3083
  %v3085 = vpop.f32.mrb[0].mxu0
  %v3086 = vadd.f32 0.0, %v3085
  %v3087 = vpop.f32.mrb[0].mxu0
  %v3088 = vadd.f32 0.0, %v3087
  %v3089 = vpop.f32.mrb[0].mxu0
  %v3090 = vadd.f32 0.0, %v3089
  %3091 = vmatprep.mubr.bf16.mxu0 0
  %3092 = vmatmul.mubr.bf16.gmra.mrb[0].mxu0 %v1241
  %v3093 = vpop.f32.mrb[0].mxu0
  %v3094 = vadd.f32 0.0, %v3093
  %v3095 = vpop.f32.mrb[0].mxu0
  %v3096 = vadd.f32 0.0, %v3095
  %v3097 = vpop.f32.mrb[0].mxu0
  %v3098 = vadd.f32 0.0, %v3097
  %v3099 = vpop.f32.mrb[0].mxu0
  %v3100 = vadd.f32 0.0, %v3099
  %3101 = vmatprep.mubr.bf16.mxu0 0
  %3102 = vmatmul.mubr.bf16.gmra.mrb[0].mxu0 %v1242
  %v3103 = vpop.f32.mrb[0].mxu0
  %v3104 = vadd.f32 0.0, %v3103
  %v3105 = vpop.f32.mrb[0].mxu0
  %v3106 = vadd.f32 0.0, %v3105
  %v3107 = vpop.f32.mrb[0].mxu0
  %v3108 = vadd.f32 0.0, %v3107
  %v3109 = vpop.f32.mrb[0].mxu0
  %v3110 = vadd.f32 0.0, %v3109
  %3111 = vmatprep.mubr.bf16.mxu0 0
  %3112 = vmatmul.mubr.bf16.gmra.mrb[0].mxu0 %v1243
  %v3113 = vpop.f32.mrb[0].mxu0
  %v3114 = vadd.f32 0.0, %v3113
  %v3115 = vpop.f32.mrb[0].mxu0
  %v3116 = vadd.f32 0.0, %v3115
  %v3117 = vpop.f32.mrb[0].mxu0
  %v3118 = vadd.f32 0.0, %v3117
  %v3119 = vpop.f32.mrb[0].mxu0
  %v3120 = vadd.f32 0.0, %v3119
  %3121 = vmatprep.mubr.bf16.mxu0 0
  %3122 = vmatmul.mubr.bf16.gmra.mrb[0].mxu0 %v1244
  %v3123 = vpop.f32.mrb[0].mxu0
  %v3124 = vadd.f32 0.0, %v3123
  %v3125 = vpop.f32.mrb[0].mxu0
  %v3126 = vadd.f32 0.0, %v3125
  %v3127 = vpop.f32.mrb[0].mxu0
  %v3128 = vadd.f32 0.0, %v3127
  %v3129 = vpop.f32.mrb[0].mxu0
  %v3130 = vadd.f32 0.0, %v3129
  %3131 = vmatprep.mubr.bf16.mxu0 0
  %3132 = vmatmul.mubr.bf16.gmra.mrb[0].mxu0 %v1245
  %v3133 = vpop.f32.mrb[0].mxu0
  %v3134 = vadd.f32 0.0, %v3133
  %v3135 = vpop.f32.mrb[0].mxu0
  %v3136 = vadd.f32 0.0, %v3135
  %v3137 = vpop.f32.mrb[0].mxu0
  %v3138 = vadd.f32 0.0, %v3137
  %v3139 = vpop.f32.mrb[0].mxu0
  %v3140 = vadd.f32 0.0, %v3139
  %3141 = vmatprep.mubr.bf16.mxu0 0
  %3142 = vmatmul.mubr.bf16.gmra.mrb[0].mxu0 %v1246
  %v3143 = vpop.f32.mrb[0].mxu0
  %v3144 = vadd.f32 0.0, %v3143
  %v3145 = vpop.f32.mrb[0].mxu0
  %v3146 = vadd.f32 0.0, %v3145
  %v3147 = vpop.f32.mrb[0].mxu0
  %v3148 = vadd.f32 0.0, %v3147
  %v3149 = vpop.f32.mrb[0].mxu0
  %v3150 = vadd.f32 0.0, %v3149
  %3151 = vmatprep.mubr.bf16.mxu0 0
  %3152 = vmatmul.mubr.bf16.gmra.mrb[0].mxu0 %v1247
  %v3153 = vpop.f32.mrb[0].mxu0
  %v3154 = vadd.f32 0.0, %v3153
  %v3155 = vpop.f32.mrb[0].mxu0
  %v3156 = vadd.f32 0.0, %v3155
  %v3157 = vpop.f32.mrb[0].mxu0
  %v3158 = vadd.f32 0.0, %v3157
  %v3159 = vpop.f32.mrb[0].mxu0
  %v3160 = vadd.f32 0.0, %v3159
  %3161 = vmatprep.mubr.bf16.mxu0 0
  %3162 = vmatmul.mubr.bf16.gmra.mrb[0].mxu0 %v1248
  %v3163 = vpop.f32.mrb[0].mxu0
  %v3164 = vadd.f32 0.0, %v3163
  %v3165 = vpop.f32.mrb[0].mxu0
  %v3166 = vadd.f32 0.0, %v3165
  %v3167 = vpop.f32.mrb[0].mxu0
  %v3168 = vadd.f32 0.0, %v3167
  %v3169 = vpop.f32.mrb[0].mxu0
  %v3170 = vadd.f32 0.0, %v3169
  %3171 = vmatprep.mubr.bf16.mxu0 0
  %3172 = vmatmul.mubr.bf16.gmra.mrb[0].mxu0 %v1249
  %v3173 = vpop.f32.mrb[0].mxu0
  %v3174 = vadd.f32 0.0, %v3173
  %v3175 = vpop.f32.mrb[0].mxu0
  %v3176 = vadd.f32 0.0, %v3175
  %v3177 = vpop.f32.mrb[0].mxu0
  %v3178 = vadd.f32 0.0, %v3177
  %v3179 = vpop.f32.mrb[0].mxu0
  %v3180 = vadd.f32 0.0, %v3179
  %3181 = vmatprep.mubr.bf16.mxu0 0
  %3182 = vmatmul.mubr.bf16.gmra.mrb[0].mxu0 %v1250
  %v3183 = vpop.f32.mrb[0].mxu0
  %v3184 = vadd.f32 0.0, %v3183
  %v3185 = vpop.f32.mrb[0].mxu0
  %v3186 = vadd.f32 0.0, %v3185
  %v3187 = vpop.f32.mrb[0].mxu0
  %v3188 = vadd.f32 0.0, %v3187
  %v3189 = vpop.f32.mrb[0].mxu0
  %v3190 = vadd.f32 0.0, %v3189
  %3191 = vmatprep.mubr.bf16.mxu0 0
  %3192 = vmatmul.mubr.bf16.gmra.mrb[0].mxu0 %v1251
  %v3193 = vpop.f32.mrb[0].mxu0
  %v3194 = vadd.f32 0.0, %v3193
  %v3195 = vpop.f32.mrb[0].mxu0
  %v3196 = vadd.f32 0.0, %v3195
  %v3197 = vpop.f32.mrb[0].mxu0
  %v3198 = vadd.f32 0.0, %v3197
  %v3199 = vpop.f32.mrb[0].mxu0
  %v3200 = vadd.f32 0.0, %v3199
  %3201 = vmatprep.mubr.bf16.mxu0 0
  %3202 = vmatmul.mubr.bf16.gmra.mrb[0].mxu0 %v1252
  %v3203 = vpop.f32.mrb[0].mxu0
  %v3204 = vadd.f32 0.0, %v3203
  %v3205 = vpop.f32.mrb[0].mxu0
  %v3206 = vadd.f32 0.0, %v3205
  %v3207 = vpop.f32.mrb[0].mxu0
  %v3208 = vadd.f32 0.0, %v3207
  %v3209 = vpop.f32.mrb[0].mxu0
  %v3210 = vadd.f32 0.0, %v3209
  %3211 = vmatprep.mubr.bf16.mxu0 0
  %3212 = vmatmul.mubr.bf16.gmra.mrb[0].mxu0 %v1253
  %v3213 = vpop.f32.mrb[0].mxu0
  %v3214 = vadd.f32 0.0, %v3213
  %v3215 = vpop.f32.mrb[0].mxu0
  %v3216 = vadd.f32 0.0, %v3215
  %v3217 = vpop.f32.mrb[0].mxu0
  %v3218 = vadd.f32 0.0, %v3217
  %v3219 = vpop.f32.mrb[0].mxu0
  %v3220 = vadd.f32 0.0, %v3219
  %3221 = vmatprep.mubr.bf16.mxu0 0
  %3222 = vmatmul.mubr.bf16.gmra.mrb[0].mxu0 %v1254
  %v3223 = vpop.f32.mrb[0].mxu0
  %v3224 = vadd.f32 0.0, %v3223
  %v3225 = vpop.f32.mrb[0].mxu0
  %v3226 = vadd.f32 0.0, %v3225
  %v3227 = vpop.f32.mrb[0].mxu0
  %v3228 = vadd.f32 0.0, %v3227
  %v3229 = vpop.f32.mrb[0].mxu0
  %v3230 = vadd.f32 0.0, %v3229
  %3231 = vmatprep.mubr.bf16.mxu0 0
  %3232 = vmatmul.mubr.bf16.gmra.mrb[0].mxu0 %v1255
  %v3233 = vpop.f32.mrb[0].mxu0
  %v3234 = vadd.f32 0.0, %v3233
  %v3235 = vpop.f32.mrb[0].mxu0
  %v3236 = vadd.f32 0.0, %v3235
  %v3237 = vpop.f32.mrb[0].mxu0
  %v3238 = vadd.f32 0.0, %v3237
  %v3239 = vpop.f32.mrb[0].mxu0
  %v3240 = vadd.f32 0.0, %v3239
  %3241 = vmatprep.mubr.bf16.mxu0 0
  %3242 = vmatmul.mubr.bf16.gmra.mrb[0].mxu0 %v1256
  %v3243 = vpop.f32.mrb[0].mxu0
  %v3244 = vadd.f32 0.0, %v3243
  %v3245 = vpop.f32.mrb[0].mxu0
  %v3246 = vadd.f32 0.0, %v3245
  %v3247 = vpop.f32.mrb[0].mxu0
  %v3248 = vadd.f32 0.0, %v3247
  %v3249 = vpop.f32.mrb[0].mxu0
  %v3250 = vadd.f32 0.0, %v3249
  %3251 = vmatprep.mubr.bf16.mxu0 0
  %3252 = vmatmul.mubr.bf16.gmra.mrb[0].mxu0 %v1257
  %v3253 = vpop.f32.mrb[0].mxu0
  %v3254 = vadd.f32 0.0, %v3253
  %v3255 = vpop.f32.mrb[0].mxu0
  %v3256 = vadd.f32 0.0, %v3255
  %v3257 = vpop.f32.mrb[0].mxu0
  %v3258 = vadd.f32 0.0, %v3257
  %v3259 = vpop.f32.mrb[0].mxu0
  %v3260 = vadd.f32 0.0, %v3259
  %3261 = vmatprep.mubr.bf16.mxu0 0
  %3262 = vmatmul.mubr.bf16.gmra.mrb[0].mxu0 %v1258
  %v3263 = vpop.f32.mrb[0].mxu0
  %v3264 = vadd.f32 0.0, %v3263
  %v3265 = vpop.f32.mrb[0].mxu0
  %v3266 = vadd.f32 0.0, %v3265
  %v3267 = vpop.f32.mrb[0].mxu0
  %v3268 = vadd.f32 0.0, %v3267
  %v3269 = vpop.f32.mrb[0].mxu0
  %v3270 = vadd.f32 0.0, %v3269
  %3271 = vmatprep.mubr.bf16.mxu0 0
  %3272 = vmatmul.mubr.bf16.gmra.mrb[0].mxu0 %v1259
  %v3273 = vpop.f32.mrb[0].mxu0
  %v3274 = vadd.f32 0.0, %v3273
  %v3275 = vpop.f32.mrb[0].mxu0
  %v3276 = vadd.f32 0.0, %v3275
  %v3277 = vpop.f32.mrb[0].mxu0
  %v3278 = vadd.f32 0.0, %v3277
  %v3279 = vpop.f32.mrb[0].mxu0
  %v3280 = vadd.f32 0.0, %v3279
  %3281 = vmatprep.mubr.bf16.mxu0 0
  %3282 = vmatmul.mubr.bf16.gmra.mrb[0].mxu0 %v1260
  %v3283 = vpop.f32.mrb[0].mxu0
  %v3284 = vadd.f32 0.0, %v3283
  %v3285 = vpop.f32.mrb[0].mxu0
  %v3286 = vadd.f32 0.0, %v3285
  %v3287 = vpop.f32.mrb[0].mxu0
  %v3288 = vadd.f32 0.0, %v3287
  %v3289 = vpop.f32.mrb[0].mxu0
  %v3290 = vadd.f32 0.0, %v3289
  %3291 = vmatprep.mubr.bf16.mxu0 0
  %3292 = vmatmul.mubr.bf16.gmra.mrb[0].mxu0 %v1261
  %v3293 = vpop.f32.mrb[0].mxu0
  %v3294 = vadd.f32 0.0, %v3293
  %v3295 = vpop.f32.mrb[0].mxu0
  %v3296 = vadd.f32 0.0, %v3295
  %v3297 = vpop.f32.mrb[0].mxu0
  %v3298 = vadd.f32 0.0, %v3297
  %v3299 = vpop.f32.mrb[0].mxu0
  %v3300 = vadd.f32 0.0, %v3299
  %3301 = vmatprep.mubr.bf16.mxu0 0
  %3302 = vmatmul.mubr.bf16.gmra.mrb[0].mxu0 %v1262
  %v3303 = vpop.f32.mrb[0].mxu0
  %v3304 = vadd.f32 0.0, %v3303
  %v3305 = vpop.f32.mrb[0].mxu0
  %v3306 = vadd.f32 0.0, %v3305
  %v3307 = vpop.f32.mrb[0].mxu0
  %v3308 = vadd.f32 0.0, %v3307
  %v3309 = vpop.f32.mrb[0].mxu0
  %v3310 = vadd.f32 0.0, %v3309
  %3311 = vdwg.mxu0
  %v3312 = vmax.f32 %v1554, %v1608
  %v3313 = vmax.f32 %v1556, %v1610
  %v3314 = vmax.f32 %v1558, %v1614
  %v3315 = vmax.f32 %v1560, %v1616
  %v3316 = vmax.f32 %v1564, %v1618
  %v3317 = vmax.f32 %v1566, %v1620
  %v3318 = vmax.f32 %v1568, %v1624
  %v3319 = vmax.f32 %v1570, %v1626
  %v3320 = vmax.f32 %v1574, %v1628
  %v3321 = vmax.f32 %v1576, %v1630
  %v3322 = vmax.f32 %v1578, %v1634
  %v3323 = vmax.f32 %v1580, %v1636
  %v3324 = vmax.f32 %v1584, %v1638
  %v3325 = vmax.f32 %v1586, %v1640
  %v3326 = vmax.f32 %v1588, %v1644
  %v3327 = vmax.f32 %v1590, %v1646
  %v3328 = vmax.f32 %v1594, %v1648
  %v3329 = vmax.f32 %v1596, %v1650
  %v3330 = vmax.f32 %v1598, %v1654
  %v3331 = vmax.f32 %v1600, %v1656
  %v3332 = vmax.f32 %v1604, %v1658
  %v3333 = vmax.f32 %v1606, %v1660
  %v3334 = vmax.f32 %v1774, %v1828
  %v3335 = vmax.f32 %v1776, %v1830
  %v3336 = vmax.f32 %v1778, %v1834
  %v3337 = vmax.f32 %v1780, %v1836
  %v3338 = vmax.f32 %v1784, %v1838
  %v3339 = vmax.f32 %v1786, %v1840
  %v3340 = vmax.f32 %v1788, %v1844
  %v3341 = vmax.f32 %v1790, %v1846
  %v3342 = vmax.f32 %v1794, %v1848
  %v3343 = vmax.f32 %v1796, %v1850
  %v3344 = vmax.f32 %v1798, %v1854
  %v3345 = vmax.f32 %v1800, %v1856
  %v3346 = vmax.f32 %v1804, %v1858
  %v3347 = vmax.f32 %v1806, %v1860
  %v3348 = vmax.f32 %v1808, %v1864
  %v3349 = vmax.f32 %v1810, %v1866
  %v3350 = vmax.f32 %v1814, %v1868
  %v3351 = vmax.f32 %v1816, %v1870
  %v3352 = vmax.f32 %v1818, %v1874
  %v3353 = vmax.f32 %v1820, %v1876
  %v3354 = vmax.f32 %v1824, %v1878
  %v3355 = vmax.f32 %v1826, %v1880
  %v3356 = vmax.f32 %v1994, %v2048
  %v3357 = vmax.f32 %v1996, %v2050
  %v3358 = vmax.f32 %v1998, %v2054
  %v3359 = vmax.f32 %v2000, %v2056
  %v3360 = vmax.f32 %v2004, %v2058
  %v3361 = vmax.f32 %v2006, %v2060
  %v3362 = vmax.f32 %v2008, %v2064
  %v3363 = vmax.f32 %v2010, %v2066
  %v3364 = vmax.f32 %v2014, %v2068
  %v3365 = vmax.f32 %v2016, %v2070
  %v3366 = vmax.f32 %v2018, %v2074
  %v3367 = vmax.f32 %v2020, %v2076
  %v3368 = vmax.f32 %v2024, %v2078
  %v3369 = vmax.f32 %v2026, %v2080
  %v3370 = vmax.f32 %v2028, %v2084
  %v3371 = vmax.f32 %v2030, %v2086
  %v3372 = vmax.f32 %v2034, %v2088
  %v3373 = vmax.f32 %v2036, %v2090
  %v3374 = vmax.f32 %v2038, %v2094
  %v3375 = vmax.f32 %v2040, %v2096
  %v3376 = vmax.f32 %v2044, %v2098
  %v3377 = vmax.f32 %v2046, %v2100
  %v3378 = vmax.f32 %v2214, %v2268
  %v3379 = vmax.f32 %v2216, %v2270
  %v3380 = vmax.f32 %v2218, %v2274
  %v3381 = vmax.f32 %v2220, %v2276
  %v3382 = vmax.f32 %v2224, %v2278
  %v3383 = vmax.f32 %v2226, %v2280
  %v3384 = vmax.f32 %v2228, %v2284
  %v3385 = vmax.f32 %v2230, %v2286
  %v3386 = vmax.f32 %v2234, %v2288
  %v3387 = vmax.f32 %v2236, %v2290
  %v3388 = vmax.f32 %v2238, %v2294
  %v3389 = vmax.f32 %v2240, %v2296
  %v3390 = vmax.f32 %v2244, %v2298
  %v3391 = vmax.f32 %v2246, %v2300
  %v3392 = vmax.f32 %v2248, %v2304
  %v3393 = vmax.f32 %v2250, %v2306
  %v3394 = vmax.f32 %v2254, %v2308
  %v3395 = vmax.f32 %v2256, %v2310
  %v3396 = vmax.f32 %v2258, %v2314
  %v3397 = vmax.f32 %v2260, %v2316
  %v3398 = vmax.f32 %v2264, %v2318
  %v3399 = vmax.f32 %v2266, %v2320
  %v3400 = vmax.f32 %v2434, %v2488
  %v3401 = vmax.f32 %v2436, %v2490
  %v3402 = vmax.f32 %v2438, %v2494
  %v3403 = vmax.f32 %v2440, %v2496
  %v3404 = vmax.f32 %v2444, %v2498
  %v3405 = vmax.f32 %v2446, %v2500
  %v3406 = vmax.f32 %v2448, %v2504
  %v3407 = vmax.f32 %v2450, %v2506
  %v3408 = vmax.f32 %v2454, %v2508
  %v3409 = vmax.f32 %v2456, %v2510
  %v3410 = vmax.f32 %v2458, %v2514
  %v3411 = vmax.f32 %v2460, %v2516
  %v3412 = vmax.f32 %v2464, %v2518
  %v3413 = vmax.f32 %v2466, %v2520
  %v3414 = vmax.f32 %v2468, %v2524
  %v3415 = vmax.f32 %v2470, %v2526
  %v3416 = vmax.f32 %v2474, %v2528
  %v3417 = vmax.f32 %v2476, %v2530
  %v3418 = vmax.f32 %v2478, %v2534
  %v3419 = vmax.f32 %v2480, %v2536
  %v3420 = vmax.f32 %v2484, %v2538
  %v3421 = vmax.f32 %v2486, %v2540
  %v3422 = vmax.f32 %v2654, %v2708
  %v3423 = vmax.f32 %v2656, %v2710
  %v3424 = vmax.f32 %v2658, %v2714
  %v3425 = vmax.f32 %v2660, %v2716
  %v3426 = vmax.f32 %v2664, %v2718
  %v3427 = vmax.f32 %v2666, %v2720
  %v3428 = vmax.f32 %v2668, %v2724
  %v3429 = vmax.f32 %v2670, %v2726
  %v3430 = vmax.f32 %v2674, %v2728
  %v3431 = vmax.f32 %v2676, %v2730
  %v3432 = vmax.f32 %v2678, %v2734
  %v3433 = vmax.f32 %v2680, %v2736
  %v3434 = vmax.f32 %v2684, %v2738
  %v3435 = vmax.f32 %v2686, %v2740
  %v3436 = vmax.f32 %v2688, %v2744
  %v3437 = vmax.f32 %v2690, %v2746
  %v3438 = vmax.f32 %v2694, %v2748
  %v3439 = vmax.f32 %v2696, %v2750
  %v3440 = vmax.f32 %v2698, %v2754
  %v3441 = vmax.f32 %v2700, %v2756
  %v3442 = vmax.f32 %v2704, %v2758
  %v3443 = vmax.f32 %v2706, %v2760
  %v3444 = vmax.f32 %v2874, %v2928
  %v3445 = vmax.f32 %v2876, %v2930
  %v3446 = vmax.f32 %v2878, %v2934
  %v3447 = vmax.f32 %v2880, %v2936
  %v3448 = vmax.f32 %v2884, %v2938
  %v3449 = vmax.f32 %v2886, %v2940
  %v3450 = vmax.f32 %v2888, %v2944
  %v3451 = vmax.f32 %v2890, %v2946
  %v3452 = vmax.f32 %v2894, %v2948
  %v3453 = vmax.f32 %v2896, %v2950
  %v3454 = vmax.f32 %v2898, %v2954
  %v3455 = vmax.f32 %v2900, %v2956
  %v3456 = vmax.f32 %v2904, %v2958
  %v3457 = vmax.f32 %v2906, %v2960
  %v3458 = vmax.f32 %v2908, %v2964
  %v3459 = vmax.f32 %v2910, %v2966
  %v3460 = vmax.f32 %v2914, %v2968
  %v3461 = vmax.f32 %v2916, %v2970
  %v3462 = vmax.f32 %v2918, %v2974
  %v3463 = vmax.f32 %v2920, %v2976
  %v3464 = vmax.f32 %v2924, %v2978
  %v3465 = vmax.f32 %v2926, %v2980
  %v3466 = vmax.f32 %v3094, %v3148
  %v3467 = vmax.f32 %v3096, %v3150
  %v3468 = vmax.f32 %v3098, %v3154
  %v3469 = vmax.f32 %v3100, %v3156
  %v3470 = vmax.f32 %v3104, %v3158
  %v3471 = vmax.f32 %v3106, %v3160
  %v3472 = vmax.f32 %v3108, %v3164
  %v3473 = vmax.f32 %v3110, %v3166
  %v3474 = vmax.f32 %v3114, %v3168
  %v3475 = vmax.f32 %v3116, %v3170
  %v3476 = vmax.f32 %v3118, %v3174
  %v3477 = vmax.f32 %v3120, %v3176
  %v3478 = vmax.f32 %v3124, %v3178
  %v3479 = vmax.f32 %v3126, %v3180
  %v3480 = vmax.f32 %v3128, %v3184
  %v3481 = vmax.f32 %v3130, %v3186
  %v3482 = vmax.f32 %v3134, %v3188
  %v3483 = vmax.f32 %v3136, %v3190
  %v3484 = vmax.f32 %v3138, %v3194
  %v3485 = vmax.f32 %v3140, %v3196
  %v3486 = vmax.f32 %v3144, %v3198
  %v3487 = vmax.f32 %v3146, %v3200
  %v3488 = vmax.f32 %v1664, %v1718
  %v3489 = vmax.f32 %v1666, %v1720
  %v3490 = vmax.f32 %v1668, %v1724
  %v3491 = vmax.f32 %v1670, %v1726
  %v3492 = vmax.f32 %v1674, %v1728
  %v3493 = vmax.f32 %v1676, %v1730
  %v3494 = vmax.f32 %v1678, %v1734
  %v3495 = vmax.f32 %v1680, %v1736
  %v3496 = vmax.f32 %v1684, %v1738
  %v3497 = vmax.f32 %v1686, %v1740
  %v3498 = vmax.f32 %v1688, %v1744
  %v3499 = vmax.f32 %v1690, %v1746
  %v3500 = vmax.f32 %v1694, %v1748
  %v3501 = vmax.f32 %v1696, %v1750
  %v3502 = vmax.f32 %v1698, %v1754
  %v3503 = vmax.f32 %v1700, %v1756
  %v3504 = vmax.f32 %v1704, %v1758
  %v3505 = vmax.f32 %v1706, %v1760
  %v3506 = vmax.f32 %v1708, %v1764
  %v3507 = vmax.f32 %v1710, %v1766
  %v3508 = vmax.f32 %v1714, %v1768
  %v3509 = vmax.f32 %v1716, %v1770
  %v3510 = vmax.f32 %v1884, %v1938
  %v3511 = vmax.f32 %v1886, %v1940
  %v3512 = vmax.f32 %v1888, %v1944
  %v3513 = vmax.f32 %v1890, %v1946
  %v3514 = vmax.f32 %v1894, %v1948
  %v3515 = vmax.f32 %v1896, %v1950
  %v3516 = vmax.f32 %v1898, %v1954
  %v3517 = vmax.f32 %v1900, %v1956
  %v3518 = vmax.f32 %v1904, %v1958
  %v3519 = vmax.f32 %v1906, %v1960
  %v3520 = vmax.f32 %v1908, %v1964
  %v3521 = vmax.f32 %v1910, %v1966
  %v3522 = vmax.f32 %v1914, %v1968
  %v3523 = vmax.f32 %v1916, %v1970
  %v3524 = vmax.f32 %v1918, %v1974
  %v3525 = vmax.f32 %v1920, %v1976
  %v3526 = vmax.f32 %v1924, %v1978
  %v3527 = vmax.f32 %v1926, %v1980
  %v3528 = vmax.f32 %v1928, %v1984
  %v3529 = vmax.f32 %v1930, %v1986
  %v3530 = vmax.f32 %v1934, %v1988
  %v3531 = vmax.f32 %v1936, %v1990
  %v3532 = vmax.f32 %v2104, %v2158
  %v3533 = vmax.f32 %v2106, %v2160
  %v3534 = vmax.f32 %v2108, %v2164
  %v3535 = vmax.f32 %v2110, %v2166
  %v3536 = vmax.f32 %v2114, %v2168
  %v3537 = vmax.f32 %v2116, %v2170
  %v3538 = vmax.f32 %v2118, %v2174
  %v3539 = vmax.f32 %v2120, %v2176
  %v3540 = vmax.f32 %v2124, %v2178
  %v3541 = vmax.f32 %v2126, %v2180
  %v3542 = vmax.f32 %v2128, %v2184
  %v3543 = vmax.f32 %v2130, %v2186
  %v3544 = vmax.f32 %v2134, %v2188
  %v3545 = vmax.f32 %v2136, %v2190
  %v3546 = vmax.f32 %v2138, %v2194
  %v3547 = vmax.f32 %v2140, %v2196
  %v3548 = vmax.f32 %v2144, %v2198
  %v3549 = vmax.f32 %v2146, %v2200
  %v3550 = vmax.f32 %v2148, %v2204
  %v3551 = vmax.f32 %v2150, %v2206
  %v3552 = vmax.f32 %v2154, %v2208
  %v3553 = vmax.f32 %v2156, %v2210
  %v3554 = vmax.f32 %v2324, %v2378
  %v3555 = vmax.f32 %v2326, %v2380
  %v3556 = vmax.f32 %v2328, %v2384
  %v3557 = vmax.f32 %v2330, %v2386
  %v3558 = vmax.f32 %v2334, %v2388
  %v3559 = vmax.f32 %v2336, %v2390
  %v3560 = vmax.f32 %v2338, %v2394
  %v3561 = vmax.f32 %v2340, %v2396
  %v3562 = vmax.f32 %v2344, %v2398
  %v3563 = vmax.f32 %v2346, %v2400
  %v3564 = vmax.f32 %v2348, %v2404
  %v3565 = vmax.f32 %v2350, %v2406
  %v3566 = vmax.f32 %v2354, %v2408
  %v3567 = vmax.f32 %v2356, %v2410
  %v3568 = vmax.f32 %v2358, %v2414
  %v3569 = vmax.f32 %v2360, %v2416
  %v3570 = vmax.f32 %v2364, %v2418
  %v3571 = vmax.f32 %v2366, %v2420
  %v3572 = vmax.f32 %v2368, %v2424
  %v3573 = vmax.f32 %v2370, %v2426
  %v3574 = vmax.f32 %v2374, %v2428
  %v3575 = vmax.f32 %v2376, %v2430
  %v3576 = vmax.f32 %v2544, %v2598
  %v3577 = vmax.f32 %v2546, %v2600
  %v3578 = vmax.f32 %v2548, %v2604
  %v3579 = vmax.f32 %v2550, %v2606
  %v3580 = vmax.f32 %v2554, %v2608
  %v3581 = vmax.f32 %v2556, %v2610
  %v3582 = vmax.f32 %v2558, %v2614
  %v3583 = vmax.f32 %v2560, %v2616
  %v3584 = vmax.f32 %v2564, %v2618
  %v3585 = vmax.f32 %v2566, %v2620
  %v3586 = vmax.f32 %v2568, %v2624
  %v3587 = vmax.f32 %v2570, %v2626
  %v3588 = vmax.f32 %v2574, %v2628
  %v3589 = vmax.f32 %v2576, %v2630
  %v3590 = vmax.f32 %v2578, %v2634
  %v3591 = vmax.f32 %v2580, %v2636
  %v3592 = vmax.f32 %v2584, %v2638
  %v3593 = vmax.f32 %v2586, %v2640
  %v3594 = vmax.f32 %v2588, %v2644
  %v3595 = vmax.f32 %v2590, %v2646
  %v3596 = vmax.f32 %v2594, %v2648
  %v3597 = vmax.f32 %v2596, %v2650
  %v3598 = vmax.f32 %v2764, %v2818
  %v3599 = vmax.f32 %v2766, %v2820
  %v3600 = vmax.f32 %v2768, %v2824
  %v3601 = vmax.f32 %v2770, %v2826
  %v3602 = vmax.f32 %v2774, %v2828
  %v3603 = vmax.f32 %v2776, %v2830
  %v3604 = vmax.f32 %v2778, %v2834
  %v3605 = vmax.f32 %v2780, %v2836
  %v3606 = vmax.f32 %v2784, %v2838
  %v3607 = vmax.f32 %v2786, %v2840
  %v3608 = vmax.f32 %v2788, %v2844
  %v3609 = vmax.f32 %v2790, %v2846
  %v3610 = vmax.f32 %v2794, %v2848
  %v3611 = vmax.f32 %v2796, %v2850
  %v3612 = vmax.f32 %v2798, %v2854
  %v3613 = vmax.f32 %v2800, %v2856
  %v3614 = vmax.f32 %v2804, %v2858
  %v3615 = vmax.f32 %v2806, %v2860
  %v3616 = vmax.f32 %v2808, %v2864
  %v3617 = vmax.f32 %v2810, %v2866
  %v3618 = vmax.f32 %v2814, %v2868
  %v3619 = vmax.f32 %v2816, %v2870
  %v3620 = vmax.f32 %v2984, %v3038
  %v3621 = vmax.f32 %v2986, %v3040
  %v3622 = vmax.f32 %v2988, %v3044
  %v3623 = vmax.f32 %v2990, %v3046
  %v3624 = vmax.f32 %v2994, %v3048
  %v3625 = vmax.f32 %v2996, %v3050
  %v3626 = vmax.f32 %v2998, %v3054
  %v3627 = vmax.f32 %v3000, %v3056
  %v3628 = vmax.f32 %v3004, %v3058
  %v3629 = vmax.f32 %v3006, %v3060
  %v3630 = vmax.f32 %v3008, %v3064
  %v3631 = vmax.f32 %v3010, %v3066
  %v3632 = vmax.f32 %v3014, %v3068
  %v3633 = vmax.f32 %v3016, %v3070
  %v3634 = vmax.f32 %v3018, %v3074
  %v3635 = vmax.f32 %v3020, %v3076
  %v3636 = vmax.f32 %v3024, %v3078
  %v3637 = vmax.f32 %v3026, %v3080
  %v3638 = vmax.f32 %v3028, %v3084
  %v3639 = vmax.f32 %v3030, %v3086
  %v3640 = vmax.f32 %v3034, %v3088
  %v3641 = vmax.f32 %v3036, %v3090
  %v3642 = vmax.f32 %v3204, %v3258
  %v3643 = vmax.f32 %v3206, %v3260
  %v3644 = vmax.f32 %v3208, %v3264
  %v3645 = vmax.f32 %v3210, %v3266
  %v3646 = vmax.f32 %v3214, %v3268
  %v3647 = vmax.f32 %v3216, %v3270
  %v3648 = vmax.f32 %v3218, %v3274
  %v3649 = vmax.f32 %v3220, %v3276
  %v3650 = vmax.f32 %v3224, %v3278
  %v3651 = vmax.f32 %v3226, %v3280
  %v3652 = vmax.f32 %v3228, %v3284
  %v3653 = vmax.f32 %v3230, %v3286
  %v3654 = vmax.f32 %v3234, %v3288
  %v3655 = vmax.f32 %v3236, %v3290
  %v3656 = vmax.f32 %v3238, %v3294
  %v3657 = vmax.f32 %v3240, %v3296
  %v3658 = vmax.f32 %v3244, %v3298
  %v3659 = vmax.f32 %v3246, %v3300
  %v3660 = vmax.f32 %v3248, %v3304
  %v3661 = vmax.f32 %v3250, %v3306
  %v3662 = vmax.f32 %v3254, %v3308
  %v3663 = vmax.f32 %v3256, %v3310
  %v3664 = vmax.f32 %v3312, %v3488
  %v3665 = vmax.f32 %v3313, %v3489
  %v3666 = vmax.f32 %v3314, %v3490
  %v3667 = vmax.f32 %v3315, %v3491
  %v3668 = vmax.f32 %v3316, %v3492
  %v3669 = vmax.f32 %v3317, %v3493
  %v3670 = vmax.f32 %v3318, %v3494
  %v3671 = vmax.f32 %v3319, %v3495
  %v3672 = vmax.f32 %v3320, %v3496
  %v3673 = vmax.f32 %v3321, %v3497
  %v3674 = vmax.f32 %v3322, %v3498
  %v3675 = vmax.f32 %v3323, %v3499
  %v3676 = vmax.f32 %v3324, %v3500
  %v3677 = vmax.f32 %v3325, %v3501
  %v3678 = vmax.f32 %v3326, %v3502
  %v3679 = vmax.f32 %v3327, %v3503
  %v3680 = vmax.f32 %v3328, %v3504
  %v3681 = vmax.f32 %v3329, %v3505
  %v3682 = vmax.f32 %v3330, %v3506
  %v3683 = vmax.f32 %v3331, %v3507
  %v3684 = vmax.f32 %v3332, %v3508
  %v3685 = vmax.f32 %v3333, %v3509
  %v3686 = vmax.f32 %v3334, %v3510
  %v3687 = vmax.f32 %v3335, %v3511
  %v3688 = vmax.f32 %v3336, %v3512
  %v3689 = vmax.f32 %v3337, %v3513
  %v3690 = vmax.f32 %v3338, %v3514
  %v3691 = vmax.f32 %v3339, %v3515
  %v3692 = vmax.f32 %v3340, %v3516
  %v3693 = vmax.f32 %v3341, %v3517
  %v3694 = vmax.f32 %v3342, %v3518
  %v3695 = vmax.f32 %v3343, %v3519
  %v3696 = vmax.f32 %v3344, %v3520
  %v3697 = vmax.f32 %v3345, %v3521
  %v3698 = vmax.f32 %v3346, %v3522
  %v3699 = vmax.f32 %v3347, %v3523
  %v3700 = vmax.f32 %v3348, %v3524
  %v3701 = vmax.f32 %v3349, %v3525
  %v3702 = vmax.f32 %v3350, %v3526
  %v3703 = vmax.f32 %v3351, %v3527
  %v3704 = vmax.f32 %v3352, %v3528
  %v3705 = vmax.f32 %v3353, %v3529
  %v3706 = vmax.f32 %v3354, %v3530
  %v3707 = vmax.f32 %v3355, %v3531
  %v3708 = vmax.f32 %v3356, %v3532
  %v3709 = vmax.f32 %v3357, %v3533
  %v3710 = vmax.f32 %v3358, %v3534
  %v3711 = vmax.f32 %v3359, %v3535
  %v3712 = vmax.f32 %v3360, %v3536
  %v3713 = vmax.f32 %v3361, %v3537
  %v3714 = vmax.f32 %v3362, %v3538
  %v3715 = vmax.f32 %v3363, %v3539
  %v3716 = vmax.f32 %v3364, %v3540
  %v3717 = vmax.f32 %v3365, %v3541
  %v3718 = vmax.f32 %v3366, %v3542
  %v3719 = vmax.f32 %v3367, %v3543
  %v3720 = vmax.f32 %v3368, %v3544
  %v3721 = vmax.f32 %v3369, %v3545
  %v3722 = vmax.f32 %v3370, %v3546
  %v3723 = vmax.f32 %v3371, %v3547
  %v3724 = vmax.f32 %v3372, %v3548
  %v3725 = vmax.f32 %v3373, %v3549
  %v3726 = vmax.f32 %v3374, %v3550
  %v3727 = vmax.f32 %v3375, %v3551
  %v3728 = vmax.f32 %v3376, %v3552
  %v3729 = vmax.f32 %v3377, %v3553
  %v3730 = vmax.f32 %v3378, %v3554
  %v3731 = vmax.f32 %v3379, %v3555
  %v3732 = vmax.f32 %v3380, %v3556
  %v3733 = vmax.f32 %v3381, %v3557
  %v3734 = vmax.f32 %v3382, %v3558
  %v3735 = vmax.f32 %v3383, %v3559
  %v3736 = vmax.f32 %v3384, %v3560
  %v3737 = vmax.f32 %v3385, %v3561
  %v3738 = vmax.f32 %v3386, %v3562
  %v3739 = vmax.f32 %v3387, %v3563
  %v3740 = vmax.f32 %v3388, %v3564
  %v3741 = vmax.f32 %v3389, %v3565
  %v3742 = vmax.f32 %v3390, %v3566
  %v3743 = vmax.f32 %v3391, %v3567
  %v3744 = vmax.f32 %v3392, %v3568
  %v3745 = vmax.f32 %v3393, %v3569
  %v3746 = vmax.f32 %v3394, %v3570
  %v3747 = vmax.f32 %v3395, %v3571
  %v3748 = vmax.f32 %v3396, %v3572
  %v3749 = vmax.f32 %v3397, %v3573
  %v3750 = vmax.f32 %v3398, %v3574
  %v3751 = vmax.f32 %v3399, %v3575
  %v3752 = vmax.f32 %v3400, %v3576
  %v3753 = vmax.f32 %v3401, %v3577
  %v3754 = vmax.f32 %v3402, %v3578
  %v3755 = vmax.f32 %v3403, %v3579
  %v3756 = vmax.f32 %v3404, %v3580
  %v3757 = vmax.f32 %v3405, %v3581
  %v3758 = vmax.f32 %v3406, %v3582
  %v3759 = vmax.f32 %v3407, %v3583
  %v3760 = vmax.f32 %v3408, %v3584
  %v3761 = vmax.f32 %v3409, %v3585
  %v3762 = vmax.f32 %v3410, %v3586
  %v3763 = vmax.f32 %v3411, %v3587
  %v3764 = vmax.f32 %v3412, %v3588
  %v3765 = vmax.f32 %v3413, %v3589
  %v3766 = vmax.f32 %v3414, %v3590
  %v3767 = vmax.f32 %v3415, %v3591
  %v3768 = vmax.f32 %v3416, %v3592
  %v3769 = vmax.f32 %v3417, %v3593
  %v3770 = vmax.f32 %v3418, %v3594
  %v3771 = vmax.f32 %v3419, %v3595
  %v3772 = vmax.f32 %v3420, %v3596
  %v3773 = vmax.f32 %v3421, %v3597
  %v3774 = vmax.f32 %v3422, %v3598
  %v3775 = vmax.f32 %v3423, %v3599
  %v3776 = vmax.f32 %v3424, %v3600
  %v3777 = vmax.f32 %v3425, %v3601
  %v3778 = vmax.f32 %v3426, %v3602
  %v3779 = vmax.f32 %v3427, %v3603
  %v3780 = vmax.f32 %v3428, %v3604
  %v3781 = vmax.f32 %v3429, %v3605
  %v3782 = vmax.f32 %v3430, %v3606
  %v3783 = vmax.f32 %v3431, %v3607
  %v3784 = vmax.f32 %v3432, %v3608
  %v3785 = vmax.f32 %v3433, %v3609
  %v3786 = vmax.f32 %v3434, %v3610
  %v3787 = vmax.f32 %v3435, %v3611
  %v3788 = vmax.f32 %v3436, %v3612
  %v3789 = vmax.f32 %v3437, %v3613
  %v3790 = vmax.f32 %v3438, %v3614
  %v3791 = vmax.f32 %v3439, %v3615
  %v3792 = vmax.f32 %v3440, %v3616
  %v3793 = vmax.f32 %v3441, %v3617
  %v3794 = vmax.f32 %v3442, %v3618
  %v3795 = vmax.f32 %v3443, %v3619
  %v3796 = vmax.f32 %v3444, %v3620
  %v3797 = vmax.f32 %v3445, %v3621
  %v3798 = vmax.f32 %v3446, %v3622
  %v3799 = vmax.f32 %v3447, %v3623
  %v3800 = vmax.f32 %v3448, %v3624
  %v3801 = vmax.f32 %v3449, %v3625
  %v3802 = vmax.f32 %v3450, %v3626
  %v3803 = vmax.f32 %v3451, %v3627
  %v3804 = vmax.f32 %v3452, %v3628
  %v3805 = vmax.f32 %v3453, %v3629
  %v3806 = vmax.f32 %v3454, %v3630
  %v3807 = vmax.f32 %v3455, %v3631
  %v3808 = vmax.f32 %v3456, %v3632
  %v3809 = vmax.f32 %v3457, %v3633
  %v3810 = vmax.f32 %v3458, %v3634
  %v3811 = vmax.f32 %v3459, %v3635
  %v3812 = vmax.f32 %v3460, %v3636
  %v3813 = vmax.f32 %v3461, %v3637
  %v3814 = vmax.f32 %v3462, %v3638
  %v3815 = vmax.f32 %v3463, %v3639
  %v3816 = vmax.f32 %v3464, %v3640
  %v3817 = vmax.f32 %v3465, %v3641
  %v3818 = vmax.f32 %v3466, %v3642
  %v3819 = vmax.f32 %v3467, %v3643
  %v3820 = vmax.f32 %v3468, %v3644
  %v3821 = vmax.f32 %v3469, %v3645
  %v3822 = vmax.f32 %v3470, %v3646
  %v3823 = vmax.f32 %v3471, %v3647
  %v3824 = vmax.f32 %v3472, %v3648
  %v3825 = vmax.f32 %v3473, %v3649
  %v3826 = vmax.f32 %v3474, %v3650
  %v3827 = vmax.f32 %v3475, %v3651
  %v3828 = vmax.f32 %v3476, %v3652
  %v3829 = vmax.f32 %v3477, %v3653
  %v3830 = vmax.f32 %v3478, %v3654
  %v3831 = vmax.f32 %v3479, %v3655
  %v3832 = vmax.f32 %v3480, %v3656
  %v3833 = vmax.f32 %v3481, %v3657
  %v3834 = vmax.f32 %v3482, %v3658
  %v3835 = vmax.f32 %v3483, %v3659
  %v3836 = vmax.f32 %v3484, %v3660
  %v3837 = vmax.f32 %v3485, %v3661
  %v3838 = vmax.f32 %v3486, %v3662
  %v3839 = vmax.f32 %v3487, %v3663
  %v3840 = vld [vmem:[%s2] sm:$0x3]
  %v3842 = vlaneseq
  %v3843 = vshrl.u32 %v3842, 7
  %v3844 = vsub.s32 0, %v3843
  %v3845 = vrot.slane %v3840, %v3844
  %v3846 = vlaneseq
  %v3847 = vshrl.u32 %v3846, 7
  %v3848 = vsub.s32 1, %v3847
  %v3849 = vrot.slane %v3840, %v3848
  %v3852 = vadd.f32 %v3664, %v3845
  %v3853 = vadd.f32 %v3665, %v3849
  %v3854 = vadd.f32 %v3666, %v3845
  %v3855 = vadd.f32 %v3667, %v3849
  %v3856 = vadd.f32 %v3668, %v3845
  %v3857 = vadd.f32 %v3669, %v3849
  %v3858 = vadd.f32 %v3670, %v3845
  %v3859 = vadd.f32 %v3671, %v3849
  %v3860 = vadd.f32 %v3672, %v3845
  %v3861 = vadd.f32 %v3673, %v3849
  %v3862 = vadd.f32 %v3674, %v3845
  %v3863 = vadd.f32 %v3675, %v3849
  %v3864 = vadd.f32 %v3676, %v3845
  %v3865 = vadd.f32 %v3677, %v3849
  %v3866 = vadd.f32 %v3678, %v3845
  %v3867 = vadd.f32 %v3679, %v3849
  %v3868 = vadd.f32 %v3680, %v3845
  %v3869 = vadd.f32 %v3681, %v3849
  %v3870 = vadd.f32 %v3682, %v3845
  %v3871 = vadd.f32 %v3683, %v3849
  %v3872 = vadd.f32 %v3684, %v3845
  %v3873 = vadd.f32 %v3685, %v3849
  %v3874 = vadd.f32 %v3686, %v3845
  %v3875 = vadd.f32 %v3687, %v3849
  %v3876 = vadd.f32 %v3688, %v3845
  %v3877 = vadd.f32 %v3689, %v3849
  %v3878 = vadd.f32 %v3690, %v3845
  %v3879 = vadd.f32 %v3691, %v3849
  %v3880 = vadd.f32 %v3692, %v3845
  %v3881 = vadd.f32 %v3693, %v3849
  %v3882 = vadd.f32 %v3694, %v3845
  %v3883 = vadd.f32 %v3695, %v3849
  %v3884 = vadd.f32 %v3696, %v3845
  %v3885 = vadd.f32 %v3697, %v3849
  %v3886 = vadd.f32 %v3698, %v3845
  %v3887 = vadd.f32 %v3699, %v3849
  %v3888 = vadd.f32 %v3700, %v3845
  %v3889 = vadd.f32 %v3701, %v3849
  %v3890 = vadd.f32 %v3702, %v3845
  %v3891 = vadd.f32 %v3703, %v3849
  %v3892 = vadd.f32 %v3704, %v3845
  %v3893 = vadd.f32 %v3705, %v3849
  %v3894 = vadd.f32 %v3706, %v3845
  %v3895 = vadd.f32 %v3707, %v3849
  %v3896 = vadd.f32 %v3708, %v3845
  %v3897 = vadd.f32 %v3709, %v3849
  %v3898 = vadd.f32 %v3710, %v3845
  %v3899 = vadd.f32 %v3711, %v3849
  %v3900 = vadd.f32 %v3712, %v3845
  %v3901 = vadd.f32 %v3713, %v3849
  %v3902 = vadd.f32 %v3714, %v3845
  %v3903 = vadd.f32 %v3715, %v3849
  %v3904 = vadd.f32 %v3716, %v3845
  %v3905 = vadd.f32 %v3717, %v3849
  %v3906 = vadd.f32 %v3718, %v3845
  %v3907 = vadd.f32 %v3719, %v3849
  %v3908 = vadd.f32 %v3720, %v3845
  %v3909 = vadd.f32 %v3721, %v3849
  %v3910 = vadd.f32 %v3722, %v3845
  %v3911 = vadd.f32 %v3723, %v3849
  %v3912 = vadd.f32 %v3724, %v3845
  %v3913 = vadd.f32 %v3725, %v3849
  %v3914 = vadd.f32 %v3726, %v3845
  %v3915 = vadd.f32 %v3727, %v3849
  %v3916 = vadd.f32 %v3728, %v3845
  %v3917 = vadd.f32 %v3729, %v3849
  %v3918 = vadd.f32 %v3730, %v3845
  %v3919 = vadd.f32 %v3731, %v3849
  %v3920 = vadd.f32 %v3732, %v3845
  %v3921 = vadd.f32 %v3733, %v3849
  %v3922 = vadd.f32 %v3734, %v3845
  %v3923 = vadd.f32 %v3735, %v3849
  %v3924 = vadd.f32 %v3736, %v3845
  %v3925 = vadd.f32 %v3737, %v3849
  %v3926 = vadd.f32 %v3738, %v3845
  %v3927 = vadd.f32 %v3739, %v3849
  %v3928 = vadd.f32 %v3740, %v3845
  %v3929 = vadd.f32 %v3741, %v3849
  %v3930 = vadd.f32 %v3742, %v3845
  %v3931 = vadd.f32 %v3743, %v3849
  %v3932 = vadd.f32 %v3744, %v3845
  %v3933 = vadd.f32 %v3745, %v3849
  %v3934 = vadd.f32 %v3746, %v3845
  %v3935 = vadd.f32 %v3747, %v3849
  %v3936 = vadd.f32 %v3748, %v3845
  %v3937 = vadd.f32 %v3749, %v3849
  %v3938 = vadd.f32 %v3750, %v3845
  %v3939 = vadd.f32 %v3751, %v3849
  %v3940 = vadd.f32 %v3752, %v3845
  %v3941 = vadd.f32 %v3753, %v3849
  %v3942 = vadd.f32 %v3754, %v3845
  %v3943 = vadd.f32 %v3755, %v3849
  %v3944 = vadd.f32 %v3756, %v3845
  %v3945 = vadd.f32 %v3757, %v3849
  %v3946 = vadd.f32 %v3758, %v3845
  %v3947 = vadd.f32 %v3759, %v3849
  %v3948 = vadd.f32 %v3760, %v3845
  %v3949 = vadd.f32 %v3761, %v3849
  %v3950 = vadd.f32 %v3762, %v3845
  %v3951 = vadd.f32 %v3763, %v3849
  %v3952 = vadd.f32 %v3764, %v3845
  %v3953 = vadd.f32 %v3765, %v3849
  %v3954 = vadd.f32 %v3766, %v3845
  %v3955 = vadd.f32 %v3767, %v3849
  %v3956 = vadd.f32 %v3768, %v3845
  %v3957 = vadd.f32 %v3769, %v3849
  %v3958 = vadd.f32 %v3770, %v3845
  %v3959 = vadd.f32 %v3771, %v3849
  %v3960 = vadd.f32 %v3772, %v3845
  %v3961 = vadd.f32 %v3773, %v3849
  %v3962 = vadd.f32 %v3774, %v3845
  %v3963 = vadd.f32 %v3775, %v3849
  %v3964 = vadd.f32 %v3776, %v3845
  %v3965 = vadd.f32 %v3777, %v3849
  %v3966 = vadd.f32 %v3778, %v3845
  %v3967 = vadd.f32 %v3779, %v3849
  %v3968 = vadd.f32 %v3780, %v3845
  %v3969 = vadd.f32 %v3781, %v3849
  %v3970 = vadd.f32 %v3782, %v3845
  %v3971 = vadd.f32 %v3783, %v3849
  %v3972 = vadd.f32 %v3784, %v3845
  %v3973 = vadd.f32 %v3785, %v3849
  %v3974 = vadd.f32 %v3786, %v3845
  %v3975 = vadd.f32 %v3787, %v3849
  %v3976 = vadd.f32 %v3788, %v3845
  %v3977 = vadd.f32 %v3789, %v3849
  %v3978 = vadd.f32 %v3790, %v3845
  %v3979 = vadd.f32 %v3791, %v3849
  %v3980 = vadd.f32 %v3792, %v3845
  %v3981 = vadd.f32 %v3793, %v3849
  %v3982 = vadd.f32 %v3794, %v3845
  %v3983 = vadd.f32 %v3795, %v3849
  %v3984 = vadd.f32 %v3796, %v3845
  %v3985 = vadd.f32 %v3797, %v3849
  %v3986 = vadd.f32 %v3798, %v3845
  %v3987 = vadd.f32 %v3799, %v3849
  %v3988 = vadd.f32 %v3800, %v3845
  %v3989 = vadd.f32 %v3801, %v3849
  %v3990 = vadd.f32 %v3802, %v3845
  %v3991 = vadd.f32 %v3803, %v3849
  %v3992 = vadd.f32 %v3804, %v3845
  %v3993 = vadd.f32 %v3805, %v3849
  %v3994 = vadd.f32 %v3806, %v3845
  %v3995 = vadd.f32 %v3807, %v3849
  %v3996 = vadd.f32 %v3808, %v3845
  %v3997 = vadd.f32 %v3809, %v3849
  %v3998 = vadd.f32 %v3810, %v3845
  %v3999 = vadd.f32 %v3811, %v3849
  %v4000 = vadd.f32 %v3812, %v3845
  %v4001 = vadd.f32 %v3813, %v3849
  %v4002 = vadd.f32 %v3814, %v3845
  %v4003 = vadd.f32 %v3815, %v3849
  %v4004 = vadd.f32 %v3816, %v3845
  %v4005 = vadd.f32 %v3817, %v3849
  %v4006 = vadd.f32 %v3818, %v3845
  %v4007 = vadd.f32 %v3819, %v3849
  %v4008 = vadd.f32 %v3820, %v3845
  %v4009 = vadd.f32 %v3821, %v3849
  %v4010 = vadd.f32 %v3822, %v3845
  %v4011 = vadd.f32 %v3823, %v3849
  %v4012 = vadd.f32 %v3824, %v3845
  %v4013 = vadd.f32 %v3825, %v3849
  %v4014 = vadd.f32 %v3826, %v3845
  %v4015 = vadd.f32 %v3827, %v3849
  %v4016 = vadd.f32 %v3828, %v3845
  %v4017 = vadd.f32 %v3829, %v3849
  %v4018 = vadd.f32 %v3830, %v3845
  %v4019 = vadd.f32 %v3831, %v3849
  %v4020 = vadd.f32 %v3832, %v3845
  %v4021 = vadd.f32 %v3833, %v3849
  %v4022 = vadd.f32 %v3834, %v3845
  %v4023 = vadd.f32 %v3835, %v3849
  %v4024 = vadd.f32 %v3836, %v3845
  %v4025 = vadd.f32 %v3837, %v3849
  %v4026 = vadd.f32 %v3838, %v3845
  %v4027 = vadd.f32 %v3839, %v3849
  %v4028 = vmax.f32 %v3852, 0.0
  %v4029 = vmax.f32 %v3853, 0.0
  %v4030 = vmax.f32 %v3854, 0.0
  %v4031 = vmax.f32 %v3855, 0.0
  %v4032 = vmax.f32 %v3856, 0.0
  %v4033 = vmax.f32 %v3857, 0.0
  %v4034 = vmax.f32 %v3858, 0.0
  %v4035 = vmax.f32 %v3859, 0.0
  %v4036 = vmax.f32 %v3860, 0.0
  %v4037 = vmax.f32 %v3861, 0.0
  %v4038 = vmax.f32 %v3862, 0.0
  %v4039 = vmax.f32 %v3863, 0.0
  %v4040 = vmax.f32 %v3864, 0.0
  %v4041 = vmax.f32 %v3865, 0.0
  %v4042 = vmax.f32 %v3866, 0.0
  %v4043 = vmax.f32 %v3867, 0.0
  %v4044 = vmax.f32 %v3868, 0.0
  %v4045 = vmax.f32 %v3869, 0.0
  %v4046 = vmax.f32 %v3870, 0.0
  %v4047 = vmax.f32 %v3871, 0.0
  %v4048 = vmax.f32 %v3872, 0.0
  %v4049 = vmax.f32 %v3873, 0.0
  %v4050 = vmax.f32 %v3874, 0.0
  %v4051 = vmax.f32 %v3875, 0.0
  %v4052 = vmax.f32 %v3876, 0.0
  %v4053 = vmax.f32 %v3877, 0.0
  %v4054 = vmax.f32 %v3878, 0.0
  %v4055 = vmax.f32 %v3879, 0.0
  %v4056 = vmax.f32 %v3880, 0.0
  %v4057 = vmax.f32 %v3881, 0.0
  %v4058 = vmax.f32 %v3882, 0.0
  %v4059 = vmax.f32 %v3883, 0.0
  %v4060 = vmax.f32 %v3884, 0.0
  %v4061 = vmax.f32 %v3885, 0.0
  %v4062 = vmax.f32 %v3886, 0.0
  %v4063 = vmax.f32 %v3887, 0.0
  %v4064 = vmax.f32 %v3888, 0.0
  %v4065 = vmax.f32 %v3889, 0.0
  %v4066 = vmax.f32 %v3890, 0.0
  %v4067 = vmax.f32 %v3891, 0.0
  %v4068 = vmax.f32 %v3892, 0.0
  %v4069 = vmax.f32 %v3893, 0.0
  %v4070 = vmax.f32 %v3894, 0.0
  %v4071 = vmax.f32 %v3895, 0.0
  %v4072 = vmax.f32 %v3896, 0.0
  %v4073 = vmax.f32 %v3897, 0.0
  %v4074 = vmax.f32 %v3898, 0.0
  %v4075 = vmax.f32 %v3899, 0.0
  %v4076 = vmax.f32 %v3900, 0.0
  %v4077 = vmax.f32 %v3901, 0.0
  %v4078 = vmax.f32 %v3902, 0.0
  %v4079 = vmax.f32 %v3903, 0.0
  %v4080 = vmax.f32 %v3904, 0.0
  %v4081 = vmax.f32 %v3905, 0.0
  %v4082 = vmax.f32 %v3906, 0.0
  %v4083 = vmax.f32 %v3907, 0.0
  %v4084 = vmax.f32 %v3908, 0.0
  %v4085 = vmax.f32 %v3909, 0.0
  %v4086 = vmax.f32 %v3910, 0.0
  %v4087 = vmax.f32 %v3911, 0.0
  %v4088 = vmax.f32 %v3912, 0.0
  %v4089 = vmax.f32 %v3913, 0.0
  %v4090 = vmax.f32 %v3914, 0.0
  %v4091 = vmax.f32 %v3915, 0.0
  %v4092 = vmax.f32 %v3916, 0.0
  %v4093 = vmax.f32 %v3917, 0.0
  %v4094 = vmax.f32 %v3918, 0.0
  %v4095 = vmax.f32 %v3919, 0.0
  %v4096 = vmax.f32 %v3920, 0.0
  %v4097 = vmax.f32 %v3921, 0.0
  %v4098 = vmax.f32 %v3922, 0.0
  %v4099 = vmax.f32 %v3923, 0.0
  %v4100 = vmax.f32 %v3924, 0.0
  %v4101 = vmax.f32 %v3925, 0.0
  %v4102 = vmax.f32 %v3926, 0.0
  %v4103 = vmax.f32 %v3927, 0.0
  %v4104 = vmax.f32 %v3928, 0.0
  %v4105 = vmax.f32 %v3929, 0.0
  %v4106 = vmax.f32 %v3930, 0.0
  %v4107 = vmax.f32 %v3931, 0.0
  %v4108 = vmax.f32 %v3932, 0.0
  %v4109 = vmax.f32 %v3933, 0.0
  %v4110 = vmax.f32 %v3934, 0.0
  %v4111 = vmax.f32 %v3935, 0.0
  %v4112 = vmax.f32 %v3936, 0.0
  %v4113 = vmax.f32 %v3937, 0.0
  %v4114 = vmax.f32 %v3938, 0.0
  %v4115 = vmax.f32 %v3939, 0.0
  %v4116 = vmax.f32 %v3940, 0.0
  %v4117 = vmax.f32 %v3941, 0.0
  %v4118 = vmax.f32 %v3942, 0.0
  %v4119 = vmax.f32 %v3943, 0.0
  %v4120 = vmax.f32 %v3944, 0.0
  %v4121 = vmax.f32 %v3945, 0.0
  %v4122 = vmax.f32 %v3946, 0.0
  %v4123 = vmax.f32 %v3947, 0.0
  %v4124 = vmax.f32 %v3948, 0.0
  %v4125 = vmax.f32 %v3949, 0.0
  %v4126 = vmax.f32 %v3950, 0.0
  %v4127 = vmax.f32 %v3951, 0.0
  %v4128 = vmax.f32 %v3952, 0.0
  %v4129 = vmax.f32 %v3953, 0.0
  %v4130 = vmax.f32 %v3954, 0.0
  %v4131 = vmax.f32 %v3955, 0.0
  %v4132 = vmax.f32 %v3956, 0.0
  %v4133 = vmax.f32 %v3957, 0.0
  %v4134 = vmax.f32 %v3958, 0.0
  %v4135 = vmax.f32 %v3959, 0.0
  %v4136 = vmax.f32 %v3960, 0.0
  %v4137 = vmax.f32 %v3961, 0.0
  %v4138 = vmax.f32 %v3962, 0.0
  %v4139 = vmax.f32 %v3963, 0.0
  %v4140 = vmax.f32 %v3964, 0.0
  %v4141 = vmax.f32 %v3965, 0.0
  %v4142 = vmax.f32 %v3966, 0.0
  %v4143 = vmax.f32 %v3967, 0.0
  %v4144 = vmax.f32 %v3968, 0.0
  %v4145 = vmax.f32 %v3969, 0.0
  %v4146 = vmax.f32 %v3970, 0.0
  %v4147 = vmax.f32 %v3971, 0.0
  %v4148 = vmax.f32 %v3972, 0.0
  %v4149 = vmax.f32 %v3973, 0.0
  %v4150 = vmax.f32 %v3974, 0.0
  %v4151 = vmax.f32 %v3975, 0.0
  %v4152 = vmax.f32 %v3976, 0.0
  %v4153 = vmax.f32 %v3977, 0.0
  %v4154 = vmax.f32 %v3978, 0.0
  %v4155 = vmax.f32 %v3979, 0.0
  %v4156 = vmax.f32 %v3980, 0.0
  %v4157 = vmax.f32 %v3981, 0.0
  %v4158 = vmax.f32 %v3982, 0.0
  %v4159 = vmax.f32 %v3983, 0.0
  %v4160 = vmax.f32 %v3984, 0.0
  %v4161 = vmax.f32 %v3985, 0.0
  %v4162 = vmax.f32 %v3986, 0.0
  %v4163 = vmax.f32 %v3987, 0.0
  %v4164 = vmax.f32 %v3988, 0.0
  %v4165 = vmax.f32 %v3989, 0.0
  %v4166 = vmax.f32 %v3990, 0.0
  %v4167 = vmax.f32 %v3991, 0.0
  %v4168 = vmax.f32 %v3992, 0.0
  %v4169 = vmax.f32 %v3993, 0.0
  %v4170 = vmax.f32 %v3994, 0.0
  %v4171 = vmax.f32 %v3995, 0.0
  %v4172 = vmax.f32 %v3996, 0.0
  %v4173 = vmax.f32 %v3997, 0.0
  %v4174 = vmax.f32 %v3998, 0.0
  %v4175 = vmax.f32 %v3999, 0.0
  %v4176 = vmax.f32 %v4000, 0.0
  %v4177 = vmax.f32 %v4001, 0.0
  %v4178 = vmax.f32 %v4002, 0.0
  %v4179 = vmax.f32 %v4003, 0.0
  %v4180 = vmax.f32 %v4004, 0.0
  %v4181 = vmax.f32 %v4005, 0.0
  %v4182 = vmax.f32 %v4006, 0.0
  %v4183 = vmax.f32 %v4007, 0.0
  %v4184 = vmax.f32 %v4008, 0.0
  %v4185 = vmax.f32 %v4009, 0.0
  %v4186 = vmax.f32 %v4010, 0.0
  %v4187 = vmax.f32 %v4011, 0.0
  %v4188 = vmax.f32 %v4012, 0.0
  %v4189 = vmax.f32 %v4013, 0.0
  %v4190 = vmax.f32 %v4014, 0.0
  %v4191 = vmax.f32 %v4015, 0.0
  %v4192 = vmax.f32 %v4016, 0.0
  %v4193 = vmax.f32 %v4017, 0.0
  %v4194 = vmax.f32 %v4018, 0.0
  %v4195 = vmax.f32 %v4019, 0.0
  %v4196 = vmax.f32 %v4020, 0.0
  %v4197 = vmax.f32 %v4021, 0.0
  %v4198 = vmax.f32 %v4022, 0.0
  %v4199 = vmax.f32 %v4023, 0.0
  %v4200 = vmax.f32 %v4024, 0.0
  %v4201 = vmax.f32 %v4025, 0.0
  %v4202 = vmax.f32 %v4026, 0.0
  %v4203 = vmax.f32 %v4027, 0.0
  %v4204 = vpack.c.bf16 %v4030, %v4028
  %v4205 = vpack.c.bf16 %v4031, %v4029
  %v4206 = vpack.c.bf16 %v4034, %v4032
  %v4207 = vpack.c.bf16 %v4035, %v4033
  %v4208 = vpack.c.bf16 %v4038, %v4036
  %v4209 = vpack.c.bf16 %v4039, %v4037
  %v4210 = vpack.c.bf16 %v4042, %v4040
  %v4211 = vpack.c.bf16 %v4043, %v4041
  %v4212 = vpack.c.bf16 %v4046, %v4044
  %v4213 = vpack.c.bf16 %v4047, %v4045
  %v4214 = vpack.c.bf16 %v4048, %v4048
  %v4215 = vpack.c.bf16 %v4049, %v4049
  %v4216 = vpack.c.bf16 %v4052, %v4050
  %v4217 = vpack.c.bf16 %v4053, %v4051
  %v4218 = vpack.c.bf16 %v4056, %v4054
  %v4219 = vpack.c.bf16 %v4057, %v4055
  %v4220 = vpack.c.bf16 %v4060, %v4058
  %v4221 = vpack.c.bf16 %v4061, %v4059
  %v4222 = vpack.c.bf16 %v4064, %v4062
  %v4223 = vpack.c.bf16 %v4065, %v4063
  %v4224 = vpack.c.bf16 %v4068, %v4066
  %v4225 = vpack.c.bf16 %v4069, %v4067
  %v4226 = vpack.c.bf16 %v4070, %v4070
  %v4227 = vpack.c.bf16 %v4071, %v4071
  %v4228 = vpack.c.bf16 %v4074, %v4072
  %v4229 = vpack.c.bf16 %v4075, %v4073
  %v4230 = vpack.c.bf16 %v4078, %v4076
  %v4231 = vpack.c.bf16 %v4079, %v4077
  %v4232 = vpack.c.bf16 %v4082, %v4080
  %v4233 = vpack.c.bf16 %v4083, %v4081
  %v4234 = vpack.c.bf16 %v4086, %v4084
  %v4235 = vpack.c.bf16 %v4087, %v4085
  %v4236 = vpack.c.bf16 %v4090, %v4088
  %v4237 = vpack.c.bf16 %v4091, %v4089
  %v4238 = vpack.c.bf16 %v4092, %v4092
  %v4239 = vpack.c.bf16 %v4093, %v4093
  %v4240 = vpack.c.bf16 %v4096, %v4094
  %v4241 = vpack.c.bf16 %v4097, %v4095
  %v4242 = vpack.c.bf16 %v4100, %v4098
  %v4243 = vpack.c.bf16 %v4101, %v4099
  %v4244 = vpack.c.bf16 %v4104, %v4102
  %v4245 = vpack.c.bf16 %v4105, %v4103
  %v4246 = vpack.c.bf16 %v4108, %v4106
  %v4247 = vpack.c.bf16 %v4109, %v4107
  %v4248 = vpack.c.bf16 %v4112, %v4110
  %v4249 = vpack.c.bf16 %v4113, %v4111
  %v4250 = vpack.c.bf16 %v4114, %v4114
  %v4251 = vpack.c.bf16 %v4115, %v4115
  %v4252 = vpack.c.bf16 %v4118, %v4116
  %v4253 = vpack.c.bf16 %v4119, %v4117
  %v4254 = vpack.c.bf16 %v4122, %v4120
  %v4255 = vpack.c.bf16 %v4123, %v4121
  %v4256 = vpack.c.bf16 %v4126, %v4124
  %v4257 = vpack.c.bf16 %v4127, %v4125
  %v4258 = vpack.c.bf16 %v4130, %v4128
  %v4259 = vpack.c.bf16 %v4131, %v4129
  %v4260 = vpack.c.bf16 %v4134, %v4132
  %v4261 = vpack.c.bf16 %v4135, %v4133
  %v4262 = vpack.c.bf16 %v4136, %v4136
  %v4263 = vpack.c.bf16 %v4137, %v4137
  %v4264 = vpack.c.bf16 %v4140, %v4138
  %v4265 = vpack.c.bf16 %v4141, %v4139
  %v4266 = vpack.c.bf16 %v4144, %v4142
  %v4267 = vpack.c.bf16 %v4145, %v4143
  %v4268 = vpack.c.bf16 %v4148, %v4146
  %v4269 = vpack.c.bf16 %v4149, %v4147
  %v4270 = vpack.c.bf16 %v4152, %v4150
  %v4271 = vpack.c.bf16 %v4153, %v4151
  %v4272 = vpack.c.bf16 %v4156, %v4154
  %v4273 = vpack.c.bf16 %v4157, %v4155
  %v4274 = vpack.c.bf16 %v4158, %v4158
  %v4275 = vpack.c.bf16 %v4159, %v4159
  %v4276 = vpack.c.bf16 %v4162, %v4160
  %v4277 = vpack.c.bf16 %v4163, %v4161
  %v4278 = vpack.c.bf16 %v4166, %v4164
  %v4279 = vpack.c.bf16 %v4167, %v4165
  %v4280 = vpack.c.bf16 %v4170, %v4168
  %v4281 = vpack.c.bf16 %v4171, %v4169
  %v4282 = vpack.c.bf16 %v4174, %v4172
  %v4283 = vpack.c.bf16 %v4175, %v4173
  %v4284 = vpack.c.bf16 %v4178, %v4176
  %v4285 = vpack.c.bf16 %v4179, %v4177
  %v4286 = vpack.c.bf16 %v4180, %v4180
  %v4287 = vpack.c.bf16 %v4181, %v4181
  %v4288 = vpack.c.bf16 %v4184, %v4182
  %v4289 = vpack.c.bf16 %v4185, %v4183
  %v4290 = vpack.c.bf16 %v4188, %v4186
  %v4291 = vpack.c.bf16 %v4189, %v4187
  %v4292 = vpack.c.bf16 %v4192, %v4190
  %v4293 = vpack.c.bf16 %v4193, %v4191
  %v4294 = vpack.c.bf16 %v4196, %v4194
  %v4295 = vpack.c.bf16 %v4197, %v4195
  %v4296 = vpack.c.bf16 %v4200, %v4198
  %v4297 = vpack.c.bf16 %v4201, %v4199
  %v4298 = vpack.c.bf16 %v4202, %v4202
  %v4299 = vpack.c.bf16 %v4203, %v4203
  %v4396 = vunpack.c.l.b16 %v4204
  %v4397 = vunpack.c.l.b16 %v4205
  %v4398 = vunpack.c.h.b16 %v4204
  %v4399 = vunpack.c.h.b16 %v4205
  %v4400 = vunpack.c.l.b16 %v4206
  %v4401 = vunpack.c.l.b16 %v4207
  %v4402 = vunpack.c.h.b16 %v4206
  %v4403 = vunpack.c.h.b16 %v4207
  %v4404 = vunpack.c.l.b16 %v4208
  %v4405 = vunpack.c.l.b16 %v4209
  %v4406 = vunpack.c.h.b16 %v4208
  %v4407 = vunpack.c.h.b16 %v4209
  %v4408 = vunpack.c.l.b16 %v4210
  %v4409 = vunpack.c.l.b16 %v4211
  %v4410 = vunpack.c.h.b16 %v4210
  %v4411 = vunpack.c.h.b16 %v4211
  %v4412 = vunpack.c.l.b16 %v4212
  %v4413 = vunpack.c.l.b16 %v4213
  %v4414 = vunpack.c.h.b16 %v4212
  %v4415 = vunpack.c.h.b16 %v4213
  %v4416 = vunpack.c.l.b16 %v4214
  %v4417 = vunpack.c.l.b16 %v4215
  %v4418 = vunpack.c.l.b16 %v4216
  %v4419 = vunpack.c.l.b16 %v4217
  %v4420 = vunpack.c.h.b16 %v4216
  %v4421 = vunpack.c.h.b16 %v4217
  %v4422 = vunpack.c.l.b16 %v4218
  %v4423 = vunpack.c.l.b16 %v4219
  %v4424 = vunpack.c.h.b16 %v4218
  %v4425 = vunpack.c.h.b16 %v4219
  %v4426 = vunpack.c.l.b16 %v4220
  %v4427 = vunpack.c.l.b16 %v4221
  %v4428 = vunpack.c.h.b16 %v4220
  %v4429 = vunpack.c.h.b16 %v4221
  %v4430 = vunpack.c.l.b16 %v4222
  %v4431 = vunpack.c.l.b16 %v4223
  %v4432 = vunpack.c.h.b16 %v4222
  %v4433 = vunpack.c.h.b16 %v4223
  %v4434 = vunpack.c.l.b16 %v4224
  %v4435 = vunpack.c.l.b16 %v4225
  %v4436 = vunpack.c.h.b16 %v4224
  %v4437 = vunpack.c.h.b16 %v4225
  %v4438 = vunpack.c.l.b16 %v4226
  %v4439 = vunpack.c.l.b16 %v4227
  %v4440 = vunpack.c.l.b16 %v4228
  %v4441 = vunpack.c.l.b16 %v4229
  %v4442 = vunpack.c.h.b16 %v4228
  %v4443 = vunpack.c.h.b16 %v4229
  %v4444 = vunpack.c.l.b16 %v4230
  %v4445 = vunpack.c.l.b16 %v4231
  %v4446 = vunpack.c.h.b16 %v4230
  %v4447 = vunpack.c.h.b16 %v4231
  %v4448 = vunpack.c.l.b16 %v4232
  %v4449 = vunpack.c.l.b16 %v4233
  %v4450 = vunpack.c.h.b16 %v4232
  %v4451 = vunpack.c.h.b16 %v4233
  %v4452 = vunpack.c.l.b16 %v4234
  %v4453 = vunpack.c.l.b16 %v4235
  %v4454 = vunpack.c.h.b16 %v4234
  %v4455 = vunpack.c.h.b16 %v4235
  %v4456 = vunpack.c.l.b16 %v4236
  %v4457 = vunpack.c.l.b16 %v4237
  %v4458 = vunpack.c.h.b16 %v4236
  %v4459 = vunpack.c.h.b16 %v4237
  %v4460 = vunpack.c.l.b16 %v4238
  %v4461 = vunpack.c.l.b16 %v4239
  %v4462 = vunpack.c.l.b16 %v4240
  %v4463 = vunpack.c.l.b16 %v4241
  %v4464 = vunpack.c.h.b16 %v4240
  %v4465 = vunpack.c.h.b16 %v4241
  %v4466 = vunpack.c.l.b16 %v4242
  %v4467 = vunpack.c.l.b16 %v4243
  %v4468 = vunpack.c.h.b16 %v4242
  %v4469 = vunpack.c.h.b16 %v4243
  %v4470 = vunpack.c.l.b16 %v4244
  %v4471 = vunpack.c.l.b16 %v4245
  %v4472 = vunpack.c.h.b16 %v4244
  %v4473 = vunpack.c.h.b16 %v4245
  %v4474 = vunpack.c.l.b16 %v4246
  %v4475 = vunpack.c.l.b16 %v4247
  %v4476 = vunpack.c.h.b16 %v4246
  %v4477 = vunpack.c.h.b16 %v4247
  %v4478 = vunpack.c.l.b16 %v4248
  %v4479 = vunpack.c.l.b16 %v4249
  %v4480 = vunpack.c.h.b16 %v4248
  %v4481 = vunpack.c.h.b16 %v4249
  %v4482 = vunpack.c.l.b16 %v4250
  %v4483 = vunpack.c.l.b16 %v4251
  %v4484 = vunpack.c.l.b16 %v4252
  %v4485 = vunpack.c.l.b16 %v4253
  %v4486 = vunpack.c.h.b16 %v4252
  %v4487 = vunpack.c.h.b16 %v4253
  %v4488 = vunpack.c.l.b16 %v4254
  %v4489 = vunpack.c.l.b16 %v4255
  %v4490 = vunpack.c.h.b16 %v4254
  %v4491 = vunpack.c.h.b16 %v4255
  %v4492 = vunpack.c.l.b16 %v4256
  %v4493 = vunpack.c.l.b16 %v4257
  %v4494 = vunpack.c.h.b16 %v4256
  %v4495 = vunpack.c.h.b16 %v4257
  %v4496 = vunpack.c.l.b16 %v4258
  %v4497 = vunpack.c.l.b16 %v4259
  %v4498 = vunpack.c.h.b16 %v4258
  %v4499 = vunpack.c.h.b16 %v4259
  %v4500 = vunpack.c.l.b16 %v4260
  %v4501 = vunpack.c.l.b16 %v4261
  %v4502 = vunpack.c.h.b16 %v4260
  %v4503 = vunpack.c.h.b16 %v4261
  %v4504 = vunpack.c.l.b16 %v4262
  %v4505 = vunpack.c.l.b16 %v4263
  %v4506 = vunpack.c.l.b16 %v4264
  %v4507 = vunpack.c.l.b16 %v4265
  %v4508 = vunpack.c.h.b16 %v4264
  %v4509 = vunpack.c.h.b16 %v4265
  %v4510 = vunpack.c.l.b16 %v4266
  %v4511 = vunpack.c.l.b16 %v4267
  %v4512 = vunpack.c.h.b16 %v4266
  %v4513 = vunpack.c.h.b16 %v4267
  %v4514 = vunpack.c.l.b16 %v4268
  %v4515 = vunpack.c.l.b16 %v4269
  %v4516 = vunpack.c.h.b16 %v4268
  %v4517 = vunpack.c.h.b16 %v4269
  %v4518 = vunpack.c.l.b16 %v4270
  %v4519 = vunpack.c.l.b16 %v4271
  %v4520 = vunpack.c.h.b16 %v4270
  %v4521 = vunpack.c.h.b16 %v4271
  %v4522 = vunpack.c.l.b16 %v4272
  %v4523 = vunpack.c.l.b16 %v4273
  %v4524 = vunpack.c.h.b16 %v4272
  %v4525 = vunpack.c.h.b16 %v4273
  %v4526 = vunpack.c.l.b16 %v4274
  %v4527 = vunpack.c.l.b16 %v4275
  %v4528 = vunpack.c.l.b16 %v4276
  %v4529 = vunpack.c.l.b16 %v4277
  %v4530 = vunpack.c.h.b16 %v4276
  %v4531 = vunpack.c.h.b16 %v4277
  %v4532 = vunpack.c.l.b16 %v4278
  %v4533 = vunpack.c.l.b16 %v4279
  %v4534 = vunpack.c.h.b16 %v4278
  %v4535 = vunpack.c.h.b16 %v4279
  %v4536 = vunpack.c.l.b16 %v4280
  %v4537 = vunpack.c.l.b16 %v4281
  %v4538 = vunpack.c.h.b16 %v4280
  %v4539 = vunpack.c.h.b16 %v4281
  %v4540 = vunpack.c.l.b16 %v4282
  %v4541 = vunpack.c.l.b16 %v4283
  %v4542 = vunpack.c.h.b16 %v4282
  %v4543 = vunpack.c.h.b16 %v4283
  %v4544 = vunpack.c.l.b16 %v4284
  %v4545 = vunpack.c.l.b16 %v4285
  %v4546 = vunpack.c.h.b16 %v4284
  %v4547 = vunpack.c.h.b16 %v4285
  %v4548 = vunpack.c.l.b16 %v4286
  %v4549 = vunpack.c.l.b16 %v4287
  %v4550 = vunpack.c.l.b16 %v4288
  %v4551 = vunpack.c.l.b16 %v4289
  %v4552 = vunpack.c.h.b16 %v4288
  %v4553 = vunpack.c.h.b16 %v4289
  %v4554 = vunpack.c.l.b16 %v4290
  %v4555 = vunpack.c.l.b16 %v4291
  %v4556 = vunpack.c.h.b16 %v4290
  %v4557 = vunpack.c.h.b16 %v4291
  %v4558 = vunpack.c.l.b16 %v4292
  %v4559 = vunpack.c.l.b16 %v4293
  %v4560 = vunpack.c.h.b16 %v4292
  %v4561 = vunpack.c.h.b16 %v4293
  %v4562 = vunpack.c.l.b16 %v4294
  %v4563 = vunpack.c.l.b16 %v4295
  %v4564 = vunpack.c.h.b16 %v4294
  %v4565 = vunpack.c.h.b16 %v4295
  %v4566 = vunpack.c.l.b16 %v4296
  %v4567 = vunpack.c.l.b16 %v4297
  %v4568 = vunpack.c.h.b16 %v4296
  %v4569 = vunpack.c.h.b16 %v4297
  %v4570 = vunpack.c.l.b16 %v4298
  %v4571 = vunpack.c.l.b16 %v4299
  %v4572 = vpack.c.b16 %v4397, %v4396
  %v4573 = vpack.c.b16 %v4399, %v4398
  %v4574 = vpack.c.b16 %v4401, %v4400
  %v4575 = vpack.c.b16 %v4403, %v4402
  %v4576 = vpack.c.b16 %v4405, %v4404
  %v4577 = vpack.c.b16 %v4407, %v4406
  %v4578 = vpack.c.b16 %v4409, %v4408
  %v4579 = vpack.c.b16 %v4411, %v4410
  %v4580 = vpack.c.b16 %v4413, %v4412
  %v4581 = vpack.c.b16 %v4415, %v4414
  %v4582 = vpack.c.b16 %v4417, %v4416
  %v4583 = vpack.c.b16 %v4419, %v4418
  %v4584 = vpack.c.b16 %v4421, %v4420
  %v4585 = vpack.c.b16 %v4423, %v4422
  %v4586 = vpack.c.b16 %v4425, %v4424
  %v4587 = vpack.c.b16 %v4427, %v4426
  %v4588 = vpack.c.b16 %v4429, %v4428
  %v4589 = vpack.c.b16 %v4431, %v4430
  %v4590 = vpack.c.b16 %v4433, %v4432
  %v4591 = vpack.c.b16 %v4435, %v4434
  %v4592 = vpack.c.b16 %v4437, %v4436
  %v4593 = vpack.c.b16 %v4439, %v4438
  %v4594 = vpack.c.b16 %v4441, %v4440
  %v4595 = vpack.c.b16 %v4443, %v4442
  %v4596 = vpack.c.b16 %v4445, %v4444
  %v4597 = vpack.c.b16 %v4447, %v4446
  %v4598 = vpack.c.b16 %v4449, %v4448
  %v4599 = vpack.c.b16 %v4451, %v4450
  %v4600 = vpack.c.b16 %v4453, %v4452
  %v4601 = vpack.c.b16 %v4455, %v4454
  %v4602 = vpack.c.b16 %v4457, %v4456
  %v4603 = vpack.c.b16 %v4459, %v4458
  %v4604 = vpack.c.b16 %v4461, %v4460
  %v4605 = vpack.c.b16 %v4463, %v4462
  %v4606 = vpack.c.b16 %v4465, %v4464
  %v4607 = vpack.c.b16 %v4467, %v4466
  %v4608 = vpack.c.b16 %v4469, %v4468
  %v4609 = vpack.c.b16 %v4471, %v4470
  %v4610 = vpack.c.b16 %v4473, %v4472
  %v4611 = vpack.c.b16 %v4475, %v4474
  %v4612 = vpack.c.b16 %v4477, %v4476
  %v4613 = vpack.c.b16 %v4479, %v4478
  %v4614 = vpack.c.b16 %v4481, %v4480
  %v4615 = vpack.c.b16 %v4483, %v4482
  %v4616 = vpack.c.b16 %v4485, %v4484
  %v4617 = vpack.c.b16 %v4487, %v4486
  %v4618 = vpack.c.b16 %v4489, %v4488
  %v4619 = vpack.c.b16 %v4491, %v4490
  %v4620 = vpack.c.b16 %v4493, %v4492
  %v4621 = vpack.c.b16 %v4495, %v4494
  %v4622 = vpack.c.b16 %v4497, %v4496
  %v4623 = vpack.c.b16 %v4499, %v4498
  %v4624 = vpack.c.b16 %v4501, %v4500
  %v4625 = vpack.c.b16 %v4503, %v4502
  %v4626 = vpack.c.b16 %v4505, %v4504
  %v4627 = vpack.c.b16 %v4507, %v4506
  %v4628 = vpack.c.b16 %v4509, %v4508
  %v4629 = vpack.c.b16 %v4511, %v4510
  %v4630 = vpack.c.b16 %v4513, %v4512
  %v4631 = vpack.c.b16 %v4515, %v4514
  %v4632 = vpack.c.b16 %v4517, %v4516
  %v4633 = vpack.c.b16 %v4519, %v4518
  %v4634 = vpack.c.b16 %v4521, %v4520
  %v4635 = vpack.c.b16 %v4523, %v4522
  %v4636 = vpack.c.b16 %v4525, %v4524
  %v4637 = vpack.c.b16 %v4527, %v4526
  %v4638 = vpack.c.b16 %v4529, %v4528
  %v4639 = vpack.c.b16 %v4531, %v4530
  %v4640 = vpack.c.b16 %v4533, %v4532
  %v4641 = vpack.c.b16 %v4535, %v4534
  %v4642 = vpack.c.b16 %v4537, %v4536
  %v4643 = vpack.c.b16 %v4539, %v4538
  %v4644 = vpack.c.b16 %v4541, %v4540
  %v4645 = vpack.c.b16 %v4543, %v4542
  %v4646 = vpack.c.b16 %v4545, %v4544
  %v4647 = vpack.c.b16 %v4547, %v4546
  %v4648 = vpack.c.b16 %v4549, %v4548
  %v4649 = vpack.c.b16 %v4551, %v4550
  %v4650 = vpack.c.b16 %v4553, %v4552
  %v4651 = vpack.c.b16 %v4555, %v4554
  %v4652 = vpack.c.b16 %v4557, %v4556
  %v4653 = vpack.c.b16 %v4559, %v4558
  %v4654 = vpack.c.b16 %v4561, %v4560
  %v4655 = vpack.c.b16 %v4563, %v4562
  %v4656 = vpack.c.b16 %v4565, %v4564
  %v4657 = vpack.c.b16 %v4567, %v4566
  %v4658 = vpack.c.b16 %v4569, %v4568
  %v4659 = vpack.c.b16 %v4571, %v4570
  %4748 = vst [vmem:[%s3] sm:$0xff] %v4572
  %4749 = vst [vmem:[%s3 + $0x8] sm:$0xff] %v4573
  %4750 = vst [vmem:[%s3 + $0x10] sm:$0xff] %v4574
  %4751 = vst [vmem:[%s3 + $0x18] sm:$0xff] %v4575
  %4752 = vst [vmem:[%s3 + $0x20] sm:$0xff] %v4576
  %4753 = vst [vmem:[%s3 + $0x28] sm:$0xff] %v4577
  %4754 = vst [vmem:[%s3 + $0x30] sm:$0xff] %v4578
  %4755 = vst [vmem:[%s3 + $0x38] sm:$0xff] %v4579
  %4756 = vst [vmem:[%s3 + $0x40] sm:$0xff] %v4580
  %4757 = vst [vmem:[%s3 + $0x48] sm:$0xff] %v4581
  %4758 = vst [vmem:[%s3 + $0x50] sm:$0xff] %v4582
  %4759 = vst [vmem:[%s3 + $0x58] sm:$0xff] %v4583
  %4760 = vst [vmem:[%s3 + $0x60] sm:$0xff] %v4584
  %4761 = vst [vmem:[%s3 + $0x68] sm:$0xff] %v4585
  %4762 = vst [vmem:[%s3 + $0x70] sm:$0xff] %v4586
  %4763 = vst [vmem:[%s3 + $0x78] sm:$0xff] %v4587
  %4764 = vst [vmem:[%s3 + $0x80] sm:$0xff] %v4588
  %4765 = vst [vmem:[%s3 + $0x88] sm:$0xff] %v4589
  %4766 = vst [vmem:[%s3 + $0x90] sm:$0xff] %v4590
  %4767 = vst [vmem:[%s3 + $0x98] sm:$0xff] %v4591
  %4768 = vst [vmem:[%s3 + $0xa0] sm:$0xff] %v4592
  %4769 = vst [vmem:[%s3 + $0xa8] sm:$0xff] %v4593
  %4770 = vst [vmem:[%s3 + $0xb0] sm:$0xff] %v4594
  %4771 = vst [vmem:[%s3 + $0xb8] sm:$0xff] %v4595
  %4772 = vst [vmem:[%s3 + $0xc0] sm:$0xff] %v4596
  %4773 = vst [vmem:[%s3 + $0xc8] sm:$0xff] %v4597
  %4774 = vst [vmem:[%s3 + $0xd0] sm:$0xff] %v4598
  %4775 = vst [vmem:[%s3 + $0xd8] sm:$0xff] %v4599
  %4776 = vst [vmem:[%s3 + $0xe0] sm:$0xff] %v4600
  %4777 = vst [vmem:[%s3 + $0xe8] sm:$0xff] %v4601
  %4778 = vst [vmem:[%s3 + $0xf0] sm:$0xff] %v4602
  %4779 = vst [vmem:[%s3 + $0xf8] sm:$0xff] %v4603
  %4780 = vst [vmem:[%s3 + $0x100] sm:$0xff] %v4604
  %4781 = vst [vmem:[%s3 + $0x108] sm:$0xff] %v4605
  %4782 = vst [vmem:[%s3 + $0x110] sm:$0xff] %v4606
  %4783 = vst [vmem:[%s3 + $0x118] sm:$0xff] %v4607
  %4784 = vst [vmem:[%s3 + $0x120] sm:$0xff] %v4608
  %4785 = vst [vmem:[%s3 + $0x128] sm:$0xff] %v4609
  %4786 = vst [vmem:[%s3 + $0x130] sm:$0xff] %v4610
  %4787 = vst [vmem:[%s3 + $0x138] sm:$0xff] %v4611
  %4788 = vst [vmem:[%s3 + $0x140] sm:$0xff] %v4612
  %4789 = vst [vmem:[%s3 + $0x148] sm:$0xff] %v4613
  %4790 = vst [vmem:[%s3 + $0x150] sm:$0xff] %v4614
  %4791 = vst [vmem:[%s3 + $0x158] sm:$0xff] %v4615
  %4792 = vst [vmem:[%s3 + $0x160] sm:$0xff] %v4616
  %4793 = vst [vmem:[%s3 + $0x168] sm:$0xff] %v4617
  %4794 = vst [vmem:[%s3 + $0x170] sm:$0xff] %v4618
  %4795 = vst [vmem:[%s3 + $0x178] sm:$0xff] %v4619
  %4796 = vst [vmem:[%s3 + $0x180] sm:$0xff] %v4620
  %4797 = vst [vmem:[%s3 + $0x188] sm:$0xff] %v4621
  %4798 = vst [vmem:[%s3 + $0x190] sm:$0xff] %v4622
  %4799 = vst [vmem:[%s3 + $0x198] sm:$0xff] %v4623
  %4800 = vst [vmem:[%s3 + $0x1a0] sm:$0xff] %v4624
  %4801 = vst [vmem:[%s3 + $0x1a8] sm:$0xff] %v4625
  %4802 = vst [vmem:[%s3 + $0x1b0] sm:$0xff] %v4626
  %4803 = vst [vmem:[%s3 + $0x1b8] sm:$0xff] %v4627
  %4804 = vst [vmem:[%s3 + $0x1c0] sm:$0xff] %v4628
  %4805 = vst [vmem:[%s3 + $0x1c8] sm:$0xff] %v4629
  %4806 = vst [vmem:[%s3 + $0x1d0] sm:$0xff] %v4630
  %4807 = vst [vmem:[%s3 + $0x1d8] sm:$0xff] %v4631
  %4808 = vst [vmem:[%s3 + $0x1e0] sm:$0xff] %v4632
  %4809 = vst [vmem:[%s3 + $0x1e8] sm:$0xff] %v4633
  %4810 = vst [vmem:[%s3 + $0x1f0] sm:$0xff] %v4634
  %4811 = vst [vmem:[%s3 + $0x1f8] sm:$0xff] %v4635
  %4812 = vst [vmem:[%s3 + $0x200] sm:$0xff] %v4636
  %4813 = vst [vmem:[%s3 + $0x208] sm:$0xff] %v4637
  %4814 = vst [vmem:[%s3 + $0x210] sm:$0xff] %v4638
  %4815 = vst [vmem:[%s3 + $0x218] sm:$0xff] %v4639
  %4816 = vst [vmem:[%s3 + $0x220] sm:$0xff] %v4640
  %4817 = vst [vmem:[%s3 + $0x228] sm:$0xff] %v4641
  %4818 = vst [vmem:[%s3 + $0x230] sm:$0xff] %v4642
  %4819 = vst [vmem:[%s3 + $0x238] sm:$0xff] %v4643
  %4820 = vst [vmem:[%s3 + $0x240] sm:$0xff] %v4644
  %4821 = vst [vmem:[%s3 + $0x248] sm:$0xff] %v4645
  %4822 = vst [vmem:[%s3 + $0x250] sm:$0xff] %v4646
  %4823 = vst [vmem:[%s3 + $0x258] sm:$0xff] %v4647
  %4824 = vst [vmem:[%s3 + $0x260] sm:$0xff] %v4648
  %4825 = vst [vmem:[%s3 + $0x268] sm:$0xff] %v4649
  %4826 = vst [vmem:[%s3 + $0x270] sm:$0xff] %v4650
  %4827 = vst [vmem:[%s3 + $0x278] sm:$0xff] %v4651
  %4828 = vst [vmem:[%s3 + $0x280] sm:$0xff] %v4652
  %4829 = vst [vmem:[%s3 + $0x288] sm:$0xff] %v4653
  %4830 = vst [vmem:[%s3 + $0x290] sm:$0xff] %v4654
  %4831 = vst [vmem:[%s3 + $0x298] sm:$0xff] %v4655
  %4832 = vst [vmem:[%s3 + $0x2a0] sm:$0xff] %v4656
  %4833 = vst [vmem:[%s3 + $0x2a8] sm:$0xff] %v4657
  %4834 = vst [vmem:[%s3 + $0x2b0] sm:$0xff] %v4658
  %4835 = vst [vmem:[%s3 + $0x2b8] sm:$0xff] %v4659
  // Predicated region
  $region14: #{_forward.2} parent=0 // pred_check
    _
  $region15: #{_forward.2} parent=0 // pred_check_branch
    %4837 = sbr.rel (0) target = $region17
  $region16: #{_forward.2} parent=0 // pred_region
    _
  $region17: #{_forward.2} parent=0 // pred_fallthru
    _
  // Predicated region
  $region18: #{_forward.2} parent=0 // pred_check
    _
  $region19: #{_forward.2} parent=0 // pred_check_branch
    %4839 = sbr.rel (0) target = $region21
  $region20: #{_forward.2} parent=0 // pred_region
    _
  $region21: #{_forward.2} parent=0 // pred_fallthru
    _

// kernel: _forward.3
$region0: #{_forward.3}
  #allocation0 [shape = 'u32[]', space=smem, size = 0x4, offset = 0x4, fixed_abs, tag = 'smem constant byte address 0x4 - core index']
  #allocation1 [shape = 'u32[144,128]{1,0:T(1,128)}', space=vmem, size = 0x12000, scoped, tag = 'internal scratch']
  #allocation2 [shape = 'f32[8,512]{1,0:T(8,128)}', space=vmem, size = 0x4000, scoped, tag = 'scratch operand']
  %s0 = inlined_call_operand.vmem [shape: bf16[8,22528], index: 0, kind: input, shape index: {}]
  %s1 = inlined_call_operand.hbm [shape: bf16[22528,512], index: 1, kind: input, shape index: {}]
  %s2 = inlined_call_operand.vmem [shape: f32[1,512], index: 2, kind: input, shape index: {}]
  %s3 = inlined_call_operand.vmem [shape: bf16[512,1024], index: 3, kind: input, shape index: {}]
  %s4 = inlined_call_operand.vmem [shape: f32[1,1024], index: 4, kind: input, shape index: {}]
  %s5 = inlined_call_operand.vmem [shape: bf16[8,1024], index: 5, kind: output, shape index: {}]
  %s6 = sld [smem:[#allocation0]]
  $region65: #{_forward.3} parent=0
    _
  %s8 = ssub.s32 1, %s6
  %s9 = scalar_select 0, %s8, %s6
  $region1: #{_forward.3} parent=0
    #allocation3 [shape = 'u8[5767168]{0}', space=vmem, size = 0x580000, scoped, tag = 'input window, operand 1']
    #allocation4 [shape = 's32[2]{0}', space=sflag, size = 0x8, scoped, tag = 'scoped memory for _forward.3']
    %10 = vsyncpa [#allocation4], 0
    %s11 = scalar_lea.sflag [#allocation4], 1
    %12 = vsyncpa %s11, 0
    loop: start=0, step=1, limit=10
    $region2: #{_forward.3} parent=1 // loop_pre_header
      _
    $region3: #{_forward.3} parent=1 // loop_header
      %s14 = sphi 0, %s18
      %p15 = scmp.ge.s32.totalorder %s14, 10
      %s21 = sphi 0, %s33
      %s22 = sphi 0, %s29
      %s23 = sphi 0, %s21
      %s24 = sphi 0, %s22
      %s25 = sphi 0, %s23
      %s26 = sphi 0, %s24
      %s38 = sphi 0, %s40
      %s41 = sphi 0, %s38
      %s42 = sphi 0, %s41
      %s58 = sphi 0, %s42
      %s64 = sphi 0, %s66
      %s67 = sphi 0, %s64
      %s68 = sphi 0, %s67
      %s84 = sphi 0, %s68
      %s88 = sphi 0, %s88
      %s90 = sphi 0, %s88
      %s91 = sphi 0, %s90
      %s105 = sphi 0, %s91
      %s109 = sphi 0, %s109
      %s111 = sphi 0, %s109
      %s112 = sphi 0, %s111
      %s126 = sphi 0, %s112
      %s130 = sphi 0, %s130
      %s132 = sphi 0, %s130
      %s133 = sphi 0, %s132
      %s147 = sphi 0, %s133
      %s153 = sphi 0, %s155
      %s156 = sphi 0, %s153
      %s157 = sphi 0, %s156
      %s173 = sphi 0, %s157
    $region4: #{_forward.3} parent=1 // loop_header_branch
      %17 = sbr.rel (%p15) target = $region8
    $region5: #{_forward.3} parent=1 // loop_body
      %s19 = ssub.s32 %s14, 1
      %s20 = ssub.s32 %s14, 2
      %s27 = sadd.s32 1, %s22
      %p28 = scmp.ge.s32.totalorder %s27, 8
      %s29 = scalar_select %p28, 0, %s27
      %s30 = sadd.s32 1, %s21
      %s31 = scalar_select %p28, %s30, %s21
      %p32 = scmp.ge.s32.totalorder %s31, 1
      %s33 = scalar_select %p32, 0, %s31
      %s34 = ssub.s32 %s21, %s33
      %s35 = ssub.s32 %s22, %s29
      %s36 = sor.u32 %s34, %s35
      %p37 = scmp.eq.s32.totalorder %s36, 0
      %s39 = sadd.s32 %s38, 1
      %s40 = scalar_select %p37, %s38, %s39
      %p43 = pneg %p37
      %p44 = scmp.eq.s32.totalorder %s14, 7
      %p45 = por %p43, %p44
      %p46 = scmp.ne.s32.totalorder %s38, %s41
      %p47 = scmp.eq.s32.totalorder %s14, 0
      %p48 = por %p46, %p47
      %p49 = scmp.ne.s32.totalorder %s38, %s41
      %p50 = scmp.eq.s32.totalorder %s19, 7
      %p51 = por %p49, %p50
      %p52 = scmp.ne.s32.totalorder %s41, %s42
      %p53 = scmp.eq.s32.totalorder %s19, 0
      %p54 = por %p52, %p53
      %p55 = scmp.ne.s32.totalorder %s41, %s42
      %p56 = scmp.eq.s32.totalorder %s20, 7
      %p57 = por %p55, %p56
      %p59 = scmp.ne.s32.totalorder %s42, %s58
      %p60 = scmp.eq.s32.totalorder %s20, 0
      %p61 = por %p59, %p60
      %s62 = ssub.s32 %s22, %s29
      %p63 = scmp.eq.s32.totalorder %s62, 0
      %s65 = sadd.s32 %s64, 1
      %s66 = scalar_select %p63, %s64, %s65
      %p69 = pneg %p63
      %p70 = scmp.eq.s32.totalorder %s14, 7
      %p71 = por %p69, %p70
      %p72 = scmp.ne.s32.totalorder %s64, %s67
      %p73 = scmp.eq.s32.totalorder %s14, 0
      %p74 = por %p72, %p73
      %p75 = scmp.ne.s32.totalorder %s64, %s67
      %p76 = scmp.eq.s32.totalorder %s19, 7
      %p77 = por %p75, %p76
      %p78 = scmp.ne.s32.totalorder %s67, %s68
      %p79 = scmp.eq.s32.totalorder %s19, 0
      %p80 = por %p78, %p79
      %p81 = scmp.ne.s32.totalorder %s67, %s68
      %p82 = scmp.eq.s32.totalorder %s20, 7
      %p83 = por %p81, %p82
      %p85 = scmp.ne.s32.totalorder %s68, %s84
      %p86 = scmp.eq.s32.totalorder %s20, 0
      %p87 = por %p85, %p86
      %s89 = sadd.s32 %s88, 1
      %p92 = scmp.eq.s32.totalorder %s14, 7
      %p93 = scmp.ne.s32.totalorder %s88, %s90
      %p94 = scmp.eq.s32.totalorder %s14, 0
      %p95 = por %p93, %p94
      %p96 = scmp.ne.s32.totalorder %s88, %s90
      %p97 = scmp.eq.s32.totalorder %s19, 7
      %p98 = por %p96, %p97
      %p99 = scmp.ne.s32.totalorder %s90, %s91
      %p100 = scmp.eq.s32.totalorder %s19, 0
      %p101 = por %p99, %p100
      %p102 = scmp.ne.s32.totalorder %s90, %s91
      %p103 = scmp.eq.s32.totalorder %s20, 7
      %p104 = por %p102, %p103
      %p106 = scmp.ne.s32.totalorder %s91, %s105
      %p107 = scmp.eq.s32.totalorder %s20, 0
      %p108 = por %p106, %p107
      %s110 = sadd.s32 %s109, 1
      %p113 = scmp.eq.s32.totalorder %s14, 7
      %p114 = scmp.ne.s32.totalorder %s109, %s111
      %p115 = scmp.eq.s32.totalorder %s14, 0
      %p116 = por %p114, %p115
      %p117 = scmp.ne.s32.totalorder %s109, %s111
      %p118 = scmp.eq.s32.totalorder %s19, 7
      %p119 = por %p117, %p118
      %p120 = scmp.ne.s32.totalorder %s111, %s112
      %p121 = scmp.eq.s32.totalorder %s19, 0
      %p122 = por %p120, %p121
      %p123 = scmp.ne.s32.totalorder %s111, %s112
      %p124 = scmp.eq.s32.totalorder %s20, 7
      %p125 = por %p123, %p124
      %p127 = scmp.ne.s32.totalorder %s112, %s126
      %p128 = scmp.eq.s32.totalorder %s20, 0
      %p129 = por %p127, %p128
      %s131 = sadd.s32 %s130, 1
      %p134 = scmp.eq.s32.totalorder %s14, 7
      %p135 = scmp.ne.s32.totalorder %s130, %s132
      %p136 = scmp.eq.s32.totalorder %s14, 0
      %p137 = por %p135, %p136
      %p138 = scmp.ne.s32.totalorder %s130, %s132
      %p139 = scmp.eq.s32.totalorder %s19, 7
      %p140 = por %p138, %p139
      %p141 = scmp.ne.s32.totalorder %s132, %s133
      %p142 = scmp.eq.s32.totalorder %s19, 0
      %p143 = por %p141, %p142
      %p144 = scmp.ne.s32.totalorder %s132, %s133
      %p145 = scmp.eq.s32.totalorder %s20, 7
      %p146 = por %p144, %p145
      %p148 = scmp.ne.s32.totalorder %s133, %s147
      %p149 = scmp.eq.s32.totalorder %s20, 0
      %p150 = por %p148, %p149
      %s151 = ssub.s32 %s21, %s33
      %p152 = scmp.eq.s32.totalorder %s151, 0
      %s154 = sadd.s32 %s153, 1
      %s155 = scalar_select %p152, %s153, %s154
      %p158 = pneg %p152
      %p159 = scmp.eq.s32.totalorder %s14, 7
      %p160 = por %p158, %p159
      %p161 = scmp.ne.s32.totalorder %s153, %s156
      %p162 = scmp.eq.s32.totalorder %s14, 0
      %p163 = por %p161, %p162
      %p164 = scmp.ne.s32.totalorder %s153, %s156
      %p165 = scmp.eq.s32.totalorder %s19, 7
      %p166 = por %p164, %p165
      %p167 = scmp.ne.s32.totalorder %s156, %s157
      %p168 = scmp.eq.s32.totalorder %s19, 0
      %p169 = por %p167, %p168
      %p170 = scmp.ne.s32.totalorder %s156, %s157
      %p171 = scmp.eq.s32.totalorder %s20, 7
      %p172 = por %p170, %p171
      %p174 = scmp.ne.s32.totalorder %s157, %s173
      %p175 = scmp.eq.s32.totalorder %s20, 0
      %p176 = por %p174, %p175
      %p177 = scmp.le.s32.totalorder 1, %s14
      %p178 = scmp.lt.s32.totalorder %s14, 9
      %p179 = pnand %p177, %p178
      %p180 = pneg %p179
      // Predicated region
      $region9: #{_forward.3} parent=5 // pred_check
        _
      $region10: #{_forward.3} parent=5 // pred_check_branch
        %182 = sbr.rel (%p179) target = $region12
      $region11: #{_forward.3} parent=5 // pred_region
        %s183 = ssub.s32 %s14, 1
        // Predicated region
        $region13: #{_forward.3} parent=11 // pred_check
          %p184 = pneg %p101
        $region14: #{_forward.3} parent=11 // pred_check_branch
          %186 = sbr.rel (%p184) target = $region16
        $region15: #{_forward.3} parent=11 // pred_region
          _
        $region16: #{_forward.3} parent=11 // pred_fallthru
          _
        // Predicated region
        $region17: #{_forward.3} parent=11 // pred_check
          %p187 = pneg %p122
        $region18: #{_forward.3} parent=11 // pred_check_branch
          %189 = sbr.rel (%p187) target = $region20
        $region19: #{_forward.3} parent=11 // pred_region
          _
        $region20: #{_forward.3} parent=11 // pred_fallthru
          _
        // Predicated region
        $region21: #{_forward.3} parent=11 // pred_check
          %p190 = pneg %p143
        $region22: #{_forward.3} parent=11 // pred_check_branch
          %192 = sbr.rel (%p190) target = $region24
        $region23: #{_forward.3} parent=11 // pred_region
          _
        $region24: #{_forward.3} parent=11 // pred_fallthru
          _
      $region12: #{_forward.3} parent=5 // pred_fallthru
        _
      %p193 = scmp.lt.s32.totalorder %s14, 8
      // Predicated region
      $region25: #{_forward.3} parent=5 // pred_check
        %p194 = pneg %p193
      $region26: #{_forward.3} parent=5 // pred_check_branch
        %196 = sbr.rel (%p194) target = $region28
      $region27: #{_forward.3} parent=5 // pred_region
        // Predicated region
        $region29: #{_forward.3} parent=27 // pred_check
          %p197 = pneg %p48
        $region30: #{_forward.3} parent=27 // pred_check_branch
          %199 = sbr.rel (%p197) target = $region32
        $region31: #{_forward.3} parent=27 // pred_region
          %s200 = smul.u32 22, %s22
          %p201 = scmp.lt.s32.totalorder %s21, 0
          %s202 = scalar_select %p201, %s21, 0
          %p203 = scmp.lt.s32.totalorder %s200, 175
          %s204 = scalar_select %p203, %s200, 175
          %s205 = smul.addr %s202, 176
          %s206 = sadd.s32 %s204, %s205
          %s207 = smul.addr %s206, 4
          %s208 = scalar_lea.vmem %s0, %s207
          %s209 = smul.u32 22, %s22
        $region32: #{_forward.3} parent=27 // pred_fallthru
          _
        // Predicated region
        $region33: #{_forward.3} parent=27 // pred_check
          %p210 = pneg %p74
        $region34: #{_forward.3} parent=27 // pred_check_branch
          %212 = sbr.rel (%p210) target = $region36
        $region35: #{_forward.3} parent=27 // pred_region
          %s213 = sand.u32 %s64, 1
          %s214 = scalar_lea.sflag [#allocation4], %s213
          %s215 = sand.u32 %s64, 1
          %s216 = smul.addr %s215, 5632
          %s217 = scalar_lea.vmem [#allocation3], %s216
          %s218 = smul.u32 352, %s22
          %s220 = ssub.s32 90112, 90112
          %221 = vsyncadd %s214, %s220
          %s222 = smul.addr %s218, 4
          %s223 = smul.addr %s222, 64
          %s224 = scalar_lea.hbm %s1, %s223
          %s225 = sshll.u32 %s217, 4
          %s226 = int_to_ptr.vmem [resolvable:$true] %s225
          %231 = dma.hbm_to_vmem [thread:$0]  %s224, 90112, %s226, %s214, 256, 256, 16
        $region36: #{_forward.3} parent=27 // pred_fallthru
          _
      $region28: #{_forward.3} parent=5 // pred_fallthru
        _
      %p232 = scmp.le.s32.totalorder 1, %s14
      %p233 = scmp.lt.s32.totalorder %s14, 9
      %p234 = pnand %p232, %p233
      %p235 = pneg %p234
      // Predicated region
      $region37: #{_forward.3} parent=5 // pred_check
        _
      $region38: #{_forward.3} parent=5 // pred_check_branch
        %237 = sbr.rel (%p234) target = $region40
      $region39: #{_forward.3} parent=5 // pred_region
        %s238 = ssub.s32 %s14, 1
        %s239 = sand.u32 %s67, 1
        %s240 = scalar_lea.sflag [#allocation4], %s239
        %s241 = sand.u32 %s67, 1
        %s242 = smul.addr %s241, 5632
        %s243 = scalar_lea.vmem [#allocation3], %s242
        // Predicated region
        $region41: #{_forward.3} parent=39 // pred_check
          %p244 = pneg %p80
        $region42: #{_forward.3} parent=39 // pred_check_branch
          %246 = sbr.rel (%p244) target = $region44
        $region43: #{_forward.3} parent=39 // pred_region
          %247 = dma.done %s240, 90112
        $region44: #{_forward.3} parent=39 // pred_fallthru
          _
        %s248 = smul.u32 22, %s24
        %p249 = scmp.lt.s32.totalorder %s23, 0
        %s250 = scalar_select %p249, %s23, 0
        %p251 = scmp.lt.s32.totalorder %s248, 175
        %s252 = scalar_select %p251, %s248, 175
        %s253 = smul.addr %s250, 176
        %s254 = sadd.s32 %s252, %s253
        %s255 = smul.addr %s254, 4
        %s256 = scalar_lea.vmem %s0, %s255
        %p257 = pneg %p54
        %p258 = pneg %p51
        %s259 = sand.u32 %s67, 1
        %s260 = scalar_lea.sflag [#allocation4], %s259
        %s261 = sand.u32 %s67, 1
        %s262 = smul.addr %s261, 5632
        %s263 = scalar_lea.vmem [#allocation3], %s262
        %p264 = pneg %p80
        %p265 = pneg %p77
        %p266 = pneg %p101
        %p267 = pneg %p98
        %p268 = pneg %p122
        %p269 = pneg %p119
        %p270 = pneg %p143
        %p271 = pneg %p140
        %p272 = pneg %p169
        %p273 = pneg %p166
        %p274 = scmp.lt.s32.totalorder %s23, 0
        %s275 = scalar_select %p274, %s23, 0
        %s276 = smul.addr %s275, 8
        %s277 = smul.addr %s276, 4
        %s278 = scalar_lea.vmem %s5, %s277
        %s279 = smul.u32 22, %s24
        %p280 = scmp.lt.s32.totalorder %s23, 0
        %s281 = scalar_select %p280, %s23, 0
        %p282 = scmp.lt.s32.totalorder %s279, 175
        %s283 = scalar_select %p282, %s279, 175
        %s284 = smul.addr %s281, 176
        %s285 = sadd.s32 %s283, %s284
        %s286 = smul.addr %s285, 4
        %s287 = scalar_lea.vmem %s0, %s286
        %s288 = smul.u32 22, %s24
        %s289 = smul.u32 352, %s24
        %p290 = scmp.lt.s32.totalorder %s23, 0
        %s291 = scalar_select %p290, %s23, 0
        %s292 = smul.addr %s291, 8
        %s293 = smul.addr %s292, 4
        %s294 = scalar_lea.vmem %s5, %s293
        %p295 = scmp.eq.s32.totalorder %s24, 0
        // Predicated region
        $region45: #{_forward.3} parent=39 // pred_check
          %p296 = pneg %p295
        $region46: #{_forward.3} parent=39 // pred_check_branch
          %298 = sbr.rel (%p296) target = $region48
        $region47: #{_forward.3} parent=39 // pred_region
          %299 = vst [vmem:[#allocation2] sm:$0xff] 0.0
          %300 = vst [vmem:[#allocation2 + $0x8] sm:$0xff] 0.0
          %301 = vst [vmem:[#allocation2 + $0x10] sm:$0xff] 0.0
          %302 = vst [vmem:[#allocation2 + $0x18] sm:$0xff] 0.0
        $region48: #{_forward.3} parent=39 // pred_fallthru
          _
        %v303 = vld [vmem:[#allocation2] sm:$0xff]
        %v304 = vld [vmem:[#allocation2 + $0x8] sm:$0xff]
        %v305 = vld [vmem:[#allocation2 + $0x10] sm:$0xff]
        %v306 = vld [vmem:[#allocation2 + $0x18] sm:$0xff]
        %v307 = vld [vmem:[%s287] sm:$0xff]
        %v308 = vld [vmem:[%s287 + $0x8] sm:$0xff]
        %v309 = vld [vmem:[%s287 + $0x10] sm:$0xff]
        %v310 = vld [vmem:[%s287 + $0x18] sm:$0xff]
        %v311 = vld [vmem:[%s287 + $0x20] sm:$0xff]
        %v312 = vld [vmem:[%s287 + $0x28] sm:$0xff]
        %v313 = vld [vmem:[%s287 + $0x30] sm:$0xff]
        %v314 = vld [vmem:[%s287 + $0x38] sm:$0xff]
        %v315 = vld [vmem:[%s287 + $0x40] sm:$0xff]
        %v316 = vld [vmem:[%s287 + $0x48] sm:$0xff]
        %v317 = vld [vmem:[%s287 + $0x50] sm:$0xff]
        %v318 = vld [vmem:[%s243] sm:$0xff]
        %v319 = vld [vmem:[%s243 + $0x8] sm:$0xff]
        %v320 = vld [vmem:[%s243 + $0x10] sm:$0xff]
        %v321 = vld [vmem:[%s243 + $0x18] sm:$0xff]
        %v322 = vld [vmem:[%s243 + $0x20] sm:$0xff]
        %v323 = vld [vmem:[%s243 + $0x28] sm:$0xff]
        %v324 = vld [vmem:[%s243 + $0x30] sm:$0xff]
        %v325 = vld [vmem:[%s243 + $0x38] sm:$0xff]
        %v326 = vld [vmem:[%s243 + $0x40] sm:$0xff]
        %v327 = vld [vmem:[%s243 + $0x48] sm:$0xff]
        %v328 = vld [vmem:[%s243 + $0x50] sm:$0xff]
        %v329 = vld [vmem:[%s243 + $0x58] sm:$0xff]
        %v330 = vld [vmem:[%s243 + $0x60] sm:$0xff]
        %v331 = vld [vmem:[%s243 + $0x68] sm:$0xff]
        %v332 = vld [vmem:[%s243 + $0x70] sm:$0xff]
        %v333 = vld [vmem:[%s243 + $0x78] sm:$0xff]
        %v334 = vld [vmem:[%s243 + $0x80] sm:$0xff]
        %v335 = vld [vmem:[%s243 + $0x88] sm:$0xff]
        %v336 = vld [vmem:[%s243 + $0x90] sm:$0xff]
        %v337 = vld [vmem:[%s243 + $0x98] sm:$0xff]
        %v338 = vld [vmem:[%s243 + $0xa0] sm:$0xff]
        %v339 = vld [vmem:[%s243 + $0xa8] sm:$0xff]
        %v340 = vld [vmem:[%s243 + $0xb0] sm:$0xff]
        %v341 = vld [vmem:[%s243 + $0xb8] sm:$0xff]
        %v342 = vld [vmem:[%s243 + $0xc0] sm:$0xff]
        %v343 = vld [vmem:[%s243 + $0xc8] sm:$0xff]
        %v344 = vld [vmem:[%s243 + $0xd0] sm:$0xff]
        %v345 = vld [vmem:[%s243 + $0xd8] sm:$0xff]
        %v346 = vld [vmem:[%s243 + $0xe0] sm:$0xff]
        %v347 = vld [vmem:[%s243 + $0xe8] sm:$0xff]
        %v348 = vld [vmem:[%s243 + $0xf0] sm:$0xff]
        %v349 = vld [vmem:[%s243 + $0xf8] sm:$0xff]
        %v350 = vld [vmem:[%s243 + $0x100] sm:$0xff]
        %v351 = vld [vmem:[%s243 + $0x108] sm:$0xff]
        %v352 = vld [vmem:[%s243 + $0x110] sm:$0xff]
        %v353 = vld [vmem:[%s243 + $0x118] sm:$0xff]
        %v354 = vld [vmem:[%s243 + $0x120] sm:$0xff]
        %v355 = vld [vmem:[%s243 + $0x128] sm:$0xff]
        %v356 = vld [vmem:[%s243 + $0x130] sm:$0xff]
        %v357 = vld [vmem:[%s243 + $0x138] sm:$0xff]
        %v358 = vld [vmem:[%s243 + $0x140] sm:$0xff]
        %v359 = vld [vmem:[%s243 + $0x148] sm:$0xff]
        %v360 = vld [vmem:[%s243 + $0x150] sm:$0xff]
        %v361 = vld [vmem:[%s243 + $0x158] sm:$0xff]
        %v362 = vld [vmem:[%s243 + $0x160] sm:$0xff]
        %v363 = vld [vmem:[%s243 + $0x168] sm:$0xff]
        %v364 = vld [vmem:[%s243 + $0x170] sm:$0xff]
        %v365 = vld [vmem:[%s243 + $0x178] sm:$0xff]
        %v366 = vld [vmem:[%s243 + $0x180] sm:$0xff]
        %v367 = vld [vmem:[%s243 + $0x188] sm:$0xff]
        %v368 = vld [vmem:[%s243 + $0x190] sm:$0xff]
        %v369 = vld [vmem:[%s243 + $0x198] sm:$0xff]
        %v370 = vld [vmem:[%s243 + $0x1a0] sm:$0xff]
        %v371 = vld [vmem:[%s243 + $0x1a8] sm:$0xff]
        %v372 = vld [vmem:[%s243 + $0x1b0] sm:$0xff]
        %v373 = vld [vmem:[%s243 + $0x1b8] sm:$0xff]
        %v374 = vld [vmem:[%s243 + $0x1c0] sm:$0xff]
        %v375 = vld [vmem:[%s243 + $0x1c8] sm:$0xff]
        %v376 = vld [vmem:[%s243 + $0x1d0] sm:$0xff]
        %v377 = vld [vmem:[%s243 + $0x1d8] sm:$0xff]
        %v378 = vld [vmem:[%s243 + $0x1e0] sm:$0xff]
        %v379 = vld [vmem:[%s243 + $0x1e8] sm:$0xff]
        %v380 = vld [vmem:[%s243 + $0x1f0] sm:$0xff]
        %v381 = vld [vmem:[%s243 + $0x1f8] sm:$0xff]
        %v382 = vld [vmem:[%s243 + $0x200] sm:$0xff]
        %v383 = vld [vmem:[%s243 + $0x208] sm:$0xff]
        %v384 = vld [vmem:[%s243 + $0x210] sm:$0xff]
        %v385 = vld [vmem:[%s243 + $0x218] sm:$0xff]
        %v386 = vld [vmem:[%s243 + $0x220] sm:$0xff]
        %v387 = vld [vmem:[%s243 + $0x228] sm:$0xff]
        %v388 = vld [vmem:[%s243 + $0x230] sm:$0xff]
        %v389 = vld [vmem:[%s243 + $0x238] sm:$0xff]
        %v390 = vld [vmem:[%s243 + $0x240] sm:$0xff]
        %v391 = vld [vmem:[%s243 + $0x248] sm:$0xff]
        %v392 = vld [vmem:[%s243 + $0x250] sm:$0xff]
        %v393 = vld [vmem:[%s243 + $0x258] sm:$0xff]
        %v394 = vld [vmem:[%s243 + $0x260] sm:$0xff]
        %v395 = vld [vmem:[%s243 + $0x268] sm:$0xff]
        %v396 = vld [vmem:[%s243 + $0x270] sm:$0xff]
        %v397 = vld [vmem:[%s243 + $0x278] sm:$0xff]
        %v398 = vld [vmem:[%s243 + $0x280] sm:$0xff]
        %v399 = vld [vmem:[%s243 + $0x288] sm:$0xff]
        %v400 = vld [vmem:[%s243 + $0x290] sm:$0xff]
        %v401 = vld [vmem:[%s243 + $0x298] sm:$0xff]
        %v402 = vld [vmem:[%s243 + $0x2a0] sm:$0xff]
        %v403 = vld [vmem:[%s243 + $0x2a8] sm:$0xff]
        %v404 = vld [vmem:[%s243 + $0x2b0] sm:$0xff]
        %v405 = vld [vmem:[%s243 + $0x2b8] sm:$0xff]
        %v406 = vld [vmem:[%s243 + $0x2c0] sm:$0xff]
        %v407 = vld [vmem:[%s243 + $0x2c8] sm:$0xff]
        %v408 = vld [vmem:[%s243 + $0x2d0] sm:$0xff]
        %v409 = vld [vmem:[%s243 + $0x2d8] sm:$0xff]
        %v410 = vld [vmem:[%s243 + $0x2e0] sm:$0xff]
        %v411 = vld [vmem:[%s243 + $0x2e8] sm:$0xff]
        %v412 = vld [vmem:[%s243 + $0x2f0] sm:$0xff]
        %v413 = vld [vmem:[%s243 + $0x2f8] sm:$0xff]
        %v414 = vld [vmem:[%s243 + $0x300] sm:$0xff]
        %v415 = vld [vmem:[%s243 + $0x308] sm:$0xff]
        %v416 = vld [vmem:[%s243 + $0x310] sm:$0xff]
        %v417 = vld [vmem:[%s243 + $0x318] sm:$0xff]
        %v418 = vld [vmem:[%s243 + $0x320] sm:$0xff]
        %v419 = vld [vmem:[%s243 + $0x328] sm:$0xff]
        %v420 = vld [vmem:[%s243 + $0x330] sm:$0xff]
        %v421 = vld [vmem:[%s243 + $0x338] sm:$0xff]
        %v422 = vld [vmem:[%s243 + $0x340] sm:$0xff]
        %v423 = vld [vmem:[%s243 + $0x348] sm:$0xff]
        %v424 = vld [vmem:[%s243 + $0x350] sm:$0xff]
        %v425 = vld [vmem:[%s243 + $0x358] sm:$0xff]
        %v426 = vld [vmem:[%s243 + $0x360] sm:$0xff]
        %v427 = vld [vmem:[%s243 + $0x368] sm:$0xff]
        %v428 = vld [vmem:[%s243 + $0x370] sm:$0xff]
        %v429 = vld [vmem:[%s243 + $0x378] sm:$0xff]
        %v430 = vld [vmem:[%s243 + $0x380] sm:$0xff]
        %v431 = vld [vmem:[%s243 + $0x388] sm:$0xff]
        %v432 = vld [vmem:[%s243 + $0x390] sm:$0xff]
        %v433 = vld [vmem:[%s243 + $0x398] sm:$0xff]
        %v434 = vld [vmem:[%s243 + $0x3a0] sm:$0xff]
        %v435 = vld [vmem:[%s243 + $0x3a8] sm:$0xff]
        %v436 = vld [vmem:[%s243 + $0x3b0] sm:$0xff]
        %v437 = vld [vmem:[%s243 + $0x3b8] sm:$0xff]
        %v438 = vld [vmem:[%s243 + $0x3c0] sm:$0xff]
        %v439 = vld [vmem:[%s243 + $0x3c8] sm:$0xff]
        %v440 = vld [vmem:[%s243 + $0x3d0] sm:$0xff]
        %v441 = vld [vmem:[%s243 + $0x3d8] sm:$0xff]
        %v442 = vld [vmem:[%s243 + $0x3e0] sm:$0xff]
        %v443 = vld [vmem:[%s243 + $0x3e8] sm:$0xff]
        %v444 = vld [vmem:[%s243 + $0x3f0] sm:$0xff]
        %v445 = vld [vmem:[%s243 + $0x3f8] sm:$0xff]
        %v446 = vld [vmem:[%s243 + $0x400] sm:$0xff]
        %v447 = vld [vmem:[%s243 + $0x408] sm:$0xff]
        %v448 = vld [vmem:[%s243 + $0x410] sm:$0xff]
        %v449 = vld [vmem:[%s243 + $0x418] sm:$0xff]
        %v450 = vld [vmem:[%s243 + $0x420] sm:$0xff]
        %v451 = vld [vmem:[%s243 + $0x428] sm:$0xff]
        %v452 = vld [vmem:[%s243 + $0x430] sm:$0xff]
        %v453 = vld [vmem:[%s243 + $0x438] sm:$0xff]
        %v454 = vld [vmem:[%s243 + $0x440] sm:$0xff]
        %v455 = vld [vmem:[%s243 + $0x448] sm:$0xff]
        %v456 = vld [vmem:[%s243 + $0x450] sm:$0xff]
        %v457 = vld [vmem:[%s243 + $0x458] sm:$0xff]
        %v458 = vld [vmem:[%s243 + $0x460] sm:$0xff]
        %v459 = vld [vmem:[%s243 + $0x468] sm:$0xff]
        %v460 = vld [vmem:[%s243 + $0x470] sm:$0xff]
        %v461 = vld [vmem:[%s243 + $0x478] sm:$0xff]
        %v462 = vld [vmem:[%s243 + $0x480] sm:$0xff]
        %v463 = vld [vmem:[%s243 + $0x488] sm:$0xff]
        %v464 = vld [vmem:[%s243 + $0x490] sm:$0xff]
        %v465 = vld [vmem:[%s243 + $0x498] sm:$0xff]
        %v466 = vld [vmem:[%s243 + $0x4a0] sm:$0xff]
        %v467 = vld [vmem:[%s243 + $0x4a8] sm:$0xff]
        %v468 = vld [vmem:[%s243 + $0x4b0] sm:$0xff]
        %v469 = vld [vmem:[%s243 + $0x4b8] sm:$0xff]
        %v470 = vld [vmem:[%s243 + $0x4c0] sm:$0xff]
        %v471 = vld [vmem:[%s243 + $0x4c8] sm:$0xff]
        %v472 = vld [vmem:[%s243 + $0x4d0] sm:$0xff]
        %v473 = vld [vmem:[%s243 + $0x4d8] sm:$0xff]
        %v474 = vld [vmem:[%s243 + $0x4e0] sm:$0xff]
        %v475 = vld [vmem:[%s243 + $0x4e8] sm:$0xff]
        %v476 = vld [vmem:[%s243 + $0x4f0] sm:$0xff]
        %v477 = vld [vmem:[%s243 + $0x4f8] sm:$0xff]
        %v478 = vld [vmem:[%s243 + $0x500] sm:$0xff]
        %v479 = vld [vmem:[%s243 + $0x508] sm:$0xff]
        %v480 = vld [vmem:[%s243 + $0x510] sm:$0xff]
        %v481 = vld [vmem:[%s243 + $0x518] sm:$0xff]
        %v482 = vld [vmem:[%s243 + $0x520] sm:$0xff]
        %v483 = vld [vmem:[%s243 + $0x528] sm:$0xff]
        %v484 = vld [vmem:[%s243 + $0x530] sm:$0xff]
        %v485 = vld [vmem:[%s243 + $0x538] sm:$0xff]
        %v486 = vld [vmem:[%s243 + $0x540] sm:$0xff]
        %v487 = vld [vmem:[%s243 + $0x548] sm:$0xff]
        %v488 = vld [vmem:[%s243 + $0x550] sm:$0xff]
        %v489 = vld [vmem:[%s243 + $0x558] sm:$0xff]
        %v490 = vld [vmem:[%s243 + $0x560] sm:$0xff]
        %v491 = vld [vmem:[%s243 + $0x568] sm:$0xff]
        %v492 = vld [vmem:[%s243 + $0x570] sm:$0xff]
        %v493 = vld [vmem:[%s243 + $0x578] sm:$0xff]
        %v494 = vld [vmem:[%s243 + $0x580] sm:$0xff]
        %v495 = vld [vmem:[%s243 + $0x588] sm:$0xff]
        %v496 = vld [vmem:[%s243 + $0x590] sm:$0xff]
        %v497 = vld [vmem:[%s243 + $0x598] sm:$0xff]
        %v498 = vld [vmem:[%s243 + $0x5a0] sm:$0xff]
        %v499 = vld [vmem:[%s243 + $0x5a8] sm:$0xff]
        %v500 = vld [vmem:[%s243 + $0x5b0] sm:$0xff]
        %v501 = vld [vmem:[%s243 + $0x5b8] sm:$0xff]
        %v502 = vld [vmem:[%s243 + $0x5c0] sm:$0xff]
        %v503 = vld [vmem:[%s243 + $0x5c8] sm:$0xff]
        %v504 = vld [vmem:[%s243 + $0x5d0] sm:$0xff]
        %v505 = vld [vmem:[%s243 + $0x5d8] sm:$0xff]
        %v506 = vld [vmem:[%s243 + $0x5e0] sm:$0xff]
        %v507 = vld [vmem:[%s243 + $0x5e8] sm:$0xff]
        %v508 = vld [vmem:[%s243 + $0x5f0] sm:$0xff]
        %v509 = vld [vmem:[%s243 + $0x5f8] sm:$0xff]
        %v510 = vld [vmem:[%s243 + $0x600] sm:$0xff]
        %v511 = vld [vmem:[%s243 + $0x608] sm:$0xff]
        %v512 = vld [vmem:[%s243 + $0x610] sm:$0xff]
        %v513 = vld [vmem:[%s243 + $0x618] sm:$0xff]
        %v514 = vld [vmem:[%s243 + $0x620] sm:$0xff]
        %v515 = vld [vmem:[%s243 + $0x628] sm:$0xff]
        %v516 = vld [vmem:[%s243 + $0x630] sm:$0xff]
        %v517 = vld [vmem:[%s243 + $0x638] sm:$0xff]
        %v518 = vld [vmem:[%s243 + $0x640] sm:$0xff]
        %v519 = vld [vmem:[%s243 + $0x648] sm:$0xff]
        %v520 = vld [vmem:[%s243 + $0x650] sm:$0xff]
        %v521 = vld [vmem:[%s243 + $0x658] sm:$0xff]
        %v522 = vld [vmem:[%s243 + $0x660] sm:$0xff]
        %v523 = vld [vmem:[%s243 + $0x668] sm:$0xff]
        %v524 = vld [vmem:[%s243 + $0x670] sm:$0xff]
        %v525 = vld [vmem:[%s243 + $0x678] sm:$0xff]
        %v526 = vld [vmem:[%s243 + $0x680] sm:$0xff]
        %v527 = vld [vmem:[%s243 + $0x688] sm:$0xff]
        %v528 = vld [vmem:[%s243 + $0x690] sm:$0xff]
        %v529 = vld [vmem:[%s243 + $0x698] sm:$0xff]
        %v530 = vld [vmem:[%s243 + $0x6a0] sm:$0xff]
        %v531 = vld [vmem:[%s243 + $0x6a8] sm:$0xff]
        %v532 = vld [vmem:[%s243 + $0x6b0] sm:$0xff]
        %v533 = vld [vmem:[%s243 + $0x6b8] sm:$0xff]
        %v534 = vld [vmem:[%s243 + $0x6c0] sm:$0xff]
        %v535 = vld [vmem:[%s243 + $0x6c8] sm:$0xff]
        %v536 = vld [vmem:[%s243 + $0x6d0] sm:$0xff]
        %v537 = vld [vmem:[%s243 + $0x6d8] sm:$0xff]
        %v538 = vld [vmem:[%s243 + $0x6e0] sm:$0xff]
        %v539 = vld [vmem:[%s243 + $0x6e8] sm:$0xff]
        %v540 = vld [vmem:[%s243 + $0x6f0] sm:$0xff]
        %v541 = vld [vmem:[%s243 + $0x6f8] sm:$0xff]
        %v542 = vld [vmem:[%s243 + $0x700] sm:$0xff]
        %v543 = vld [vmem:[%s243 + $0x708] sm:$0xff]
        %v544 = vld [vmem:[%s243 + $0x710] sm:$0xff]
        %v545 = vld [vmem:[%s243 + $0x718] sm:$0xff]
        %v546 = vld [vmem:[%s243 + $0x720] sm:$0xff]
        %v547 = vld [vmem:[%s243 + $0x728] sm:$0xff]
        %v548 = vld [vmem:[%s243 + $0x730] sm:$0xff]
        %v549 = vld [vmem:[%s243 + $0x738] sm:$0xff]
        %v550 = vld [vmem:[%s243 + $0x740] sm:$0xff]
        %v551 = vld [vmem:[%s243 + $0x748] sm:$0xff]
        %v552 = vld [vmem:[%s243 + $0x750] sm:$0xff]
        %v553 = vld [vmem:[%s243 + $0x758] sm:$0xff]
        %v554 = vld [vmem:[%s243 + $0x760] sm:$0xff]
        %v555 = vld [vmem:[%s243 + $0x768] sm:$0xff]
        %v556 = vld [vmem:[%s243 + $0x770] sm:$0xff]
        %v557 = vld [vmem:[%s243 + $0x778] sm:$0xff]
        %v558 = vld [vmem:[%s243 + $0x780] sm:$0xff]
        %v559 = vld [vmem:[%s243 + $0x788] sm:$0xff]
        %v560 = vld [vmem:[%s243 + $0x790] sm:$0xff]
        %v561 = vld [vmem:[%s243 + $0x798] sm:$0xff]
        %v562 = vld [vmem:[%s243 + $0x7a0] sm:$0xff]
        %v563 = vld [vmem:[%s243 + $0x7a8] sm:$0xff]
        %v564 = vld [vmem:[%s243 + $0x7b0] sm:$0xff]
        %v565 = vld [vmem:[%s243 + $0x7b8] sm:$0xff]
        %v566 = vld [vmem:[%s243 + $0x7c0] sm:$0xff]
        %v567 = vld [vmem:[%s243 + $0x7c8] sm:$0xff]
        %v568 = vld [vmem:[%s243 + $0x7d0] sm:$0xff]
        %v569 = vld [vmem:[%s243 + $0x7d8] sm:$0xff]
        %v570 = vld [vmem:[%s243 + $0x7e0] sm:$0xff]
        %v571 = vld [vmem:[%s243 + $0x7e8] sm:$0xff]
        %v572 = vld [vmem:[%s243 + $0x7f0] sm:$0xff]
        %v573 = vld [vmem:[%s243 + $0x7f8] sm:$0xff]
        %v574 = vld [vmem:[%s243 + $0x800] sm:$0xff]
        %v575 = vld [vmem:[%s243 + $0x808] sm:$0xff]
        %v576 = vld [vmem:[%s243 + $0x810] sm:$0xff]
        %v577 = vld [vmem:[%s243 + $0x818] sm:$0xff]
        %v578 = vld [vmem:[%s243 + $0x820] sm:$0xff]
        %v579 = vld [vmem:[%s243 + $0x828] sm:$0xff]
        %v580 = vld [vmem:[%s243 + $0x830] sm:$0xff]
        %v581 = vld [vmem:[%s243 + $0x838] sm:$0xff]
        %v582 = vld [vmem:[%s243 + $0x840] sm:$0xff]
        %v583 = vld [vmem:[%s243 + $0x848] sm:$0xff]
        %v584 = vld [vmem:[%s243 + $0x850] sm:$0xff]
        %v585 = vld [vmem:[%s243 + $0x858] sm:$0xff]
        %v586 = vld [vmem:[%s243 + $0x860] sm:$0xff]
        %v587 = vld [vmem:[%s243 + $0x868] sm:$0xff]
        %v588 = vld [vmem:[%s243 + $0x870] sm:$0xff]
        %v589 = vld [vmem:[%s243 + $0x878] sm:$0xff]
        %v590 = vld [vmem:[%s243 + $0x880] sm:$0xff]
        %v591 = vld [vmem:[%s243 + $0x888] sm:$0xff]
        %v592 = vld [vmem:[%s243 + $0x890] sm:$0xff]
        %v593 = vld [vmem:[%s243 + $0x898] sm:$0xff]
        %v594 = vld [vmem:[%s243 + $0x8a0] sm:$0xff]
        %v595 = vld [vmem:[%s243 + $0x8a8] sm:$0xff]
        %v596 = vld [vmem:[%s243 + $0x8b0] sm:$0xff]
        %v597 = vld [vmem:[%s243 + $0x8b8] sm:$0xff]
        %v598 = vld [vmem:[%s243 + $0x8c0] sm:$0xff]
        %v599 = vld [vmem:[%s243 + $0x8c8] sm:$0xff]
        %v600 = vld [vmem:[%s243 + $0x8d0] sm:$0xff]
        %v601 = vld [vmem:[%s243 + $0x8d8] sm:$0xff]
        %v602 = vld [vmem:[%s243 + $0x8e0] sm:$0xff]
        %v603 = vld [vmem:[%s243 + $0x8e8] sm:$0xff]
        %v604 = vld [vmem:[%s243 + $0x8f0] sm:$0xff]
        %v605 = vld [vmem:[%s243 + $0x8f8] sm:$0xff]
        %v606 = vld [vmem:[%s243 + $0x900] sm:$0xff]
        %v607 = vld [vmem:[%s243 + $0x908] sm:$0xff]
        %v608 = vld [vmem:[%s243 + $0x910] sm:$0xff]
        %v609 = vld [vmem:[%s243 + $0x918] sm:$0xff]
        %v610 = vld [vmem:[%s243 + $0x920] sm:$0xff]
        %v611 = vld [vmem:[%s243 + $0x928] sm:$0xff]
        %v612 = vld [vmem:[%s243 + $0x930] sm:$0xff]
        %v613 = vld [vmem:[%s243 + $0x938] sm:$0xff]
        %v614 = vld [vmem:[%s243 + $0x940] sm:$0xff]
        %v615 = vld [vmem:[%s243 + $0x948] sm:$0xff]
        %v616 = vld [vmem:[%s243 + $0x950] sm:$0xff]
        %v617 = vld [vmem:[%s243 + $0x958] sm:$0xff]
        %v618 = vld [vmem:[%s243 + $0x960] sm:$0xff]
        %v619 = vld [vmem:[%s243 + $0x968] sm:$0xff]
        %v620 = vld [vmem:[%s243 + $0x970] sm:$0xff]
        %v621 = vld [vmem:[%s243 + $0x978] sm:$0xff]
        %v622 = vld [vmem:[%s243 + $0x980] sm:$0xff]
        %v623 = vld [vmem:[%s243 + $0x988] sm:$0xff]
        %v624 = vld [vmem:[%s243 + $0x990] sm:$0xff]
        %v625 = vld [vmem:[%s243 + $0x998] sm:$0xff]
        %v626 = vld [vmem:[%s243 + $0x9a0] sm:$0xff]
        %v627 = vld [vmem:[%s243 + $0x9a8] sm:$0xff]
        %v628 = vld [vmem:[%s243 + $0x9b0] sm:$0xff]
        %v629 = vld [vmem:[%s243 + $0x9b8] sm:$0xff]
        %v630 = vld [vmem:[%s243 + $0x9c0] sm:$0xff]
        %v631 = vld [vmem:[%s243 + $0x9c8] sm:$0xff]
        %v632 = vld [vmem:[%s243 + $0x9d0] sm:$0xff]
        %v633 = vld [vmem:[%s243 + $0x9d8] sm:$0xff]
        %v634 = vld [vmem:[%s243 + $0x9e0] sm:$0xff]
        %v635 = vld [vmem:[%s243 + $0x9e8] sm:$0xff]
        %v636 = vld [vmem:[%s243 + $0x9f0] sm:$0xff]
        %v637 = vld [vmem:[%s243 + $0x9f8] sm:$0xff]
        %v638 = vld [vmem:[%s243 + $0xa00] sm:$0xff]
        %v639 = vld [vmem:[%s243 + $0xa08] sm:$0xff]
        %v640 = vld [vmem:[%s243 + $0xa10] sm:$0xff]
        %v641 = vld [vmem:[%s243 + $0xa18] sm:$0xff]
        %v642 = vld [vmem:[%s243 + $0xa20] sm:$0xff]
        %v643 = vld [vmem:[%s243 + $0xa28] sm:$0xff]
        %v644 = vld [vmem:[%s243 + $0xa30] sm:$0xff]
        %v645 = vld [vmem:[%s243 + $0xa38] sm:$0xff]
        %v646 = vld [vmem:[%s243 + $0xa40] sm:$0xff]
        %v647 = vld [vmem:[%s243 + $0xa48] sm:$0xff]
        %v648 = vld [vmem:[%s243 + $0xa50] sm:$0xff]
        %v649 = vld [vmem:[%s243 + $0xa58] sm:$0xff]
        %v650 = vld [vmem:[%s243 + $0xa60] sm:$0xff]
        %v651 = vld [vmem:[%s243 + $0xa68] sm:$0xff]
        %v652 = vld [vmem:[%s243 + $0xa70] sm:$0xff]
        %v653 = vld [vmem:[%s243 + $0xa78] sm:$0xff]
        %v654 = vld [vmem:[%s243 + $0xa80] sm:$0xff]
        %v655 = vld [vmem:[%s243 + $0xa88] sm:$0xff]
        %v656 = vld [vmem:[%s243 + $0xa90] sm:$0xff]
        %v657 = vld [vmem:[%s243 + $0xa98] sm:$0xff]
        %v658 = vld [vmem:[%s243 + $0xaa0] sm:$0xff]
        %v659 = vld [vmem:[%s243 + $0xaa8] sm:$0xff]
        %v660 = vld [vmem:[%s243 + $0xab0] sm:$0xff]
        %v661 = vld [vmem:[%s243 + $0xab8] sm:$0xff]
        %v662 = vld [vmem:[%s243 + $0xac0] sm:$0xff]
        %v663 = vld [vmem:[%s243 + $0xac8] sm:$0xff]
        %v664 = vld [vmem:[%s243 + $0xad0] sm:$0xff]
        %v665 = vld [vmem:[%s243 + $0xad8] sm:$0xff]
        %v666 = vld [vmem:[%s243 + $0xae0] sm:$0xff]
        %v667 = vld [vmem:[%s243 + $0xae8] sm:$0xff]
        %v668 = vld [vmem:[%s243 + $0xaf0] sm:$0xff]
        %v669 = vld [vmem:[%s243 + $0xaf8] sm:$0xff]
        %v670 = vld [vmem:[%s243 + $0xb00] sm:$0xff]
        %v671 = vld [vmem:[%s243 + $0xb08] sm:$0xff]
        %v672 = vld [vmem:[%s243 + $0xb10] sm:$0xff]
        %v673 = vld [vmem:[%s243 + $0xb18] sm:$0xff]
        %v674 = vld [vmem:[%s243 + $0xb20] sm:$0xff]
        %v675 = vld [vmem:[%s243 + $0xb28] sm:$0xff]
        %v676 = vld [vmem:[%s243 + $0xb30] sm:$0xff]
        %v677 = vld [vmem:[%s243 + $0xb38] sm:$0xff]
        %v678 = vld [vmem:[%s243 + $0xb40] sm:$0xff]
        %v679 = vld [vmem:[%s243 + $0xb48] sm:$0xff]
        %v680 = vld [vmem:[%s243 + $0xb50] sm:$0xff]
        %v681 = vld [vmem:[%s243 + $0xb58] sm:$0xff]
        %v682 = vld [vmem:[%s243 + $0xb60] sm:$0xff]
        %v683 = vld [vmem:[%s243 + $0xb68] sm:$0xff]
        %v684 = vld [vmem:[%s243 + $0xb70] sm:$0xff]
        %v685 = vld [vmem:[%s243 + $0xb78] sm:$0xff]
        %v686 = vld [vmem:[%s243 + $0xb80] sm:$0xff]
        %v687 = vld [vmem:[%s243 + $0xb88] sm:$0xff]
        %v688 = vld [vmem:[%s243 + $0xb90] sm:$0xff]
        %v689 = vld [vmem:[%s243 + $0xb98] sm:$0xff]
        %v690 = vld [vmem:[%s243 + $0xba0] sm:$0xff]
        %v691 = vld [vmem:[%s243 + $0xba8] sm:$0xff]
        %v692 = vld [vmem:[%s243 + $0xbb0] sm:$0xff]
        %v693 = vld [vmem:[%s243 + $0xbb8] sm:$0xff]
        %v694 = vld [vmem:[%s243 + $0xbc0] sm:$0xff]
        %v695 = vld [vmem:[%s243 + $0xbc8] sm:$0xff]
        %v696 = vld [vmem:[%s243 + $0xbd0] sm:$0xff]
        %v697 = vld [vmem:[%s243 + $0xbd8] sm:$0xff]
        %v698 = vld [vmem:[%s243 + $0xbe0] sm:$0xff]
        %v699 = vld [vmem:[%s243 + $0xbe8] sm:$0xff]
        %v700 = vld [vmem:[%s243 + $0xbf0] sm:$0xff]
        %v701 = vld [vmem:[%s243 + $0xbf8] sm:$0xff]
        %v702 = vld [vmem:[%s243 + $0xc00] sm:$0xff]
        %v703 = vld [vmem:[%s243 + $0xc08] sm:$0xff]
        %v704 = vld [vmem:[%s243 + $0xc10] sm:$0xff]
        %v705 = vld [vmem:[%s243 + $0xc18] sm:$0xff]
        %v706 = vld [vmem:[%s243 + $0xc20] sm:$0xff]
        %v707 = vld [vmem:[%s243 + $0xc28] sm:$0xff]
        %v708 = vld [vmem:[%s243 + $0xc30] sm:$0xff]
        %v709 = vld [vmem:[%s243 + $0xc38] sm:$0xff]
        %v710 = vld [vmem:[%s243 + $0xc40] sm:$0xff]
        %v711 = vld [vmem:[%s243 + $0xc48] sm:$0xff]
        %v712 = vld [vmem:[%s243 + $0xc50] sm:$0xff]
        %v713 = vld [vmem:[%s243 + $0xc58] sm:$0xff]
        %v714 = vld [vmem:[%s243 + $0xc60] sm:$0xff]
        %v715 = vld [vmem:[%s243 + $0xc68] sm:$0xff]
        %v716 = vld [vmem:[%s243 + $0xc70] sm:$0xff]
        %v717 = vld [vmem:[%s243 + $0xc78] sm:$0xff]
        %v718 = vld [vmem:[%s243 + $0xc80] sm:$0xff]
        %v719 = vld [vmem:[%s243 + $0xc88] sm:$0xff]
        %v720 = vld [vmem:[%s243 + $0xc90] sm:$0xff]
        %v721 = vld [vmem:[%s243 + $0xc98] sm:$0xff]
        %v722 = vld [vmem:[%s243 + $0xca0] sm:$0xff]
        %v723 = vld [vmem:[%s243 + $0xca8] sm:$0xff]
        %v724 = vld [vmem:[%s243 + $0xcb0] sm:$0xff]
        %v725 = vld [vmem:[%s243 + $0xcb8] sm:$0xff]
        %v726 = vld [vmem:[%s243 + $0xcc0] sm:$0xff]
        %v727 = vld [vmem:[%s243 + $0xcc8] sm:$0xff]
        %v728 = vld [vmem:[%s243 + $0xcd0] sm:$0xff]
        %v729 = vld [vmem:[%s243 + $0xcd8] sm:$0xff]
        %v730 = vld [vmem:[%s243 + $0xce0] sm:$0xff]
        %v731 = vld [vmem:[%s243 + $0xce8] sm:$0xff]
        %v732 = vld [vmem:[%s243 + $0xcf0] sm:$0xff]
        %v733 = vld [vmem:[%s243 + $0xcf8] sm:$0xff]
        %v734 = vld [vmem:[%s243 + $0xd00] sm:$0xff]
        %v735 = vld [vmem:[%s243 + $0xd08] sm:$0xff]
        %v736 = vld [vmem:[%s243 + $0xd10] sm:$0xff]
        %v737 = vld [vmem:[%s243 + $0xd18] sm:$0xff]
        %v738 = vld [vmem:[%s243 + $0xd20] sm:$0xff]
        %v739 = vld [vmem:[%s243 + $0xd28] sm:$0xff]
        %v740 = vld [vmem:[%s243 + $0xd30] sm:$0xff]
        %v741 = vld [vmem:[%s243 + $0xd38] sm:$0xff]
        %v742 = vld [vmem:[%s243 + $0xd40] sm:$0xff]
        %v743 = vld [vmem:[%s243 + $0xd48] sm:$0xff]
        %v744 = vld [vmem:[%s243 + $0xd50] sm:$0xff]
        %v745 = vld [vmem:[%s243 + $0xd58] sm:$0xff]
        %v746 = vld [vmem:[%s243 + $0xd60] sm:$0xff]
        %v747 = vld [vmem:[%s243 + $0xd68] sm:$0xff]
        %v748 = vld [vmem:[%s243 + $0xd70] sm:$0xff]
        %v749 = vld [vmem:[%s243 + $0xd78] sm:$0xff]
        %v750 = vld [vmem:[%s243 + $0xd80] sm:$0xff]
        %v751 = vld [vmem:[%s243 + $0xd88] sm:$0xff]
        %v752 = vld [vmem:[%s243 + $0xd90] sm:$0xff]
        %v753 = vld [vmem:[%s243 + $0xd98] sm:$0xff]
        %v754 = vld [vmem:[%s243 + $0xda0] sm:$0xff]
        %v755 = vld [vmem:[%s243 + $0xda8] sm:$0xff]
        %v756 = vld [vmem:[%s243 + $0xdb0] sm:$0xff]
        %v757 = vld [vmem:[%s243 + $0xdb8] sm:$0xff]
        %v758 = vld [vmem:[%s243 + $0xdc0] sm:$0xff]
        %v759 = vld [vmem:[%s243 + $0xdc8] sm:$0xff]
        %v760 = vld [vmem:[%s243 + $0xdd0] sm:$0xff]
        %v761 = vld [vmem:[%s243 + $0xdd8] sm:$0xff]
        %v762 = vld [vmem:[%s243 + $0xde0] sm:$0xff]
        %v763 = vld [vmem:[%s243 + $0xde8] sm:$0xff]
        %v764 = vld [vmem:[%s243 + $0xdf0] sm:$0xff]
        %v765 = vld [vmem:[%s243 + $0xdf8] sm:$0xff]
        %v766 = vld [vmem:[%s243 + $0xe00] sm:$0xff]
        %v767 = vld [vmem:[%s243 + $0xe08] sm:$0xff]
        %v768 = vld [vmem:[%s243 + $0xe10] sm:$0xff]
        %v769 = vld [vmem:[%s243 + $0xe18] sm:$0xff]
        %v770 = vld [vmem:[%s243 + $0xe20] sm:$0xff]
        %v771 = vld [vmem:[%s243 + $0xe28] sm:$0xff]
        %v772 = vld [vmem:[%s243 + $0xe30] sm:$0xff]
        %v773 = vld [vmem:[%s243 + $0xe38] sm:$0xff]
        %v774 = vld [vmem:[%s243 + $0xe40] sm:$0xff]
        %v775 = vld [vmem:[%s243 + $0xe48] sm:$0xff]
        %v776 = vld [vmem:[%s243 + $0xe50] sm:$0xff]
        %v777 = vld [vmem:[%s243 + $0xe58] sm:$0xff]
        %v778 = vld [vmem:[%s243 + $0xe60] sm:$0xff]
        %v779 = vld [vmem:[%s243 + $0xe68] sm:$0xff]
        %v780 = vld [vmem:[%s243 + $0xe70] sm:$0xff]
        %v781 = vld [vmem:[%s243 + $0xe78] sm:$0xff]
        %v782 = vld [vmem:[%s243 + $0xe80] sm:$0xff]
        %v783 = vld [vmem:[%s243 + $0xe88] sm:$0xff]
        %v784 = vld [vmem:[%s243 + $0xe90] sm:$0xff]
        %v785 = vld [vmem:[%s243 + $0xe98] sm:$0xff]
        %v786 = vld [vmem:[%s243 + $0xea0] sm:$0xff]
        %v787 = vld [vmem:[%s243 + $0xea8] sm:$0xff]
        %v788 = vld [vmem:[%s243 + $0xeb0] sm:$0xff]
        %v789 = vld [vmem:[%s243 + $0xeb8] sm:$0xff]
        %v790 = vld [vmem:[%s243 + $0xec0] sm:$0xff]
        %v791 = vld [vmem:[%s243 + $0xec8] sm:$0xff]
        %v792 = vld [vmem:[%s243 + $0xed0] sm:$0xff]
        %v793 = vld [vmem:[%s243 + $0xed8] sm:$0xff]
        %v794 = vld [vmem:[%s243 + $0xee0] sm:$0xff]
        %v795 = vld [vmem:[%s243 + $0xee8] sm:$0xff]
        %v796 = vld [vmem:[%s243 + $0xef0] sm:$0xff]
        %v797 = vld [vmem:[%s243 + $0xef8] sm:$0xff]
        %v798 = vld [vmem:[%s243 + $0xf00] sm:$0xff]
        %v799 = vld [vmem:[%s243 + $0xf08] sm:$0xff]
        %v800 = vld [vmem:[%s243 + $0xf10] sm:$0xff]
        %v801 = vld [vmem:[%s243 + $0xf18] sm:$0xff]
        %v802 = vld [vmem:[%s243 + $0xf20] sm:$0xff]
        %v803 = vld [vmem:[%s243 + $0xf28] sm:$0xff]
        %v804 = vld [vmem:[%s243 + $0xf30] sm:$0xff]
        %v805 = vld [vmem:[%s243 + $0xf38] sm:$0xff]
        %v806 = vld [vmem:[%s243 + $0xf40] sm:$0xff]
        %v807 = vld [vmem:[%s243 + $0xf48] sm:$0xff]
        %v808 = vld [vmem:[%s243 + $0xf50] sm:$0xff]
        %v809 = vld [vmem:[%s243 + $0xf58] sm:$0xff]
        %v810 = vld [vmem:[%s243 + $0xf60] sm:$0xff]
        %v811 = vld [vmem:[%s243 + $0xf68] sm:$0xff]
        %v812 = vld [vmem:[%s243 + $0xf70] sm:$0xff]
        %v813 = vld [vmem:[%s243 + $0xf78] sm:$0xff]
        %v814 = vld [vmem:[%s243 + $0xf80] sm:$0xff]
        %v815 = vld [vmem:[%s243 + $0xf88] sm:$0xff]
        %v816 = vld [vmem:[%s243 + $0xf90] sm:$0xff]
        %v817 = vld [vmem:[%s243 + $0xf98] sm:$0xff]
        %v818 = vld [vmem:[%s243 + $0xfa0] sm:$0xff]
        %v819 = vld [vmem:[%s243 + $0xfa8] sm:$0xff]
        %v820 = vld [vmem:[%s243 + $0xfb0] sm:$0xff]
        %v821 = vld [vmem:[%s243 + $0xfb8] sm:$0xff]
        %v822 = vld [vmem:[%s243 + $0xfc0] sm:$0xff]
        %v823 = vld [vmem:[%s243 + $0xfc8] sm:$0xff]
        %v824 = vld [vmem:[%s243 + $0xfd0] sm:$0xff]
        %v825 = vld [vmem:[%s243 + $0xfd8] sm:$0xff]
        %v826 = vld [vmem:[%s243 + $0xfe0] sm:$0xff]
        %v827 = vld [vmem:[%s243 + $0xfe8] sm:$0xff]
        %v828 = vld [vmem:[%s243 + $0xff0] sm:$0xff]
        %v829 = vld [vmem:[%s243 + $0xff8] sm:$0xff]
        %v830 = vld [vmem:[%s243 + $0x1000] sm:$0xff]
        %v831 = vld [vmem:[%s243 + $0x1008] sm:$0xff]
        %v832 = vld [vmem:[%s243 + $0x1010] sm:$0xff]
        %v833 = vld [vmem:[%s243 + $0x1018] sm:$0xff]
        %v834 = vld [vmem:[%s243 + $0x1020] sm:$0xff]
        %v835 = vld [vmem:[%s243 + $0x1028] sm:$0xff]
        %v836 = vld [vmem:[%s243 + $0x1030] sm:$0xff]
        %v837 = vld [vmem:[%s243 + $0x1038] sm:$0xff]
        %v838 = vld [vmem:[%s243 + $0x1040] sm:$0xff]
        %v839 = vld [vmem:[%s243 + $0x1048] sm:$0xff]
        %v840 = vld [vmem:[%s243 + $0x1050] sm:$0xff]
        %v841 = vld [vmem:[%s243 + $0x1058] sm:$0xff]
        %v842 = vld [vmem:[%s243 + $0x1060] sm:$0xff]
        %v843 = vld [vmem:[%s243 + $0x1068] sm:$0xff]
        %v844 = vld [vmem:[%s243 + $0x1070] sm:$0xff]
        %v845 = vld [vmem:[%s243 + $0x1078] sm:$0xff]
        %v846 = vld [vmem:[%s243 + $0x1080] sm:$0xff]
        %v847 = vld [vmem:[%s243 + $0x1088] sm:$0xff]
        %v848 = vld [vmem:[%s243 + $0x1090] sm:$0xff]
        %v849 = vld [vmem:[%s243 + $0x1098] sm:$0xff]
        %v850 = vld [vmem:[%s243 + $0x10a0] sm:$0xff]
        %v851 = vld [vmem:[%s243 + $0x10a8] sm:$0xff]
        %v852 = vld [vmem:[%s243 + $0x10b0] sm:$0xff]
        %v853 = vld [vmem:[%s243 + $0x10b8] sm:$0xff]
        %v854 = vld [vmem:[%s243 + $0x10c0] sm:$0xff]
        %v855 = vld [vmem:[%s243 + $0x10c8] sm:$0xff]
        %v856 = vld [vmem:[%s243 + $0x10d0] sm:$0xff]
        %v857 = vld [vmem:[%s243 + $0x10d8] sm:$0xff]
        %v858 = vld [vmem:[%s243 + $0x10e0] sm:$0xff]
        %v859 = vld [vmem:[%s243 + $0x10e8] sm:$0xff]
        %v860 = vld [vmem:[%s243 + $0x10f0] sm:$0xff]
        %v861 = vld [vmem:[%s243 + $0x10f8] sm:$0xff]
        %v862 = vld [vmem:[%s243 + $0x1100] sm:$0xff]
        %v863 = vld [vmem:[%s243 + $0x1108] sm:$0xff]
        %v864 = vld [vmem:[%s243 + $0x1110] sm:$0xff]
        %v865 = vld [vmem:[%s243 + $0x1118] sm:$0xff]
        %v866 = vld [vmem:[%s243 + $0x1120] sm:$0xff]
        %v867 = vld [vmem:[%s243 + $0x1128] sm:$0xff]
        %v868 = vld [vmem:[%s243 + $0x1130] sm:$0xff]
        %v869 = vld [vmem:[%s243 + $0x1138] sm:$0xff]
        %v870 = vld [vmem:[%s243 + $0x1140] sm:$0xff]
        %v871 = vld [vmem:[%s243 + $0x1148] sm:$0xff]
        %v872 = vld [vmem:[%s243 + $0x1150] sm:$0xff]
        %v873 = vld [vmem:[%s243 + $0x1158] sm:$0xff]
        %v874 = vld [vmem:[%s243 + $0x1160] sm:$0xff]
        %v875 = vld [vmem:[%s243 + $0x1168] sm:$0xff]
        %v876 = vld [vmem:[%s243 + $0x1170] sm:$0xff]
        %v877 = vld [vmem:[%s243 + $0x1178] sm:$0xff]
        %v878 = vld [vmem:[%s243 + $0x1180] sm:$0xff]
        %v879 = vld [vmem:[%s243 + $0x1188] sm:$0xff]
        %v880 = vld [vmem:[%s243 + $0x1190] sm:$0xff]
        %v881 = vld [vmem:[%s243 + $0x1198] sm:$0xff]
        %v882 = vld [vmem:[%s243 + $0x11a0] sm:$0xff]
        %v883 = vld [vmem:[%s243 + $0x11a8] sm:$0xff]
        %v884 = vld [vmem:[%s243 + $0x11b0] sm:$0xff]
        %v885 = vld [vmem:[%s243 + $0x11b8] sm:$0xff]
        %v886 = vld [vmem:[%s243 + $0x11c0] sm:$0xff]
        %v887 = vld [vmem:[%s243 + $0x11c8] sm:$0xff]
        %v888 = vld [vmem:[%s243 + $0x11d0] sm:$0xff]
        %v889 = vld [vmem:[%s243 + $0x11d8] sm:$0xff]
        %v890 = vld [vmem:[%s243 + $0x11e0] sm:$0xff]
        %v891 = vld [vmem:[%s243 + $0x11e8] sm:$0xff]
        %v892 = vld [vmem:[%s243 + $0x11f0] sm:$0xff]
        %v893 = vld [vmem:[%s243 + $0x11f8] sm:$0xff]
        %v894 = vld [vmem:[%s243 + $0x1200] sm:$0xff]
        %v895 = vld [vmem:[%s243 + $0x1208] sm:$0xff]
        %v896 = vld [vmem:[%s243 + $0x1210] sm:$0xff]
        %v897 = vld [vmem:[%s243 + $0x1218] sm:$0xff]
        %v898 = vld [vmem:[%s243 + $0x1220] sm:$0xff]
        %v899 = vld [vmem:[%s243 + $0x1228] sm:$0xff]
        %v900 = vld [vmem:[%s243 + $0x1230] sm:$0xff]
        %v901 = vld [vmem:[%s243 + $0x1238] sm:$0xff]
        %v902 = vld [vmem:[%s243 + $0x1240] sm:$0xff]
        %v903 = vld [vmem:[%s243 + $0x1248] sm:$0xff]
        %v904 = vld [vmem:[%s243 + $0x1250] sm:$0xff]
        %v905 = vld [vmem:[%s243 + $0x1258] sm:$0xff]
        %v906 = vld [vmem:[%s243 + $0x1260] sm:$0xff]
        %v907 = vld [vmem:[%s243 + $0x1268] sm:$0xff]
        %v908 = vld [vmem:[%s243 + $0x1270] sm:$0xff]
        %v909 = vld [vmem:[%s243 + $0x1278] sm:$0xff]
        %v910 = vld [vmem:[%s243 + $0x1280] sm:$0xff]
        %v911 = vld [vmem:[%s243 + $0x1288] sm:$0xff]
        %v912 = vld [vmem:[%s243 + $0x1290] sm:$0xff]
        %v913 = vld [vmem:[%s243 + $0x1298] sm:$0xff]
        %v914 = vld [vmem:[%s243 + $0x12a0] sm:$0xff]
        %v915 = vld [vmem:[%s243 + $0x12a8] sm:$0xff]
        %v916 = vld [vmem:[%s243 + $0x12b0] sm:$0xff]
        %v917 = vld [vmem:[%s243 + $0x12b8] sm:$0xff]
        %v918 = vld [vmem:[%s243 + $0x12c0] sm:$0xff]
        %v919 = vld [vmem:[%s243 + $0x12c8] sm:$0xff]
        %v920 = vld [vmem:[%s243 + $0x12d0] sm:$0xff]
        %v921 = vld [vmem:[%s243 + $0x12d8] sm:$0xff]
        %v922 = vld [vmem:[%s243 + $0x12e0] sm:$0xff]
        %v923 = vld [vmem:[%s243 + $0x12e8] sm:$0xff]
        %v924 = vld [vmem:[%s243 + $0x12f0] sm:$0xff]
        %v925 = vld [vmem:[%s243 + $0x12f8] sm:$0xff]
        %v926 = vld [vmem:[%s243 + $0x1300] sm:$0xff]
        %v927 = vld [vmem:[%s243 + $0x1308] sm:$0xff]
        %v928 = vld [vmem:[%s243 + $0x1310] sm:$0xff]
        %v929 = vld [vmem:[%s243 + $0x1318] sm:$0xff]
        %v930 = vld [vmem:[%s243 + $0x1320] sm:$0xff]
        %v931 = vld [vmem:[%s243 + $0x1328] sm:$0xff]
        %v932 = vld [vmem:[%s243 + $0x1330] sm:$0xff]
        %v933 = vld [vmem:[%s243 + $0x1338] sm:$0xff]
        %v934 = vld [vmem:[%s243 + $0x1340] sm:$0xff]
        %v935 = vld [vmem:[%s243 + $0x1348] sm:$0xff]
        %v936 = vld [vmem:[%s243 + $0x1350] sm:$0xff]
        %v937 = vld [vmem:[%s243 + $0x1358] sm:$0xff]
        %v938 = vld [vmem:[%s243 + $0x1360] sm:$0xff]
        %v939 = vld [vmem:[%s243 + $0x1368] sm:$0xff]
        %v940 = vld [vmem:[%s243 + $0x1370] sm:$0xff]
        %v941 = vld [vmem:[%s243 + $0x1378] sm:$0xff]
        %v942 = vld [vmem:[%s243 + $0x1380] sm:$0xff]
        %v943 = vld [vmem:[%s243 + $0x1388] sm:$0xff]
        %v944 = vld [vmem:[%s243 + $0x1390] sm:$0xff]
        %v945 = vld [vmem:[%s243 + $0x1398] sm:$0xff]
        %v946 = vld [vmem:[%s243 + $0x13a0] sm:$0xff]
        %v947 = vld [vmem:[%s243 + $0x13a8] sm:$0xff]
        %v948 = vld [vmem:[%s243 + $0x13b0] sm:$0xff]
        %v949 = vld [vmem:[%s243 + $0x13b8] sm:$0xff]
        %v950 = vld [vmem:[%s243 + $0x13c0] sm:$0xff]
        %v951 = vld [vmem:[%s243 + $0x13c8] sm:$0xff]
        %v952 = vld [vmem:[%s243 + $0x13d0] sm:$0xff]
        %v953 = vld [vmem:[%s243 + $0x13d8] sm:$0xff]
        %v954 = vld [vmem:[%s243 + $0x13e0] sm:$0xff]
        %v955 = vld [vmem:[%s243 + $0x13e8] sm:$0xff]
        %v956 = vld [vmem:[%s243 + $0x13f0] sm:$0xff]
        %v957 = vld [vmem:[%s243 + $0x13f8] sm:$0xff]
        %v958 = vld [vmem:[%s243 + $0x1400] sm:$0xff]
        %v959 = vld [vmem:[%s243 + $0x1408] sm:$0xff]
        %v960 = vld [vmem:[%s243 + $0x1410] sm:$0xff]
        %v961 = vld [vmem:[%s243 + $0x1418] sm:$0xff]
        %v962 = vld [vmem:[%s243 + $0x1420] sm:$0xff]
        %v963 = vld [vmem:[%s243 + $0x1428] sm:$0xff]
        %v964 = vld [vmem:[%s243 + $0x1430] sm:$0xff]
        %v965 = vld [vmem:[%s243 + $0x1438] sm:$0xff]
        %v966 = vld [vmem:[%s243 + $0x1440] sm:$0xff]
        %v967 = vld [vmem:[%s243 + $0x1448] sm:$0xff]
        %v968 = vld [vmem:[%s243 + $0x1450] sm:$0xff]
        %v969 = vld [vmem:[%s243 + $0x1458] sm:$0xff]
        %v970 = vld [vmem:[%s243 + $0x1460] sm:$0xff]
        %v971 = vld [vmem:[%s243 + $0x1468] sm:$0xff]
        %v972 = vld [vmem:[%s243 + $0x1470] sm:$0xff]
        %v973 = vld [vmem:[%s243 + $0x1478] sm:$0xff]
        %v974 = vld [vmem:[%s243 + $0x1480] sm:$0xff]
        %v975 = vld [vmem:[%s243 + $0x1488] sm:$0xff]
        %v976 = vld [vmem:[%s243 + $0x1490] sm:$0xff]
        %v977 = vld [vmem:[%s243 + $0x1498] sm:$0xff]
        %v978 = vld [vmem:[%s243 + $0x14a0] sm:$0xff]
        %v979 = vld [vmem:[%s243 + $0x14a8] sm:$0xff]
        %v980 = vld [vmem:[%s243 + $0x14b0] sm:$0xff]
        %v981 = vld [vmem:[%s243 + $0x14b8] sm:$0xff]
        %v982 = vld [vmem:[%s243 + $0x14c0] sm:$0xff]
        %v983 = vld [vmem:[%s243 + $0x14c8] sm:$0xff]
        %v984 = vld [vmem:[%s243 + $0x14d0] sm:$0xff]
        %v985 = vld [vmem:[%s243 + $0x14d8] sm:$0xff]
        %v986 = vld [vmem:[%s243 + $0x14e0] sm:$0xff]
        %v987 = vld [vmem:[%s243 + $0x14e8] sm:$0xff]
        %v988 = vld [vmem:[%s243 + $0x14f0] sm:$0xff]
        %v989 = vld [vmem:[%s243 + $0x14f8] sm:$0xff]
        %v990 = vld [vmem:[%s243 + $0x1500] sm:$0xff]
        %v991 = vld [vmem:[%s243 + $0x1508] sm:$0xff]
        %v992 = vld [vmem:[%s243 + $0x1510] sm:$0xff]
        %v993 = vld [vmem:[%s243 + $0x1518] sm:$0xff]
        %v994 = vld [vmem:[%s243 + $0x1520] sm:$0xff]
        %v995 = vld [vmem:[%s243 + $0x1528] sm:$0xff]
        %v996 = vld [vmem:[%s243 + $0x1530] sm:$0xff]
        %v997 = vld [vmem:[%s243 + $0x1538] sm:$0xff]
        %v998 = vld [vmem:[%s243 + $0x1540] sm:$0xff]
        %v999 = vld [vmem:[%s243 + $0x1548] sm:$0xff]
        %v1000 = vld [vmem:[%s243 + $0x1550] sm:$0xff]
        %v1001 = vld [vmem:[%s243 + $0x1558] sm:$0xff]
        %v1002 = vld [vmem:[%s243 + $0x1560] sm:$0xff]
        %v1003 = vld [vmem:[%s243 + $0x1568] sm:$0xff]
        %v1004 = vld [vmem:[%s243 + $0x1570] sm:$0xff]
        %v1005 = vld [vmem:[%s243 + $0x1578] sm:$0xff]
        %v1006 = vld [vmem:[%s243 + $0x1580] sm:$0xff]
        %v1007 = vld [vmem:[%s243 + $0x1588] sm:$0xff]
        %v1008 = vld [vmem:[%s243 + $0x1590] sm:$0xff]
        %v1009 = vld [vmem:[%s243 + $0x1598] sm:$0xff]
        %v1010 = vld [vmem:[%s243 + $0x15a0] sm:$0xff]
        %v1011 = vld [vmem:[%s243 + $0x15a8] sm:$0xff]
        %v1012 = vld [vmem:[%s243 + $0x15b0] sm:$0xff]
        %v1013 = vld [vmem:[%s243 + $0x15b8] sm:$0xff]
        %v1014 = vld [vmem:[%s243 + $0x15c0] sm:$0xff]
        %v1015 = vld [vmem:[%s243 + $0x15c8] sm:$0xff]
        %v1016 = vld [vmem:[%s243 + $0x15d0] sm:$0xff]
        %v1017 = vld [vmem:[%s243 + $0x15d8] sm:$0xff]
        %v1018 = vld [vmem:[%s243 + $0x15e0] sm:$0xff]
        %v1019 = vld [vmem:[%s243 + $0x15e8] sm:$0xff]
        %v1020 = vld [vmem:[%s243 + $0x15f0] sm:$0xff]
        %v1021 = vld [vmem:[%s243 + $0x15f8] sm:$0xff]
        %v1033 = vunpack.c.l.b16 %v307
        %v1034 = vunpack.c.h.b16 %v307
        %v1035 = vunpack.c.l.b16 %v308
        %v1036 = vunpack.c.h.b16 %v308
        %v1037 = vunpack.c.l.b16 %v309
        %v1038 = vunpack.c.h.b16 %v309
        %v1039 = vunpack.c.l.b16 %v310
        %v1040 = vunpack.c.h.b16 %v310
        %v1041 = vunpack.c.l.b16 %v311
        %v1042 = vunpack.c.h.b16 %v311
        %v1043 = vunpack.c.l.b16 %v312
        %v1044 = vunpack.c.h.b16 %v312
        %v1045 = vunpack.c.l.b16 %v313
        %v1046 = vunpack.c.h.b16 %v313
        %v1047 = vunpack.c.l.b16 %v314
        %v1048 = vunpack.c.h.b16 %v314
        %v1049 = vunpack.c.l.b16 %v315
        %v1050 = vunpack.c.h.b16 %v315
        %v1051 = vunpack.c.l.b16 %v316
        %v1052 = vunpack.c.h.b16 %v316
        %v1053 = vunpack.c.l.b16 %v317
        %v1054 = vunpack.c.h.b16 %v317
        %v1055 = vpack.c.b16 %v1033, %v1033
        %v1056 = vpack.c.b16 %v1034, %v1034
        %v1057 = vpack.c.b16 %v1035, %v1035
        %v1058 = vpack.c.b16 %v1036, %v1036
        %v1059 = vpack.c.b16 %v1037, %v1037
        %v1060 = vpack.c.b16 %v1038, %v1038
        %v1061 = vpack.c.b16 %v1039, %v1039
        %v1062 = vpack.c.b16 %v1040, %v1040
        %v1063 = vpack.c.b16 %v1041, %v1041
        %v1064 = vpack.c.b16 %v1042, %v1042
        %v1065 = vpack.c.b16 %v1043, %v1043
        %v1066 = vpack.c.b16 %v1044, %v1044
        %v1067 = vpack.c.b16 %v1045, %v1045
        %v1068 = vpack.c.b16 %v1046, %v1046
        %v1069 = vpack.c.b16 %v1047, %v1047
        %v1070 = vpack.c.b16 %v1048, %v1048
        %v1071 = vpack.c.b16 %v1049, %v1049
        %v1072 = vpack.c.b16 %v1050, %v1050
        %v1073 = vpack.c.b16 %v1051, %v1051
        %v1074 = vpack.c.b16 %v1052, %v1052
        %v1075 = vpack.c.b16 %v1053, %v1053
        %v1076 = vpack.c.b16 %v1054, %v1054
        %v1803 = vunpack.c.l.b16 %v318
        %v1804 = vunpack.c.h.b16 %v318
        %v1805 = vunpack.c.l.b16 %v319
        %v1806 = vunpack.c.h.b16 %v319
        %v1807 = vunpack.c.l.b16 %v320
        %v1808 = vunpack.c.h.b16 %v320
        %v1809 = vunpack.c.l.b16 %v321
        %v1810 = vunpack.c.h.b16 %v321
        %v1811 = vunpack.c.l.b16 %v322
        %v1812 = vunpack.c.h.b16 %v322
        %v1813 = vunpack.c.l.b16 %v323
        %v1814 = vunpack.c.h.b16 %v323
        %v1815 = vunpack.c.l.b16 %v324
        %v1816 = vunpack.c.h.b16 %v324
        %v1817 = vunpack.c.l.b16 %v325
        %v1818 = vunpack.c.h.b16 %v325
        %v1819 = vunpack.c.l.b16 %v326
        %v1820 = vunpack.c.h.b16 %v326
        %v1821 = vunpack.c.l.b16 %v327
        %v1822 = vunpack.c.h.b16 %v327
        %v1823 = vunpack.c.l.b16 %v328
        %v1824 = vunpack.c.h.b16 %v328
        %v1825 = vunpack.c.l.b16 %v329
        %v1826 = vunpack.c.h.b16 %v329
        %v1827 = vunpack.c.l.b16 %v330
        %v1828 = vunpack.c.h.b16 %v330
        %v1829 = vunpack.c.l.b16 %v331
        %v1830 = vunpack.c.h.b16 %v331
        %v1831 = vunpack.c.l.b16 %v332
        %v1832 = vunpack.c.h.b16 %v332
        %v1833 = vunpack.c.l.b16 %v333
        %v1834 = vunpack.c.h.b16 %v333
        %v1835 = vunpack.c.l.b16 %v334
        %v1836 = vunpack.c.h.b16 %v334
        %v1837 = vunpack.c.l.b16 %v335
        %v1838 = vunpack.c.h.b16 %v335
        %v1839 = vunpack.c.l.b16 %v336
        %v1840 = vunpack.c.h.b16 %v336
        %v1841 = vunpack.c.l.b16 %v337
        %v1842 = vunpack.c.h.b16 %v337
        %v1843 = vunpack.c.l.b16 %v338
        %v1844 = vunpack.c.h.b16 %v338
        %v1845 = vunpack.c.l.b16 %v339
        %v1846 = vunpack.c.h.b16 %v339
        %v1847 = vunpack.c.l.b16 %v340
        %v1848 = vunpack.c.h.b16 %v340
        %v1849 = vunpack.c.l.b16 %v341
        %v1850 = vunpack.c.h.b16 %v341
        %v1851 = vunpack.c.l.b16 %v342
        %v1852 = vunpack.c.h.b16 %v342
        %v1853 = vunpack.c.l.b16 %v343
        %v1854 = vunpack.c.h.b16 %v343
        %v1855 = vunpack.c.l.b16 %v344
        %v1856 = vunpack.c.h.b16 %v344
        %v1857 = vunpack.c.l.b16 %v345
        %v1858 = vunpack.c.h.b16 %v345
        %v1859 = vunpack.c.l.b16 %v346
        %v1860 = vunpack.c.h.b16 %v346
        %v1861 = vunpack.c.l.b16 %v347
        %v1862 = vunpack.c.h.b16 %v347
        %v1863 = vunpack.c.l.b16 %v348
        %v1864 = vunpack.c.h.b16 %v348
        %v1865 = vunpack.c.l.b16 %v349
        %v1866 = vunpack.c.h.b16 %v349
        %v1867 = vunpack.c.l.b16 %v350
        %v1868 = vunpack.c.h.b16 %v350
        %v1869 = vunpack.c.l.b16 %v351
        %v1870 = vunpack.c.h.b16 %v351
        %v1871 = vunpack.c.l.b16 %v352
        %v1872 = vunpack.c.h.b16 %v352
        %v1873 = vunpack.c.l.b16 %v353
        %v1874 = vunpack.c.h.b16 %v353
        %v1875 = vunpack.c.l.b16 %v354
        %v1876 = vunpack.c.h.b16 %v354
        %v1877 = vunpack.c.l.b16 %v355
        %v1878 = vunpack.c.h.b16 %v355
        %v1879 = vunpack.c.l.b16 %v356
        %v1880 = vunpack.c.h.b16 %v356
        %v1881 = vunpack.c.l.b16 %v357
        %v1882 = vunpack.c.h.b16 %v357
        %v1883 = vunpack.c.l.b16 %v358
        %v1884 = vunpack.c.h.b16 %v358
        %v1885 = vunpack.c.l.b16 %v359
        %v1886 = vunpack.c.h.b16 %v359
        %v1887 = vunpack.c.l.b16 %v360
        %v1888 = vunpack.c.h.b16 %v360
        %v1889 = vunpack.c.l.b16 %v361
        %v1890 = vunpack.c.h.b16 %v361
        %v1891 = vunpack.c.l.b16 %v362
        %v1892 = vunpack.c.h.b16 %v362
        %v1893 = vunpack.c.l.b16 %v363
        %v1894 = vunpack.c.h.b16 %v363
        %v1895 = vunpack.c.l.b16 %v364
        %v1896 = vunpack.c.h.b16 %v364
        %v1897 = vunpack.c.l.b16 %v365
        %v1898 = vunpack.c.h.b16 %v365
        %v1899 = vunpack.c.l.b16 %v366
        %v1900 = vunpack.c.h.b16 %v366
        %v1901 = vunpack.c.l.b16 %v367
        %v1902 = vunpack.c.h.b16 %v367
        %v1903 = vunpack.c.l.b16 %v368
        %v1904 = vunpack.c.h.b16 %v368
        %v1905 = vunpack.c.l.b16 %v369
        %v1906 = vunpack.c.h.b16 %v369
        %v1907 = vunpack.c.l.b16 %v370
        %v1908 = vunpack.c.h.b16 %v370
        %v1909 = vunpack.c.l.b16 %v371
        %v1910 = vunpack.c.h.b16 %v371
        %v1911 = vunpack.c.l.b16 %v372
        %v1912 = vunpack.c.h.b16 %v372
        %v1913 = vunpack.c.l.b16 %v373
        %v1914 = vunpack.c.h.b16 %v373
        %v1915 = vunpack.c.l.b16 %v374
        %v1916 = vunpack.c.h.b16 %v374
        %v1917 = vunpack.c.l.b16 %v375
        %v1918 = vunpack.c.h.b16 %v375
        %v1919 = vunpack.c.l.b16 %v376
        %v1920 = vunpack.c.h.b16 %v376
        %v1921 = vunpack.c.l.b16 %v377
        %v1922 = vunpack.c.h.b16 %v377
        %v1923 = vunpack.c.l.b16 %v378
        %v1924 = vunpack.c.h.b16 %v378
        %v1925 = vunpack.c.l.b16 %v379
        %v1926 = vunpack.c.h.b16 %v379
        %v1927 = vunpack.c.l.b16 %v380
        %v1928 = vunpack.c.h.b16 %v380
        %v1929 = vunpack.c.l.b16 %v381
        %v1930 = vunpack.c.h.b16 %v381
        %v1931 = vunpack.c.l.b16 %v382
        %v1932 = vunpack.c.h.b16 %v382
        %v1933 = vunpack.c.l.b16 %v383
        %v1934 = vunpack.c.h.b16 %v383
        %v1935 = vunpack.c.l.b16 %v384
        %v1936 = vunpack.c.h.b16 %v384
        %v1937 = vunpack.c.l.b16 %v385
        %v1938 = vunpack.c.h.b16 %v385
        %v1939 = vunpack.c.l.b16 %v386
        %v1940 = vunpack.c.h.b16 %v386
        %v1941 = vunpack.c.l.b16 %v387
        %v1942 = vunpack.c.h.b16 %v387
        %v1943 = vunpack.c.l.b16 %v388
        %v1944 = vunpack.c.h.b16 %v388
        %v1945 = vunpack.c.l.b16 %v389
        %v1946 = vunpack.c.h.b16 %v389
        %v1947 = vunpack.c.l.b16 %v390
        %v1948 = vunpack.c.h.b16 %v390
        %v1949 = vunpack.c.l.b16 %v391
        %v1950 = vunpack.c.h.b16 %v391
        %v1951 = vunpack.c.l.b16 %v392
        %v1952 = vunpack.c.h.b16 %v392
        %v1953 = vunpack.c.l.b16 %v393
        %v1954 = vunpack.c.h.b16 %v393
        %v1955 = vunpack.c.l.b16 %v394
        %v1956 = vunpack.c.h.b16 %v394
        %v1957 = vunpack.c.l.b16 %v395
        %v1958 = vunpack.c.h.b16 %v395
        %v1959 = vunpack.c.l.b16 %v396
        %v1960 = vunpack.c.h.b16 %v396
        %v1961 = vunpack.c.l.b16 %v397
        %v1962 = vunpack.c.h.b16 %v397
        %v1963 = vunpack.c.l.b16 %v398
        %v1964 = vunpack.c.h.b16 %v398
        %v1965 = vunpack.c.l.b16 %v399
        %v1966 = vunpack.c.h.b16 %v399
        %v1967 = vunpack.c.l.b16 %v400
        %v1968 = vunpack.c.h.b16 %v400
        %v1969 = vunpack.c.l.b16 %v401
        %v1970 = vunpack.c.h.b16 %v401
        %v1971 = vunpack.c.l.b16 %v402
        %v1972 = vunpack.c.h.b16 %v402
        %v1973 = vunpack.c.l.b16 %v403
        %v1974 = vunpack.c.h.b16 %v403
        %v1975 = vunpack.c.l.b16 %v404
        %v1976 = vunpack.c.h.b16 %v404
        %v1977 = vunpack.c.l.b16 %v405
        %v1978 = vunpack.c.h.b16 %v405
        %v1979 = vunpack.c.l.b16 %v406
        %v1980 = vunpack.c.h.b16 %v406
        %v1981 = vunpack.c.l.b16 %v407
        %v1982 = vunpack.c.h.b16 %v407
        %v1983 = vunpack.c.l.b16 %v408
        %v1984 = vunpack.c.h.b16 %v408
        %v1985 = vunpack.c.l.b16 %v409
        %v1986 = vunpack.c.h.b16 %v409
        %v1987 = vunpack.c.l.b16 %v410
        %v1988 = vunpack.c.h.b16 %v410
        %v1989 = vunpack.c.l.b16 %v411
        %v1990 = vunpack.c.h.b16 %v411
        %v1991 = vunpack.c.l.b16 %v412
        %v1992 = vunpack.c.h.b16 %v412
        %v1993 = vunpack.c.l.b16 %v413
        %v1994 = vunpack.c.h.b16 %v413
        %v1995 = vunpack.c.l.b16 %v414
        %v1996 = vunpack.c.h.b16 %v414
        %v1997 = vunpack.c.l.b16 %v415
        %v1998 = vunpack.c.h.b16 %v415
        %v1999 = vunpack.c.l.b16 %v416
        %v2000 = vunpack.c.h.b16 %v416
        %v2001 = vunpack.c.l.b16 %v417
        %v2002 = vunpack.c.h.b16 %v417
        %v2003 = vunpack.c.l.b16 %v418
        %v2004 = vunpack.c.h.b16 %v418
        %v2005 = vunpack.c.l.b16 %v419
        %v2006 = vunpack.c.h.b16 %v419
        %v2007 = vunpack.c.l.b16 %v420
        %v2008 = vunpack.c.h.b16 %v420
        %v2009 = vunpack.c.l.b16 %v421
        %v2010 = vunpack.c.h.b16 %v421
        %v2011 = vunpack.c.l.b16 %v422
        %v2012 = vunpack.c.h.b16 %v422
        %v2013 = vunpack.c.l.b16 %v423
        %v2014 = vunpack.c.h.b16 %v423
        %v2015 = vunpack.c.l.b16 %v424
        %v2016 = vunpack.c.h.b16 %v424
        %v2017 = vunpack.c.l.b16 %v425
        %v2018 = vunpack.c.h.b16 %v425
        %v2019 = vunpack.c.l.b16 %v426
        %v2020 = vunpack.c.h.b16 %v426
        %v2021 = vunpack.c.l.b16 %v427
        %v2022 = vunpack.c.h.b16 %v427
        %v2023 = vunpack.c.l.b16 %v428
        %v2024 = vunpack.c.h.b16 %v428
        %v2025 = vunpack.c.l.b16 %v429
        %v2026 = vunpack.c.h.b16 %v429
        %v2027 = vunpack.c.l.b16 %v430
        %v2028 = vunpack.c.h.b16 %v430
        %v2029 = vunpack.c.l.b16 %v431
        %v2030 = vunpack.c.h.b16 %v431
        %v2031 = vunpack.c.l.b16 %v432
        %v2032 = vunpack.c.h.b16 %v432
        %v2033 = vunpack.c.l.b16 %v433
        %v2034 = vunpack.c.h.b16 %v433
        %v2035 = vunpack.c.l.b16 %v434
        %v2036 = vunpack.c.h.b16 %v434
        %v2037 = vunpack.c.l.b16 %v435
        %v2038 = vunpack.c.h.b16 %v435
        %v2039 = vunpack.c.l.b16 %v436
        %v2040 = vunpack.c.h.b16 %v436
        %v2041 = vunpack.c.l.b16 %v437
        %v2042 = vunpack.c.h.b16 %v437
        %v2043 = vunpack.c.l.b16 %v438
        %v2044 = vunpack.c.h.b16 %v438
        %v2045 = vunpack.c.l.b16 %v439
        %v2046 = vunpack.c.h.b16 %v439
        %v2047 = vunpack.c.l.b16 %v440
        %v2048 = vunpack.c.h.b16 %v440
        %v2049 = vunpack.c.l.b16 %v441
        %v2050 = vunpack.c.h.b16 %v441
        %v2051 = vunpack.c.l.b16 %v442
        %v2052 = vunpack.c.h.b16 %v442
        %v2053 = vunpack.c.l.b16 %v443
        %v2054 = vunpack.c.h.b16 %v443
        %v2055 = vunpack.c.l.b16 %v444
        %v2056 = vunpack.c.h.b16 %v444
        %v2057 = vunpack.c.l.b16 %v445
        %v2058 = vunpack.c.h.b16 %v445
        %v2059 = vunpack.c.l.b16 %v446
        %v2060 = vunpack.c.h.b16 %v446
        %v2061 = vunpack.c.l.b16 %v447
        %v2062 = vunpack.c.h.b16 %v447
        %v2063 = vunpack.c.l.b16 %v448
        %v2064 = vunpack.c.h.b16 %v448
        %v2065 = vunpack.c.l.b16 %v449
        %v2066 = vunpack.c.h.b16 %v449
        %v2067 = vunpack.c.l.b16 %v450
        %v2068 = vunpack.c.h.b16 %v450
        %v2069 = vunpack.c.l.b16 %v451
        %v2070 = vunpack.c.h.b16 %v451
        %v2071 = vunpack.c.l.b16 %v452
        %v2072 = vunpack.c.h.b16 %v452
        %v2073 = vunpack.c.l.b16 %v453
        %v2074 = vunpack.c.h.b16 %v453
        %v2075 = vunpack.c.l.b16 %v454
        %v2076 = vunpack.c.h.b16 %v454
        %v2077 = vunpack.c.l.b16 %v455
        %v2078 = vunpack.c.h.b16 %v455
        %v2079 = vunpack.c.l.b16 %v456
        %v2080 = vunpack.c.h.b16 %v456
        %v2081 = vunpack.c.l.b16 %v457
        %v2082 = vunpack.c.h.b16 %v457
        %v2083 = vunpack.c.l.b16 %v458
        %v2084 = vunpack.c.h.b16 %v458
        %v2085 = vunpack.c.l.b16 %v459
        %v2086 = vunpack.c.h.b16 %v459
        %v2087 = vunpack.c.l.b16 %v460
        %v2088 = vunpack.c.h.b16 %v460
        %v2089 = vunpack.c.l.b16 %v461
        %v2090 = vunpack.c.h.b16 %v461
        %v2091 = vunpack.c.l.b16 %v462
        %v2092 = vunpack.c.h.b16 %v462
        %v2093 = vunpack.c.l.b16 %v463
        %v2094 = vunpack.c.h.b16 %v463
        %v2095 = vunpack.c.l.b16 %v464
        %v2096 = vunpack.c.h.b16 %v464
        %v2097 = vunpack.c.l.b16 %v465
        %v2098 = vunpack.c.h.b16 %v465
        %v2099 = vunpack.c.l.b16 %v466
        %v2100 = vunpack.c.h.b16 %v466
        %v2101 = vunpack.c.l.b16 %v467
        %v2102 = vunpack.c.h.b16 %v467
        %v2103 = vunpack.c.l.b16 %v468
        %v2104 = vunpack.c.h.b16 %v468
        %v2105 = vunpack.c.l.b16 %v469
        %v2106 = vunpack.c.h.b16 %v469
        %v2107 = vunpack.c.l.b16 %v470
        %v2108 = vunpack.c.h.b16 %v470
        %v2109 = vunpack.c.l.b16 %v471
        %v2110 = vunpack.c.h.b16 %v471
        %v2111 = vunpack.c.l.b16 %v472
        %v2112 = vunpack.c.h.b16 %v472
        %v2113 = vunpack.c.l.b16 %v473
        %v2114 = vunpack.c.h.b16 %v473
        %v2115 = vunpack.c.l.b16 %v474
        %v2116 = vunpack.c.h.b16 %v474
        %v2117 = vunpack.c.l.b16 %v475
        %v2118 = vunpack.c.h.b16 %v475
        %v2119 = vunpack.c.l.b16 %v476
        %v2120 = vunpack.c.h.b16 %v476
        %v2121 = vunpack.c.l.b16 %v477
        %v2122 = vunpack.c.h.b16 %v477
        %v2123 = vunpack.c.l.b16 %v478
        %v2124 = vunpack.c.h.b16 %v478
        %v2125 = vunpack.c.l.b16 %v479
        %v2126 = vunpack.c.h.b16 %v479
        %v2127 = vunpack.c.l.b16 %v480
        %v2128 = vunpack.c.h.b16 %v480
        %v2129 = vunpack.c.l.b16 %v481
        %v2130 = vunpack.c.h.b16 %v481
        %v2131 = vunpack.c.l.b16 %v482
        %v2132 = vunpack.c.h.b16 %v482
        %v2133 = vunpack.c.l.b16 %v483
        %v2134 = vunpack.c.h.b16 %v483
        %v2135 = vunpack.c.l.b16 %v484
        %v2136 = vunpack.c.h.b16 %v484
        %v2137 = vunpack.c.l.b16 %v485
        %v2138 = vunpack.c.h.b16 %v485
        %v2139 = vunpack.c.l.b16 %v486
        %v2140 = vunpack.c.h.b16 %v486
        %v2141 = vunpack.c.l.b16 %v487
        %v2142 = vunpack.c.h.b16 %v487
        %v2143 = vunpack.c.l.b16 %v488
        %v2144 = vunpack.c.h.b16 %v488
        %v2145 = vunpack.c.l.b16 %v489
        %v2146 = vunpack.c.h.b16 %v489
        %v2147 = vunpack.c.l.b16 %v490
        %v2148 = vunpack.c.h.b16 %v490
        %v2149 = vunpack.c.l.b16 %v491
        %v2150 = vunpack.c.h.b16 %v491
        %v2151 = vunpack.c.l.b16 %v492
        %v2152 = vunpack.c.h.b16 %v492
        %v2153 = vunpack.c.l.b16 %v493
        %v2154 = vunpack.c.h.b16 %v493
        %v2155 = vunpack.c.l.b16 %v494
        %v2156 = vunpack.c.h.b16 %v494
        %v2157 = vunpack.c.l.b16 %v495
        %v2158 = vunpack.c.h.b16 %v495
        %v2159 = vunpack.c.l.b16 %v496
        %v2160 = vunpack.c.h.b16 %v496
        %v2161 = vunpack.c.l.b16 %v497
        %v2162 = vunpack.c.h.b16 %v497
        %v2163 = vunpack.c.l.b16 %v498
        %v2164 = vunpack.c.h.b16 %v498
        %v2165 = vunpack.c.l.b16 %v499
        %v2166 = vunpack.c.h.b16 %v499
        %v2167 = vunpack.c.l.b16 %v500
        %v2168 = vunpack.c.h.b16 %v500
        %v2169 = vunpack.c.l.b16 %v501
        %v2170 = vunpack.c.h.b16 %v501
        %v2171 = vunpack.c.l.b16 %v502
        %v2172 = vunpack.c.h.b16 %v502
        %v2173 = vunpack.c.l.b16 %v503
        %v2174 = vunpack.c.h.b16 %v503
        %v2175 = vunpack.c.l.b16 %v504
        %v2176 = vunpack.c.h.b16 %v504
        %v2177 = vunpack.c.l.b16 %v505
        %v2178 = vunpack.c.h.b16 %v505
        %v2179 = vunpack.c.l.b16 %v506
        %v2180 = vunpack.c.h.b16 %v506
        %v2181 = vunpack.c.l.b16 %v507
        %v2182 = vunpack.c.h.b16 %v507
        %v2183 = vunpack.c.l.b16 %v508
        %v2184 = vunpack.c.h.b16 %v508
        %v2185 = vunpack.c.l.b16 %v509
        %v2186 = vunpack.c.h.b16 %v509
        %v2187 = vunpack.c.l.b16 %v510
        %v2188 = vunpack.c.h.b16 %v510
        %v2189 = vunpack.c.l.b16 %v511
        %v2190 = vunpack.c.h.b16 %v511
        %v2191 = vunpack.c.l.b16 %v512
        %v2192 = vunpack.c.h.b16 %v512
        %v2193 = vunpack.c.l.b16 %v513
        %v2194 = vunpack.c.h.b16 %v513
        %v2195 = vunpack.c.l.b16 %v514
        %v2196 = vunpack.c.h.b16 %v514
        %v2197 = vunpack.c.l.b16 %v515
        %v2198 = vunpack.c.h.b16 %v515
        %v2199 = vunpack.c.l.b16 %v516
        %v2200 = vunpack.c.h.b16 %v516
        %v2201 = vunpack.c.l.b16 %v517
        %v2202 = vunpack.c.h.b16 %v517
        %v2203 = vunpack.c.l.b16 %v518
        %v2204 = vunpack.c.h.b16 %v518
        %v2205 = vunpack.c.l.b16 %v519
        %v2206 = vunpack.c.h.b16 %v519
        %v2207 = vunpack.c.l.b16 %v520
        %v2208 = vunpack.c.h.b16 %v520
        %v2209 = vunpack.c.l.b16 %v521
        %v2210 = vunpack.c.h.b16 %v521
        %v2211 = vunpack.c.l.b16 %v522
        %v2212 = vunpack.c.h.b16 %v522
        %v2213 = vunpack.c.l.b16 %v523
        %v2214 = vunpack.c.h.b16 %v523
        %v2215 = vunpack.c.l.b16 %v524
        %v2216 = vunpack.c.h.b16 %v524
        %v2217 = vunpack.c.l.b16 %v525
        %v2218 = vunpack.c.h.b16 %v525
        %v2219 = vunpack.c.l.b16 %v526
        %v2220 = vunpack.c.h.b16 %v526
        %v2221 = vunpack.c.l.b16 %v527
        %v2222 = vunpack.c.h.b16 %v527
        %v2223 = vunpack.c.l.b16 %v528
        %v2224 = vunpack.c.h.b16 %v528
        %v2225 = vunpack.c.l.b16 %v529
        %v2226 = vunpack.c.h.b16 %v529
        %v2227 = vunpack.c.l.b16 %v530
        %v2228 = vunpack.c.h.b16 %v530
        %v2229 = vunpack.c.l.b16 %v531
        %v2230 = vunpack.c.h.b16 %v531
        %v2231 = vunpack.c.l.b16 %v532
        %v2232 = vunpack.c.h.b16 %v532
        %v2233 = vunpack.c.l.b16 %v533
        %v2234 = vunpack.c.h.b16 %v533
        %v2235 = vunpack.c.l.b16 %v534
        %v2236 = vunpack.c.h.b16 %v534
        %v2237 = vunpack.c.l.b16 %v535
        %v2238 = vunpack.c.h.b16 %v535
        %v2239 = vunpack.c.l.b16 %v536
        %v2240 = vunpack.c.h.b16 %v536
        %v2241 = vunpack.c.l.b16 %v537
        %v2242 = vunpack.c.h.b16 %v537
        %v2243 = vunpack.c.l.b16 %v538
        %v2244 = vunpack.c.h.b16 %v538
        %v2245 = vunpack.c.l.b16 %v539
        %v2246 = vunpack.c.h.b16 %v539
        %v2247 = vunpack.c.l.b16 %v540
        %v2248 = vunpack.c.h.b16 %v540
        %v2249 = vunpack.c.l.b16 %v541
        %v2250 = vunpack.c.h.b16 %v541
        %v2251 = vunpack.c.l.b16 %v542
        %v2252 = vunpack.c.h.b16 %v542
        %v2253 = vunpack.c.l.b16 %v543
        %v2254 = vunpack.c.h.b16 %v543
        %v2255 = vunpack.c.l.b16 %v544
        %v2256 = vunpack.c.h.b16 %v544
        %v2257 = vunpack.c.l.b16 %v545
        %v2258 = vunpack.c.h.b16 %v545
        %v2259 = vunpack.c.l.b16 %v546
        %v2260 = vunpack.c.h.b16 %v546
        %v2261 = vunpack.c.l.b16 %v547
        %v2262 = vunpack.c.h.b16 %v547
        %v2263 = vunpack.c.l.b16 %v548
        %v2264 = vunpack.c.h.b16 %v548
        %v2265 = vunpack.c.l.b16 %v549
        %v2266 = vunpack.c.h.b16 %v549
        %v2267 = vunpack.c.l.b16 %v550
        %v2268 = vunpack.c.h.b16 %v550
        %v2269 = vunpack.c.l.b16 %v551
        %v2270 = vunpack.c.h.b16 %v551
        %v2271 = vunpack.c.l.b16 %v552
        %v2272 = vunpack.c.h.b16 %v552
        %v2273 = vunpack.c.l.b16 %v553
        %v2274 = vunpack.c.h.b16 %v553
        %v2275 = vunpack.c.l.b16 %v554
        %v2276 = vunpack.c.h.b16 %v554
        %v2277 = vunpack.c.l.b16 %v555
        %v2278 = vunpack.c.h.b16 %v555
        %v2279 = vunpack.c.l.b16 %v556
        %v2280 = vunpack.c.h.b16 %v556
        %v2281 = vunpack.c.l.b16 %v557
        %v2282 = vunpack.c.h.b16 %v557
        %v2283 = vunpack.c.l.b16 %v558
        %v2284 = vunpack.c.h.b16 %v558
        %v2285 = vunpack.c.l.b16 %v559
        %v2286 = vunpack.c.h.b16 %v559
        %v2287 = vunpack.c.l.b16 %v560
        %v2288 = vunpack.c.h.b16 %v560
        %v2289 = vunpack.c.l.b16 %v561
        %v2290 = vunpack.c.h.b16 %v561
        %v2291 = vunpack.c.l.b16 %v562
        %v2292 = vunpack.c.h.b16 %v562
        %v2293 = vunpack.c.l.b16 %v563
        %v2294 = vunpack.c.h.b16 %v563
        %v2295 = vunpack.c.l.b16 %v564
        %v2296 = vunpack.c.h.b16 %v564
        %v2297 = vunpack.c.l.b16 %v565
        %v2298 = vunpack.c.h.b16 %v565
        %v2299 = vunpack.c.l.b16 %v566
        %v2300 = vunpack.c.h.b16 %v566
        %v2301 = vunpack.c.l.b16 %v567
        %v2302 = vunpack.c.h.b16 %v567
        %v2303 = vunpack.c.l.b16 %v568
        %v2304 = vunpack.c.h.b16 %v568
        %v2305 = vunpack.c.l.b16 %v569
        %v2306 = vunpack.c.h.b16 %v569
        %v2307 = vunpack.c.l.b16 %v570
        %v2308 = vunpack.c.h.b16 %v570
        %v2309 = vunpack.c.l.b16 %v571
        %v2310 = vunpack.c.h.b16 %v571
        %v2311 = vunpack.c.l.b16 %v572
        %v2312 = vunpack.c.h.b16 %v572
        %v2313 = vunpack.c.l.b16 %v573
        %v2314 = vunpack.c.h.b16 %v573
        %v2315 = vunpack.c.l.b16 %v574
        %v2316 = vunpack.c.h.b16 %v574
        %v2317 = vunpack.c.l.b16 %v575
        %v2318 = vunpack.c.h.b16 %v575
        %v2319 = vunpack.c.l.b16 %v576
        %v2320 = vunpack.c.h.b16 %v576
        %v2321 = vunpack.c.l.b16 %v577
        %v2322 = vunpack.c.h.b16 %v577
        %v2323 = vunpack.c.l.b16 %v578
        %v2324 = vunpack.c.h.b16 %v578
        %v2325 = vunpack.c.l.b16 %v579
        %v2326 = vunpack.c.h.b16 %v579
        %v2327 = vunpack.c.l.b16 %v580
        %v2328 = vunpack.c.h.b16 %v580
        %v2329 = vunpack.c.l.b16 %v581
        %v2330 = vunpack.c.h.b16 %v581
        %v2331 = vunpack.c.l.b16 %v582
        %v2332 = vunpack.c.h.b16 %v582
        %v2333 = vunpack.c.l.b16 %v583
        %v2334 = vunpack.c.h.b16 %v583
        %v2335 = vunpack.c.l.b16 %v584
        %v2336 = vunpack.c.h.b16 %v584
        %v2337 = vunpack.c.l.b16 %v585
        %v2338 = vunpack.c.h.b16 %v585
        %v2339 = vunpack.c.l.b16 %v586
        %v2340 = vunpack.c.h.b16 %v586
        %v2341 = vunpack.c.l.b16 %v587
        %v2342 = vunpack.c.h.b16 %v587
        %v2343 = vunpack.c.l.b16 %v588
        %v2344 = vunpack.c.h.b16 %v588
        %v2345 = vunpack.c.l.b16 %v589
        %v2346 = vunpack.c.h.b16 %v589
        %v2347 = vunpack.c.l.b16 %v590
        %v2348 = vunpack.c.h.b16 %v590
        %v2349 = vunpack.c.l.b16 %v591
        %v2350 = vunpack.c.h.b16 %v591
        %v2351 = vunpack.c.l.b16 %v592
        %v2352 = vunpack.c.h.b16 %v592
        %v2353 = vunpack.c.l.b16 %v593
        %v2354 = vunpack.c.h.b16 %v593
        %v2355 = vunpack.c.l.b16 %v594
        %v2356 = vunpack.c.h.b16 %v594
        %v2357 = vunpack.c.l.b16 %v595
        %v2358 = vunpack.c.h.b16 %v595
        %v2359 = vunpack.c.l.b16 %v596
        %v2360 = vunpack.c.h.b16 %v596
        %v2361 = vunpack.c.l.b16 %v597
        %v2362 = vunpack.c.h.b16 %v597
        %v2363 = vunpack.c.l.b16 %v598
        %v2364 = vunpack.c.h.b16 %v598
        %v2365 = vunpack.c.l.b16 %v599
        %v2366 = vunpack.c.h.b16 %v599
        %v2367 = vunpack.c.l.b16 %v600
        %v2368 = vunpack.c.h.b16 %v600
        %v2369 = vunpack.c.l.b16 %v601
        %v2370 = vunpack.c.h.b16 %v601
        %v2371 = vunpack.c.l.b16 %v602
        %v2372 = vunpack.c.h.b16 %v602
        %v2373 = vunpack.c.l.b16 %v603
        %v2374 = vunpack.c.h.b16 %v603
        %v2375 = vunpack.c.l.b16 %v604
        %v2376 = vunpack.c.h.b16 %v604
        %v2377 = vunpack.c.l.b16 %v605
        %v2378 = vunpack.c.h.b16 %v605
        %v2379 = vunpack.c.l.b16 %v606
        %v2380 = vunpack.c.h.b16 %v606
        %v2381 = vunpack.c.l.b16 %v607
        %v2382 = vunpack.c.h.b16 %v607
        %v2383 = vunpack.c.l.b16 %v608
        %v2384 = vunpack.c.h.b16 %v608
        %v2385 = vunpack.c.l.b16 %v609
        %v2386 = vunpack.c.h.b16 %v609
        %v2387 = vunpack.c.l.b16 %v610
        %v2388 = vunpack.c.h.b16 %v610
        %v2389 = vunpack.c.l.b16 %v611
        %v2390 = vunpack.c.h.b16 %v611
        %v2391 = vunpack.c.l.b16 %v612
        %v2392 = vunpack.c.h.b16 %v612
        %v2393 = vunpack.c.l.b16 %v613
        %v2394 = vunpack.c.h.b16 %v613
        %v2395 = vunpack.c.l.b16 %v614
        %v2396 = vunpack.c.h.b16 %v614
        %v2397 = vunpack.c.l.b16 %v615
        %v2398 = vunpack.c.h.b16 %v615
        %v2399 = vunpack.c.l.b16 %v616
        %v2400 = vunpack.c.h.b16 %v616
        %v2401 = vunpack.c.l.b16 %v617
        %v2402 = vunpack.c.h.b16 %v617
        %v2403 = vunpack.c.l.b16 %v618
        %v2404 = vunpack.c.h.b16 %v618
        %v2405 = vunpack.c.l.b16 %v619
        %v2406 = vunpack.c.h.b16 %v619
        %v2407 = vunpack.c.l.b16 %v620
        %v2408 = vunpack.c.h.b16 %v620
        %v2409 = vunpack.c.l.b16 %v621
        %v2410 = vunpack.c.h.b16 %v621
        %v2411 = vunpack.c.l.b16 %v622
        %v2412 = vunpack.c.h.b16 %v622
        %v2413 = vunpack.c.l.b16 %v623
        %v2414 = vunpack.c.h.b16 %v623
        %v2415 = vunpack.c.l.b16 %v624
        %v2416 = vunpack.c.h.b16 %v624
        %v2417 = vunpack.c.l.b16 %v625
        %v2418 = vunpack.c.h.b16 %v625
        %v2419 = vunpack.c.l.b16 %v626
        %v2420 = vunpack.c.h.b16 %v626
        %v2421 = vunpack.c.l.b16 %v627
        %v2422 = vunpack.c.h.b16 %v627
        %v2423 = vunpack.c.l.b16 %v628
        %v2424 = vunpack.c.h.b16 %v628
        %v2425 = vunpack.c.l.b16 %v629
        %v2426 = vunpack.c.h.b16 %v629
        %v2427 = vunpack.c.l.b16 %v630
        %v2428 = vunpack.c.h.b16 %v630
        %v2429 = vunpack.c.l.b16 %v631
        %v2430 = vunpack.c.h.b16 %v631
        %v2431 = vunpack.c.l.b16 %v632
        %v2432 = vunpack.c.h.b16 %v632
        %v2433 = vunpack.c.l.b16 %v633
        %v2434 = vunpack.c.h.b16 %v633
        %v2435 = vunpack.c.l.b16 %v634
        %v2436 = vunpack.c.h.b16 %v634
        %v2437 = vunpack.c.l.b16 %v635
        %v2438 = vunpack.c.h.b16 %v635
        %v2439 = vunpack.c.l.b16 %v636
        %v2440 = vunpack.c.h.b16 %v636
        %v2441 = vunpack.c.l.b16 %v637
        %v2442 = vunpack.c.h.b16 %v637
        %v2443 = vunpack.c.l.b16 %v638
        %v2444 = vunpack.c.h.b16 %v638
        %v2445 = vunpack.c.l.b16 %v639
        %v2446 = vunpack.c.h.b16 %v639
        %v2447 = vunpack.c.l.b16 %v640
        %v2448 = vunpack.c.h.b16 %v640
        %v2449 = vunpack.c.l.b16 %v641
        %v2450 = vunpack.c.h.b16 %v641
        %v2451 = vunpack.c.l.b16 %v642
        %v2452 = vunpack.c.h.b16 %v642
        %v2453 = vunpack.c.l.b16 %v643
        %v2454 = vunpack.c.h.b16 %v643
        %v2455 = vunpack.c.l.b16 %v644
        %v2456 = vunpack.c.h.b16 %v644
        %v2457 = vunpack.c.l.b16 %v645
        %v2458 = vunpack.c.h.b16 %v645
        %v2459 = vunpack.c.l.b16 %v646
        %v2460 = vunpack.c.h.b16 %v646
        %v2461 = vunpack.c.l.b16 %v647
        %v2462 = vunpack.c.h.b16 %v647
        %v2463 = vunpack.c.l.b16 %v648
        %v2464 = vunpack.c.h.b16 %v648
        %v2465 = vunpack.c.l.b16 %v649
        %v2466 = vunpack.c.h.b16 %v649
        %v2467 = vunpack.c.l.b16 %v650
        %v2468 = vunpack.c.h.b16 %v650
        %v2469 = vunpack.c.l.b16 %v651
        %v2470 = vunpack.c.h.b16 %v651
        %v2471 = vunpack.c.l.b16 %v652
        %v2472 = vunpack.c.h.b16 %v652
        %v2473 = vunpack.c.l.b16 %v653
        %v2474 = vunpack.c.h.b16 %v653
        %v2475 = vunpack.c.l.b16 %v654
        %v2476 = vunpack.c.h.b16 %v654
        %v2477 = vunpack.c.l.b16 %v655
        %v2478 = vunpack.c.h.b16 %v655
        %v2479 = vunpack.c.l.b16 %v656
        %v2480 = vunpack.c.h.b16 %v656
        %v2481 = vunpack.c.l.b16 %v657
        %v2482 = vunpack.c.h.b16 %v657
        %v2483 = vunpack.c.l.b16 %v658
        %v2484 = vunpack.c.h.b16 %v658
        %v2485 = vunpack.c.l.b16 %v659
        %v2486 = vunpack.c.h.b16 %v659
        %v2487 = vunpack.c.l.b16 %v660
        %v2488 = vunpack.c.h.b16 %v660
        %v2489 = vunpack.c.l.b16 %v661
        %v2490 = vunpack.c.h.b16 %v661
        %v2491 = vunpack.c.l.b16 %v662
        %v2492 = vunpack.c.h.b16 %v662
        %v2493 = vunpack.c.l.b16 %v663
        %v2494 = vunpack.c.h.b16 %v663
        %v2495 = vunpack.c.l.b16 %v664
        %v2496 = vunpack.c.h.b16 %v664
        %v2497 = vunpack.c.l.b16 %v665
        %v2498 = vunpack.c.h.b16 %v665
        %v2499 = vunpack.c.l.b16 %v666
        %v2500 = vunpack.c.h.b16 %v666
        %v2501 = vunpack.c.l.b16 %v667
        %v2502 = vunpack.c.h.b16 %v667
        %v2503 = vunpack.c.l.b16 %v668
        %v2504 = vunpack.c.h.b16 %v668
        %v2505 = vunpack.c.l.b16 %v669
        %v2506 = vunpack.c.h.b16 %v669
        %v2507 = vunpack.c.l.b16 %v670
        %v2508 = vunpack.c.h.b16 %v670
        %v2509 = vunpack.c.l.b16 %v671
        %v2510 = vunpack.c.h.b16 %v671
        %v2511 = vunpack.c.l.b16 %v672
        %v2512 = vunpack.c.h.b16 %v672
        %v2513 = vunpack.c.l.b16 %v673
        %v2514 = vunpack.c.h.b16 %v673
        %v2515 = vunpack.c.l.b16 %v674
        %v2516 = vunpack.c.h.b16 %v674
        %v2517 = vunpack.c.l.b16 %v675
        %v2518 = vunpack.c.h.b16 %v675
        %v2519 = vunpack.c.l.b16 %v676
        %v2520 = vunpack.c.h.b16 %v676
        %v2521 = vunpack.c.l.b16 %v677
        %v2522 = vunpack.c.h.b16 %v677
        %v2523 = vunpack.c.l.b16 %v678
        %v2524 = vunpack.c.h.b16 %v678
        %v2525 = vunpack.c.l.b16 %v679
        %v2526 = vunpack.c.h.b16 %v679
        %v2527 = vunpack.c.l.b16 %v680
        %v2528 = vunpack.c.h.b16 %v680
        %v2529 = vunpack.c.l.b16 %v681
        %v2530 = vunpack.c.h.b16 %v681
        %v2531 = vunpack.c.l.b16 %v682
        %v2532 = vunpack.c.h.b16 %v682
        %v2533 = vunpack.c.l.b16 %v683
        %v2534 = vunpack.c.h.b16 %v683
        %v2535 = vunpack.c.l.b16 %v684
        %v2536 = vunpack.c.h.b16 %v684
        %v2537 = vunpack.c.l.b16 %v685
        %v2538 = vunpack.c.h.b16 %v685
        %v2539 = vunpack.c.l.b16 %v686
        %v2540 = vunpack.c.h.b16 %v686
        %v2541 = vunpack.c.l.b16 %v687
        %v2542 = vunpack.c.h.b16 %v687
        %v2543 = vunpack.c.l.b16 %v688
        %v2544 = vunpack.c.h.b16 %v688
        %v2545 = vunpack.c.l.b16 %v689
        %v2546 = vunpack.c.h.b16 %v689
        %v2547 = vunpack.c.l.b16 %v690
        %v2548 = vunpack.c.h.b16 %v690
        %v2549 = vunpack.c.l.b16 %v691
        %v2550 = vunpack.c.h.b16 %v691
        %v2551 = vunpack.c.l.b16 %v692
        %v2552 = vunpack.c.h.b16 %v692
        %v2553 = vunpack.c.l.b16 %v693
        %v2554 = vunpack.c.h.b16 %v693
        %v2555 = vunpack.c.l.b16 %v694
        %v2556 = vunpack.c.h.b16 %v694
        %v2557 = vunpack.c.l.b16 %v695
        %v2558 = vunpack.c.h.b16 %v695
        %v2559 = vunpack.c.l.b16 %v696
        %v2560 = vunpack.c.h.b16 %v696
        %v2561 = vunpack.c.l.b16 %v697
        %v2562 = vunpack.c.h.b16 %v697
        %v2563 = vunpack.c.l.b16 %v698
        %v2564 = vunpack.c.h.b16 %v698
        %v2565 = vunpack.c.l.b16 %v699
        %v2566 = vunpack.c.h.b16 %v699
        %v2567 = vunpack.c.l.b16 %v700
        %v2568 = vunpack.c.h.b16 %v700
        %v2569 = vunpack.c.l.b16 %v701
        %v2570 = vunpack.c.h.b16 %v701
        %v2571 = vunpack.c.l.b16 %v702
        %v2572 = vunpack.c.h.b16 %v702
        %v2573 = vunpack.c.l.b16 %v703
        %v2574 = vunpack.c.h.b16 %v703
        %v2575 = vunpack.c.l.b16 %v704
        %v2576 = vunpack.c.h.b16 %v704
        %v2577 = vunpack.c.l.b16 %v705
        %v2578 = vunpack.c.h.b16 %v705
        %v2579 = vunpack.c.l.b16 %v706
        %v2580 = vunpack.c.h.b16 %v706
        %v2581 = vunpack.c.l.b16 %v707
        %v2582 = vunpack.c.h.b16 %v707
        %v2583 = vunpack.c.l.b16 %v708
        %v2584 = vunpack.c.h.b16 %v708
        %v2585 = vunpack.c.l.b16 %v709
        %v2586 = vunpack.c.h.b16 %v709
        %v2587 = vunpack.c.l.b16 %v710
        %v2588 = vunpack.c.h.b16 %v710
        %v2589 = vunpack.c.l.b16 %v711
        %v2590 = vunpack.c.h.b16 %v711
        %v2591 = vunpack.c.l.b16 %v712
        %v2592 = vunpack.c.h.b16 %v712
        %v2593 = vunpack.c.l.b16 %v713
        %v2594 = vunpack.c.h.b16 %v713
        %v2595 = vunpack.c.l.b16 %v714
        %v2596 = vunpack.c.h.b16 %v714
        %v2597 = vunpack.c.l.b16 %v715
        %v2598 = vunpack.c.h.b16 %v715
        %v2599 = vunpack.c.l.b16 %v716
        %v2600 = vunpack.c.h.b16 %v716
        %v2601 = vunpack.c.l.b16 %v717
        %v2602 = vunpack.c.h.b16 %v717
        %v2603 = vunpack.c.l.b16 %v718
        %v2604 = vunpack.c.h.b16 %v718
        %v2605 = vunpack.c.l.b16 %v719
        %v2606 = vunpack.c.h.b16 %v719
        %v2607 = vunpack.c.l.b16 %v720
        %v2608 = vunpack.c.h.b16 %v720
        %v2609 = vunpack.c.l.b16 %v721
        %v2610 = vunpack.c.h.b16 %v721
        %v2611 = vunpack.c.l.b16 %v722
        %v2612 = vunpack.c.h.b16 %v722
        %v2613 = vunpack.c.l.b16 %v723
        %v2614 = vunpack.c.h.b16 %v723
        %v2615 = vunpack.c.l.b16 %v724
        %v2616 = vunpack.c.h.b16 %v724
        %v2617 = vunpack.c.l.b16 %v725
        %v2618 = vunpack.c.h.b16 %v725
        %v2619 = vunpack.c.l.b16 %v726
        %v2620 = vunpack.c.h.b16 %v726
        %v2621 = vunpack.c.l.b16 %v727
        %v2622 = vunpack.c.h.b16 %v727
        %v2623 = vunpack.c.l.b16 %v728
        %v2624 = vunpack.c.h.b16 %v728
        %v2625 = vunpack.c.l.b16 %v729
        %v2626 = vunpack.c.h.b16 %v729
        %v2627 = vunpack.c.l.b16 %v730
        %v2628 = vunpack.c.h.b16 %v730
        %v2629 = vunpack.c.l.b16 %v731
        %v2630 = vunpack.c.h.b16 %v731
        %v2631 = vunpack.c.l.b16 %v732
        %v2632 = vunpack.c.h.b16 %v732
        %v2633 = vunpack.c.l.b16 %v733
        %v2634 = vunpack.c.h.b16 %v733
        %v2635 = vunpack.c.l.b16 %v734
        %v2636 = vunpack.c.h.b16 %v734
        %v2637 = vunpack.c.l.b16 %v735
        %v2638 = vunpack.c.h.b16 %v735
        %v2639 = vunpack.c.l.b16 %v736
        %v2640 = vunpack.c.h.b16 %v736
        %v2641 = vunpack.c.l.b16 %v737
        %v2642 = vunpack.c.h.b16 %v737
        %v2643 = vunpack.c.l.b16 %v738
        %v2644 = vunpack.c.h.b16 %v738
        %v2645 = vunpack.c.l.b16 %v739
        %v2646 = vunpack.c.h.b16 %v739
        %v2647 = vunpack.c.l.b16 %v740
        %v2648 = vunpack.c.h.b16 %v740
        %v2649 = vunpack.c.l.b16 %v741
        %v2650 = vunpack.c.h.b16 %v741
        %v2651 = vunpack.c.l.b16 %v742
        %v2652 = vunpack.c.h.b16 %v742
        %v2653 = vunpack.c.l.b16 %v743
        %v2654 = vunpack.c.h.b16 %v743
        %v2655 = vunpack.c.l.b16 %v744
        %v2656 = vunpack.c.h.b16 %v744
        %v2657 = vunpack.c.l.b16 %v745
        %v2658 = vunpack.c.h.b16 %v745
        %v2659 = vunpack.c.l.b16 %v746
        %v2660 = vunpack.c.h.b16 %v746
        %v2661 = vunpack.c.l.b16 %v747
        %v2662 = vunpack.c.h.b16 %v747
        %v2663 = vunpack.c.l.b16 %v748
        %v2664 = vunpack.c.h.b16 %v748
        %v2665 = vunpack.c.l.b16 %v749
        %v2666 = vunpack.c.h.b16 %v749
        %v2667 = vunpack.c.l.b16 %v750
        %v2668 = vunpack.c.h.b16 %v750
        %v2669 = vunpack.c.l.b16 %v751
        %v2670 = vunpack.c.h.b16 %v751
        %v2671 = vunpack.c.l.b16 %v752
        %v2672 = vunpack.c.h.b16 %v752
        %v2673 = vunpack.c.l.b16 %v753
        %v2674 = vunpack.c.h.b16 %v753
        %v2675 = vunpack.c.l.b16 %v754
        %v2676 = vunpack.c.h.b16 %v754
        %v2677 = vunpack.c.l.b16 %v755
        %v2678 = vunpack.c.h.b16 %v755
        %v2679 = vunpack.c.l.b16 %v756
        %v2680 = vunpack.c.h.b16 %v756
        %v2681 = vunpack.c.l.b16 %v757
        %v2682 = vunpack.c.h.b16 %v757
        %v2683 = vunpack.c.l.b16 %v758
        %v2684 = vunpack.c.h.b16 %v758
        %v2685 = vunpack.c.l.b16 %v759
        %v2686 = vunpack.c.h.b16 %v759
        %v2687 = vunpack.c.l.b16 %v760
        %v2688 = vunpack.c.h.b16 %v760
        %v2689 = vunpack.c.l.b16 %v761
        %v2690 = vunpack.c.h.b16 %v761
        %v2691 = vunpack.c.l.b16 %v762
        %v2692 = vunpack.c.h.b16 %v762
        %v2693 = vunpack.c.l.b16 %v763
        %v2694 = vunpack.c.h.b16 %v763
        %v2695 = vunpack.c.l.b16 %v764
        %v2696 = vunpack.c.h.b16 %v764
        %v2697 = vunpack.c.l.b16 %v765
        %v2698 = vunpack.c.h.b16 %v765
        %v2699 = vunpack.c.l.b16 %v766
        %v2700 = vunpack.c.h.b16 %v766
        %v2701 = vunpack.c.l.b16 %v767
        %v2702 = vunpack.c.h.b16 %v767
        %v2703 = vunpack.c.l.b16 %v768
        %v2704 = vunpack.c.h.b16 %v768
        %v2705 = vunpack.c.l.b16 %v769
        %v2706 = vunpack.c.h.b16 %v769
        %v2707 = vunpack.c.l.b16 %v770
        %v2708 = vunpack.c.h.b16 %v770
        %v2709 = vunpack.c.l.b16 %v771
        %v2710 = vunpack.c.h.b16 %v771
        %v2711 = vunpack.c.l.b16 %v772
        %v2712 = vunpack.c.h.b16 %v772
        %v2713 = vunpack.c.l.b16 %v773
        %v2714 = vunpack.c.h.b16 %v773
        %v2715 = vunpack.c.l.b16 %v774
        %v2716 = vunpack.c.h.b16 %v774
        %v2717 = vunpack.c.l.b16 %v775
        %v2718 = vunpack.c.h.b16 %v775
        %v2719 = vunpack.c.l.b16 %v776
        %v2720 = vunpack.c.h.b16 %v776
        %v2721 = vunpack.c.l.b16 %v777
        %v2722 = vunpack.c.h.b16 %v777
        %v2723 = vunpack.c.l.b16 %v778
        %v2724 = vunpack.c.h.b16 %v778
        %v2725 = vunpack.c.l.b16 %v779
        %v2726 = vunpack.c.h.b16 %v779
        %v2727 = vunpack.c.l.b16 %v780
        %v2728 = vunpack.c.h.b16 %v780
        %v2729 = vunpack.c.l.b16 %v781
        %v2730 = vunpack.c.h.b16 %v781
        %v2731 = vunpack.c.l.b16 %v782
        %v2732 = vunpack.c.h.b16 %v782
        %v2733 = vunpack.c.l.b16 %v783
        %v2734 = vunpack.c.h.b16 %v783
        %v2735 = vunpack.c.l.b16 %v784
        %v2736 = vunpack.c.h.b16 %v784
        %v2737 = vunpack.c.l.b16 %v785
        %v2738 = vunpack.c.h.b16 %v785
        %v2739 = vunpack.c.l.b16 %v786
        %v2740 = vunpack.c.h.b16 %v786
        %v2741 = vunpack.c.l.b16 %v787
        %v2742 = vunpack.c.h.b16 %v787
        %v2743 = vunpack.c.l.b16 %v788
        %v2744 = vunpack.c.h.b16 %v788
        %v2745 = vunpack.c.l.b16 %v789
        %v2746 = vunpack.c.h.b16 %v789
        %v2747 = vunpack.c.l.b16 %v790
        %v2748 = vunpack.c.h.b16 %v790
        %v2749 = vunpack.c.l.b16 %v791
        %v2750 = vunpack.c.h.b16 %v791
        %v2751 = vunpack.c.l.b16 %v792
        %v2752 = vunpack.c.h.b16 %v792
        %v2753 = vunpack.c.l.b16 %v793
        %v2754 = vunpack.c.h.b16 %v793
        %v2755 = vunpack.c.l.b16 %v794
        %v2756 = vunpack.c.h.b16 %v794
        %v2757 = vunpack.c.l.b16 %v795
        %v2758 = vunpack.c.h.b16 %v795
        %v2759 = vunpack.c.l.b16 %v796
        %v2760 = vunpack.c.h.b16 %v796
        %v2761 = vunpack.c.l.b16 %v797
        %v2762 = vunpack.c.h.b16 %v797
        %v2763 = vunpack.c.l.b16 %v798
        %v2764 = vunpack.c.h.b16 %v798
        %v2765 = vunpack.c.l.b16 %v799
        %v2766 = vunpack.c.h.b16 %v799
        %v2767 = vunpack.c.l.b16 %v800
        %v2768 = vunpack.c.h.b16 %v800
        %v2769 = vunpack.c.l.b16 %v801
        %v2770 = vunpack.c.h.b16 %v801
        %v2771 = vunpack.c.l.b16 %v802
        %v2772 = vunpack.c.h.b16 %v802
        %v2773 = vunpack.c.l.b16 %v803
        %v2774 = vunpack.c.h.b16 %v803
        %v2775 = vunpack.c.l.b16 %v804
        %v2776 = vunpack.c.h.b16 %v804
        %v2777 = vunpack.c.l.b16 %v805
        %v2778 = vunpack.c.h.b16 %v805
        %v2779 = vunpack.c.l.b16 %v806
        %v2780 = vunpack.c.h.b16 %v806
        %v2781 = vunpack.c.l.b16 %v807
        %v2782 = vunpack.c.h.b16 %v807
        %v2783 = vunpack.c.l.b16 %v808
        %v2784 = vunpack.c.h.b16 %v808
        %v2785 = vunpack.c.l.b16 %v809
        %v2786 = vunpack.c.h.b16 %v809
        %v2787 = vunpack.c.l.b16 %v810
        %v2788 = vunpack.c.h.b16 %v810
        %v2789 = vunpack.c.l.b16 %v811
        %v2790 = vunpack.c.h.b16 %v811
        %v2791 = vunpack.c.l.b16 %v812
        %v2792 = vunpack.c.h.b16 %v812
        %v2793 = vunpack.c.l.b16 %v813
        %v2794 = vunpack.c.h.b16 %v813
        %v2795 = vunpack.c.l.b16 %v814
        %v2796 = vunpack.c.h.b16 %v814
        %v2797 = vunpack.c.l.b16 %v815
        %v2798 = vunpack.c.h.b16 %v815
        %v2799 = vunpack.c.l.b16 %v816
        %v2800 = vunpack.c.h.b16 %v816
        %v2801 = vunpack.c.l.b16 %v817
        %v2802 = vunpack.c.h.b16 %v817
        %v2803 = vunpack.c.l.b16 %v818
        %v2804 = vunpack.c.h.b16 %v818
        %v2805 = vunpack.c.l.b16 %v819
        %v2806 = vunpack.c.h.b16 %v819
        %v2807 = vunpack.c.l.b16 %v820
        %v2808 = vunpack.c.h.b16 %v820
        %v2809 = vunpack.c.l.b16 %v821
        %v2810 = vunpack.c.h.b16 %v821
        %v2811 = vunpack.c.l.b16 %v822
        %v2812 = vunpack.c.h.b16 %v822
        %v2813 = vunpack.c.l.b16 %v823
        %v2814 = vunpack.c.h.b16 %v823
        %v2815 = vunpack.c.l.b16 %v824
        %v2816 = vunpack.c.h.b16 %v824
        %v2817 = vunpack.c.l.b16 %v825
        %v2818 = vunpack.c.h.b16 %v825
        %v2819 = vunpack.c.l.b16 %v826
        %v2820 = vunpack.c.h.b16 %v826
        %v2821 = vunpack.c.l.b16 %v827
        %v2822 = vunpack.c.h.b16 %v827
        %v2823 = vunpack.c.l.b16 %v828
        %v2824 = vunpack.c.h.b16 %v828
        %v2825 = vunpack.c.l.b16 %v829
        %v2826 = vunpack.c.h.b16 %v829
        %v2827 = vunpack.c.l.b16 %v830
        %v2828 = vunpack.c.h.b16 %v830
        %v2829 = vunpack.c.l.b16 %v831
        %v2830 = vunpack.c.h.b16 %v831
        %v2831 = vunpack.c.l.b16 %v832
        %v2832 = vunpack.c.h.b16 %v832
        %v2833 = vunpack.c.l.b16 %v833
        %v2834 = vunpack.c.h.b16 %v833
        %v2835 = vunpack.c.l.b16 %v834
        %v2836 = vunpack.c.h.b16 %v834
        %v2837 = vunpack.c.l.b16 %v835
        %v2838 = vunpack.c.h.b16 %v835
        %v2839 = vunpack.c.l.b16 %v836
        %v2840 = vunpack.c.h.b16 %v836
        %v2841 = vunpack.c.l.b16 %v837
        %v2842 = vunpack.c.h.b16 %v837
        %v2843 = vunpack.c.l.b16 %v838
        %v2844 = vunpack.c.h.b16 %v838
        %v2845 = vunpack.c.l.b16 %v839
        %v2846 = vunpack.c.h.b16 %v839
        %v2847 = vunpack.c.l.b16 %v840
        %v2848 = vunpack.c.h.b16 %v840
        %v2849 = vunpack.c.l.b16 %v841
        %v2850 = vunpack.c.h.b16 %v841
        %v2851 = vunpack.c.l.b16 %v842
        %v2852 = vunpack.c.h.b16 %v842
        %v2853 = vunpack.c.l.b16 %v843
        %v2854 = vunpack.c.h.b16 %v843
        %v2855 = vunpack.c.l.b16 %v844
        %v2856 = vunpack.c.h.b16 %v844
        %v2857 = vunpack.c.l.b16 %v845
        %v2858 = vunpack.c.h.b16 %v845
        %v2859 = vunpack.c.l.b16 %v846
        %v2860 = vunpack.c.h.b16 %v846
        %v2861 = vunpack.c.l.b16 %v847
        %v2862 = vunpack.c.h.b16 %v847
        %v2863 = vunpack.c.l.b16 %v848
        %v2864 = vunpack.c.h.b16 %v848
        %v2865 = vunpack.c.l.b16 %v849
        %v2866 = vunpack.c.h.b16 %v849
        %v2867 = vunpack.c.l.b16 %v850
        %v2868 = vunpack.c.h.b16 %v850
        %v2869 = vunpack.c.l.b16 %v851
        %v2870 = vunpack.c.h.b16 %v851
        %v2871 = vunpack.c.l.b16 %v852
        %v2872 = vunpack.c.h.b16 %v852
        %v2873 = vunpack.c.l.b16 %v853
        %v2874 = vunpack.c.h.b16 %v853
        %v2875 = vunpack.c.l.b16 %v854
        %v2876 = vunpack.c.h.b16 %v854
        %v2877 = vunpack.c.l.b16 %v855
        %v2878 = vunpack.c.h.b16 %v855
        %v2879 = vunpack.c.l.b16 %v856
        %v2880 = vunpack.c.h.b16 %v856
        %v2881 = vunpack.c.l.b16 %v857
        %v2882 = vunpack.c.h.b16 %v857
        %v2883 = vunpack.c.l.b16 %v858
        %v2884 = vunpack.c.h.b16 %v858
        %v2885 = vunpack.c.l.b16 %v859
        %v2886 = vunpack.c.h.b16 %v859
        %v2887 = vunpack.c.l.b16 %v860
        %v2888 = vunpack.c.h.b16 %v860
        %v2889 = vunpack.c.l.b16 %v861
        %v2890 = vunpack.c.h.b16 %v861
        %v2891 = vunpack.c.l.b16 %v862
        %v2892 = vunpack.c.h.b16 %v862
        %v2893 = vunpack.c.l.b16 %v863
        %v2894 = vunpack.c.h.b16 %v863
        %v2895 = vunpack.c.l.b16 %v864
        %v2896 = vunpack.c.h.b16 %v864
        %v2897 = vunpack.c.l.b16 %v865
        %v2898 = vunpack.c.h.b16 %v865
        %v2899 = vunpack.c.l.b16 %v866
        %v2900 = vunpack.c.h.b16 %v866
        %v2901 = vunpack.c.l.b16 %v867
        %v2902 = vunpack.c.h.b16 %v867
        %v2903 = vunpack.c.l.b16 %v868
        %v2904 = vunpack.c.h.b16 %v868
        %v2905 = vunpack.c.l.b16 %v869
        %v2906 = vunpack.c.h.b16 %v869
        %v2907 = vunpack.c.l.b16 %v870
        %v2908 = vunpack.c.h.b16 %v870
        %v2909 = vunpack.c.l.b16 %v871
        %v2910 = vunpack.c.h.b16 %v871
        %v2911 = vunpack.c.l.b16 %v872
        %v2912 = vunpack.c.h.b16 %v872
        %v2913 = vunpack.c.l.b16 %v873
        %v2914 = vunpack.c.h.b16 %v873
        %v2915 = vunpack.c.l.b16 %v874
        %v2916 = vunpack.c.h.b16 %v874
        %v2917 = vunpack.c.l.b16 %v875
        %v2918 = vunpack.c.h.b16 %v875
        %v2919 = vunpack.c.l.b16 %v876
        %v2920 = vunpack.c.h.b16 %v876
        %v2921 = vunpack.c.l.b16 %v877
        %v2922 = vunpack.c.h.b16 %v877
        %v2923 = vunpack.c.l.b16 %v878
        %v2924 = vunpack.c.h.b16 %v878
        %v2925 = vunpack.c.l.b16 %v879
        %v2926 = vunpack.c.h.b16 %v879
        %v2927 = vunpack.c.l.b16 %v880
        %v2928 = vunpack.c.h.b16 %v880
        %v2929 = vunpack.c.l.b16 %v881
        %v2930 = vunpack.c.h.b16 %v881
        %v2931 = vunpack.c.l.b16 %v882
        %v2932 = vunpack.c.h.b16 %v882
        %v2933 = vunpack.c.l.b16 %v883
        %v2934 = vunpack.c.h.b16 %v883
        %v2935 = vunpack.c.l.b16 %v884
        %v2936 = vunpack.c.h.b16 %v884
        %v2937 = vunpack.c.l.b16 %v885
        %v2938 = vunpack.c.h.b16 %v885
        %v2939 = vunpack.c.l.b16 %v886
        %v2940 = vunpack.c.h.b16 %v886
        %v2941 = vunpack.c.l.b16 %v887
        %v2942 = vunpack.c.h.b16 %v887
        %v2943 = vunpack.c.l.b16 %v888
        %v2944 = vunpack.c.h.b16 %v888
        %v2945 = vunpack.c.l.b16 %v889
        %v2946 = vunpack.c.h.b16 %v889
        %v2947 = vunpack.c.l.b16 %v890
        %v2948 = vunpack.c.h.b16 %v890
        %v2949 = vunpack.c.l.b16 %v891
        %v2950 = vunpack.c.h.b16 %v891
        %v2951 = vunpack.c.l.b16 %v892
        %v2952 = vunpack.c.h.b16 %v892
        %v2953 = vunpack.c.l.b16 %v893
        %v2954 = vunpack.c.h.b16 %v893
        %v2955 = vunpack.c.l.b16 %v894
        %v2956 = vunpack.c.h.b16 %v894
        %v2957 = vunpack.c.l.b16 %v895
        %v2958 = vunpack.c.h.b16 %v895
        %v2959 = vunpack.c.l.b16 %v896
        %v2960 = vunpack.c.h.b16 %v896
        %v2961 = vunpack.c.l.b16 %v897
        %v2962 = vunpack.c.h.b16 %v897
        %v2963 = vunpack.c.l.b16 %v898
        %v2964 = vunpack.c.h.b16 %v898
        %v2965 = vunpack.c.l.b16 %v899
        %v2966 = vunpack.c.h.b16 %v899
        %v2967 = vunpack.c.l.b16 %v900
        %v2968 = vunpack.c.h.b16 %v900
        %v2969 = vunpack.c.l.b16 %v901
        %v2970 = vunpack.c.h.b16 %v901
        %v2971 = vunpack.c.l.b16 %v902
        %v2972 = vunpack.c.h.b16 %v902
        %v2973 = vunpack.c.l.b16 %v903
        %v2974 = vunpack.c.h.b16 %v903
        %v2975 = vunpack.c.l.b16 %v904
        %v2976 = vunpack.c.h.b16 %v904
        %v2977 = vunpack.c.l.b16 %v905
        %v2978 = vunpack.c.h.b16 %v905
        %v2979 = vunpack.c.l.b16 %v906
        %v2980 = vunpack.c.h.b16 %v906
        %v2981 = vunpack.c.l.b16 %v907
        %v2982 = vunpack.c.h.b16 %v907
        %v2983 = vunpack.c.l.b16 %v908
        %v2984 = vunpack.c.h.b16 %v908
        %v2985 = vunpack.c.l.b16 %v909
        %v2986 = vunpack.c.h.b16 %v909
        %v2987 = vunpack.c.l.b16 %v910
        %v2988 = vunpack.c.h.b16 %v910
        %v2989 = vunpack.c.l.b16 %v911
        %v2990 = vunpack.c.h.b16 %v911
        %v2991 = vunpack.c.l.b16 %v912
        %v2992 = vunpack.c.h.b16 %v912
        %v2993 = vunpack.c.l.b16 %v913
        %v2994 = vunpack.c.h.b16 %v913
        %v2995 = vunpack.c.l.b16 %v914
        %v2996 = vunpack.c.h.b16 %v914
        %v2997 = vunpack.c.l.b16 %v915
        %v2998 = vunpack.c.h.b16 %v915
        %v2999 = vunpack.c.l.b16 %v916
        %v3000 = vunpack.c.h.b16 %v916
        %v3001 = vunpack.c.l.b16 %v917
        %v3002 = vunpack.c.h.b16 %v917
        %v3003 = vunpack.c.l.b16 %v918
        %v3004 = vunpack.c.h.b16 %v918
        %v3005 = vunpack.c.l.b16 %v919
        %v3006 = vunpack.c.h.b16 %v919
        %v3007 = vunpack.c.l.b16 %v920
        %v3008 = vunpack.c.h.b16 %v920
        %v3009 = vunpack.c.l.b16 %v921
        %v3010 = vunpack.c.h.b16 %v921
        %v3011 = vunpack.c.l.b16 %v922
        %v3012 = vunpack.c.h.b16 %v922
        %v3013 = vunpack.c.l.b16 %v923
        %v3014 = vunpack.c.h.b16 %v923
        %v3015 = vunpack.c.l.b16 %v924
        %v3016 = vunpack.c.h.b16 %v924
        %v3017 = vunpack.c.l.b16 %v925
        %v3018 = vunpack.c.h.b16 %v925
        %v3019 = vunpack.c.l.b16 %v926
        %v3020 = vunpack.c.h.b16 %v926
        %v3021 = vunpack.c.l.b16 %v927
        %v3022 = vunpack.c.h.b16 %v927
        %v3023 = vunpack.c.l.b16 %v928
        %v3024 = vunpack.c.h.b16 %v928
        %v3025 = vunpack.c.l.b16 %v929
        %v3026 = vunpack.c.h.b16 %v929
        %v3027 = vunpack.c.l.b16 %v930
        %v3028 = vunpack.c.h.b16 %v930
        %v3029 = vunpack.c.l.b16 %v931
        %v3030 = vunpack.c.h.b16 %v931
        %v3031 = vunpack.c.l.b16 %v932
        %v3032 = vunpack.c.h.b16 %v932
        %v3033 = vunpack.c.l.b16 %v933
        %v3034 = vunpack.c.h.b16 %v933
        %v3035 = vunpack.c.l.b16 %v934
        %v3036 = vunpack.c.h.b16 %v934
        %v3037 = vunpack.c.l.b16 %v935
        %v3038 = vunpack.c.h.b16 %v935
        %v3039 = vunpack.c.l.b16 %v936
        %v3040 = vunpack.c.h.b16 %v936
        %v3041 = vunpack.c.l.b16 %v937
        %v3042 = vunpack.c.h.b16 %v937
        %v3043 = vunpack.c.l.b16 %v938
        %v3044 = vunpack.c.h.b16 %v938
        %v3045 = vunpack.c.l.b16 %v939
        %v3046 = vunpack.c.h.b16 %v939
        %v3047 = vunpack.c.l.b16 %v940
        %v3048 = vunpack.c.h.b16 %v940
        %v3049 = vunpack.c.l.b16 %v941
        %v3050 = vunpack.c.h.b16 %v941
        %v3051 = vunpack.c.l.b16 %v942
        %v3052 = vunpack.c.h.b16 %v942
        %v3053 = vunpack.c.l.b16 %v943
        %v3054 = vunpack.c.h.b16 %v943
        %v3055 = vunpack.c.l.b16 %v944
        %v3056 = vunpack.c.h.b16 %v944
        %v3057 = vunpack.c.l.b16 %v945
        %v3058 = vunpack.c.h.b16 %v945
        %v3059 = vunpack.c.l.b16 %v946
        %v3060 = vunpack.c.h.b16 %v946
        %v3061 = vunpack.c.l.b16 %v947
        %v3062 = vunpack.c.h.b16 %v947
        %v3063 = vunpack.c.l.b16 %v948
        %v3064 = vunpack.c.h.b16 %v948
        %v3065 = vunpack.c.l.b16 %v949
        %v3066 = vunpack.c.h.b16 %v949
        %v3067 = vunpack.c.l.b16 %v950
        %v3068 = vunpack.c.h.b16 %v950
        %v3069 = vunpack.c.l.b16 %v951
        %v3070 = vunpack.c.h.b16 %v951
        %v3071 = vunpack.c.l.b16 %v952
        %v3072 = vunpack.c.h.b16 %v952
        %v3073 = vunpack.c.l.b16 %v953
        %v3074 = vunpack.c.h.b16 %v953
        %v3075 = vunpack.c.l.b16 %v954
        %v3076 = vunpack.c.h.b16 %v954
        %v3077 = vunpack.c.l.b16 %v955
        %v3078 = vunpack.c.h.b16 %v955
        %v3079 = vunpack.c.l.b16 %v956
        %v3080 = vunpack.c.h.b16 %v956
        %v3081 = vunpack.c.l.b16 %v957
        %v3082 = vunpack.c.h.b16 %v957
        %v3083 = vunpack.c.l.b16 %v958
        %v3084 = vunpack.c.h.b16 %v958
        %v3085 = vunpack.c.l.b16 %v959
        %v3086 = vunpack.c.h.b16 %v959
        %v3087 = vunpack.c.l.b16 %v960
        %v3088 = vunpack.c.h.b16 %v960
        %v3089 = vunpack.c.l.b16 %v961
        %v3090 = vunpack.c.h.b16 %v961
        %v3091 = vunpack.c.l.b16 %v962
        %v3092 = vunpack.c.h.b16 %v962
        %v3093 = vunpack.c.l.b16 %v963
        %v3094 = vunpack.c.h.b16 %v963
        %v3095 = vunpack.c.l.b16 %v964
        %v3096 = vunpack.c.h.b16 %v964
        %v3097 = vunpack.c.l.b16 %v965
        %v3098 = vunpack.c.h.b16 %v965
        %v3099 = vunpack.c.l.b16 %v966
        %v3100 = vunpack.c.h.b16 %v966
        %v3101 = vunpack.c.l.b16 %v967
        %v3102 = vunpack.c.h.b16 %v967
        %v3103 = vunpack.c.l.b16 %v968
        %v3104 = vunpack.c.h.b16 %v968
        %v3105 = vunpack.c.l.b16 %v969
        %v3106 = vunpack.c.h.b16 %v969
        %v3107 = vunpack.c.l.b16 %v970
        %v3108 = vunpack.c.h.b16 %v970
        %v3109 = vunpack.c.l.b16 %v971
        %v3110 = vunpack.c.h.b16 %v971
        %v3111 = vunpack.c.l.b16 %v972
        %v3112 = vunpack.c.h.b16 %v972
        %v3113 = vunpack.c.l.b16 %v973
        %v3114 = vunpack.c.h.b16 %v973
        %v3115 = vunpack.c.l.b16 %v974
        %v3116 = vunpack.c.h.b16 %v974
        %v3117 = vunpack.c.l.b16 %v975
        %v3118 = vunpack.c.h.b16 %v975
        %v3119 = vunpack.c.l.b16 %v976
        %v3120 = vunpack.c.h.b16 %v976
        %v3121 = vunpack.c.l.b16 %v977
        %v3122 = vunpack.c.h.b16 %v977
        %v3123 = vunpack.c.l.b16 %v978
        %v3124 = vunpack.c.h.b16 %v978
        %v3125 = vunpack.c.l.b16 %v979
        %v3126 = vunpack.c.h.b16 %v979
        %v3127 = vunpack.c.l.b16 %v980
        %v3128 = vunpack.c.h.b16 %v980
        %v3129 = vunpack.c.l.b16 %v981
        %v3130 = vunpack.c.h.b16 %v981
        %v3131 = vunpack.c.l.b16 %v982
        %v3132 = vunpack.c.h.b16 %v982
        %v3133 = vunpack.c.l.b16 %v983
        %v3134 = vunpack.c.h.b16 %v983
        %v3135 = vunpack.c.l.b16 %v984
        %v3136 = vunpack.c.h.b16 %v984
        %v3137 = vunpack.c.l.b16 %v985
        %v3138 = vunpack.c.h.b16 %v985
        %v3139 = vunpack.c.l.b16 %v986
        %v3140 = vunpack.c.h.b16 %v986
        %v3141 = vunpack.c.l.b16 %v987
        %v3142 = vunpack.c.h.b16 %v987
        %v3143 = vunpack.c.l.b16 %v988
        %v3144 = vunpack.c.h.b16 %v988
        %v3145 = vunpack.c.l.b16 %v989
        %v3146 = vunpack.c.h.b16 %v989
        %v3147 = vunpack.c.l.b16 %v990
        %v3148 = vunpack.c.h.b16 %v990
        %v3149 = vunpack.c.l.b16 %v991
        %v3150 = vunpack.c.h.b16 %v991
        %v3151 = vunpack.c.l.b16 %v992
        %v3152 = vunpack.c.h.b16 %v992
        %v3153 = vunpack.c.l.b16 %v993
        %v3154 = vunpack.c.h.b16 %v993
        %v3155 = vunpack.c.l.b16 %v994
        %v3156 = vunpack.c.h.b16 %v994
        %v3157 = vunpack.c.l.b16 %v995
        %v3158 = vunpack.c.h.b16 %v995
        %v3159 = vunpack.c.l.b16 %v996
        %v3160 = vunpack.c.h.b16 %v996
        %v3161 = vunpack.c.l.b16 %v997
        %v3162 = vunpack.c.h.b16 %v997
        %v3163 = vunpack.c.l.b16 %v998
        %v3164 = vunpack.c.h.b16 %v998
        %v3165 = vunpack.c.l.b16 %v999
        %v3166 = vunpack.c.h.b16 %v999
        %v3167 = vunpack.c.l.b16 %v1000
        %v3168 = vunpack.c.h.b16 %v1000
        %v3169 = vunpack.c.l.b16 %v1001
        %v3170 = vunpack.c.h.b16 %v1001
        %v3171 = vunpack.c.l.b16 %v1002
        %v3172 = vunpack.c.h.b16 %v1002
        %v3173 = vunpack.c.l.b16 %v1003
        %v3174 = vunpack.c.h.b16 %v1003
        %v3175 = vunpack.c.l.b16 %v1004
        %v3176 = vunpack.c.h.b16 %v1004
        %v3177 = vunpack.c.l.b16 %v1005
        %v3178 = vunpack.c.h.b16 %v1005
        %v3179 = vunpack.c.l.b16 %v1006
        %v3180 = vunpack.c.h.b16 %v1006
        %v3181 = vunpack.c.l.b16 %v1007
        %v3182 = vunpack.c.h.b16 %v1007
        %v3183 = vunpack.c.l.b16 %v1008
        %v3184 = vunpack.c.h.b16 %v1008
        %v3185 = vunpack.c.l.b16 %v1009
        %v3186 = vunpack.c.h.b16 %v1009
        %v3187 = vunpack.c.l.b16 %v1010
        %v3188 = vunpack.c.h.b16 %v1010
        %v3189 = vunpack.c.l.b16 %v1011
        %v3190 = vunpack.c.h.b16 %v1011
        %v3191 = vunpack.c.l.b16 %v1012
        %v3192 = vunpack.c.h.b16 %v1012
        %v3193 = vunpack.c.l.b16 %v1013
        %v3194 = vunpack.c.h.b16 %v1013
        %v3195 = vunpack.c.l.b16 %v1014
        %v3196 = vunpack.c.h.b16 %v1014
        %v3197 = vunpack.c.l.b16 %v1015
        %v3198 = vunpack.c.h.b16 %v1015
        %v3199 = vunpack.c.l.b16 %v1016
        %v3200 = vunpack.c.h.b16 %v1016
        %v3201 = vunpack.c.l.b16 %v1017
        %v3202 = vunpack.c.h.b16 %v1017
        %v3203 = vunpack.c.l.b16 %v1018
        %v3204 = vunpack.c.h.b16 %v1018
        %v3205 = vunpack.c.l.b16 %v1019
        %v3206 = vunpack.c.h.b16 %v1019
        %v3207 = vunpack.c.l.b16 %v1020
        %v3208 = vunpack.c.h.b16 %v1020
        %v3209 = vunpack.c.l.b16 %v1021
        %v3210 = vunpack.c.h.b16 %v1021
        %v3211 = vpack.c.b16 %v1807, %v1803
        %v3212 = vpack.c.b16 %v1808, %v1804
        %v3213 = vpack.c.b16 %v1809, %v1805
        %v3214 = vpack.c.b16 %v1810, %v1806
        %v3215 = vpack.c.b16 %v1815, %v1811
        %v3216 = vpack.c.b16 %v1816, %v1812
        %v3217 = vpack.c.b16 %v1817, %v1813
        %v3218 = vpack.c.b16 %v1818, %v1814
        %v3219 = vpack.c.b16 %v1823, %v1819
        %v3220 = vpack.c.b16 %v1824, %v1820
        %v3221 = vpack.c.b16 %v1825, %v1821
        %v3222 = vpack.c.b16 %v1826, %v1822
        %v3223 = vpack.c.b16 %v1831, %v1827
        %v3224 = vpack.c.b16 %v1832, %v1828
        %v3225 = vpack.c.b16 %v1833, %v1829
        %v3226 = vpack.c.b16 %v1834, %v1830
        %v3227 = vpack.c.b16 %v1839, %v1835
        %v3228 = vpack.c.b16 %v1840, %v1836
        %v3229 = vpack.c.b16 %v1841, %v1837
        %v3230 = vpack.c.b16 %v1842, %v1838
        %v3231 = vpack.c.b16 %v1847, %v1843
        %v3232 = vpack.c.b16 %v1848, %v1844
        %v3233 = vpack.c.b16 %v1849, %v1845
        %v3234 = vpack.c.b16 %v1850, %v1846
        %v3235 = vpack.c.b16 %v1855, %v1851
        %v3236 = vpack.c.b16 %v1856, %v1852
        %v3237 = vpack.c.b16 %v1857, %v1853
        %v3238 = vpack.c.b16 %v1858, %v1854
        %v3239 = vpack.c.b16 %v1863, %v1859
        %v3240 = vpack.c.b16 %v1864, %v1860
        %v3241 = vpack.c.b16 %v1865, %v1861
        %v3242 = vpack.c.b16 %v1866, %v1862
        %v3243 = vpack.c.b16 %v1871, %v1867
        %v3244 = vpack.c.b16 %v1872, %v1868
        %v3245 = vpack.c.b16 %v1873, %v1869
        %v3246 = vpack.c.b16 %v1874, %v1870
        %v3247 = vpack.c.b16 %v1879, %v1875
        %v3248 = vpack.c.b16 %v1880, %v1876
        %v3249 = vpack.c.b16 %v1881, %v1877
        %v3250 = vpack.c.b16 %v1882, %v1878
        %v3251 = vpack.c.b16 %v1887, %v1883
        %v3252 = vpack.c.b16 %v1888, %v1884
        %v3253 = vpack.c.b16 %v1889, %v1885
        %v3254 = vpack.c.b16 %v1890, %v1886
        %v3255 = vpack.c.b16 %v1895, %v1891
        %v3256 = vpack.c.b16 %v1896, %v1892
        %v3257 = vpack.c.b16 %v1897, %v1893
        %v3258 = vpack.c.b16 %v1898, %v1894
        %v3259 = vpack.c.b16 %v1903, %v1899
        %v3260 = vpack.c.b16 %v1904, %v1900
        %v3261 = vpack.c.b16 %v1905, %v1901
        %v3262 = vpack.c.b16 %v1906, %v1902
        %v3263 = vpack.c.b16 %v1911, %v1907
        %v3264 = vpack.c.b16 %v1912, %v1908
        %v3265 = vpack.c.b16 %v1913, %v1909
        %v3266 = vpack.c.b16 %v1914, %v1910
        %v3267 = vpack.c.b16 %v1919, %v1915
        %v3268 = vpack.c.b16 %v1920, %v1916
        %v3269 = vpack.c.b16 %v1921, %v1917
        %v3270 = vpack.c.b16 %v1922, %v1918
        %v3271 = vpack.c.b16 %v1927, %v1923
        %v3272 = vpack.c.b16 %v1928, %v1924
        %v3273 = vpack.c.b16 %v1929, %v1925
        %v3274 = vpack.c.b16 %v1930, %v1926
        %v3275 = vpack.c.b16 %v1935, %v1931
        %v3276 = vpack.c.b16 %v1936, %v1932
        %v3277 = vpack.c.b16 %v1937, %v1933
        %v3278 = vpack.c.b16 %v1938, %v1934
        %v3279 = vpack.c.b16 %v1943, %v1939
        %v3280 = vpack.c.b16 %v1944, %v1940
        %v3281 = vpack.c.b16 %v1945, %v1941
        %v3282 = vpack.c.b16 %v1946, %v1942
        %v3283 = vpack.c.b16 %v1951, %v1947
        %v3284 = vpack.c.b16 %v1952, %v1948
        %v3285 = vpack.c.b16 %v1953, %v1949
        %v3286 = vpack.c.b16 %v1954, %v1950
        %v3287 = vpack.c.b16 %v1959, %v1955
        %v3288 = vpack.c.b16 %v1960, %v1956
        %v3289 = vpack.c.b16 %v1961, %v1957
        %v3290 = vpack.c.b16 %v1962, %v1958
        %v3291 = vpack.c.b16 %v1967, %v1963
        %v3292 = vpack.c.b16 %v1968, %v1964
        %v3293 = vpack.c.b16 %v1969, %v1965
        %v3294 = vpack.c.b16 %v1970, %v1966
        %v3295 = vpack.c.b16 %v1975, %v1971
        %v3296 = vpack.c.b16 %v1976, %v1972
        %v3297 = vpack.c.b16 %v1977, %v1973
        %v3298 = vpack.c.b16 %v1978, %v1974
        %v3299 = vpack.c.b16 %v1983, %v1979
        %v3300 = vpack.c.b16 %v1984, %v1980
        %v3301 = vpack.c.b16 %v1985, %v1981
        %v3302 = vpack.c.b16 %v1986, %v1982
        %v3303 = vpack.c.b16 %v1991, %v1987
        %v3304 = vpack.c.b16 %v1992, %v1988
        %v3305 = vpack.c.b16 %v1993, %v1989
        %v3306 = vpack.c.b16 %v1994, %v1990
        %v3307 = vpack.c.b16 %v1999, %v1995
        %v3308 = vpack.c.b16 %v2000, %v1996
        %v3309 = vpack.c.b16 %v2001, %v1997
        %v3310 = vpack.c.b16 %v2002, %v1998
        %v3311 = vpack.c.b16 %v2007, %v2003
        %v3312 = vpack.c.b16 %v2008, %v2004
        %v3313 = vpack.c.b16 %v2009, %v2005
        %v3314 = vpack.c.b16 %v2010, %v2006
        %v3315 = vpack.c.b16 %v2015, %v2011
        %v3316 = vpack.c.b16 %v2016, %v2012
        %v3317 = vpack.c.b16 %v2017, %v2013
        %v3318 = vpack.c.b16 %v2018, %v2014
        %v3319 = vpack.c.b16 %v2023, %v2019
        %v3320 = vpack.c.b16 %v2024, %v2020
        %v3321 = vpack.c.b16 %v2025, %v2021
        %v3322 = vpack.c.b16 %v2026, %v2022
        %v3323 = vpack.c.b16 %v2031, %v2027
        %v3324 = vpack.c.b16 %v2032, %v2028
        %v3325 = vpack.c.b16 %v2033, %v2029
        %v3326 = vpack.c.b16 %v2034, %v2030
        %v3327 = vpack.c.b16 %v2039, %v2035
        %v3328 = vpack.c.b16 %v2040, %v2036
        %v3329 = vpack.c.b16 %v2041, %v2037
        %v3330 = vpack.c.b16 %v2042, %v2038
        %v3331 = vpack.c.b16 %v2047, %v2043
        %v3332 = vpack.c.b16 %v2048, %v2044
        %v3333 = vpack.c.b16 %v2049, %v2045
        %v3334 = vpack.c.b16 %v2050, %v2046
        %v3335 = vpack.c.b16 %v2055, %v2051
        %v3336 = vpack.c.b16 %v2056, %v2052
        %v3337 = vpack.c.b16 %v2057, %v2053
        %v3338 = vpack.c.b16 %v2058, %v2054
        %v3339 = vpack.c.b16 %v2063, %v2059
        %v3340 = vpack.c.b16 %v2064, %v2060
        %v3341 = vpack.c.b16 %v2065, %v2061
        %v3342 = vpack.c.b16 %v2066, %v2062
        %v3343 = vpack.c.b16 %v2071, %v2067
        %v3344 = vpack.c.b16 %v2072, %v2068
        %v3345 = vpack.c.b16 %v2073, %v2069
        %v3346 = vpack.c.b16 %v2074, %v2070
        %v3347 = vpack.c.b16 %v2079, %v2075
        %v3348 = vpack.c.b16 %v2080, %v2076
        %v3349 = vpack.c.b16 %v2081, %v2077
        %v3350 = vpack.c.b16 %v2082, %v2078
        %v3351 = vpack.c.b16 %v2087, %v2083
        %v3352 = vpack.c.b16 %v2088, %v2084
        %v3353 = vpack.c.b16 %v2089, %v2085
        %v3354 = vpack.c.b16 %v2090, %v2086
        %v3355 = vpack.c.b16 %v2095, %v2091
        %v3356 = vpack.c.b16 %v2096, %v2092
        %v3357 = vpack.c.b16 %v2097, %v2093
        %v3358 = vpack.c.b16 %v2098, %v2094
        %v3359 = vpack.c.b16 %v2103, %v2099
        %v3360 = vpack.c.b16 %v2104, %v2100
        %v3361 = vpack.c.b16 %v2105, %v2101
        %v3362 = vpack.c.b16 %v2106, %v2102
        %v3363 = vpack.c.b16 %v2111, %v2107
        %v3364 = vpack.c.b16 %v2112, %v2108
        %v3365 = vpack.c.b16 %v2113, %v2109
        %v3366 = vpack.c.b16 %v2114, %v2110
        %v3367 = vpack.c.b16 %v2119, %v2115
        %v3368 = vpack.c.b16 %v2120, %v2116
        %v3369 = vpack.c.b16 %v2121, %v2117
        %v3370 = vpack.c.b16 %v2122, %v2118
        %v3371 = vpack.c.b16 %v2127, %v2123
        %v3372 = vpack.c.b16 %v2128, %v2124
        %v3373 = vpack.c.b16 %v2129, %v2125
        %v3374 = vpack.c.b16 %v2130, %v2126
        %v3375 = vpack.c.b16 %v2135, %v2131
        %v3376 = vpack.c.b16 %v2136, %v2132
        %v3377 = vpack.c.b16 %v2137, %v2133
        %v3378 = vpack.c.b16 %v2138, %v2134
        %v3379 = vpack.c.b16 %v2143, %v2139
        %v3380 = vpack.c.b16 %v2144, %v2140
        %v3381 = vpack.c.b16 %v2145, %v2141
        %v3382 = vpack.c.b16 %v2146, %v2142
        %v3383 = vpack.c.b16 %v2151, %v2147
        %v3384 = vpack.c.b16 %v2152, %v2148
        %v3385 = vpack.c.b16 %v2153, %v2149
        %v3386 = vpack.c.b16 %v2154, %v2150
        %v3387 = vpack.c.b16 %v2159, %v2155
        %v3388 = vpack.c.b16 %v2160, %v2156
        %v3389 = vpack.c.b16 %v2161, %v2157
        %v3390 = vpack.c.b16 %v2162, %v2158
        %v3391 = vpack.c.b16 %v2167, %v2163
        %v3392 = vpack.c.b16 %v2168, %v2164
        %v3393 = vpack.c.b16 %v2169, %v2165
        %v3394 = vpack.c.b16 %v2170, %v2166
        %v3395 = vpack.c.b16 %v2175, %v2171
        %v3396 = vpack.c.b16 %v2176, %v2172
        %v3397 = vpack.c.b16 %v2177, %v2173
        %v3398 = vpack.c.b16 %v2178, %v2174
        %v3399 = vpack.c.b16 %v2183, %v2179
        %v3400 = vpack.c.b16 %v2184, %v2180
        %v3401 = vpack.c.b16 %v2185, %v2181
        %v3402 = vpack.c.b16 %v2186, %v2182
        %v3403 = vpack.c.b16 %v2191, %v2187
        %v3404 = vpack.c.b16 %v2192, %v2188
        %v3405 = vpack.c.b16 %v2193, %v2189
        %v3406 = vpack.c.b16 %v2194, %v2190
        %v3407 = vpack.c.b16 %v2199, %v2195
        %v3408 = vpack.c.b16 %v2200, %v2196
        %v3409 = vpack.c.b16 %v2201, %v2197
        %v3410 = vpack.c.b16 %v2202, %v2198
        %v3411 = vpack.c.b16 %v2207, %v2203
        %v3412 = vpack.c.b16 %v2208, %v2204
        %v3413 = vpack.c.b16 %v2209, %v2205
        %v3414 = vpack.c.b16 %v2210, %v2206
        %v3415 = vpack.c.b16 %v2215, %v2211
        %v3416 = vpack.c.b16 %v2216, %v2212
        %v3417 = vpack.c.b16 %v2217, %v2213
        %v3418 = vpack.c.b16 %v2218, %v2214
        %v3419 = vpack.c.b16 %v2223, %v2219
        %v3420 = vpack.c.b16 %v2224, %v2220
        %v3421 = vpack.c.b16 %v2225, %v2221
        %v3422 = vpack.c.b16 %v2226, %v2222
        %v3423 = vpack.c.b16 %v2231, %v2227
        %v3424 = vpack.c.b16 %v2232, %v2228
        %v3425 = vpack.c.b16 %v2233, %v2229
        %v3426 = vpack.c.b16 %v2234, %v2230
        %v3427 = vpack.c.b16 %v2239, %v2235
        %v3428 = vpack.c.b16 %v2240, %v2236
        %v3429 = vpack.c.b16 %v2241, %v2237
        %v3430 = vpack.c.b16 %v2242, %v2238
        %v3431 = vpack.c.b16 %v2247, %v2243
        %v3432 = vpack.c.b16 %v2248, %v2244
        %v3433 = vpack.c.b16 %v2249, %v2245
        %v3434 = vpack.c.b16 %v2250, %v2246
        %v3435 = vpack.c.b16 %v2255, %v2251
        %v3436 = vpack.c.b16 %v2256, %v2252
        %v3437 = vpack.c.b16 %v2257, %v2253
        %v3438 = vpack.c.b16 %v2258, %v2254
        %v3439 = vpack.c.b16 %v2263, %v2259
        %v3440 = vpack.c.b16 %v2264, %v2260
        %v3441 = vpack.c.b16 %v2265, %v2261
        %v3442 = vpack.c.b16 %v2266, %v2262
        %v3443 = vpack.c.b16 %v2271, %v2267
        %v3444 = vpack.c.b16 %v2272, %v2268
        %v3445 = vpack.c.b16 %v2273, %v2269
        %v3446 = vpack.c.b16 %v2274, %v2270
        %v3447 = vpack.c.b16 %v2279, %v2275
        %v3448 = vpack.c.b16 %v2280, %v2276
        %v3449 = vpack.c.b16 %v2281, %v2277
        %v3450 = vpack.c.b16 %v2282, %v2278
        %v3451 = vpack.c.b16 %v2287, %v2283
        %v3452 = vpack.c.b16 %v2288, %v2284
        %v3453 = vpack.c.b16 %v2289, %v2285
        %v3454 = vpack.c.b16 %v2290, %v2286
        %v3455 = vpack.c.b16 %v2295, %v2291
        %v3456 = vpack.c.b16 %v2296, %v2292
        %v3457 = vpack.c.b16 %v2297, %v2293
        %v3458 = vpack.c.b16 %v2298, %v2294
        %v3459 = vpack.c.b16 %v2303, %v2299
        %v3460 = vpack.c.b16 %v2304, %v2300
        %v3461 = vpack.c.b16 %v2305, %v2301
        %v3462 = vpack.c.b16 %v2306, %v2302
        %v3463 = vpack.c.b16 %v2311, %v2307
        %v3464 = vpack.c.b16 %v2312, %v2308
        %v3465 = vpack.c.b16 %v2313, %v2309
        %v3466 = vpack.c.b16 %v2314, %v2310
        %v3467 = vpack.c.b16 %v2319, %v2315
        %v3468 = vpack.c.b16 %v2320, %v2316
        %v3469 = vpack.c.b16 %v2321, %v2317
        %v3470 = vpack.c.b16 %v2322, %v2318
        %v3471 = vpack.c.b16 %v2327, %v2323
        %v3472 = vpack.c.b16 %v2328, %v2324
        %v3473 = vpack.c.b16 %v2329, %v2325
        %v3474 = vpack.c.b16 %v2330, %v2326
        %v3475 = vpack.c.b16 %v2335, %v2331
        %v3476 = vpack.c.b16 %v2336, %v2332
        %v3477 = vpack.c.b16 %v2337, %v2333
        %v3478 = vpack.c.b16 %v2338, %v2334
        %v3479 = vpack.c.b16 %v2343, %v2339
        %v3480 = vpack.c.b16 %v2344, %v2340
        %v3481 = vpack.c.b16 %v2345, %v2341
        %v3482 = vpack.c.b16 %v2346, %v2342
        %v3483 = vpack.c.b16 %v2351, %v2347
        %v3484 = vpack.c.b16 %v2352, %v2348
        %v3485 = vpack.c.b16 %v2353, %v2349
        %v3486 = vpack.c.b16 %v2354, %v2350
        %v3487 = vpack.c.b16 %v2359, %v2355
        %v3488 = vpack.c.b16 %v2360, %v2356
        %v3489 = vpack.c.b16 %v2361, %v2357
        %v3490 = vpack.c.b16 %v2362, %v2358
        %v3491 = vpack.c.b16 %v2367, %v2363
        %v3492 = vpack.c.b16 %v2368, %v2364
        %v3493 = vpack.c.b16 %v2369, %v2365
        %v3494 = vpack.c.b16 %v2370, %v2366
        %v3495 = vpack.c.b16 %v2375, %v2371
        %v3496 = vpack.c.b16 %v2376, %v2372
        %v3497 = vpack.c.b16 %v2377, %v2373
        %v3498 = vpack.c.b16 %v2378, %v2374
        %v3499 = vpack.c.b16 %v2383, %v2379
        %v3500 = vpack.c.b16 %v2384, %v2380
        %v3501 = vpack.c.b16 %v2385, %v2381
        %v3502 = vpack.c.b16 %v2386, %v2382
        %v3503 = vpack.c.b16 %v2391, %v2387
        %v3504 = vpack.c.b16 %v2392, %v2388
        %v3505 = vpack.c.b16 %v2393, %v2389
        %v3506 = vpack.c.b16 %v2394, %v2390
        %v3507 = vpack.c.b16 %v2399, %v2395
        %v3508 = vpack.c.b16 %v2400, %v2396
        %v3509 = vpack.c.b16 %v2401, %v2397
        %v3510 = vpack.c.b16 %v2402, %v2398
        %v3511 = vpack.c.b16 %v2407, %v2403
        %v3512 = vpack.c.b16 %v2408, %v2404
        %v3513 = vpack.c.b16 %v2409, %v2405
        %v3514 = vpack.c.b16 %v2410, %v2406
        %v3515 = vpack.c.b16 %v2415, %v2411
        %v3516 = vpack.c.b16 %v2416, %v2412
        %v3517 = vpack.c.b16 %v2417, %v2413
        %v3518 = vpack.c.b16 %v2418, %v2414
        %v3519 = vpack.c.b16 %v2423, %v2419
        %v3520 = vpack.c.b16 %v2424, %v2420
        %v3521 = vpack.c.b16 %v2425, %v2421
        %v3522 = vpack.c.b16 %v2426, %v2422
        %v3523 = vpack.c.b16 %v2431, %v2427
        %v3524 = vpack.c.b16 %v2432, %v2428
        %v3525 = vpack.c.b16 %v2433, %v2429
        %v3526 = vpack.c.b16 %v2434, %v2430
        %v3527 = vpack.c.b16 %v2439, %v2435
        %v3528 = vpack.c.b16 %v2440, %v2436
        %v3529 = vpack.c.b16 %v2441, %v2437
        %v3530 = vpack.c.b16 %v2442, %v2438
        %v3531 = vpack.c.b16 %v2447, %v2443
        %v3532 = vpack.c.b16 %v2448, %v2444
        %v3533 = vpack.c.b16 %v2449, %v2445
        %v3534 = vpack.c.b16 %v2450, %v2446
        %v3535 = vpack.c.b16 %v2455, %v2451
        %v3536 = vpack.c.b16 %v2456, %v2452
        %v3537 = vpack.c.b16 %v2457, %v2453
        %v3538 = vpack.c.b16 %v2458, %v2454
        %v3539 = vpack.c.b16 %v2463, %v2459
        %v3540 = vpack.c.b16 %v2464, %v2460
        %v3541 = vpack.c.b16 %v2465, %v2461
        %v3542 = vpack.c.b16 %v2466, %v2462
        %v3543 = vpack.c.b16 %v2471, %v2467
        %v3544 = vpack.c.b16 %v2472, %v2468
        %v3545 = vpack.c.b16 %v2473, %v2469
        %v3546 = vpack.c.b16 %v2474, %v2470
        %v3547 = vpack.c.b16 %v2479, %v2475
        %v3548 = vpack.c.b16 %v2480, %v2476
        %v3549 = vpack.c.b16 %v2481, %v2477
        %v3550 = vpack.c.b16 %v2482, %v2478
        %v3551 = vpack.c.b16 %v2487, %v2483
        %v3552 = vpack.c.b16 %v2488, %v2484
        %v3553 = vpack.c.b16 %v2489, %v2485
        %v3554 = vpack.c.b16 %v2490, %v2486
        %v3555 = vpack.c.b16 %v2495, %v2491
        %v3556 = vpack.c.b16 %v2496, %v2492
        %v3557 = vpack.c.b16 %v2497, %v2493
        %v3558 = vpack.c.b16 %v2498, %v2494
        %v3559 = vpack.c.b16 %v2503, %v2499
        %v3560 = vpack.c.b16 %v2504, %v2500
        %v3561 = vpack.c.b16 %v2505, %v2501
        %v3562 = vpack.c.b16 %v2506, %v2502
        %v3563 = vpack.c.b16 %v2511, %v2507
        %v3564 = vpack.c.b16 %v2512, %v2508
        %v3565 = vpack.c.b16 %v2513, %v2509
        %v3566 = vpack.c.b16 %v2514, %v2510
        %v3567 = vpack.c.b16 %v2519, %v2515
        %v3568 = vpack.c.b16 %v2520, %v2516
        %v3569 = vpack.c.b16 %v2521, %v2517
        %v3570 = vpack.c.b16 %v2522, %v2518
        %v3571 = vpack.c.b16 %v2527, %v2523
        %v3572 = vpack.c.b16 %v2528, %v2524
        %v3573 = vpack.c.b16 %v2529, %v2525
        %v3574 = vpack.c.b16 %v2530, %v2526
        %v3575 = vpack.c.b16 %v2535, %v2531
        %v3576 = vpack.c.b16 %v2536, %v2532
        %v3577 = vpack.c.b16 %v2537, %v2533
        %v3578 = vpack.c.b16 %v2538, %v2534
        %v3579 = vpack.c.b16 %v2543, %v2539
        %v3580 = vpack.c.b16 %v2544, %v2540
        %v3581 = vpack.c.b16 %v2545, %v2541
        %v3582 = vpack.c.b16 %v2546, %v2542
        %v3583 = vpack.c.b16 %v2551, %v2547
        %v3584 = vpack.c.b16 %v2552, %v2548
        %v3585 = vpack.c.b16 %v2553, %v2549
        %v3586 = vpack.c.b16 %v2554, %v2550
        %v3587 = vpack.c.b16 %v2559, %v2555
        %v3588 = vpack.c.b16 %v2560, %v2556
        %v3589 = vpack.c.b16 %v2561, %v2557
        %v3590 = vpack.c.b16 %v2562, %v2558
        %v3591 = vpack.c.b16 %v2567, %v2563
        %v3592 = vpack.c.b16 %v2568, %v2564
        %v3593 = vpack.c.b16 %v2569, %v2565
        %v3594 = vpack.c.b16 %v2570, %v2566
        %v3595 = vpack.c.b16 %v2575, %v2571
        %v3596 = vpack.c.b16 %v2576, %v2572
        %v3597 = vpack.c.b16 %v2577, %v2573
        %v3598 = vpack.c.b16 %v2578, %v2574
        %v3599 = vpack.c.b16 %v2583, %v2579
        %v3600 = vpack.c.b16 %v2584, %v2580
        %v3601 = vpack.c.b16 %v2585, %v2581
        %v3602 = vpack.c.b16 %v2586, %v2582
        %v3603 = vpack.c.b16 %v2591, %v2587
        %v3604 = vpack.c.b16 %v2592, %v2588
        %v3605 = vpack.c.b16 %v2593, %v2589
        %v3606 = vpack.c.b16 %v2594, %v2590
        %v3607 = vpack.c.b16 %v2599, %v2595
        %v3608 = vpack.c.b16 %v2600, %v2596
        %v3609 = vpack.c.b16 %v2601, %v2597
        %v3610 = vpack.c.b16 %v2602, %v2598
        %v3611 = vpack.c.b16 %v2607, %v2603
        %v3612 = vpack.c.b16 %v2608, %v2604
        %v3613 = vpack.c.b16 %v2609, %v2605
        %v3614 = vpack.c.b16 %v2610, %v2606
        %v3615 = vpack.c.b16 %v2615, %v2611
        %v3616 = vpack.c.b16 %v2616, %v2612
        %v3617 = vpack.c.b16 %v2617, %v2613
        %v3618 = vpack.c.b16 %v2618, %v2614
        %v3619 = vpack.c.b16 %v2623, %v2619
        %v3620 = vpack.c.b16 %v2624, %v2620
        %v3621 = vpack.c.b16 %v2625, %v2621
        %v3622 = vpack.c.b16 %v2626, %v2622
        %v3623 = vpack.c.b16 %v2631, %v2627
        %v3624 = vpack.c.b16 %v2632, %v2628
        %v3625 = vpack.c.b16 %v2633, %v2629
        %v3626 = vpack.c.b16 %v2634, %v2630
        %v3627 = vpack.c.b16 %v2639, %v2635
        %v3628 = vpack.c.b16 %v2640, %v2636
        %v3629 = vpack.c.b16 %v2641, %v2637
        %v3630 = vpack.c.b16 %v2642, %v2638
        %v3631 = vpack.c.b16 %v2647, %v2643
        %v3632 = vpack.c.b16 %v2648, %v2644
        %v3633 = vpack.c.b16 %v2649, %v2645
        %v3634 = vpack.c.b16 %v2650, %v2646
        %v3635 = vpack.c.b16 %v2655, %v2651
        %v3636 = vpack.c.b16 %v2656, %v2652
        %v3637 = vpack.c.b16 %v2657, %v2653
        %v3638 = vpack.c.b16 %v2658, %v2654
        %v3639 = vpack.c.b16 %v2663, %v2659
        %v3640 = vpack.c.b16 %v2664, %v2660
        %v3641 = vpack.c.b16 %v2665, %v2661
        %v3642 = vpack.c.b16 %v2666, %v2662
        %v3643 = vpack.c.b16 %v2671, %v2667
        %v3644 = vpack.c.b16 %v2672, %v2668
        %v3645 = vpack.c.b16 %v2673, %v2669
        %v3646 = vpack.c.b16 %v2674, %v2670
        %v3647 = vpack.c.b16 %v2679, %v2675
        %v3648 = vpack.c.b16 %v2680, %v2676
        %v3649 = vpack.c.b16 %v2681, %v2677
        %v3650 = vpack.c.b16 %v2682, %v2678
        %v3651 = vpack.c.b16 %v2687, %v2683
        %v3652 = vpack.c.b16 %v2688, %v2684
        %v3653 = vpack.c.b16 %v2689, %v2685
        %v3654 = vpack.c.b16 %v2690, %v2686
        %v3655 = vpack.c.b16 %v2695, %v2691
        %v3656 = vpack.c.b16 %v2696, %v2692
        %v3657 = vpack.c.b16 %v2697, %v2693
        %v3658 = vpack.c.b16 %v2698, %v2694
        %v3659 = vpack.c.b16 %v2703, %v2699
        %v3660 = vpack.c.b16 %v2704, %v2700
        %v3661 = vpack.c.b16 %v2705, %v2701
        %v3662 = vpack.c.b16 %v2706, %v2702
        %v3663 = vpack.c.b16 %v2711, %v2707
        %v3664 = vpack.c.b16 %v2712, %v2708
        %v3665 = vpack.c.b16 %v2713, %v2709
        %v3666 = vpack.c.b16 %v2714, %v2710
        %v3667 = vpack.c.b16 %v2719, %v2715
        %v3668 = vpack.c.b16 %v2720, %v2716
        %v3669 = vpack.c.b16 %v2721, %v2717
        %v3670 = vpack.c.b16 %v2722, %v2718
        %v3671 = vpack.c.b16 %v2727, %v2723
        %v3672 = vpack.c.b16 %v2728, %v2724
        %v3673 = vpack.c.b16 %v2729, %v2725
        %v3674 = vpack.c.b16 %v2730, %v2726
        %v3675 = vpack.c.b16 %v2735, %v2731
        %v3676 = vpack.c.b16 %v2736, %v2732
        %v3677 = vpack.c.b16 %v2737, %v2733
        %v3678 = vpack.c.b16 %v2738, %v2734
        %v3679 = vpack.c.b16 %v2743, %v2739
        %v3680 = vpack.c.b16 %v2744, %v2740
        %v3681 = vpack.c.b16 %v2745, %v2741
        %v3682 = vpack.c.b16 %v2746, %v2742
        %v3683 = vpack.c.b16 %v2751, %v2747
        %v3684 = vpack.c.b16 %v2752, %v2748
        %v3685 = vpack.c.b16 %v2753, %v2749
        %v3686 = vpack.c.b16 %v2754, %v2750
        %v3687 = vpack.c.b16 %v2759, %v2755
        %v3688 = vpack.c.b16 %v2760, %v2756
        %v3689 = vpack.c.b16 %v2761, %v2757
        %v3690 = vpack.c.b16 %v2762, %v2758
        %v3691 = vpack.c.b16 %v2767, %v2763
        %v3692 = vpack.c.b16 %v2768, %v2764
        %v3693 = vpack.c.b16 %v2769, %v2765
        %v3694 = vpack.c.b16 %v2770, %v2766
        %v3695 = vpack.c.b16 %v2775, %v2771
        %v3696 = vpack.c.b16 %v2776, %v2772
        %v3697 = vpack.c.b16 %v2777, %v2773
        %v3698 = vpack.c.b16 %v2778, %v2774
        %v3699 = vpack.c.b16 %v2783, %v2779
        %v3700 = vpack.c.b16 %v2784, %v2780
        %v3701 = vpack.c.b16 %v2785, %v2781
        %v3702 = vpack.c.b16 %v2786, %v2782
        %v3703 = vpack.c.b16 %v2791, %v2787
        %v3704 = vpack.c.b16 %v2792, %v2788
        %v3705 = vpack.c.b16 %v2793, %v2789
        %v3706 = vpack.c.b16 %v2794, %v2790
        %v3707 = vpack.c.b16 %v2799, %v2795
        %v3708 = vpack.c.b16 %v2800, %v2796
        %v3709 = vpack.c.b16 %v2801, %v2797
        %v3710 = vpack.c.b16 %v2802, %v2798
        %v3711 = vpack.c.b16 %v2807, %v2803
        %v3712 = vpack.c.b16 %v2808, %v2804
        %v3713 = vpack.c.b16 %v2809, %v2805
        %v3714 = vpack.c.b16 %v2810, %v2806
        %v3715 = vpack.c.b16 %v2815, %v2811
        %v3716 = vpack.c.b16 %v2816, %v2812
        %v3717 = vpack.c.b16 %v2817, %v2813
        %v3718 = vpack.c.b16 %v2818, %v2814
        %v3719 = vpack.c.b16 %v2823, %v2819
        %v3720 = vpack.c.b16 %v2824, %v2820
        %v3721 = vpack.c.b16 %v2825, %v2821
        %v3722 = vpack.c.b16 %v2826, %v2822
        %v3723 = vpack.c.b16 %v2831, %v2827
        %v3724 = vpack.c.b16 %v2832, %v2828
        %v3725 = vpack.c.b16 %v2833, %v2829
        %v3726 = vpack.c.b16 %v2834, %v2830
        %v3727 = vpack.c.b16 %v2839, %v2835
        %v3728 = vpack.c.b16 %v2840, %v2836
        %v3729 = vpack.c.b16 %v2841, %v2837
        %v3730 = vpack.c.b16 %v2842, %v2838
        %v3731 = vpack.c.b16 %v2847, %v2843
        %v3732 = vpack.c.b16 %v2848, %v2844
        %v3733 = vpack.c.b16 %v2849, %v2845
        %v3734 = vpack.c.b16 %v2850, %v2846
        %v3735 = vpack.c.b16 %v2855, %v2851
        %v3736 = vpack.c.b16 %v2856, %v2852
        %v3737 = vpack.c.b16 %v2857, %v2853
        %v3738 = vpack.c.b16 %v2858, %v2854
        %v3739 = vpack.c.b16 %v2863, %v2859
        %v3740 = vpack.c.b16 %v2864, %v2860
        %v3741 = vpack.c.b16 %v2865, %v2861
        %v3742 = vpack.c.b16 %v2866, %v2862
        %v3743 = vpack.c.b16 %v2871, %v2867
        %v3744 = vpack.c.b16 %v2872, %v2868
        %v3745 = vpack.c.b16 %v2873, %v2869
        %v3746 = vpack.c.b16 %v2874, %v2870
        %v3747 = vpack.c.b16 %v2879, %v2875
        %v3748 = vpack.c.b16 %v2880, %v2876
        %v3749 = vpack.c.b16 %v2881, %v2877
        %v3750 = vpack.c.b16 %v2882, %v2878
        %v3751 = vpack.c.b16 %v2887, %v2883
        %v3752 = vpack.c.b16 %v2888, %v2884
        %v3753 = vpack.c.b16 %v2889, %v2885
        %v3754 = vpack.c.b16 %v2890, %v2886
        %v3755 = vpack.c.b16 %v2895, %v2891
        %v3756 = vpack.c.b16 %v2896, %v2892
        %v3757 = vpack.c.b16 %v2897, %v2893
        %v3758 = vpack.c.b16 %v2898, %v2894
        %v3759 = vpack.c.b16 %v2903, %v2899
        %v3760 = vpack.c.b16 %v2904, %v2900
        %v3761 = vpack.c.b16 %v2905, %v2901
        %v3762 = vpack.c.b16 %v2906, %v2902
        %v3763 = vpack.c.b16 %v2911, %v2907
        %v3764 = vpack.c.b16 %v2912, %v2908
        %v3765 = vpack.c.b16 %v2913, %v2909
        %v3766 = vpack.c.b16 %v2914, %v2910
        %v3767 = vpack.c.b16 %v2919, %v2915
        %v3768 = vpack.c.b16 %v2920, %v2916
        %v3769 = vpack.c.b16 %v2921, %v2917
        %v3770 = vpack.c.b16 %v2922, %v2918
        %v3771 = vpack.c.b16 %v2927, %v2923
        %v3772 = vpack.c.b16 %v2928, %v2924
        %v3773 = vpack.c.b16 %v2929, %v2925
        %v3774 = vpack.c.b16 %v2930, %v2926
        %v3775 = vpack.c.b16 %v2935, %v2931
        %v3776 = vpack.c.b16 %v2936, %v2932
        %v3777 = vpack.c.b16 %v2937, %v2933
        %v3778 = vpack.c.b16 %v2938, %v2934
        %v3779 = vpack.c.b16 %v2943, %v2939
        %v3780 = vpack.c.b16 %v2944, %v2940
        %v3781 = vpack.c.b16 %v2945, %v2941
        %v3782 = vpack.c.b16 %v2946, %v2942
        %v3783 = vpack.c.b16 %v2951, %v2947
        %v3784 = vpack.c.b16 %v2952, %v2948
        %v3785 = vpack.c.b16 %v2953, %v2949
        %v3786 = vpack.c.b16 %v2954, %v2950
        %v3787 = vpack.c.b16 %v2959, %v2955
        %v3788 = vpack.c.b16 %v2960, %v2956
        %v3789 = vpack.c.b16 %v2961, %v2957
        %v3790 = vpack.c.b16 %v2962, %v2958
        %v3791 = vpack.c.b16 %v2967, %v2963
        %v3792 = vpack.c.b16 %v2968, %v2964
        %v3793 = vpack.c.b16 %v2969, %v2965
        %v3794 = vpack.c.b16 %v2970, %v2966
        %v3795 = vpack.c.b16 %v2975, %v2971
        %v3796 = vpack.c.b16 %v2976, %v2972
        %v3797 = vpack.c.b16 %v2977, %v2973
        %v3798 = vpack.c.b16 %v2978, %v2974
        %v3799 = vpack.c.b16 %v2983, %v2979
        %v3800 = vpack.c.b16 %v2984, %v2980
        %v3801 = vpack.c.b16 %v2985, %v2981
        %v3802 = vpack.c.b16 %v2986, %v2982
        %v3803 = vpack.c.b16 %v2991, %v2987
        %v3804 = vpack.c.b16 %v2992, %v2988
        %v3805 = vpack.c.b16 %v2993, %v2989
        %v3806 = vpack.c.b16 %v2994, %v2990
        %v3807 = vpack.c.b16 %v2999, %v2995
        %v3808 = vpack.c.b16 %v3000, %v2996
        %v3809 = vpack.c.b16 %v3001, %v2997
        %v3810 = vpack.c.b16 %v3002, %v2998
        %v3811 = vpack.c.b16 %v3007, %v3003
        %v3812 = vpack.c.b16 %v3008, %v3004
        %v3813 = vpack.c.b16 %v3009, %v3005
        %v3814 = vpack.c.b16 %v3010, %v3006
        %v3815 = vpack.c.b16 %v3015, %v3011
        %v3816 = vpack.c.b16 %v3016, %v3012
        %v3817 = vpack.c.b16 %v3017, %v3013
        %v3818 = vpack.c.b16 %v3018, %v3014
        %v3819 = vpack.c.b16 %v3023, %v3019
        %v3820 = vpack.c.b16 %v3024, %v3020
        %v3821 = vpack.c.b16 %v3025, %v3021
        %v3822 = vpack.c.b16 %v3026, %v3022
        %v3823 = vpack.c.b16 %v3031, %v3027
        %v3824 = vpack.c.b16 %v3032, %v3028
        %v3825 = vpack.c.b16 %v3033, %v3029
        %v3826 = vpack.c.b16 %v3034, %v3030
        %v3827 = vpack.c.b16 %v3039, %v3035
        %v3828 = vpack.c.b16 %v3040, %v3036
        %v3829 = vpack.c.b16 %v3041, %v3037
        %v3830 = vpack.c.b16 %v3042, %v3038
        %v3831 = vpack.c.b16 %v3047, %v3043
        %v3832 = vpack.c.b16 %v3048, %v3044
        %v3833 = vpack.c.b16 %v3049, %v3045
        %v3834 = vpack.c.b16 %v3050, %v3046
        %v3835 = vpack.c.b16 %v3055, %v3051
        %v3836 = vpack.c.b16 %v3056, %v3052
        %v3837 = vpack.c.b16 %v3057, %v3053
        %v3838 = vpack.c.b16 %v3058, %v3054
        %v3839 = vpack.c.b16 %v3063, %v3059
        %v3840 = vpack.c.b16 %v3064, %v3060
        %v3841 = vpack.c.b16 %v3065, %v3061
        %v3842 = vpack.c.b16 %v3066, %v3062
        %v3843 = vpack.c.b16 %v3071, %v3067
        %v3844 = vpack.c.b16 %v3072, %v3068
        %v3845 = vpack.c.b16 %v3073, %v3069
        %v3846 = vpack.c.b16 %v3074, %v3070
        %v3847 = vpack.c.b16 %v3079, %v3075
        %v3848 = vpack.c.b16 %v3080, %v3076
        %v3849 = vpack.c.b16 %v3081, %v3077
        %v3850 = vpack.c.b16 %v3082, %v3078
        %v3851 = vpack.c.b16 %v3087, %v3083
        %v3852 = vpack.c.b16 %v3088, %v3084
        %v3853 = vpack.c.b16 %v3089, %v3085
        %v3854 = vpack.c.b16 %v3090, %v3086
        %v3855 = vpack.c.b16 %v3095, %v3091
        %v3856 = vpack.c.b16 %v3096, %v3092
        %v3857 = vpack.c.b16 %v3097, %v3093
        %v3858 = vpack.c.b16 %v3098, %v3094
        %v3859 = vpack.c.b16 %v3103, %v3099
        %v3860 = vpack.c.b16 %v3104, %v3100
        %v3861 = vpack.c.b16 %v3105, %v3101
        %v3862 = vpack.c.b16 %v3106, %v3102
        %v3863 = vpack.c.b16 %v3111, %v3107
        %v3864 = vpack.c.b16 %v3112, %v3108
        %v3865 = vpack.c.b16 %v3113, %v3109
        %v3866 = vpack.c.b16 %v3114, %v3110
        %v3867 = vpack.c.b16 %v3119, %v3115
        %v3868 = vpack.c.b16 %v3120, %v3116
        %v3869 = vpack.c.b16 %v3121, %v3117
        %v3870 = vpack.c.b16 %v3122, %v3118
        %v3871 = vpack.c.b16 %v3127, %v3123
        %v3872 = vpack.c.b16 %v3128, %v3124
        %v3873 = vpack.c.b16 %v3129, %v3125
        %v3874 = vpack.c.b16 %v3130, %v3126
        %v3875 = vpack.c.b16 %v3135, %v3131
        %v3876 = vpack.c.b16 %v3136, %v3132
        %v3877 = vpack.c.b16 %v3137, %v3133
        %v3878 = vpack.c.b16 %v3138, %v3134
        %v3879 = vpack.c.b16 %v3143, %v3139
        %v3880 = vpack.c.b16 %v3144, %v3140
        %v3881 = vpack.c.b16 %v3145, %v3141
        %v3882 = vpack.c.b16 %v3146, %v3142
        %v3883 = vpack.c.b16 %v3151, %v3147
        %v3884 = vpack.c.b16 %v3152, %v3148
        %v3885 = vpack.c.b16 %v3153, %v3149
        %v3886 = vpack.c.b16 %v3154, %v3150
        %v3887 = vpack.c.b16 %v3159, %v3155
        %v3888 = vpack.c.b16 %v3160, %v3156
        %v3889 = vpack.c.b16 %v3161, %v3157
        %v3890 = vpack.c.b16 %v3162, %v3158
        %v3891 = vpack.c.b16 %v3167, %v3163
        %v3892 = vpack.c.b16 %v3168, %v3164
        %v3893 = vpack.c.b16 %v3169, %v3165
        %v3894 = vpack.c.b16 %v3170, %v3166
        %v3895 = vpack.c.b16 %v3175, %v3171
        %v3896 = vpack.c.b16 %v3176, %v3172
        %v3897 = vpack.c.b16 %v3177, %v3173
        %v3898 = vpack.c.b16 %v3178, %v3174
        %v3899 = vpack.c.b16 %v3183, %v3179
        %v3900 = vpack.c.b16 %v3184, %v3180
        %v3901 = vpack.c.b16 %v3185, %v3181
        %v3902 = vpack.c.b16 %v3186, %v3182
        %v3903 = vpack.c.b16 %v3191, %v3187
        %v3904 = vpack.c.b16 %v3192, %v3188
        %v3905 = vpack.c.b16 %v3193, %v3189
        %v3906 = vpack.c.b16 %v3194, %v3190
        %v3907 = vpack.c.b16 %v3199, %v3195
        %v3908 = vpack.c.b16 %v3200, %v3196
        %v3909 = vpack.c.b16 %v3201, %v3197
        %v3910 = vpack.c.b16 %v3202, %v3198
        %v3911 = vpack.c.b16 %v3207, %v3203
        %v3912 = vpack.c.b16 %v3208, %v3204
        %v3913 = vpack.c.b16 %v3209, %v3205
        %v3914 = vpack.c.b16 %v3210, %v3206
        %4619 = vmatprep.subr.bf16.mxu0 %v3212
        %4620 = vmatpush1.bf16.msra.mxu0 %v3211
        %4621 = vmatprep.subr.bf16.mxu0 %v3216
        %4622 = vmatpush1.bf16.msra.mxu0 %v3215
        %4623 = vmatprep.subr.bf16.mxu0 %v3220
        %4624 = vmatpush1.bf16.msra.mxu0 %v3219
        %4625 = vmatprep.subr.bf16.mxu0 %v3224
        %4626 = vmatpush1.bf16.msra.mxu0 %v3223
        %4627 = vmatprep.subr.bf16.mxu0 %v3228
        %4628 = vmatpush1.bf16.msra.mxu0 %v3227
        %4629 = vmatprep.subr.bf16.mxu0 %v3232
        %4630 = vmatpush1.bf16.msra.mxu0 %v3231
        %4631 = vmatprep.subr.bf16.mxu0 %v3236
        %4632 = vmatpush1.bf16.msra.mxu0 %v3235
        %4633 = vmatprep.subr.bf16.mxu0 %v3240
        %4634 = vmatpush1.bf16.msra.mxu0 %v3239
        %4635 = vmatprep.subr.bf16.mxu0 %v3244
        %4636 = vmatpush1.bf16.msra.mxu0 %v3243
        %4637 = vmatprep.subr.bf16.mxu0 %v3248
        %4638 = vmatpush1.bf16.msra.mxu0 %v3247
        %4639 = vmatprep.subr.bf16.mxu0 %v3252
        %4640 = vmatpush1.bf16.msra.mxu0 %v3251
        %4641 = vmatprep.subr.bf16.mxu0 %v3256
        %4642 = vmatpush1.bf16.msra.mxu0 %v3255
        %4643 = vmatprep.subr.bf16.mxu0 %v3260
        %4644 = vmatpush1.bf16.msra.mxu0 %v3259
        %4645 = vmatprep.subr.bf16.mxu0 %v3264
        %4646 = vmatpush1.bf16.msra.mxu0 %v3263
        %4647 = vmatprep.subr.bf16.mxu0 %v3268
        %4648 = vmatpush1.bf16.msra.mxu0 %v3267
        %4649 = vmatprep.subr.bf16.mxu0 %v3272
        %4650 = vmatpush1.bf16.msra.mxu0 %v3271
        %4651 = vmatprep.mubr.bf16.mxu0 %v1056
        %4652 = vmatmul.mubr.bf16.gmra.mrb[0].mxu0 %v1055
        %v4653 = vpop.f32.mrb[0].mxu0
        %v4654 = vadd.f32 0.0, %v4653
        %v4655 = vpop.f32.mrb[0].mxu0
        %v4656 = vadd.f32 0.0, %v4655
        %v4657 = vpop.f32.mrb[0].mxu0
        %v4658 = vpop.f32.mrb[0].mxu0
        %4659 = vdwg.mxu0
        %4660 = vmatprep.subr.bf16.mxu0 %v3276
        %4661 = vmatpush1.bf16.msra.mxu0 %v3275
        %4662 = vmatprep.subr.bf16.mxu0 %v3280
        %4663 = vmatpush1.bf16.msra.mxu0 %v3279
        %4664 = vmatprep.subr.bf16.mxu0 %v3284
        %4665 = vmatpush1.bf16.msra.mxu0 %v3283
        %4666 = vmatprep.subr.bf16.mxu0 %v3288
        %4667 = vmatpush1.bf16.msra.mxu0 %v3287
        %4668 = vmatprep.subr.bf16.mxu0 %v3292
        %4669 = vmatpush1.bf16.msra.mxu0 %v3291
        %4670 = vmatprep.subr.bf16.mxu0 %v3296
        %4671 = vmatpush1.bf16.msra.mxu0 %v3295
        %4672 = vmatprep.subr.bf16.mxu0 %v3300
        %4673 = vmatpush1.bf16.msra.mxu0 %v3299
        %4674 = vmatprep.subr.bf16.mxu0 %v3304
        %4675 = vmatpush1.bf16.msra.mxu0 %v3303
        %4676 = vmatprep.subr.bf16.mxu0 %v3308
        %4677 = vmatpush1.bf16.msra.mxu0 %v3307
        %4678 = vmatprep.subr.bf16.mxu0 %v3312
        %4679 = vmatpush1.bf16.msra.mxu0 %v3311
        %4680 = vmatprep.subr.bf16.mxu0 %v3316
        %4681 = vmatpush1.bf16.msra.mxu0 %v3315
        %4682 = vmatprep.subr.bf16.mxu0 %v3320
        %4683 = vmatpush1.bf16.msra.mxu0 %v3319
        %4684 = vmatprep.subr.bf16.mxu0 %v3324
        %4685 = vmatpush1.bf16.msra.mxu0 %v3323
        %4686 = vmatprep.subr.bf16.mxu0 %v3328
        %4687 = vmatpush1.bf16.msra.mxu0 %v3327
        %4688 = vmatprep.subr.bf16.mxu0 %v3332
        %4689 = vmatpush1.bf16.msra.mxu0 %v3331
        %4690 = vmatprep.subr.bf16.mxu0 %v3336
        %4691 = vmatpush1.bf16.msra.mxu0 %v3335
        %4692 = vmatprep.mubr.bf16.mxu0 %v1058
        %4693 = vmatmul.mubr.bf16.gmra.mrb[0].mxu0 %v1057
        %v4694 = vpop.f32.mrb[0].mxu0
        %v4695 = vadd.f32 %v4654, %v4694
        %v4696 = vpop.f32.mrb[0].mxu0
        %v4697 = vadd.f32 %v4656, %v4696
        %v4698 = vpop.f32.mrb[0].mxu0
        %v4699 = vpop.f32.mrb[0].mxu0
        %4700 = vdwg.mxu0
        %4701 = vmatprep.subr.bf16.mxu0 %v3340
        %4702 = vmatpush1.bf16.msra.mxu0 %v3339
        %4703 = vmatprep.subr.bf16.mxu0 %v3344
        %4704 = vmatpush1.bf16.msra.mxu0 %v3343
        %4705 = vmatprep.subr.bf16.mxu0 %v3348
        %4706 = vmatpush1.bf16.msra.mxu0 %v3347
        %4707 = vmatprep.subr.bf16.mxu0 %v3352
        %4708 = vmatpush1.bf16.msra.mxu0 %v3351
        %4709 = vmatprep.subr.bf16.mxu0 %v3356
        %4710 = vmatpush1.bf16.msra.mxu0 %v3355
        %4711 = vmatprep.subr.bf16.mxu0 %v3360
        %4712 = vmatpush1.bf16.msra.mxu0 %v3359
        %4713 = vmatprep.subr.bf16.mxu0 %v3364
        %4714 = vmatpush1.bf16.msra.mxu0 %v3363
        %4715 = vmatprep.subr.bf16.mxu0 %v3368
        %4716 = vmatpush1.bf16.msra.mxu0 %v3367
        %4717 = vmatprep.subr.bf16.mxu0 %v3372
        %4718 = vmatpush1.bf16.msra.mxu0 %v3371
        %4719 = vmatprep.subr.bf16.mxu0 %v3376
        %4720 = vmatpush1.bf16.msra.mxu0 %v3375
        %4721 = vmatprep.subr.bf16.mxu0 %v3380
        %4722 = vmatpush1.bf16.msra.mxu0 %v3379
        %4723 = vmatprep.subr.bf16.mxu0 %v3384
        %4724 = vmatpush1.bf16.msra.mxu0 %v3383
        %4725 = vmatprep.subr.bf16.mxu0 %v3388
        %4726 = vmatpush1.bf16.msra.mxu0 %v3387
        %4727 = vmatprep.subr.bf16.mxu0 %v3392
        %4728 = vmatpush1.bf16.msra.mxu0 %v3391
        %4729 = vmatprep.subr.bf16.mxu0 %v3396
        %4730 = vmatpush1.bf16.msra.mxu0 %v3395
        %4731 = vmatprep.subr.bf16.mxu0 %v3400
        %4732 = vmatpush1.bf16.msra.mxu0 %v3399
        %4733 = vmatprep.mubr.bf16.mxu0 %v1060
        %4734 = vmatmul.mubr.bf16.gmra.mrb[0].mxu0 %v1059
        %v4735 = vpop.f32.mrb[0].mxu0
        %v4736 = vadd.f32 %v4695, %v4735
        %v4737 = vpop.f32.mrb[0].mxu0
        %v4738 = vadd.f32 %v4697, %v4737
        %v4739 = vpop.f32.mrb[0].mxu0
        %v4740 = vpop.f32.mrb[0].mxu0
        %4741 = vdwg.mxu0
        %4742 = vmatprep.subr.bf16.mxu0 %v3404
        %4743 = vmatpush1.bf16.msra.mxu0 %v3403
        %4744 = vmatprep.subr.bf16.mxu0 %v3408
        %4745 = vmatpush1.bf16.msra.mxu0 %v3407
        %4746 = vmatprep.subr.bf16.mxu0 %v3412
        %4747 = vmatpush1.bf16.msra.mxu0 %v3411
        %4748 = vmatprep.subr.bf16.mxu0 %v3416
        %4749 = vmatpush1.bf16.msra.mxu0 %v3415
        %4750 = vmatprep.subr.bf16.mxu0 %v3420
        %4751 = vmatpush1.bf16.msra.mxu0 %v3419
        %4752 = vmatprep.subr.bf16.mxu0 %v3424
        %4753 = vmatpush1.bf16.msra.mxu0 %v3423
        %4754 = vmatprep.subr.bf16.mxu0 %v3428
        %4755 = vmatpush1.bf16.msra.mxu0 %v3427
        %4756 = vmatprep.subr.bf16.mxu0 %v3432
        %4757 = vmatpush1.bf16.msra.mxu0 %v3431
        %4758 = vmatprep.subr.bf16.mxu0 %v3436
        %4759 = vmatpush1.bf16.msra.mxu0 %v3435
        %4760 = vmatprep.subr.bf16.mxu0 %v3440
        %4761 = vmatpush1.bf16.msra.mxu0 %v3439
        %4762 = vmatprep.subr.bf16.mxu0 %v3444
        %4763 = vmatpush1.bf16.msra.mxu0 %v3443
        %4764 = vmatprep.subr.bf16.mxu0 %v3448
        %4765 = vmatpush1.bf16.msra.mxu0 %v3447
        %4766 = vmatprep.subr.bf16.mxu0 %v3452
        %4767 = vmatpush1.bf16.msra.mxu0 %v3451
        %4768 = vmatprep.subr.bf16.mxu0 %v3456
        %4769 = vmatpush1.bf16.msra.mxu0 %v3455
        %4770 = vmatprep.subr.bf16.mxu0 %v3460
        %4771 = vmatpush1.bf16.msra.mxu0 %v3459
        %4772 = vmatprep.subr.bf16.mxu0 %v3464
        %4773 = vmatpush1.bf16.msra.mxu0 %v3463
        %4774 = vmatprep.mubr.bf16.mxu0 %v1062
        %4775 = vmatmul.mubr.bf16.gmra.mrb[0].mxu0 %v1061
        %v4776 = vpop.f32.mrb[0].mxu0
        %v4777 = vadd.f32 %v4736, %v4776
        %v4778 = vpop.f32.mrb[0].mxu0
        %v4779 = vadd.f32 %v4738, %v4778
        %v4780 = vpop.f32.mrb[0].mxu0
        %v4781 = vpop.f32.mrb[0].mxu0
        %4782 = vdwg.mxu0
        %4783 = vmatprep.subr.bf16.mxu0 %v3468
        %4784 = vmatpush1.bf16.msra.mxu0 %v3467
        %4785 = vmatprep.subr.bf16.mxu0 %v3472
        %4786 = vmatpush1.bf16.msra.mxu0 %v3471
        %4787 = vmatprep.subr.bf16.mxu0 %v3476
        %4788 = vmatpush1.bf16.msra.mxu0 %v3475
        %4789 = vmatprep.subr.bf16.mxu0 %v3480
        %4790 = vmatpush1.bf16.msra.mxu0 %v3479
        %4791 = vmatprep.subr.bf16.mxu0 %v3484
        %4792 = vmatpush1.bf16.msra.mxu0 %v3483
        %4793 = vmatprep.subr.bf16.mxu0 %v3488
        %4794 = vmatpush1.bf16.msra.mxu0 %v3487
        %4795 = vmatprep.subr.bf16.mxu0 %v3492
        %4796 = vmatpush1.bf16.msra.mxu0 %v3491
        %4797 = vmatprep.subr.bf16.mxu0 %v3496
        %4798 = vmatpush1.bf16.msra.mxu0 %v3495
        %4799 = vmatprep.subr.bf16.mxu0 %v3500
        %4800 = vmatpush1.bf16.msra.mxu0 %v3499
        %4801 = vmatprep.subr.bf16.mxu0 %v3504
        %4802 = vmatpush1.bf16.msra.mxu0 %v3503
        %4803 = vmatprep.subr.bf16.mxu0 %v3508
        %4804 = vmatpush1.bf16.msra.mxu0 %v3507
        %4805 = vmatprep.subr.bf16.mxu0 %v3512
        %4806 = vmatpush1.bf16.msra.mxu0 %v3511
        %4807 = vmatprep.subr.bf16.mxu0 %v3516
        %4808 = vmatpush1.bf16.msra.mxu0 %v3515
        %4809 = vmatprep.subr.bf16.mxu0 %v3520
        %4810 = vmatpush1.bf16.msra.mxu0 %v3519
        %4811 = vmatprep.subr.bf16.mxu0 %v3524
        %4812 = vmatpush1.bf16.msra.mxu0 %v3523
        %4813 = vmatprep.subr.bf16.mxu0 %v3528
        %4814 = vmatpush1.bf16.msra.mxu0 %v3527
        %4815 = vmatprep.mubr.bf16.mxu0 %v1064
        %4816 = vmatmul.mubr.bf16.gmra.mrb[0].mxu0 %v1063
        %v4817 = vpop.f32.mrb[0].mxu0
        %v4818 = vadd.f32 %v4777, %v4817
        %v4819 = vpop.f32.mrb[0].mxu0
        %v4820 = vadd.f32 %v4779, %v4819
        %v4821 = vpop.f32.mrb[0].mxu0
        %v4822 = vpop.f32.mrb[0].mxu0
        %4823 = vdwg.mxu0
        %4824 = vmatprep.subr.bf16.mxu0 %v3532
        %4825 = vmatpush1.bf16.msra.mxu0 %v3531
        %4826 = vmatprep.subr.bf16.mxu0 %v3536
        %4827 = vmatpush1.bf16.msra.mxu0 %v3535
        %4828 = vmatprep.subr.bf16.mxu0 %v3540
        %4829 = vmatpush1.bf16.msra.mxu0 %v3539
        %4830 = vmatprep.subr.bf16.mxu0 %v3544
        %4831 = vmatpush1.bf16.msra.mxu0 %v3543
        %4832 = vmatprep.subr.bf16.mxu0 %v3548
        %4833 = vmatpush1.bf16.msra.mxu0 %v3547
        %4834 = vmatprep.subr.bf16.mxu0 %v3552
        %4835 = vmatpush1.bf16.msra.mxu0 %v3551
        %4836 = vmatprep.subr.bf16.mxu0 %v3556
        %4837 = vmatpush1.bf16.msra.mxu0 %v3555
        %4838 = vmatprep.subr.bf16.mxu0 %v3560
        %4839 = vmatpush1.bf16.msra.mxu0 %v3559
        %4840 = vmatprep.subr.bf16.mxu0 %v3564
        %4841 = vmatpush1.bf16.msra.mxu0 %v3563
        %4842 = vmatprep.subr.bf16.mxu0 %v3568
        %4843 = vmatpush1.bf16.msra.mxu0 %v3567
        %4844 = vmatprep.subr.bf16.mxu0 %v3572
        %4845 = vmatpush1.bf16.msra.mxu0 %v3571
        %4846 = vmatprep.subr.bf16.mxu0 %v3576
        %4847 = vmatpush1.bf16.msra.mxu0 %v3575
        %4848 = vmatprep.subr.bf16.mxu0 %v3580
        %4849 = vmatpush1.bf16.msra.mxu0 %v3579
        %4850 = vmatprep.subr.bf16.mxu0 %v3584
        %4851 = vmatpush1.bf16.msra.mxu0 %v3583
        %4852 = vmatprep.subr.bf16.mxu0 %v3588
        %4853 = vmatpush1.bf16.msra.mxu0 %v3587
        %4854 = vmatprep.subr.bf16.mxu0 %v3592
        %4855 = vmatpush1.bf16.msra.mxu0 %v3591
        %4856 = vmatprep.mubr.bf16.mxu0 %v1066
        %4857 = vmatmul.mubr.bf16.gmra.mrb[0].mxu0 %v1065
        %v4858 = vpop.f32.mrb[0].mxu0
        %v4859 = vadd.f32 %v4818, %v4858
        %v4860 = vpop.f32.mrb[0].mxu0
        %v4861 = vadd.f32 %v4820, %v4860
        %v4862 = vpop.f32.mrb[0].mxu0
        %v4863 = vpop.f32.mrb[0].mxu0
        %4864 = vdwg.mxu0
        %4865 = vmatprep.subr.bf16.mxu0 %v3596
        %4866 = vmatpush1.bf16.msra.mxu0 %v3595
        %4867 = vmatprep.subr.bf16.mxu0 %v3600
        %4868 = vmatpush1.bf16.msra.mxu0 %v3599
        %4869 = vmatprep.subr.bf16.mxu0 %v3604
        %4870 = vmatpush1.bf16.msra.mxu0 %v3603
        %4871 = vmatprep.subr.bf16.mxu0 %v3608
        %4872 = vmatpush1.bf16.msra.mxu0 %v3607
        %4873 = vmatprep.subr.bf16.mxu0 %v3612
        %4874 = vmatpush1.bf16.msra.mxu0 %v3611
        %4875 = vmatprep.subr.bf16.mxu0 %v3616
        %4876 = vmatpush1.bf16.msra.mxu0 %v3615
        %4877 = vmatprep.subr.bf16.mxu0 %v3620
        %4878 = vmatpush1.bf16.msra.mxu0 %v3619
        %4879 = vmatprep.subr.bf16.mxu0 %v3624
        %4880 = vmatpush1.bf16.msra.mxu0 %v3623
        %4881 = vmatprep.subr.bf16.mxu0 %v3628
        %4882 = vmatpush1.bf16.msra.mxu0 %v3627
        %4883 = vmatprep.subr.bf16.mxu0 %v3632
        %4884 = vmatpush1.bf16.msra.mxu0 %v3631
        %4885 = vmatprep.subr.bf16.mxu0 %v3636
        %4886 = vmatpush1.bf16.msra.mxu0 %v3635
        %4887 = vmatprep.subr.bf16.mxu0 %v3640
        %4888 = vmatpush1.bf16.msra.mxu0 %v3639
        %4889 = vmatprep.subr.bf16.mxu0 %v3644
        %4890 = vmatpush1.bf16.msra.mxu0 %v3643
        %4891 = vmatprep.subr.bf16.mxu0 %v3648
        %4892 = vmatpush1.bf16.msra.mxu0 %v3647
        %4893 = vmatprep.subr.bf16.mxu0 %v3652
        %4894 = vmatpush1.bf16.msra.mxu0 %v3651
        %4895 = vmatprep.subr.bf16.mxu0 %v3656
        %4896 = vmatpush1.bf16.msra.mxu0 %v3655
        %4897 = vmatprep.mubr.bf16.mxu0 %v1068
        %4898 = vmatmul.mubr.bf16.gmra.mrb[0].mxu0 %v1067
        %v4899 = vpop.f32.mrb[0].mxu0
        %v4900 = vadd.f32 %v4859, %v4899
        %v4901 = vpop.f32.mrb[0].mxu0
        %v4902 = vadd.f32 %v4861, %v4901
        %v4903 = vpop.f32.mrb[0].mxu0
        %v4904 = vpop.f32.mrb[0].mxu0
        %4905 = vdwg.mxu0
        %4906 = vmatprep.subr.bf16.mxu0 %v3660
        %4907 = vmatpush1.bf16.msra.mxu0 %v3659
        %4908 = vmatprep.subr.bf16.mxu0 %v3664
        %4909 = vmatpush1.bf16.msra.mxu0 %v3663
        %4910 = vmatprep.subr.bf16.mxu0 %v3668
        %4911 = vmatpush1.bf16.msra.mxu0 %v3667
        %4912 = vmatprep.subr.bf16.mxu0 %v3672
        %4913 = vmatpush1.bf16.msra.mxu0 %v3671
        %4914 = vmatprep.subr.bf16.mxu0 %v3676
        %4915 = vmatpush1.bf16.msra.mxu0 %v3675
        %4916 = vmatprep.subr.bf16.mxu0 %v3680
        %4917 = vmatpush1.bf16.msra.mxu0 %v3679
        %4918 = vmatprep.subr.bf16.mxu0 %v3684
        %4919 = vmatpush1.bf16.msra.mxu0 %v3683
        %4920 = vmatprep.subr.bf16.mxu0 %v3688
        %4921 = vmatpush1.bf16.msra.mxu0 %v3687
        %4922 = vmatprep.subr.bf16.mxu0 %v3692
        %4923 = vmatpush1.bf16.msra.mxu0 %v3691
        %4924 = vmatprep.subr.bf16.mxu0 %v3696
        %4925 = vmatpush1.bf16.msra.mxu0 %v3695
        %4926 = vmatprep.subr.bf16.mxu0 %v3700
        %4927 = vmatpush1.bf16.msra.mxu0 %v3699
        %4928 = vmatprep.subr.bf16.mxu0 %v3704
        %4929 = vmatpush1.bf16.msra.mxu0 %v3703
        %4930 = vmatprep.subr.bf16.mxu0 %v3708
        %4931 = vmatpush1.bf16.msra.mxu0 %v3707
        %4932 = vmatprep.subr.bf16.mxu0 %v3712
        %4933 = vmatpush1.bf16.msra.mxu0 %v3711
        %4934 = vmatprep.subr.bf16.mxu0 %v3716
        %4935 = vmatpush1.bf16.msra.mxu0 %v3715
        %4936 = vmatprep.subr.bf16.mxu0 %v3720
        %4937 = vmatpush1.bf16.msra.mxu0 %v3719
        %4938 = vmatprep.mubr.bf16.mxu0 %v1070
        %4939 = vmatmul.mubr.bf16.gmra.mrb[0].mxu0 %v1069
        %v4940 = vpop.f32.mrb[0].mxu0
        %v4941 = vadd.f32 %v4900, %v4940
        %v4942 = vpop.f32.mrb[0].mxu0
        %v4943 = vadd.f32 %v4902, %v4942
        %v4944 = vpop.f32.mrb[0].mxu0
        %v4945 = vpop.f32.mrb[0].mxu0
        %4946 = vdwg.mxu0
        %4947 = vmatprep.subr.bf16.mxu0 %v3724
        %4948 = vmatpush1.bf16.msra.mxu0 %v3723
        %4949 = vmatprep.subr.bf16.mxu0 %v3728
        %4950 = vmatpush1.bf16.msra.mxu0 %v3727
        %4951 = vmatprep.subr.bf16.mxu0 %v3732
        %4952 = vmatpush1.bf16.msra.mxu0 %v3731
        %4953 = vmatprep.subr.bf16.mxu0 %v3736
        %4954 = vmatpush1.bf16.msra.mxu0 %v3735
        %4955 = vmatprep.subr.bf16.mxu0 %v3740
        %4956 = vmatpush1.bf16.msra.mxu0 %v3739
        %4957 = vmatprep.subr.bf16.mxu0 %v3744
        %4958 = vmatpush1.bf16.msra.mxu0 %v3743
        %4959 = vmatprep.subr.bf16.mxu0 %v3748
        %4960 = vmatpush1.bf16.msra.mxu0 %v3747
        %4961 = vmatprep.subr.bf16.mxu0 %v3752
        %4962 = vmatpush1.bf16.msra.mxu0 %v3751
        %4963 = vmatprep.subr.bf16.mxu0 %v3756
        %4964 = vmatpush1.bf16.msra.mxu0 %v3755
        %4965 = vmatprep.subr.bf16.mxu0 %v3760
        %4966 = vmatpush1.bf16.msra.mxu0 %v3759
        %4967 = vmatprep.subr.bf16.mxu0 %v3764
        %4968 = vmatpush1.bf16.msra.mxu0 %v3763
        %4969 = vmatprep.subr.bf16.mxu0 %v3768
        %4970 = vmatpush1.bf16.msra.mxu0 %v3767
        %4971 = vmatprep.subr.bf16.mxu0 %v3772
        %4972 = vmatpush1.bf16.msra.mxu0 %v3771
        %4973 = vmatprep.subr.bf16.mxu0 %v3776
        %4974 = vmatpush1.bf16.msra.mxu0 %v3775
        %4975 = vmatprep.subr.bf16.mxu0 %v3780
        %4976 = vmatpush1.bf16.msra.mxu0 %v3779
        %4977 = vmatprep.subr.bf16.mxu0 %v3784
        %4978 = vmatpush1.bf16.msra.mxu0 %v3783
        %4979 = vmatprep.mubr.bf16.mxu0 %v1072
        %4980 = vmatmul.mubr.bf16.gmra.mrb[0].mxu0 %v1071
        %v4981 = vpop.f32.mrb[0].mxu0
        %v4982 = vadd.f32 %v4941, %v4981
        %v4983 = vpop.f32.mrb[0].mxu0
        %v4984 = vadd.f32 %v4943, %v4983
        %v4985 = vpop.f32.mrb[0].mxu0
        %v4986 = vpop.f32.mrb[0].mxu0
        %4987 = vdwg.mxu0
        %4988 = vmatprep.subr.bf16.mxu0 %v3788
        %4989 = vmatpush1.bf16.msra.mxu0 %v3787
        %4990 = vmatprep.subr.bf16.mxu0 %v3792
        %4991 = vmatpush1.bf16.msra.mxu0 %v3791
        %4992 = vmatprep.subr.bf16.mxu0 %v3796
        %4993 = vmatpush1.bf16.msra.mxu0 %v3795
        %4994 = vmatprep.subr.bf16.mxu0 %v3800
        %4995 = vmatpush1.bf16.msra.mxu0 %v3799
        %4996 = vmatprep.subr.bf16.mxu0 %v3804
        %4997 = vmatpush1.bf16.msra.mxu0 %v3803
        %4998 = vmatprep.subr.bf16.mxu0 %v3808
        %4999 = vmatpush1.bf16.msra.mxu0 %v3807
        %5000 = vmatprep.subr.bf16.mxu0 %v3812
        %5001 = vmatpush1.bf16.msra.mxu0 %v3811
        %5002 = vmatprep.subr.bf16.mxu0 %v3816
        %5003 = vmatpush1.bf16.msra.mxu0 %v3815
        %5004 = vmatprep.subr.bf16.mxu0 %v3820
        %5005 = vmatpush1.bf16.msra.mxu0 %v3819
        %5006 = vmatprep.subr.bf16.mxu0 %v3824
        %5007 = vmatpush1.bf16.msra.mxu0 %v3823
        %5008 = vmatprep.subr.bf16.mxu0 %v3828
        %5009 = vmatpush1.bf16.msra.mxu0 %v3827
        %5010 = vmatprep.subr.bf16.mxu0 %v3832
        %5011 = vmatpush1.bf16.msra.mxu0 %v3831
        %5012 = vmatprep.subr.bf16.mxu0 %v3836
        %5013 = vmatpush1.bf16.msra.mxu0 %v3835
        %5014 = vmatprep.subr.bf16.mxu0 %v3840
        %5015 = vmatpush1.bf16.msra.mxu0 %v3839
        %5016 = vmatprep.subr.bf16.mxu0 %v3844
        %5017 = vmatpush1.bf16.msra.mxu0 %v3843
        %5018 = vmatprep.subr.bf16.mxu0 %v3848
        %5019 = vmatpush1.bf16.msra.mxu0 %v3847
        %5020 = vmatprep.mubr.bf16.mxu0 %v1074
        %5021 = vmatmul.mubr.bf16.gmra.mrb[0].mxu0 %v1073
        %v5022 = vpop.f32.mrb[0].mxu0
        %v5023 = vadd.f32 %v4982, %v5022
        %v5024 = vpop.f32.mrb[0].mxu0
        %v5025 = vadd.f32 %v4984, %v5024
        %v5026 = vpop.f32.mrb[0].mxu0
        %v5027 = vpop.f32.mrb[0].mxu0
        %5028 = vdwg.mxu0
        %5029 = vmatprep.subr.bf16.mxu0 %v3852
        %5030 = vmatpush1.bf16.msra.mxu0 %v3851
        %5031 = vmatprep.subr.bf16.mxu0 %v3856
        %5032 = vmatpush1.bf16.msra.mxu0 %v3855
        %5033 = vmatprep.subr.bf16.mxu0 %v3860
        %5034 = vmatpush1.bf16.msra.mxu0 %v3859
        %5035 = vmatprep.subr.bf16.mxu0 %v3864
        %5036 = vmatpush1.bf16.msra.mxu0 %v3863
        %5037 = vmatprep.subr.bf16.mxu0 %v3868
        %5038 = vmatpush1.bf16.msra.mxu0 %v3867
        %5039 = vmatprep.subr.bf16.mxu0 %v3872
        %5040 = vmatpush1.bf16.msra.mxu0 %v3871
        %5041 = vmatprep.subr.bf16.mxu0 %v3876
        %5042 = vmatpush1.bf16.msra.mxu0 %v3875
        %5043 = vmatprep.subr.bf16.mxu0 %v3880
        %5044 = vmatpush1.bf16.msra.mxu0 %v3879
        %5045 = vmatprep.subr.bf16.mxu0 %v3884
        %5046 = vmatpush1.bf16.msra.mxu0 %v3883
        %5047 = vmatprep.subr.bf16.mxu0 %v3888
        %5048 = vmatpush1.bf16.msra.mxu0 %v3887
        %5049 = vmatprep.subr.bf16.mxu0 %v3892
        %5050 = vmatpush1.bf16.msra.mxu0 %v3891
        %5051 = vmatprep.subr.bf16.mxu0 %v3896
        %5052 = vmatpush1.bf16.msra.mxu0 %v3895
        %5053 = vmatprep.subr.bf16.mxu0 %v3900
        %5054 = vmatpush1.bf16.msra.mxu0 %v3899
        %5055 = vmatprep.subr.bf16.mxu0 %v3904
        %5056 = vmatpush1.bf16.msra.mxu0 %v3903
        %5057 = vmatprep.subr.bf16.mxu0 %v3908
        %5058 = vmatpush1.bf16.msra.mxu0 %v3907
        %5059 = vmatprep.subr.bf16.mxu0 %v3912
        %5060 = vmatpush1.bf16.msra.mxu0 %v3911
        %5061 = vmatprep.mubr.bf16.mxu0 %v1076
        %5062 = vmatmul.mubr.bf16.gmra.mrb[0].mxu0 %v1075
        %v5063 = vpop.f32.mrb[0].mxu0
        %v5064 = vadd.f32 %v5023, %v5063
        %v5065 = vpop.f32.mrb[0].mxu0
        %v5066 = vadd.f32 %v5025, %v5065
        %v5067 = vpop.f32.mrb[0].mxu0
        %v5068 = vpop.f32.mrb[0].mxu0
        %5069 = vdwg.mxu0
        %5070 = vmatprep.subr.bf16.mxu0 %v3214
        %5071 = vmatpush1.bf16.msra.mxu0 %v3213
        %5072 = vmatprep.subr.bf16.mxu0 %v3218
        %5073 = vmatpush1.bf16.msra.mxu0 %v3217
        %5074 = vmatprep.subr.bf16.mxu0 %v3222
        %5075 = vmatpush1.bf16.msra.mxu0 %v3221
        %5076 = vmatprep.subr.bf16.mxu0 %v3226
        %5077 = vmatpush1.bf16.msra.mxu0 %v3225
        %5078 = vmatprep.subr.bf16.mxu0 %v3230
        %5079 = vmatpush1.bf16.msra.mxu0 %v3229
        %5080 = vmatprep.subr.bf16.mxu0 %v3234
        %5081 = vmatpush1.bf16.msra.mxu0 %v3233
        %5082 = vmatprep.subr.bf16.mxu0 %v3238
        %5083 = vmatpush1.bf16.msra.mxu0 %v3237
        %5084 = vmatprep.subr.bf16.mxu0 %v3242
        %5085 = vmatpush1.bf16.msra.mxu0 %v3241
        %5086 = vmatprep.subr.bf16.mxu0 %v3246
        %5087 = vmatpush1.bf16.msra.mxu0 %v3245
        %5088 = vmatprep.subr.bf16.mxu0 %v3250
        %5089 = vmatpush1.bf16.msra.mxu0 %v3249
        %5090 = vmatprep.subr.bf16.mxu0 %v3254
        %5091 = vmatpush1.bf16.msra.mxu0 %v3253
        %5092 = vmatprep.subr.bf16.mxu0 %v3258
        %5093 = vmatpush1.bf16.msra.mxu0 %v3257
        %5094 = vmatprep.subr.bf16.mxu0 %v3262
        %5095 = vmatpush1.bf16.msra.mxu0 %v3261
        %5096 = vmatprep.subr.bf16.mxu0 %v3266
        %5097 = vmatpush1.bf16.msra.mxu0 %v3265
        %5098 = vmatprep.subr.bf16.mxu0 %v3270
        %5099 = vmatpush1.bf16.msra.mxu0 %v3269
        %5100 = vmatprep.subr.bf16.mxu0 %v3274
        %5101 = vmatpush1.bf16.msra.mxu0 %v3273
        %5102 = vmatprep.mubr.bf16.mxu0 %v1056
        %5103 = vmatmul.mubr.bf16.gmra.mrb[0].mxu0 %v1055
        %v5104 = vpop.f32.mrb[0].mxu0
        %v5105 = vadd.f32 0.0, %v5104
        %v5106 = vpop.f32.mrb[0].mxu0
        %v5107 = vadd.f32 0.0, %v5106
        %v5108 = vpop.f32.mrb[0].mxu0
        %v5109 = vpop.f32.mrb[0].mxu0
        %5110 = vdwg.mxu0
        %5111 = vmatprep.subr.bf16.mxu0 %v3278
        %5112 = vmatpush1.bf16.msra.mxu0 %v3277
        %5113 = vmatprep.subr.bf16.mxu0 %v3282
        %5114 = vmatpush1.bf16.msra.mxu0 %v3281
        %5115 = vmatprep.subr.bf16.mxu0 %v3286
        %5116 = vmatpush1.bf16.msra.mxu0 %v3285
        %5117 = vmatprep.subr.bf16.mxu0 %v3290
        %5118 = vmatpush1.bf16.msra.mxu0 %v3289
        %5119 = vmatprep.subr.bf16.mxu0 %v3294
        %5120 = vmatpush1.bf16.msra.mxu0 %v3293
        %5121 = vmatprep.subr.bf16.mxu0 %v3298
        %5122 = vmatpush1.bf16.msra.mxu0 %v3297
        %5123 = vmatprep.subr.bf16.mxu0 %v3302
        %5124 = vmatpush1.bf16.msra.mxu0 %v3301
        %5125 = vmatprep.subr.bf16.mxu0 %v3306
        %5126 = vmatpush1.bf16.msra.mxu0 %v3305
        %5127 = vmatprep.subr.bf16.mxu0 %v3310
        %5128 = vmatpush1.bf16.msra.mxu0 %v3309
        %5129 = vmatprep.subr.bf16.mxu0 %v3314
        %5130 = vmatpush1.bf16.msra.mxu0 %v3313
        %5131 = vmatprep.subr.bf16.mxu0 %v3318
        %5132 = vmatpush1.bf16.msra.mxu0 %v3317
        %5133 = vmatprep.subr.bf16.mxu0 %v3322
        %5134 = vmatpush1.bf16.msra.mxu0 %v3321
        %5135 = vmatprep.subr.bf16.mxu0 %v3326
        %5136 = vmatpush1.bf16.msra.mxu0 %v3325
        %5137 = vmatprep.subr.bf16.mxu0 %v3330
        %5138 = vmatpush1.bf16.msra.mxu0 %v3329
        %5139 = vmatprep.subr.bf16.mxu0 %v3334
        %5140 = vmatpush1.bf16.msra.mxu0 %v3333
        %5141 = vmatprep.subr.bf16.mxu0 %v3338
        %5142 = vmatpush1.bf16.msra.mxu0 %v3337
        %5143 = vmatprep.mubr.bf16.mxu0 %v1058
        %5144 = vmatmul.mubr.bf16.gmra.mrb[0].mxu0 %v1057
        %v5145 = vpop.f32.mrb[0].mxu0
        %v5146 = vadd.f32 %v5105, %v5145
        %v5147 = vpop.f32.mrb[0].mxu0
        %v5148 = vadd.f32 %v5107, %v5147
        %v5149 = vpop.f32.mrb[0].mxu0
        %v5150 = vpop.f32.mrb[0].mxu0
        %5151 = vdwg.mxu0
        %5152 = vmatprep.subr.bf16.mxu0 %v3342
        %5153 = vmatpush1.bf16.msra.mxu0 %v3341
        %5154 = vmatprep.subr.bf16.mxu0 %v3346
        %5155 = vmatpush1.bf16.msra.mxu0 %v3345
        %5156 = vmatprep.subr.bf16.mxu0 %v3350
        %5157 = vmatpush1.bf16.msra.mxu0 %v3349
        %5158 = vmatprep.subr.bf16.mxu0 %v3354
        %5159 = vmatpush1.bf16.msra.mxu0 %v3353
        %5160 = vmatprep.subr.bf16.mxu0 %v3358
        %5161 = vmatpush1.bf16.msra.mxu0 %v3357
        %5162 = vmatprep.subr.bf16.mxu0 %v3362
        %5163 = vmatpush1.bf16.msra.mxu0 %v3361
        %5164 = vmatprep.subr.bf16.mxu0 %v3366
        %5165 = vmatpush1.bf16.msra.mxu0 %v3365
        %5166 = vmatprep.subr.bf16.mxu0 %v3370
        %5167 = vmatpush1.bf16.msra.mxu0 %v3369
        %5168 = vmatprep.subr.bf16.mxu0 %v3374
        %5169 = vmatpush1.bf16.msra.mxu0 %v3373
        %5170 = vmatprep.subr.bf16.mxu0 %v3378
        %5171 = vmatpush1.bf16.msra.mxu0 %v3377
        %5172 = vmatprep.subr.bf16.mxu0 %v3382
        %5173 = vmatpush1.bf16.msra.mxu0 %v3381
        %5174 = vmatprep.subr.bf16.mxu0 %v3386
        %5175 = vmatpush1.bf16.msra.mxu0 %v3385
        %5176 = vmatprep.subr.bf16.mxu0 %v3390
        %5177 = vmatpush1.bf16.msra.mxu0 %v3389
        %5178 = vmatprep.subr.bf16.mxu0 %v3394
        %5179 = vmatpush1.bf16.msra.mxu0 %v3393
        %5180 = vmatprep.subr.bf16.mxu0 %v3398
        %5181 = vmatpush1.bf16.msra.mxu0 %v3397
        %5182 = vmatprep.subr.bf16.mxu0 %v3402
        %5183 = vmatpush1.bf16.msra.mxu0 %v3401
        %5184 = vmatprep.mubr.bf16.mxu0 %v1060
        %5185 = vmatmul.mubr.bf16.gmra.mrb[0].mxu0 %v1059
        %v5186 = vpop.f32.mrb[0].mxu0
        %v5187 = vadd.f32 %v5146, %v5186
        %v5188 = vpop.f32.mrb[0].mxu0
        %v5189 = vadd.f32 %v5148, %v5188
        %v5190 = vpop.f32.mrb[0].mxu0
        %v5191 = vpop.f32.mrb[0].mxu0
        %5192 = vdwg.mxu0
        %5193 = vmatprep.subr.bf16.mxu0 %v3406
        %5194 = vmatpush1.bf16.msra.mxu0 %v3405
        %5195 = vmatprep.subr.bf16.mxu0 %v3410
        %5196 = vmatpush1.bf16.msra.mxu0 %v3409
        %5197 = vmatprep.subr.bf16.mxu0 %v3414
        %5198 = vmatpush1.bf16.msra.mxu0 %v3413
        %5199 = vmatprep.subr.bf16.mxu0 %v3418
        %5200 = vmatpush1.bf16.msra.mxu0 %v3417
        %5201 = vmatprep.subr.bf16.mxu0 %v3422
        %5202 = vmatpush1.bf16.msra.mxu0 %v3421
        %5203 = vmatprep.subr.bf16.mxu0 %v3426
        %5204 = vmatpush1.bf16.msra.mxu0 %v3425
        %5205 = vmatprep.subr.bf16.mxu0 %v3430
        %5206 = vmatpush1.bf16.msra.mxu0 %v3429
        %5207 = vmatprep.subr.bf16.mxu0 %v3434
        %5208 = vmatpush1.bf16.msra.mxu0 %v3433
        %5209 = vmatprep.subr.bf16.mxu0 %v3438
        %5210 = vmatpush1.bf16.msra.mxu0 %v3437
        %5211 = vmatprep.subr.bf16.mxu0 %v3442
        %5212 = vmatpush1.bf16.msra.mxu0 %v3441
        %5213 = vmatprep.subr.bf16.mxu0 %v3446
        %5214 = vmatpush1.bf16.msra.mxu0 %v3445
        %5215 = vmatprep.subr.bf16.mxu0 %v3450
        %5216 = vmatpush1.bf16.msra.mxu0 %v3449
        %5217 = vmatprep.subr.bf16.mxu0 %v3454
        %5218 = vmatpush1.bf16.msra.mxu0 %v3453
        %5219 = vmatprep.subr.bf16.mxu0 %v3458
        %5220 = vmatpush1.bf16.msra.mxu0 %v3457
        %5221 = vmatprep.subr.bf16.mxu0 %v3462
        %5222 = vmatpush1.bf16.msra.mxu0 %v3461
        %5223 = vmatprep.subr.bf16.mxu0 %v3466
        %5224 = vmatpush1.bf16.msra.mxu0 %v3465
        %5225 = vmatprep.mubr.bf16.mxu0 %v1062
        %5226 = vmatmul.mubr.bf16.gmra.mrb[0].mxu0 %v1061
        %v5227 = vpop.f32.mrb[0].mxu0
        %v5228 = vadd.f32 %v5187, %v5227
        %v5229 = vpop.f32.mrb[0].mxu0
        %v5230 = vadd.f32 %v5189, %v5229
        %v5231 = vpop.f32.mrb[0].mxu0
        %v5232 = vpop.f32.mrb[0].mxu0
        %5233 = vdwg.mxu0
        %5234 = vmatprep.subr.bf16.mxu0 %v3470
        %5235 = vmatpush1.bf16.msra.mxu0 %v3469
        %5236 = vmatprep.subr.bf16.mxu0 %v3474
        %5237 = vmatpush1.bf16.msra.mxu0 %v3473
        %5238 = vmatprep.subr.bf16.mxu0 %v3478
        %5239 = vmatpush1.bf16.msra.mxu0 %v3477
        %5240 = vmatprep.subr.bf16.mxu0 %v3482
        %5241 = vmatpush1.bf16.msra.mxu0 %v3481
        %5242 = vmatprep.subr.bf16.mxu0 %v3486
        %5243 = vmatpush1.bf16.msra.mxu0 %v3485
        %5244 = vmatprep.subr.bf16.mxu0 %v3490
        %5245 = vmatpush1.bf16.msra.mxu0 %v3489
        %5246 = vmatprep.subr.bf16.mxu0 %v3494
        %5247 = vmatpush1.bf16.msra.mxu0 %v3493
        %5248 = vmatprep.subr.bf16.mxu0 %v3498
        %5249 = vmatpush1.bf16.msra.mxu0 %v3497
        %5250 = vmatprep.subr.bf16.mxu0 %v3502
        %5251 = vmatpush1.bf16.msra.mxu0 %v3501
        %5252 = vmatprep.subr.bf16.mxu0 %v3506
        %5253 = vmatpush1.bf16.msra.mxu0 %v3505
        %5254 = vmatprep.subr.bf16.mxu0 %v3510
        %5255 = vmatpush1.bf16.msra.mxu0 %v3509
        %5256 = vmatprep.subr.bf16.mxu0 %v3514
        %5257 = vmatpush1.bf16.msra.mxu0 %v3513
        %5258 = vmatprep.subr.bf16.mxu0 %v3518
        %5259 = vmatpush1.bf16.msra.mxu0 %v3517
        %5260 = vmatprep.subr.bf16.mxu0 %v3522
        %5261 = vmatpush1.bf16.msra.mxu0 %v3521
        %5262 = vmatprep.subr.bf16.mxu0 %v3526
        %5263 = vmatpush1.bf16.msra.mxu0 %v3525
        %5264 = vmatprep.subr.bf16.mxu0 %v3530
        %5265 = vmatpush1.bf16.msra.mxu0 %v3529
        %5266 = vmatprep.mubr.bf16.mxu0 %v1064
        %5267 = vmatmul.mubr.bf16.gmra.mrb[0].mxu0 %v1063
        %v5268 = vpop.f32.mrb[0].mxu0
        %v5269 = vadd.f32 %v5228, %v5268
        %v5270 = vpop.f32.mrb[0].mxu0
        %v5271 = vadd.f32 %v5230, %v5270
        %v5272 = vpop.f32.mrb[0].mxu0
        %v5273 = vpop.f32.mrb[0].mxu0
        %5274 = vdwg.mxu0
        %5275 = vmatprep.subr.bf16.mxu0 %v3534
        %5276 = vmatpush1.bf16.msra.mxu0 %v3533
        %5277 = vmatprep.subr.bf16.mxu0 %v3538
        %5278 = vmatpush1.bf16.msra.mxu0 %v3537
        %5279 = vmatprep.subr.bf16.mxu0 %v3542
        %5280 = vmatpush1.bf16.msra.mxu0 %v3541
        %5281 = vmatprep.subr.bf16.mxu0 %v3546
        %5282 = vmatpush1.bf16.msra.mxu0 %v3545
        %5283 = vmatprep.subr.bf16.mxu0 %v3550
        %5284 = vmatpush1.bf16.msra.mxu0 %v3549
        %5285 = vmatprep.subr.bf16.mxu0 %v3554
        %5286 = vmatpush1.bf16.msra.mxu0 %v3553
        %5287 = vmatprep.subr.bf16.mxu0 %v3558
        %5288 = vmatpush1.bf16.msra.mxu0 %v3557
        %5289 = vmatprep.subr.bf16.mxu0 %v3562
        %5290 = vmatpush1.bf16.msra.mxu0 %v3561
        %5291 = vmatprep.subr.bf16.mxu0 %v3566
        %5292 = vmatpush1.bf16.msra.mxu0 %v3565
        %5293 = vmatprep.subr.bf16.mxu0 %v3570
        %5294 = vmatpush1.bf16.msra.mxu0 %v3569
        %5295 = vmatprep.subr.bf16.mxu0 %v3574
        %5296 = vmatpush1.bf16.msra.mxu0 %v3573
        %5297 = vmatprep.subr.bf16.mxu0 %v3578
        %5298 = vmatpush1.bf16.msra.mxu0 %v3577
        %5299 = vmatprep.subr.bf16.mxu0 %v3582
        %5300 = vmatpush1.bf16.msra.mxu0 %v3581
        %5301 = vmatprep.subr.bf16.mxu0 %v3586
        %5302 = vmatpush1.bf16.msra.mxu0 %v3585
        %5303 = vmatprep.subr.bf16.mxu0 %v3590
        %5304 = vmatpush1.bf16.msra.mxu0 %v3589
        %5305 = vmatprep.subr.bf16.mxu0 %v3594
        %5306 = vmatpush1.bf16.msra.mxu0 %v3593
        %5307 = vmatprep.mubr.bf16.mxu0 %v1066
        %5308 = vmatmul.mubr.bf16.gmra.mrb[0].mxu0 %v1065
        %v5309 = vpop.f32.mrb[0].mxu0
        %v5310 = vadd.f32 %v5269, %v5309
        %v5311 = vpop.f32.mrb[0].mxu0
        %v5312 = vadd.f32 %v5271, %v5311
        %v5313 = vpop.f32.mrb[0].mxu0
        %v5314 = vpop.f32.mrb[0].mxu0
        %5315 = vdwg.mxu0
        %5316 = vmatprep.subr.bf16.mxu0 %v3598
        %5317 = vmatpush1.bf16.msra.mxu0 %v3597
        %5318 = vmatprep.subr.bf16.mxu0 %v3602
        %5319 = vmatpush1.bf16.msra.mxu0 %v3601
        %5320 = vmatprep.subr.bf16.mxu0 %v3606
        %5321 = vmatpush1.bf16.msra.mxu0 %v3605
        %5322 = vmatprep.subr.bf16.mxu0 %v3610
        %5323 = vmatpush1.bf16.msra.mxu0 %v3609
        %5324 = vmatprep.subr.bf16.mxu0 %v3614
        %5325 = vmatpush1.bf16.msra.mxu0 %v3613
        %5326 = vmatprep.subr.bf16.mxu0 %v3618
        %5327 = vmatpush1.bf16.msra.mxu0 %v3617
        %5328 = vmatprep.subr.bf16.mxu0 %v3622
        %5329 = vmatpush1.bf16.msra.mxu0 %v3621
        %5330 = vmatprep.subr.bf16.mxu0 %v3626
        %5331 = vmatpush1.bf16.msra.mxu0 %v3625
        %5332 = vmatprep.subr.bf16.mxu0 %v3630
        %5333 = vmatpush1.bf16.msra.mxu0 %v3629
        %5334 = vmatprep.subr.bf16.mxu0 %v3634
        %5335 = vmatpush1.bf16.msra.mxu0 %v3633
        %5336 = vmatprep.subr.bf16.mxu0 %v3638
        %5337 = vmatpush1.bf16.msra.mxu0 %v3637
        %5338 = vmatprep.subr.bf16.mxu0 %v3642
        %5339 = vmatpush1.bf16.msra.mxu0 %v3641
        %5340 = vmatprep.subr.bf16.mxu0 %v3646
        %5341 = vmatpush1.bf16.msra.mxu0 %v3645
        %5342 = vmatprep.subr.bf16.mxu0 %v3650
        %5343 = vmatpush1.bf16.msra.mxu0 %v3649
        %5344 = vmatprep.subr.bf16.mxu0 %v3654
        %5345 = vmatpush1.bf16.msra.mxu0 %v3653
        %5346 = vmatprep.subr.bf16.mxu0 %v3658
        %5347 = vmatpush1.bf16.msra.mxu0 %v3657
        %5348 = vmatprep.mubr.bf16.mxu0 %v1068
        %5349 = vmatmul.mubr.bf16.gmra.mrb[0].mxu0 %v1067
        %v5350 = vpop.f32.mrb[0].mxu0
        %v5351 = vadd.f32 %v5310, %v5350
        %v5352 = vpop.f32.mrb[0].mxu0
        %v5353 = vadd.f32 %v5312, %v5352
        %v5354 = vpop.f32.mrb[0].mxu0
        %v5355 = vpop.f32.mrb[0].mxu0
        %5356 = vdwg.mxu0
        %5357 = vmatprep.subr.bf16.mxu0 %v3662
        %5358 = vmatpush1.bf16.msra.mxu0 %v3661
        %5359 = vmatprep.subr.bf16.mxu0 %v3666
        %5360 = vmatpush1.bf16.msra.mxu0 %v3665
        %5361 = vmatprep.subr.bf16.mxu0 %v3670
        %5362 = vmatpush1.bf16.msra.mxu0 %v3669
        %5363 = vmatprep.subr.bf16.mxu0 %v3674
        %5364 = vmatpush1.bf16.msra.mxu0 %v3673
        %5365 = vmatprep.subr.bf16.mxu0 %v3678
        %5366 = vmatpush1.bf16.msra.mxu0 %v3677
        %5367 = vmatprep.subr.bf16.mxu0 %v3682
        %5368 = vmatpush1.bf16.msra.mxu0 %v3681
        %5369 = vmatprep.subr.bf16.mxu0 %v3686
        %5370 = vmatpush1.bf16.msra.mxu0 %v3685
        %5371 = vmatprep.subr.bf16.mxu0 %v3690
        %5372 = vmatpush1.bf16.msra.mxu0 %v3689
        %5373 = vmatprep.subr.bf16.mxu0 %v3694
        %5374 = vmatpush1.bf16.msra.mxu0 %v3693
        %5375 = vmatprep.subr.bf16.mxu0 %v3698
        %5376 = vmatpush1.bf16.msra.mxu0 %v3697
        %5377 = vmatprep.subr.bf16.mxu0 %v3702
        %5378 = vmatpush1.bf16.msra.mxu0 %v3701
        %5379 = vmatprep.subr.bf16.mxu0 %v3706
        %5380 = vmatpush1.bf16.msra.mxu0 %v3705
        %5381 = vmatprep.subr.bf16.mxu0 %v3710
        %5382 = vmatpush1.bf16.msra.mxu0 %v3709
        %5383 = vmatprep.subr.bf16.mxu0 %v3714
        %5384 = vmatpush1.bf16.msra.mxu0 %v3713
        %5385 = vmatprep.subr.bf16.mxu0 %v3718
        %5386 = vmatpush1.bf16.msra.mxu0 %v3717
        %5387 = vmatprep.subr.bf16.mxu0 %v3722
        %5388 = vmatpush1.bf16.msra.mxu0 %v3721
        %5389 = vmatprep.mubr.bf16.mxu0 %v1070
        %5390 = vmatmul.mubr.bf16.gmra.mrb[0].mxu0 %v1069
        %v5391 = vpop.f32.mrb[0].mxu0
        %v5392 = vadd.f32 %v5351, %v5391
        %v5393 = vpop.f32.mrb[0].mxu0
        %v5394 = vadd.f32 %v5353, %v5393
        %v5395 = vpop.f32.mrb[0].mxu0
        %v5396 = vpop.f32.mrb[0].mxu0
        %5397 = vdwg.mxu0
        %5398 = vmatprep.subr.bf16.mxu0 %v3726
        %5399 = vmatpush1.bf16.msra.mxu0 %v3725
        %5400 = vmatprep.subr.bf16.mxu0 %v3730
        %5401 = vmatpush1.bf16.msra.mxu0 %v3729
        %5402 = vmatprep.subr.bf16.mxu0 %v3734
        %5403 = vmatpush1.bf16.msra.mxu0 %v3733
        %5404 = vmatprep.subr.bf16.mxu0 %v3738
        %5405 = vmatpush1.bf16.msra.mxu0 %v3737
        %5406 = vmatprep.subr.bf16.mxu0 %v3742
        %5407 = vmatpush1.bf16.msra.mxu0 %v3741
        %5408 = vmatprep.subr.bf16.mxu0 %v3746
        %5409 = vmatpush1.bf16.msra.mxu0 %v3745
        %5410 = vmatprep.subr.bf16.mxu0 %v3750
        %5411 = vmatpush1.bf16.msra.mxu0 %v3749
        %5412 = vmatprep.subr.bf16.mxu0 %v3754
        %5413 = vmatpush1.bf16.msra.mxu0 %v3753
        %5414 = vmatprep.subr.bf16.mxu0 %v3758
        %5415 = vmatpush1.bf16.msra.mxu0 %v3757
        %5416 = vmatprep.subr.bf16.mxu0 %v3762
        %5417 = vmatpush1.bf16.msra.mxu0 %v3761
        %5418 = vmatprep.subr.bf16.mxu0 %v3766
        %5419 = vmatpush1.bf16.msra.mxu0 %v3765
        %5420 = vmatprep.subr.bf16.mxu0 %v3770
        %5421 = vmatpush1.bf16.msra.mxu0 %v3769
        %5422 = vmatprep.subr.bf16.mxu0 %v3774
        %5423 = vmatpush1.bf16.msra.mxu0 %v3773
        %5424 = vmatprep.subr.bf16.mxu0 %v3778
        %5425 = vmatpush1.bf16.msra.mxu0 %v3777
        %5426 = vmatprep.subr.bf16.mxu0 %v3782
        %5427 = vmatpush1.bf16.msra.mxu0 %v3781
        %5428 = vmatprep.subr.bf16.mxu0 %v3786
        %5429 = vmatpush1.bf16.msra.mxu0 %v3785
        %5430 = vmatprep.mubr.bf16.mxu0 %v1072
        %5431 = vmatmul.mubr.bf16.gmra.mrb[0].mxu0 %v1071
        %v5432 = vpop.f32.mrb[0].mxu0
        %v5433 = vadd.f32 %v5392, %v5432
        %v5434 = vpop.f32.mrb[0].mxu0
        %v5435 = vadd.f32 %v5394, %v5434
        %v5436 = vpop.f32.mrb[0].mxu0
        %v5437 = vpop.f32.mrb[0].mxu0
        %5438 = vdwg.mxu0
        %5439 = vmatprep.subr.bf16.mxu0 %v3790
        %5440 = vmatpush1.bf16.msra.mxu0 %v3789
        %5441 = vmatprep.subr.bf16.mxu0 %v3794
        %5442 = vmatpush1.bf16.msra.mxu0 %v3793
        %5443 = vmatprep.subr.bf16.mxu0 %v3798
        %5444 = vmatpush1.bf16.msra.mxu0 %v3797
        %5445 = vmatprep.subr.bf16.mxu0 %v3802
        %5446 = vmatpush1.bf16.msra.mxu0 %v3801
        %5447 = vmatprep.subr.bf16.mxu0 %v3806
        %5448 = vmatpush1.bf16.msra.mxu0 %v3805
        %5449 = vmatprep.subr.bf16.mxu0 %v3810
        %5450 = vmatpush1.bf16.msra.mxu0 %v3809
        %5451 = vmatprep.subr.bf16.mxu0 %v3814
        %5452 = vmatpush1.bf16.msra.mxu0 %v3813
        %5453 = vmatprep.subr.bf16.mxu0 %v3818
        %5454 = vmatpush1.bf16.msra.mxu0 %v3817
        %5455 = vmatprep.subr.bf16.mxu0 %v3822
        %5456 = vmatpush1.bf16.msra.mxu0 %v3821
        %5457 = vmatprep.subr.bf16.mxu0 %v3826
        %5458 = vmatpush1.bf16.msra.mxu0 %v3825
        %5459 = vmatprep.subr.bf16.mxu0 %v3830
        %5460 = vmatpush1.bf16.msra.mxu0 %v3829
        %5461 = vmatprep.subr.bf16.mxu0 %v3834
        %5462 = vmatpush1.bf16.msra.mxu0 %v3833
        %5463 = vmatprep.subr.bf16.mxu0 %v3838
        %5464 = vmatpush1.bf16.msra.mxu0 %v3837
        %5465 = vmatprep.subr.bf16.mxu0 %v3842
        %5466 = vmatpush1.bf16.msra.mxu0 %v3841
        %5467 = vmatprep.subr.bf16.mxu0 %v3846
        %5468 = vmatpush1.bf16.msra.mxu0 %v3845
        %5469 = vmatprep.subr.bf16.mxu0 %v3850
        %5470 = vmatpush1.bf16.msra.mxu0 %v3849
        %5471 = vmatprep.mubr.bf16.mxu0 %v1074
        %5472 = vmatmul.mubr.bf16.gmra.mrb[0].mxu0 %v1073
        %v5473 = vpop.f32.mrb[0].mxu0
        %v5474 = vadd.f32 %v5433, %v5473
        %v5475 = vpop.f32.mrb[0].mxu0
        %v5476 = vadd.f32 %v5435, %v5475
        %v5477 = vpop.f32.mrb[0].mxu0
        %v5478 = vpop.f32.mrb[0].mxu0
        %5479 = vdwg.mxu0
        %5480 = vmatprep.subr.bf16.mxu0 %v3854
        %5481 = vmatpush1.bf16.msra.mxu0 %v3853
        %5482 = vmatprep.subr.bf16.mxu0 %v3858
        %5483 = vmatpush1.bf16.msra.mxu0 %v3857
        %5484 = vmatprep.subr.bf16.mxu0 %v3862
        %5485 = vmatpush1.bf16.msra.mxu0 %v3861
        %5486 = vmatprep.subr.bf16.mxu0 %v3866
        %5487 = vmatpush1.bf16.msra.mxu0 %v3865
        %5488 = vmatprep.subr.bf16.mxu0 %v3870
        %5489 = vmatpush1.bf16.msra.mxu0 %v3869
        %5490 = vmatprep.subr.bf16.mxu0 %v3874
        %5491 = vmatpush1.bf16.msra.mxu0 %v3873
        %5492 = vmatprep.subr.bf16.mxu0 %v3878
        %5493 = vmatpush1.bf16.msra.mxu0 %v3877
        %5494 = vmatprep.subr.bf16.mxu0 %v3882
        %5495 = vmatpush1.bf16.msra.mxu0 %v3881
        %5496 = vmatprep.subr.bf16.mxu0 %v3886
        %5497 = vmatpush1.bf16.msra.mxu0 %v3885
        %5498 = vmatprep.subr.bf16.mxu0 %v3890
        %5499 = vmatpush1.bf16.msra.mxu0 %v3889
        %5500 = vmatprep.subr.bf16.mxu0 %v3894
        %5501 = vmatpush1.bf16.msra.mxu0 %v3893
        %5502 = vmatprep.subr.bf16.mxu0 %v3898
        %5503 = vmatpush1.bf16.msra.mxu0 %v3897
        %5504 = vmatprep.subr.bf16.mxu0 %v3902
        %5505 = vmatpush1.bf16.msra.mxu0 %v3901
        %5506 = vmatprep.subr.bf16.mxu0 %v3906
        %5507 = vmatpush1.bf16.msra.mxu0 %v3905
        %5508 = vmatprep.subr.bf16.mxu0 %v3910
        %5509 = vmatpush1.bf16.msra.mxu0 %v3909
        %5510 = vmatprep.subr.bf16.mxu0 %v3914
        %5511 = vmatpush1.bf16.msra.mxu0 %v3913
        %5512 = vmatprep.mubr.bf16.mxu0 %v1076
        %5513 = vmatmul.mubr.bf16.gmra.mrb[0].mxu0 %v1075
        %v5514 = vpop.f32.mrb[0].mxu0
        %v5515 = vadd.f32 %v5474, %v5514
        %v5516 = vpop.f32.mrb[0].mxu0
        %v5517 = vadd.f32 %v5476, %v5516
        %v5518 = vpop.f32.mrb[0].mxu0
        %v5519 = vpop.f32.mrb[0].mxu0
        %5520 = vdwg.mxu0
        %v5521 = vadd.f32 %v303, %v5064
        %v5522 = vadd.f32 %v304, %v5066
        %v5523 = vadd.f32 %v305, %v5515
        %v5524 = vadd.f32 %v306, %v5517
        %5525 = vst [vmem:[#allocation2] sm:$0xff] %v5521
        %5526 = vst [vmem:[#allocation2 + $0x8] sm:$0xff] %v5522
        %5527 = vst [vmem:[#allocation2 + $0x10] sm:$0xff] %v5523
        %5528 = vst [vmem:[#allocation2 + $0x18] sm:$0xff] %v5524
        %p5529 = scmp.eq.s32.totalorder %s24, 7
        // Predicated region
        $region49: #{_forward.3} parent=39 // pred_check
          %p5530 = pneg %p5529
        $region50: #{_forward.3} parent=39 // pred_check_branch
          %5532 = sbr.rel (%p5530) target = $region52
        $region51: #{_forward.3} parent=39 // pred_region
          %v5533 = vld [vmem:[#allocation2] sm:$0xff]
          %v5534 = vld [vmem:[#allocation2 + $0x8] sm:$0xff]
          %v5535 = vld [vmem:[#allocation2 + $0x10] sm:$0xff]
          %v5536 = vld [vmem:[#allocation2 + $0x18] sm:$0xff]
          %v5537 = vld [vmem:[%s2] sm:$0xf]
          %v5539 = vlaneseq
          %v5540 = vshrl.u32 %v5539, 7
          %v5541 = vsub.s32 0, %v5540
          %v5542 = vrot.slane %v5537, %v5541
          %v5543 = vlaneseq
          %v5544 = vshrl.u32 %v5543, 7
          %v5545 = vsub.s32 1, %v5544
          %v5546 = vrot.slane %v5537, %v5545
          %v5547 = vlaneseq
          %v5548 = vshrl.u32 %v5547, 7
          %v5549 = vsub.s32 2, %v5548
          %v5550 = vrot.slane %v5537, %v5549
          %v5551 = vlaneseq
          %v5552 = vshrl.u32 %v5551, 7
          %v5553 = vsub.s32 3, %v5552
          %v5554 = vrot.slane %v5537, %v5553
          %v5559 = vadd.f32 %v5533, %v5542
          %v5560 = vadd.f32 %v5534, %v5546
          %v5561 = vadd.f32 %v5535, %v5550
          %v5562 = vadd.f32 %v5536, %v5554
          %v5563 = vmax.f32 %v5559, 0.0
          %v5564 = vmax.f32 %v5560, 0.0
          %v5565 = vmax.f32 %v5561, 0.0
          %v5566 = vmax.f32 %v5562, 0.0
          %v5567 = vpack.c.bf16 %v5563, %v5563
          %v5568 = vpack.c.bf16 %v5564, %v5564
          %v5569 = vpack.c.bf16 %v5565, %v5565
          %v5570 = vpack.c.bf16 %v5566, %v5566
          %v5571 = vld [vmem:[%s3] sm:$0xff]
          %v5572 = vld [vmem:[%s3 + $0x8] sm:$0xff]
          %v5573 = vld [vmem:[%s3 + $0x10] sm:$0xff]
          %v5574 = vld [vmem:[%s3 + $0x18] sm:$0xff]
          %v5575 = vld [vmem:[%s3 + $0x20] sm:$0xff]
          %v5576 = vld [vmem:[%s3 + $0x28] sm:$0xff]
          %v5577 = vld [vmem:[%s3 + $0x30] sm:$0xff]
          %v5578 = vld [vmem:[%s3 + $0x38] sm:$0xff]
          %v5579 = vld [vmem:[%s3 + $0x40] sm:$0xff]
          %v5580 = vld [vmem:[%s3 + $0x48] sm:$0xff]
          %v5581 = vld [vmem:[%s3 + $0x50] sm:$0xff]
          %v5582 = vld [vmem:[%s3 + $0x58] sm:$0xff]
          %v5583 = vld [vmem:[%s3 + $0x60] sm:$0xff]
          %v5584 = vld [vmem:[%s3 + $0x68] sm:$0xff]
          %v5585 = vld [vmem:[%s3 + $0x70] sm:$0xff]
          %v5586 = vld [vmem:[%s3 + $0x78] sm:$0xff]
          %v5587 = vld [vmem:[%s3 + $0x80] sm:$0xff]
          %v5588 = vld [vmem:[%s3 + $0x88] sm:$0xff]
          %v5589 = vld [vmem:[%s3 + $0x90] sm:$0xff]
          %v5590 = vld [vmem:[%s3 + $0x98] sm:$0xff]
          %v5591 = vld [vmem:[%s3 + $0xa0] sm:$0xff]
          %v5592 = vld [vmem:[%s3 + $0xa8] sm:$0xff]
          %v5593 = vld [vmem:[%s3 + $0xb0] sm:$0xff]
          %v5594 = vld [vmem:[%s3 + $0xb8] sm:$0xff]
          %v5595 = vld [vmem:[%s3 + $0xc0] sm:$0xff]
          %v5596 = vld [vmem:[%s3 + $0xc8] sm:$0xff]
          %v5597 = vld [vmem:[%s3 + $0xd0] sm:$0xff]
          %v5598 = vld [vmem:[%s3 + $0xd8] sm:$0xff]
          %v5599 = vld [vmem:[%s3 + $0xe0] sm:$0xff]
          %v5600 = vld [vmem:[%s3 + $0xe8] sm:$0xff]
          %v5601 = vld [vmem:[%s3 + $0xf0] sm:$0xff]
          %v5602 = vld [vmem:[%s3 + $0xf8] sm:$0xff]
          %v5603 = vld [vmem:[%s3 + $0x100] sm:$0xff]
          %v5604 = vld [vmem:[%s3 + $0x108] sm:$0xff]
          %v5605 = vld [vmem:[%s3 + $0x110] sm:$0xff]
          %v5606 = vld [vmem:[%s3 + $0x118] sm:$0xff]
          %v5607 = vld [vmem:[%s3 + $0x120] sm:$0xff]
          %v5608 = vld [vmem:[%s3 + $0x128] sm:$0xff]
          %v5609 = vld [vmem:[%s3 + $0x130] sm:$0xff]
          %v5610 = vld [vmem:[%s3 + $0x138] sm:$0xff]
          %v5611 = vld [vmem:[%s3 + $0x140] sm:$0xff]
          %v5612 = vld [vmem:[%s3 + $0x148] sm:$0xff]
          %v5613 = vld [vmem:[%s3 + $0x150] sm:$0xff]
          %v5614 = vld [vmem:[%s3 + $0x158] sm:$0xff]
          %v5615 = vld [vmem:[%s3 + $0x160] sm:$0xff]
          %v5616 = vld [vmem:[%s3 + $0x168] sm:$0xff]
          %v5617 = vld [vmem:[%s3 + $0x170] sm:$0xff]
          %v5618 = vld [vmem:[%s3 + $0x178] sm:$0xff]
          %v5619 = vld [vmem:[%s3 + $0x180] sm:$0xff]
          %v5620 = vld [vmem:[%s3 + $0x188] sm:$0xff]
          %v5621 = vld [vmem:[%s3 + $0x190] sm:$0xff]
          %v5622 = vld [vmem:[%s3 + $0x198] sm:$0xff]
          %v5623 = vld [vmem:[%s3 + $0x1a0] sm:$0xff]
          %v5624 = vld [vmem:[%s3 + $0x1a8] sm:$0xff]
          %v5625 = vld [vmem:[%s3 + $0x1b0] sm:$0xff]
          %v5626 = vld [vmem:[%s3 + $0x1b8] sm:$0xff]
          %v5627 = vld [vmem:[%s3 + $0x1c0] sm:$0xff]
          %v5628 = vld [vmem:[%s3 + $0x1c8] sm:$0xff]
          %v5629 = vld [vmem:[%s3 + $0x1d0] sm:$0xff]
          %v5630 = vld [vmem:[%s3 + $0x1d8] sm:$0xff]
          %v5631 = vld [vmem:[%s3 + $0x1e0] sm:$0xff]
          %v5632 = vld [vmem:[%s3 + $0x1e8] sm:$0xff]
          %v5633 = vld [vmem:[%s3 + $0x1f0] sm:$0xff]
          %v5634 = vld [vmem:[%s3 + $0x1f8] sm:$0xff]
          %v5635 = vld [vmem:[%s3 + $0x200] sm:$0xff]
          %v5636 = vld [vmem:[%s3 + $0x208] sm:$0xff]
          %v5637 = vld [vmem:[%s3 + $0x210] sm:$0xff]
          %v5638 = vld [vmem:[%s3 + $0x218] sm:$0xff]
          %v5639 = vld [vmem:[%s3 + $0x220] sm:$0xff]
          %v5640 = vld [vmem:[%s3 + $0x228] sm:$0xff]
          %v5641 = vld [vmem:[%s3 + $0x230] sm:$0xff]
          %v5642 = vld [vmem:[%s3 + $0x238] sm:$0xff]
          %v5643 = vld [vmem:[%s3 + $0x240] sm:$0xff]
          %v5644 = vld [vmem:[%s3 + $0x248] sm:$0xff]
          %v5645 = vld [vmem:[%s3 + $0x250] sm:$0xff]
          %v5646 = vld [vmem:[%s3 + $0x258] sm:$0xff]
          %v5647 = vld [vmem:[%s3 + $0x260] sm:$0xff]
          %v5648 = vld [vmem:[%s3 + $0x268] sm:$0xff]
          %v5649 = vld [vmem:[%s3 + $0x270] sm:$0xff]
          %v5650 = vld [vmem:[%s3 + $0x278] sm:$0xff]
          %v5651 = vld [vmem:[%s3 + $0x280] sm:$0xff]
          %v5652 = vld [vmem:[%s3 + $0x288] sm:$0xff]
          %v5653 = vld [vmem:[%s3 + $0x290] sm:$0xff]
          %v5654 = vld [vmem:[%s3 + $0x298] sm:$0xff]
          %v5655 = vld [vmem:[%s3 + $0x2a0] sm:$0xff]
          %v5656 = vld [vmem:[%s3 + $0x2a8] sm:$0xff]
          %v5657 = vld [vmem:[%s3 + $0x2b0] sm:$0xff]
          %v5658 = vld [vmem:[%s3 + $0x2b8] sm:$0xff]
          %v5659 = vld [vmem:[%s3 + $0x2c0] sm:$0xff]
          %v5660 = vld [vmem:[%s3 + $0x2c8] sm:$0xff]
          %v5661 = vld [vmem:[%s3 + $0x2d0] sm:$0xff]
          %v5662 = vld [vmem:[%s3 + $0x2d8] sm:$0xff]
          %v5663 = vld [vmem:[%s3 + $0x2e0] sm:$0xff]
          %v5664 = vld [vmem:[%s3 + $0x2e8] sm:$0xff]
          %v5665 = vld [vmem:[%s3 + $0x2f0] sm:$0xff]
          %v5666 = vld [vmem:[%s3 + $0x2f8] sm:$0xff]
          %v5667 = vld [vmem:[%s3 + $0x300] sm:$0xff]
          %v5668 = vld [vmem:[%s3 + $0x308] sm:$0xff]
          %v5669 = vld [vmem:[%s3 + $0x310] sm:$0xff]
          %v5670 = vld [vmem:[%s3 + $0x318] sm:$0xff]
          %v5671 = vld [vmem:[%s3 + $0x320] sm:$0xff]
          %v5672 = vld [vmem:[%s3 + $0x328] sm:$0xff]
          %v5673 = vld [vmem:[%s3 + $0x330] sm:$0xff]
          %v5674 = vld [vmem:[%s3 + $0x338] sm:$0xff]
          %v5675 = vld [vmem:[%s3 + $0x340] sm:$0xff]
          %v5676 = vld [vmem:[%s3 + $0x348] sm:$0xff]
          %v5677 = vld [vmem:[%s3 + $0x350] sm:$0xff]
          %v5678 = vld [vmem:[%s3 + $0x358] sm:$0xff]
          %v5679 = vld [vmem:[%s3 + $0x360] sm:$0xff]
          %v5680 = vld [vmem:[%s3 + $0x368] sm:$0xff]
          %v5681 = vld [vmem:[%s3 + $0x370] sm:$0xff]
          %v5682 = vld [vmem:[%s3 + $0x378] sm:$0xff]
          %v5683 = vld [vmem:[%s3 + $0x380] sm:$0xff]
          %v5684 = vld [vmem:[%s3 + $0x388] sm:$0xff]
          %v5685 = vld [vmem:[%s3 + $0x390] sm:$0xff]
          %v5686 = vld [vmem:[%s3 + $0x398] sm:$0xff]
          %v5687 = vld [vmem:[%s3 + $0x3a0] sm:$0xff]
          %v5688 = vld [vmem:[%s3 + $0x3a8] sm:$0xff]
          %v5689 = vld [vmem:[%s3 + $0x3b0] sm:$0xff]
          %v5690 = vld [vmem:[%s3 + $0x3b8] sm:$0xff]
          %v5691 = vld [vmem:[%s3 + $0x3c0] sm:$0xff]
          %v5692 = vld [vmem:[%s3 + $0x3c8] sm:$0xff]
          %v5693 = vld [vmem:[%s3 + $0x3d0] sm:$0xff]
          %v5694 = vld [vmem:[%s3 + $0x3d8] sm:$0xff]
          %v5695 = vld [vmem:[%s3 + $0x3e0] sm:$0xff]
          %v5696 = vld [vmem:[%s3 + $0x3e8] sm:$0xff]
          %v5697 = vld [vmem:[%s3 + $0x3f0] sm:$0xff]
          %v5698 = vld [vmem:[%s3 + $0x3f8] sm:$0xff]
          %v5699 = vld [vmem:[%s3 + $0x400] sm:$0xff]
          %v5700 = vld [vmem:[%s3 + $0x408] sm:$0xff]
          %v5701 = vld [vmem:[%s3 + $0x410] sm:$0xff]
          %v5702 = vld [vmem:[%s3 + $0x418] sm:$0xff]
          %v5703 = vld [vmem:[%s3 + $0x420] sm:$0xff]
          %v5704 = vld [vmem:[%s3 + $0x428] sm:$0xff]
          %v5705 = vld [vmem:[%s3 + $0x430] sm:$0xff]
          %v5706 = vld [vmem:[%s3 + $0x438] sm:$0xff]
          %v5707 = vld [vmem:[%s3 + $0x440] sm:$0xff]
          %v5708 = vld [vmem:[%s3 + $0x448] sm:$0xff]
          %v5709 = vld [vmem:[%s3 + $0x450] sm:$0xff]
          %v5710 = vld [vmem:[%s3 + $0x458] sm:$0xff]
          %v5711 = vld [vmem:[%s3 + $0x460] sm:$0xff]
          %v5712 = vld [vmem:[%s3 + $0x468] sm:$0xff]
          %v5713 = vld [vmem:[%s3 + $0x470] sm:$0xff]
          %v5714 = vld [vmem:[%s3 + $0x478] sm:$0xff]
          %v5715 = vld [vmem:[%s3 + $0x480] sm:$0xff]
          %v5716 = vld [vmem:[%s3 + $0x488] sm:$0xff]
          %v5717 = vld [vmem:[%s3 + $0x490] sm:$0xff]
          %v5718 = vld [vmem:[%s3 + $0x498] sm:$0xff]
          %v5719 = vld [vmem:[%s3 + $0x4a0] sm:$0xff]
          %v5720 = vld [vmem:[%s3 + $0x4a8] sm:$0xff]
          %v5721 = vld [vmem:[%s3 + $0x4b0] sm:$0xff]
          %v5722 = vld [vmem:[%s3 + $0x4b8] sm:$0xff]
          %v5723 = vld [vmem:[%s3 + $0x4c0] sm:$0xff]
          %v5724 = vld [vmem:[%s3 + $0x4c8] sm:$0xff]
          %v5725 = vld [vmem:[%s3 + $0x4d0] sm:$0xff]
          %v5726 = vld [vmem:[%s3 + $0x4d8] sm:$0xff]
          %v5727 = vld [vmem:[%s3 + $0x4e0] sm:$0xff]
          %v5728 = vld [vmem:[%s3 + $0x4e8] sm:$0xff]
          %v5729 = vld [vmem:[%s3 + $0x4f0] sm:$0xff]
          %v5730 = vld [vmem:[%s3 + $0x4f8] sm:$0xff]
          %v5731 = vld [vmem:[%s3 + $0x500] sm:$0xff]
          %v5732 = vld [vmem:[%s3 + $0x508] sm:$0xff]
          %v5733 = vld [vmem:[%s3 + $0x510] sm:$0xff]
          %v5734 = vld [vmem:[%s3 + $0x518] sm:$0xff]
          %v5735 = vld [vmem:[%s3 + $0x520] sm:$0xff]
          %v5736 = vld [vmem:[%s3 + $0x528] sm:$0xff]
          %v5737 = vld [vmem:[%s3 + $0x530] sm:$0xff]
          %v5738 = vld [vmem:[%s3 + $0x538] sm:$0xff]
          %v5739 = vld [vmem:[%s3 + $0x540] sm:$0xff]
          %v5740 = vld [vmem:[%s3 + $0x548] sm:$0xff]
          %v5741 = vld [vmem:[%s3 + $0x550] sm:$0xff]
          %v5742 = vld [vmem:[%s3 + $0x558] sm:$0xff]
          %v5743 = vld [vmem:[%s3 + $0x560] sm:$0xff]
          %v5744 = vld [vmem:[%s3 + $0x568] sm:$0xff]
          %v5745 = vld [vmem:[%s3 + $0x570] sm:$0xff]
          %v5746 = vld [vmem:[%s3 + $0x578] sm:$0xff]
          %v5747 = vld [vmem:[%s3 + $0x580] sm:$0xff]
          %v5748 = vld [vmem:[%s3 + $0x588] sm:$0xff]
          %v5749 = vld [vmem:[%s3 + $0x590] sm:$0xff]
          %v5750 = vld [vmem:[%s3 + $0x598] sm:$0xff]
          %v5751 = vld [vmem:[%s3 + $0x5a0] sm:$0xff]
          %v5752 = vld [vmem:[%s3 + $0x5a8] sm:$0xff]
          %v5753 = vld [vmem:[%s3 + $0x5b0] sm:$0xff]
          %v5754 = vld [vmem:[%s3 + $0x5b8] sm:$0xff]
          %v5755 = vld [vmem:[%s3 + $0x5c0] sm:$0xff]
          %v5756 = vld [vmem:[%s3 + $0x5c8] sm:$0xff]
          %v5757 = vld [vmem:[%s3 + $0x5d0] sm:$0xff]
          %v5758 = vld [vmem:[%s3 + $0x5d8] sm:$0xff]
          %v5759 = vld [vmem:[%s3 + $0x5e0] sm:$0xff]
          %v5760 = vld [vmem:[%s3 + $0x5e8] sm:$0xff]
          %v5761 = vld [vmem:[%s3 + $0x5f0] sm:$0xff]
          %v5762 = vld [vmem:[%s3 + $0x5f8] sm:$0xff]
          %v5763 = vld [vmem:[%s3 + $0x600] sm:$0xff]
          %v5764 = vld [vmem:[%s3 + $0x608] sm:$0xff]
          %v5765 = vld [vmem:[%s3 + $0x610] sm:$0xff]
          %v5766 = vld [vmem:[%s3 + $0x618] sm:$0xff]
          %v5767 = vld [vmem:[%s3 + $0x620] sm:$0xff]
          %v5768 = vld [vmem:[%s3 + $0x628] sm:$0xff]
          %v5769 = vld [vmem:[%s3 + $0x630] sm:$0xff]
          %v5770 = vld [vmem:[%s3 + $0x638] sm:$0xff]
          %v5771 = vld [vmem:[%s3 + $0x640] sm:$0xff]
          %v5772 = vld [vmem:[%s3 + $0x648] sm:$0xff]
          %v5773 = vld [vmem:[%s3 + $0x650] sm:$0xff]
          %v5774 = vld [vmem:[%s3 + $0x658] sm:$0xff]
          %v5775 = vld [vmem:[%s3 + $0x660] sm:$0xff]
          %v5776 = vld [vmem:[%s3 + $0x668] sm:$0xff]
          %v5777 = vld [vmem:[%s3 + $0x670] sm:$0xff]
          %v5778 = vld [vmem:[%s3 + $0x678] sm:$0xff]
          %v5779 = vld [vmem:[%s3 + $0x680] sm:$0xff]
          %v5780 = vld [vmem:[%s3 + $0x688] sm:$0xff]
          %v5781 = vld [vmem:[%s3 + $0x690] sm:$0xff]
          %v5782 = vld [vmem:[%s3 + $0x698] sm:$0xff]
          %v5783 = vld [vmem:[%s3 + $0x6a0] sm:$0xff]
          %v5784 = vld [vmem:[%s3 + $0x6a8] sm:$0xff]
          %v5785 = vld [vmem:[%s3 + $0x6b0] sm:$0xff]
          %v5786 = vld [vmem:[%s3 + $0x6b8] sm:$0xff]
          %v5787 = vld [vmem:[%s3 + $0x6c0] sm:$0xff]
          %v5788 = vld [vmem:[%s3 + $0x6c8] sm:$0xff]
          %v5789 = vld [vmem:[%s3 + $0x6d0] sm:$0xff]
          %v5790 = vld [vmem:[%s3 + $0x6d8] sm:$0xff]
          %v5791 = vld [vmem:[%s3 + $0x6e0] sm:$0xff]
          %v5792 = vld [vmem:[%s3 + $0x6e8] sm:$0xff]
          %v5793 = vld [vmem:[%s3 + $0x6f0] sm:$0xff]
          %v5794 = vld [vmem:[%s3 + $0x6f8] sm:$0xff]
          %v5795 = vld [vmem:[%s3 + $0x700] sm:$0xff]
          %v5796 = vld [vmem:[%s3 + $0x708] sm:$0xff]
          %v5797 = vld [vmem:[%s3 + $0x710] sm:$0xff]
          %v5798 = vld [vmem:[%s3 + $0x718] sm:$0xff]
          %v5799 = vld [vmem:[%s3 + $0x720] sm:$0xff]
          %v5800 = vld [vmem:[%s3 + $0x728] sm:$0xff]
          %v5801 = vld [vmem:[%s3 + $0x730] sm:$0xff]
          %v5802 = vld [vmem:[%s3 + $0x738] sm:$0xff]
          %v5803 = vld [vmem:[%s3 + $0x740] sm:$0xff]
          %v5804 = vld [vmem:[%s3 + $0x748] sm:$0xff]
          %v5805 = vld [vmem:[%s3 + $0x750] sm:$0xff]
          %v5806 = vld [vmem:[%s3 + $0x758] sm:$0xff]
          %v5807 = vld [vmem:[%s3 + $0x760] sm:$0xff]
          %v5808 = vld [vmem:[%s3 + $0x768] sm:$0xff]
          %v5809 = vld [vmem:[%s3 + $0x770] sm:$0xff]
          %v5810 = vld [vmem:[%s3 + $0x778] sm:$0xff]
          %v5811 = vld [vmem:[%s3 + $0x780] sm:$0xff]
          %v5812 = vld [vmem:[%s3 + $0x788] sm:$0xff]
          %v5813 = vld [vmem:[%s3 + $0x790] sm:$0xff]
          %v5814 = vld [vmem:[%s3 + $0x798] sm:$0xff]
          %v5815 = vld [vmem:[%s3 + $0x7a0] sm:$0xff]
          %v5816 = vld [vmem:[%s3 + $0x7a8] sm:$0xff]
          %v5817 = vld [vmem:[%s3 + $0x7b0] sm:$0xff]
          %v5818 = vld [vmem:[%s3 + $0x7b8] sm:$0xff]
          %v5819 = vld [vmem:[%s3 + $0x7c0] sm:$0xff]
          %v5820 = vld [vmem:[%s3 + $0x7c8] sm:$0xff]
          %v5821 = vld [vmem:[%s3 + $0x7d0] sm:$0xff]
          %v5822 = vld [vmem:[%s3 + $0x7d8] sm:$0xff]
          %v5823 = vld [vmem:[%s3 + $0x7e0] sm:$0xff]
          %v5824 = vld [vmem:[%s3 + $0x7e8] sm:$0xff]
          %v5825 = vld [vmem:[%s3 + $0x7f0] sm:$0xff]
          %v5826 = vld [vmem:[%s3 + $0x7f8] sm:$0xff]
          %v5827 = vld [vmem:[%s4] sm:$0xff]
          %v5829 = vlaneseq
          %v5830 = vshrl.u32 %v5829, 7
          %v5831 = vsub.s32 0, %v5830
          %v5832 = vrot.slane %v5827, %v5831
          %v5833 = vlaneseq
          %v5834 = vshrl.u32 %v5833, 7
          %v5835 = vsub.s32 1, %v5834
          %v5836 = vrot.slane %v5827, %v5835
          %v5837 = vlaneseq
          %v5838 = vshrl.u32 %v5837, 7
          %v5839 = vsub.s32 2, %v5838
          %v5840 = vrot.slane %v5827, %v5839
          %v5841 = vlaneseq
          %v5842 = vshrl.u32 %v5841, 7
          %v5843 = vsub.s32 3, %v5842
          %v5844 = vrot.slane %v5827, %v5843
          %v5845 = vlaneseq
          %v5846 = vshrl.u32 %v5845, 7
          %v5847 = vsub.s32 4, %v5846
          %v5848 = vrot.slane %v5827, %v5847
          %v5849 = vlaneseq
          %v5850 = vshrl.u32 %v5849, 7
          %v5851 = vsub.s32 5, %v5850
          %v5852 = vrot.slane %v5827, %v5851
          %v5853 = vlaneseq
          %v5854 = vshrl.u32 %v5853, 7
          %v5855 = vsub.s32 6, %v5854
          %v5856 = vrot.slane %v5827, %v5855
          %v5857 = vlaneseq
          %v5858 = vshrl.u32 %v5857, 7
          %v5859 = vsub.s32 7, %v5858
          %v5860 = vrot.slane %v5827, %v5859
          %v6125 = vunpack.c.l.b16 %v5571
          %v6126 = vunpack.c.h.b16 %v5571
          %v6127 = vunpack.c.l.b16 %v5572
          %v6128 = vunpack.c.h.b16 %v5572
          %v6129 = vunpack.c.l.b16 %v5573
          %v6130 = vunpack.c.h.b16 %v5573
          %v6131 = vunpack.c.l.b16 %v5574
          %v6132 = vunpack.c.h.b16 %v5574
          %v6133 = vunpack.c.l.b16 %v5575
          %v6134 = vunpack.c.h.b16 %v5575
          %v6135 = vunpack.c.l.b16 %v5576
          %v6136 = vunpack.c.h.b16 %v5576
          %v6137 = vunpack.c.l.b16 %v5577
          %v6138 = vunpack.c.h.b16 %v5577
          %v6139 = vunpack.c.l.b16 %v5578
          %v6140 = vunpack.c.h.b16 %v5578
          %v6141 = vunpack.c.l.b16 %v5579
          %v6142 = vunpack.c.h.b16 %v5579
          %v6143 = vunpack.c.l.b16 %v5580
          %v6144 = vunpack.c.h.b16 %v5580
          %v6145 = vunpack.c.l.b16 %v5581
          %v6146 = vunpack.c.h.b16 %v5581
          %v6147 = vunpack.c.l.b16 %v5582
          %v6148 = vunpack.c.h.b16 %v5582
          %v6149 = vunpack.c.l.b16 %v5583
          %v6150 = vunpack.c.h.b16 %v5583
          %v6151 = vunpack.c.l.b16 %v5584
          %v6152 = vunpack.c.h.b16 %v5584
          %v6153 = vunpack.c.l.b16 %v5585
          %v6154 = vunpack.c.h.b16 %v5585
          %v6155 = vunpack.c.l.b16 %v5586
          %v6156 = vunpack.c.h.b16 %v5586
          %v6157 = vunpack.c.l.b16 %v5587
          %v6158 = vunpack.c.h.b16 %v5587
          %v6159 = vunpack.c.l.b16 %v5588
          %v6160 = vunpack.c.h.b16 %v5588
          %v6161 = vunpack.c.l.b16 %v5589
          %v6162 = vunpack.c.h.b16 %v5589
          %v6163 = vunpack.c.l.b16 %v5590
          %v6164 = vunpack.c.h.b16 %v5590
          %v6165 = vunpack.c.l.b16 %v5591
          %v6166 = vunpack.c.h.b16 %v5591
          %v6167 = vunpack.c.l.b16 %v5592
          %v6168 = vunpack.c.h.b16 %v5592
          %v6169 = vunpack.c.l.b16 %v5593
          %v6170 = vunpack.c.h.b16 %v5593
          %v6171 = vunpack.c.l.b16 %v5594
          %v6172 = vunpack.c.h.b16 %v5594
          %v6173 = vunpack.c.l.b16 %v5595
          %v6174 = vunpack.c.h.b16 %v5595
          %v6175 = vunpack.c.l.b16 %v5596
          %v6176 = vunpack.c.h.b16 %v5596
          %v6177 = vunpack.c.l.b16 %v5597
          %v6178 = vunpack.c.h.b16 %v5597
          %v6179 = vunpack.c.l.b16 %v5598
          %v6180 = vunpack.c.h.b16 %v5598
          %v6181 = vunpack.c.l.b16 %v5599
          %v6182 = vunpack.c.h.b16 %v5599
          %v6183 = vunpack.c.l.b16 %v5600
          %v6184 = vunpack.c.h.b16 %v5600
          %v6185 = vunpack.c.l.b16 %v5601
          %v6186 = vunpack.c.h.b16 %v5601
          %v6187 = vunpack.c.l.b16 %v5602
          %v6188 = vunpack.c.h.b16 %v5602
          %v6189 = vunpack.c.l.b16 %v5603
          %v6190 = vunpack.c.h.b16 %v5603
          %v6191 = vunpack.c.l.b16 %v5604
          %v6192 = vunpack.c.h.b16 %v5604
          %v6193 = vunpack.c.l.b16 %v5605
          %v6194 = vunpack.c.h.b16 %v5605
          %v6195 = vunpack.c.l.b16 %v5606
          %v6196 = vunpack.c.h.b16 %v5606
          %v6197 = vunpack.c.l.b16 %v5607
          %v6198 = vunpack.c.h.b16 %v5607
          %v6199 = vunpack.c.l.b16 %v5608
          %v6200 = vunpack.c.h.b16 %v5608
          %v6201 = vunpack.c.l.b16 %v5609
          %v6202 = vunpack.c.h.b16 %v5609
          %v6203 = vunpack.c.l.b16 %v5610
          %v6204 = vunpack.c.h.b16 %v5610
          %v6205 = vunpack.c.l.b16 %v5611
          %v6206 = vunpack.c.h.b16 %v5611
          %v6207 = vunpack.c.l.b16 %v5612
          %v6208 = vunpack.c.h.b16 %v5612
          %v6209 = vunpack.c.l.b16 %v5613
          %v6210 = vunpack.c.h.b16 %v5613
          %v6211 = vunpack.c.l.b16 %v5614
          %v6212 = vunpack.c.h.b16 %v5614
          %v6213 = vunpack.c.l.b16 %v5615
          %v6214 = vunpack.c.h.b16 %v5615
          %v6215 = vunpack.c.l.b16 %v5616
          %v6216 = vunpack.c.h.b16 %v5616
          %v6217 = vunpack.c.l.b16 %v5617
          %v6218 = vunpack.c.h.b16 %v5617
          %v6219 = vunpack.c.l.b16 %v5618
          %v6220 = vunpack.c.h.b16 %v5618
          %v6221 = vunpack.c.l.b16 %v5619
          %v6222 = vunpack.c.h.b16 %v5619
          %v6223 = vunpack.c.l.b16 %v5620
          %v6224 = vunpack.c.h.b16 %v5620
          %v6225 = vunpack.c.l.b16 %v5621
          %v6226 = vunpack.c.h.b16 %v5621
          %v6227 = vunpack.c.l.b16 %v5622
          %v6228 = vunpack.c.h.b16 %v5622
          %v6229 = vunpack.c.l.b16 %v5623
          %v6230 = vunpack.c.h.b16 %v5623
          %v6231 = vunpack.c.l.b16 %v5624
          %v6232 = vunpack.c.h.b16 %v5624
          %v6233 = vunpack.c.l.b16 %v5625
          %v6234 = vunpack.c.h.b16 %v5625
          %v6235 = vunpack.c.l.b16 %v5626
          %v6236 = vunpack.c.h.b16 %v5626
          %v6237 = vunpack.c.l.b16 %v5627
          %v6238 = vunpack.c.h.b16 %v5627
          %v6239 = vunpack.c.l.b16 %v5628
          %v6240 = vunpack.c.h.b16 %v5628
          %v6241 = vunpack.c.l.b16 %v5629
          %v6242 = vunpack.c.h.b16 %v5629
          %v6243 = vunpack.c.l.b16 %v5630
          %v6244 = vunpack.c.h.b16 %v5630
          %v6245 = vunpack.c.l.b16 %v5631
          %v6246 = vunpack.c.h.b16 %v5631
          %v6247 = vunpack.c.l.b16 %v5632
          %v6248 = vunpack.c.h.b16 %v5632
          %v6249 = vunpack.c.l.b16 %v5633
          %v6250 = vunpack.c.h.b16 %v5633
          %v6251 = vunpack.c.l.b16 %v5634
          %v6252 = vunpack.c.h.b16 %v5634
          %v6253 = vunpack.c.l.b16 %v5635
          %v6254 = vunpack.c.h.b16 %v5635
          %v6255 = vunpack.c.l.b16 %v5636
          %v6256 = vunpack.c.h.b16 %v5636
          %v6257 = vunpack.c.l.b16 %v5637
          %v6258 = vunpack.c.h.b16 %v5637
          %v6259 = vunpack.c.l.b16 %v5638
          %v6260 = vunpack.c.h.b16 %v5638
          %v6261 = vunpack.c.l.b16 %v5639
          %v6262 = vunpack.c.h.b16 %v5639
          %v6263 = vunpack.c.l.b16 %v5640
          %v6264 = vunpack.c.h.b16 %v5640
          %v6265 = vunpack.c.l.b16 %v5641
          %v6266 = vunpack.c.h.b16 %v5641
          %v6267 = vunpack.c.l.b16 %v5642
          %v6268 = vunpack.c.h.b16 %v5642
          %v6269 = vunpack.c.l.b16 %v5643
          %v6270 = vunpack.c.h.b16 %v5643
          %v6271 = vunpack.c.l.b16 %v5644
          %v6272 = vunpack.c.h.b16 %v5644
          %v6273 = vunpack.c.l.b16 %v5645
          %v6274 = vunpack.c.h.b16 %v5645
          %v6275 = vunpack.c.l.b16 %v5646
          %v6276 = vunpack.c.h.b16 %v5646
          %v6277 = vunpack.c.l.b16 %v5647
          %v6278 = vunpack.c.h.b16 %v5647
          %v6279 = vunpack.c.l.b16 %v5648
          %v6280 = vunpack.c.h.b16 %v5648
          %v6281 = vunpack.c.l.b16 %v5649
          %v6282 = vunpack.c.h.b16 %v5649
          %v6283 = vunpack.c.l.b16 %v5650
          %v6284 = vunpack.c.h.b16 %v5650
          %v6285 = vunpack.c.l.b16 %v5651
          %v6286 = vunpack.c.h.b16 %v5651
          %v6287 = vunpack.c.l.b16 %v5652
          %v6288 = vunpack.c.h.b16 %v5652
          %v6289 = vunpack.c.l.b16 %v5653
          %v6290 = vunpack.c.h.b16 %v5653
          %v6291 = vunpack.c.l.b16 %v5654
          %v6292 = vunpack.c.h.b16 %v5654
          %v6293 = vunpack.c.l.b16 %v5655
          %v6294 = vunpack.c.h.b16 %v5655
          %v6295 = vunpack.c.l.b16 %v5656
          %v6296 = vunpack.c.h.b16 %v5656
          %v6297 = vunpack.c.l.b16 %v5657
          %v6298 = vunpack.c.h.b16 %v5657
          %v6299 = vunpack.c.l.b16 %v5658
          %v6300 = vunpack.c.h.b16 %v5658
          %v6301 = vunpack.c.l.b16 %v5659
          %v6302 = vunpack.c.h.b16 %v5659
          %v6303 = vunpack.c.l.b16 %v5660
          %v6304 = vunpack.c.h.b16 %v5660
          %v6305 = vunpack.c.l.b16 %v5661
          %v6306 = vunpack.c.h.b16 %v5661
          %v6307 = vunpack.c.l.b16 %v5662
          %v6308 = vunpack.c.h.b16 %v5662
          %v6309 = vunpack.c.l.b16 %v5663
          %v6310 = vunpack.c.h.b16 %v5663
          %v6311 = vunpack.c.l.b16 %v5664
          %v6312 = vunpack.c.h.b16 %v5664
          %v6313 = vunpack.c.l.b16 %v5665
          %v6314 = vunpack.c.h.b16 %v5665
          %v6315 = vunpack.c.l.b16 %v5666
          %v6316 = vunpack.c.h.b16 %v5666
          %v6317 = vunpack.c.l.b16 %v5667
          %v6318 = vunpack.c.h.b16 %v5667
          %v6319 = vunpack.c.l.b16 %v5668
          %v6320 = vunpack.c.h.b16 %v5668
          %v6321 = vunpack.c.l.b16 %v5669
          %v6322 = vunpack.c.h.b16 %v5669
          %v6323 = vunpack.c.l.b16 %v5670
          %v6324 = vunpack.c.h.b16 %v5670
          %v6325 = vunpack.c.l.b16 %v5671
          %v6326 = vunpack.c.h.b16 %v5671
          %v6327 = vunpack.c.l.b16 %v5672
          %v6328 = vunpack.c.h.b16 %v5672
          %v6329 = vunpack.c.l.b16 %v5673
          %v6330 = vunpack.c.h.b16 %v5673
          %v6331 = vunpack.c.l.b16 %v5674
          %v6332 = vunpack.c.h.b16 %v5674
          %v6333 = vunpack.c.l.b16 %v5675
          %v6334 = vunpack.c.h.b16 %v5675
          %v6335 = vunpack.c.l.b16 %v5676
          %v6336 = vunpack.c.h.b16 %v5676
          %v6337 = vunpack.c.l.b16 %v5677
          %v6338 = vunpack.c.h.b16 %v5677
          %v6339 = vunpack.c.l.b16 %v5678
          %v6340 = vunpack.c.h.b16 %v5678
          %v6341 = vunpack.c.l.b16 %v5679
          %v6342 = vunpack.c.h.b16 %v5679
          %v6343 = vunpack.c.l.b16 %v5680
          %v6344 = vunpack.c.h.b16 %v5680
          %v6345 = vunpack.c.l.b16 %v5681
          %v6346 = vunpack.c.h.b16 %v5681
          %v6347 = vunpack.c.l.b16 %v5682
          %v6348 = vunpack.c.h.b16 %v5682
          %v6349 = vunpack.c.l.b16 %v5683
          %v6350 = vunpack.c.h.b16 %v5683
          %v6351 = vunpack.c.l.b16 %v5684
          %v6352 = vunpack.c.h.b16 %v5684
          %v6353 = vunpack.c.l.b16 %v5685
          %v6354 = vunpack.c.h.b16 %v5685
          %v6355 = vunpack.c.l.b16 %v5686
          %v6356 = vunpack.c.h.b16 %v5686
          %v6357 = vunpack.c.l.b16 %v5687
          %v6358 = vunpack.c.h.b16 %v5687
          %v6359 = vunpack.c.l.b16 %v5688
          %v6360 = vunpack.c.h.b16 %v5688
          %v6361 = vunpack.c.l.b16 %v5689
          %v6362 = vunpack.c.h.b16 %v5689
          %v6363 = vunpack.c.l.b16 %v5690
          %v6364 = vunpack.c.h.b16 %v5690
          %v6365 = vunpack.c.l.b16 %v5691
          %v6366 = vunpack.c.h.b16 %v5691
          %v6367 = vunpack.c.l.b16 %v5692
          %v6368 = vunpack.c.h.b16 %v5692
          %v6369 = vunpack.c.l.b16 %v5693
          %v6370 = vunpack.c.h.b16 %v5693
          %v6371 = vunpack.c.l.b16 %v5694
          %v6372 = vunpack.c.h.b16 %v5694
          %v6373 = vunpack.c.l.b16 %v5695
          %v6374 = vunpack.c.h.b16 %v5695
          %v6375 = vunpack.c.l.b16 %v5696
          %v6376 = vunpack.c.h.b16 %v5696
          %v6377 = vunpack.c.l.b16 %v5697
          %v6378 = vunpack.c.h.b16 %v5697
          %v6379 = vunpack.c.l.b16 %v5698
          %v6380 = vunpack.c.h.b16 %v5698
          %v6381 = vunpack.c.l.b16 %v5699
          %v6382 = vunpack.c.h.b16 %v5699
          %v6383 = vunpack.c.l.b16 %v5700
          %v6384 = vunpack.c.h.b16 %v5700
          %v6385 = vunpack.c.l.b16 %v5701
          %v6386 = vunpack.c.h.b16 %v5701
          %v6387 = vunpack.c.l.b16 %v5702
          %v6388 = vunpack.c.h.b16 %v5702
          %v6389 = vunpack.c.l.b16 %v5703
          %v6390 = vunpack.c.h.b16 %v5703
          %v6391 = vunpack.c.l.b16 %v5704
          %v6392 = vunpack.c.h.b16 %v5704
          %v6393 = vunpack.c.l.b16 %v5705
          %v6394 = vunpack.c.h.b16 %v5705
          %v6395 = vunpack.c.l.b16 %v5706
          %v6396 = vunpack.c.h.b16 %v5706
          %v6397 = vunpack.c.l.b16 %v5707
          %v6398 = vunpack.c.h.b16 %v5707
          %v6399 = vunpack.c.l.b16 %v5708
          %v6400 = vunpack.c.h.b16 %v5708
          %v6401 = vunpack.c.l.b16 %v5709
          %v6402 = vunpack.c.h.b16 %v5709
          %v6403 = vunpack.c.l.b16 %v5710
          %v6404 = vunpack.c.h.b16 %v5710
          %v6405 = vunpack.c.l.b16 %v5711
          %v6406 = vunpack.c.h.b16 %v5711
          %v6407 = vunpack.c.l.b16 %v5712
          %v6408 = vunpack.c.h.b16 %v5712
          %v6409 = vunpack.c.l.b16 %v5713
          %v6410 = vunpack.c.h.b16 %v5713
          %v6411 = vunpack.c.l.b16 %v5714
          %v6412 = vunpack.c.h.b16 %v5714
          %v6413 = vunpack.c.l.b16 %v5715
          %v6414 = vunpack.c.h.b16 %v5715
          %v6415 = vunpack.c.l.b16 %v5716
          %v6416 = vunpack.c.h.b16 %v5716
          %v6417 = vunpack.c.l.b16 %v5717
          %v6418 = vunpack.c.h.b16 %v5717
          %v6419 = vunpack.c.l.b16 %v5718
          %v6420 = vunpack.c.h.b16 %v5718
          %v6421 = vunpack.c.l.b16 %v5719
          %v6422 = vunpack.c.h.b16 %v5719
          %v6423 = vunpack.c.l.b16 %v5720
          %v6424 = vunpack.c.h.b16 %v5720
          %v6425 = vunpack.c.l.b16 %v5721
          %v6426 = vunpack.c.h.b16 %v5721
          %v6427 = vunpack.c.l.b16 %v5722
          %v6428 = vunpack.c.h.b16 %v5722
          %v6429 = vunpack.c.l.b16 %v5723
          %v6430 = vunpack.c.h.b16 %v5723
          %v6431 = vunpack.c.l.b16 %v5724
          %v6432 = vunpack.c.h.b16 %v5724
          %v6433 = vunpack.c.l.b16 %v5725
          %v6434 = vunpack.c.h.b16 %v5725
          %v6435 = vunpack.c.l.b16 %v5726
          %v6436 = vunpack.c.h.b16 %v5726
          %v6437 = vunpack.c.l.b16 %v5727
          %v6438 = vunpack.c.h.b16 %v5727
          %v6439 = vunpack.c.l.b16 %v5728
          %v6440 = vunpack.c.h.b16 %v5728
          %v6441 = vunpack.c.l.b16 %v5729
          %v6442 = vunpack.c.h.b16 %v5729
          %v6443 = vunpack.c.l.b16 %v5730
          %v6444 = vunpack.c.h.b16 %v5730
          %v6445 = vunpack.c.l.b16 %v5731
          %v6446 = vunpack.c.h.b16 %v5731
          %v6447 = vunpack.c.l.b16 %v5732
          %v6448 = vunpack.c.h.b16 %v5732
          %v6449 = vunpack.c.l.b16 %v5733
          %v6450 = vunpack.c.h.b16 %v5733
          %v6451 = vunpack.c.l.b16 %v5734
          %v6452 = vunpack.c.h.b16 %v5734
          %v6453 = vunpack.c.l.b16 %v5735
          %v6454 = vunpack.c.h.b16 %v5735
          %v6455 = vunpack.c.l.b16 %v5736
          %v6456 = vunpack.c.h.b16 %v5736
          %v6457 = vunpack.c.l.b16 %v5737
          %v6458 = vunpack.c.h.b16 %v5737
          %v6459 = vunpack.c.l.b16 %v5738
          %v6460 = vunpack.c.h.b16 %v5738
          %v6461 = vunpack.c.l.b16 %v5739
          %v6462 = vunpack.c.h.b16 %v5739
          %v6463 = vunpack.c.l.b16 %v5740
          %v6464 = vunpack.c.h.b16 %v5740
          %v6465 = vunpack.c.l.b16 %v5741
          %v6466 = vunpack.c.h.b16 %v5741
          %v6467 = vunpack.c.l.b16 %v5742
          %v6468 = vunpack.c.h.b16 %v5742
          %v6469 = vunpack.c.l.b16 %v5743
          %v6470 = vunpack.c.h.b16 %v5743
          %v6471 = vunpack.c.l.b16 %v5744
          %v6472 = vunpack.c.h.b16 %v5744
          %v6473 = vunpack.c.l.b16 %v5745
          %v6474 = vunpack.c.h.b16 %v5745
          %v6475 = vunpack.c.l.b16 %v5746
          %v6476 = vunpack.c.h.b16 %v5746
          %v6477 = vunpack.c.l.b16 %v5747
          %v6478 = vunpack.c.h.b16 %v5747
          %v6479 = vunpack.c.l.b16 %v5748
          %v6480 = vunpack.c.h.b16 %v5748
          %v6481 = vunpack.c.l.b16 %v5749
          %v6482 = vunpack.c.h.b16 %v5749
          %v6483 = vunpack.c.l.b16 %v5750
          %v6484 = vunpack.c.h.b16 %v5750
          %v6485 = vunpack.c.l.b16 %v5751
          %v6486 = vunpack.c.h.b16 %v5751
          %v6487 = vunpack.c.l.b16 %v5752
          %v6488 = vunpack.c.h.b16 %v5752
          %v6489 = vunpack.c.l.b16 %v5753
          %v6490 = vunpack.c.h.b16 %v5753
          %v6491 = vunpack.c.l.b16 %v5754
          %v6492 = vunpack.c.h.b16 %v5754
          %v6493 = vunpack.c.l.b16 %v5755
          %v6494 = vunpack.c.h.b16 %v5755
          %v6495 = vunpack.c.l.b16 %v5756
          %v6496 = vunpack.c.h.b16 %v5756
          %v6497 = vunpack.c.l.b16 %v5757
          %v6498 = vunpack.c.h.b16 %v5757
          %v6499 = vunpack.c.l.b16 %v5758
          %v6500 = vunpack.c.h.b16 %v5758
          %v6501 = vunpack.c.l.b16 %v5759
          %v6502 = vunpack.c.h.b16 %v5759
          %v6503 = vunpack.c.l.b16 %v5760
          %v6504 = vunpack.c.h.b16 %v5760
          %v6505 = vunpack.c.l.b16 %v5761
          %v6506 = vunpack.c.h.b16 %v5761
          %v6507 = vunpack.c.l.b16 %v5762
          %v6508 = vunpack.c.h.b16 %v5762
          %v6509 = vunpack.c.l.b16 %v5763
          %v6510 = vunpack.c.h.b16 %v5763
          %v6511 = vunpack.c.l.b16 %v5764
          %v6512 = vunpack.c.h.b16 %v5764
          %v6513 = vunpack.c.l.b16 %v5765
          %v6514 = vunpack.c.h.b16 %v5765
          %v6515 = vunpack.c.l.b16 %v5766
          %v6516 = vunpack.c.h.b16 %v5766
          %v6517 = vunpack.c.l.b16 %v5767
          %v6518 = vunpack.c.h.b16 %v5767
          %v6519 = vunpack.c.l.b16 %v5768
          %v6520 = vunpack.c.h.b16 %v5768
          %v6521 = vunpack.c.l.b16 %v5769
          %v6522 = vunpack.c.h.b16 %v5769
          %v6523 = vunpack.c.l.b16 %v5770
          %v6524 = vunpack.c.h.b16 %v5770
          %v6525 = vunpack.c.l.b16 %v5771
          %v6526 = vunpack.c.h.b16 %v5771
          %v6527 = vunpack.c.l.b16 %v5772
          %v6528 = vunpack.c.h.b16 %v5772
          %v6529 = vunpack.c.l.b16 %v5773
          %v6530 = vunpack.c.h.b16 %v5773
          %v6531 = vunpack.c.l.b16 %v5774
          %v6532 = vunpack.c.h.b16 %v5774
          %v6533 = vunpack.c.l.b16 %v5775
          %v6534 = vunpack.c.h.b16 %v5775
          %v6535 = vunpack.c.l.b16 %v5776
          %v6536 = vunpack.c.h.b16 %v5776
          %v6537 = vunpack.c.l.b16 %v5777
          %v6538 = vunpack.c.h.b16 %v5777
          %v6539 = vunpack.c.l.b16 %v5778
          %v6540 = vunpack.c.h.b16 %v5778
          %v6541 = vunpack.c.l.b16 %v5779
          %v6542 = vunpack.c.h.b16 %v5779
          %v6543 = vunpack.c.l.b16 %v5780
          %v6544 = vunpack.c.h.b16 %v5780
          %v6545 = vunpack.c.l.b16 %v5781
          %v6546 = vunpack.c.h.b16 %v5781
          %v6547 = vunpack.c.l.b16 %v5782
          %v6548 = vunpack.c.h.b16 %v5782
          %v6549 = vunpack.c.l.b16 %v5783
          %v6550 = vunpack.c.h.b16 %v5783
          %v6551 = vunpack.c.l.b16 %v5784
          %v6552 = vunpack.c.h.b16 %v5784
          %v6553 = vunpack.c.l.b16 %v5785
          %v6554 = vunpack.c.h.b16 %v5785
          %v6555 = vunpack.c.l.b16 %v5786
          %v6556 = vunpack.c.h.b16 %v5786
          %v6557 = vunpack.c.l.b16 %v5787
          %v6558 = vunpack.c.h.b16 %v5787
          %v6559 = vunpack.c.l.b16 %v5788
          %v6560 = vunpack.c.h.b16 %v5788
          %v6561 = vunpack.c.l.b16 %v5789
          %v6562 = vunpack.c.h.b16 %v5789
          %v6563 = vunpack.c.l.b16 %v5790
          %v6564 = vunpack.c.h.b16 %v5790
          %v6565 = vunpack.c.l.b16 %v5791
          %v6566 = vunpack.c.h.b16 %v5791
          %v6567 = vunpack.c.l.b16 %v5792
          %v6568 = vunpack.c.h.b16 %v5792
          %v6569 = vunpack.c.l.b16 %v5793
          %v6570 = vunpack.c.h.b16 %v5793
          %v6571 = vunpack.c.l.b16 %v5794
          %v6572 = vunpack.c.h.b16 %v5794
          %v6573 = vunpack.c.l.b16 %v5795
          %v6574 = vunpack.c.h.b16 %v5795
          %v6575 = vunpack.c.l.b16 %v5796
          %v6576 = vunpack.c.h.b16 %v5796
          %v6577 = vunpack.c.l.b16 %v5797
          %v6578 = vunpack.c.h.b16 %v5797
          %v6579 = vunpack.c.l.b16 %v5798
          %v6580 = vunpack.c.h.b16 %v5798
          %v6581 = vunpack.c.l.b16 %v5799
          %v6582 = vunpack.c.h.b16 %v5799
          %v6583 = vunpack.c.l.b16 %v5800
          %v6584 = vunpack.c.h.b16 %v5800
          %v6585 = vunpack.c.l.b16 %v5801
          %v6586 = vunpack.c.h.b16 %v5801
          %v6587 = vunpack.c.l.b16 %v5802
          %v6588 = vunpack.c.h.b16 %v5802
          %v6589 = vunpack.c.l.b16 %v5803
          %v6590 = vunpack.c.h.b16 %v5803
          %v6591 = vunpack.c.l.b16 %v5804
          %v6592 = vunpack.c.h.b16 %v5804
          %v6593 = vunpack.c.l.b16 %v5805
          %v6594 = vunpack.c.h.b16 %v5805
          %v6595 = vunpack.c.l.b16 %v5806
          %v6596 = vunpack.c.h.b16 %v5806
          %v6597 = vunpack.c.l.b16 %v5807
          %v6598 = vunpack.c.h.b16 %v5807
          %v6599 = vunpack.c.l.b16 %v5808
          %v6600 = vunpack.c.h.b16 %v5808
          %v6601 = vunpack.c.l.b16 %v5809
          %v6602 = vunpack.c.h.b16 %v5809
          %v6603 = vunpack.c.l.b16 %v5810
          %v6604 = vunpack.c.h.b16 %v5810
          %v6605 = vunpack.c.l.b16 %v5811
          %v6606 = vunpack.c.h.b16 %v5811
          %v6607 = vunpack.c.l.b16 %v5812
          %v6608 = vunpack.c.h.b16 %v5812
          %v6609 = vunpack.c.l.b16 %v5813
          %v6610 = vunpack.c.h.b16 %v5813
          %v6611 = vunpack.c.l.b16 %v5814
          %v6612 = vunpack.c.h.b16 %v5814
          %v6613 = vunpack.c.l.b16 %v5815
          %v6614 = vunpack.c.h.b16 %v5815
          %v6615 = vunpack.c.l.b16 %v5816
          %v6616 = vunpack.c.h.b16 %v5816
          %v6617 = vunpack.c.l.b16 %v5817
          %v6618 = vunpack.c.h.b16 %v5817
          %v6619 = vunpack.c.l.b16 %v5818
          %v6620 = vunpack.c.h.b16 %v5818
          %v6621 = vunpack.c.l.b16 %v5819
          %v6622 = vunpack.c.h.b16 %v5819
          %v6623 = vunpack.c.l.b16 %v5820
          %v6624 = vunpack.c.h.b16 %v5820
          %v6625 = vunpack.c.l.b16 %v5821
          %v6626 = vunpack.c.h.b16 %v5821
          %v6627 = vunpack.c.l.b16 %v5822
          %v6628 = vunpack.c.h.b16 %v5822
          %v6629 = vunpack.c.l.b16 %v5823
          %v6630 = vunpack.c.h.b16 %v5823
          %v6631 = vunpack.c.l.b16 %v5824
          %v6632 = vunpack.c.h.b16 %v5824
          %v6633 = vunpack.c.l.b16 %v5825
          %v6634 = vunpack.c.h.b16 %v5825
          %v6635 = vunpack.c.l.b16 %v5826
          %v6636 = vunpack.c.h.b16 %v5826
          %v6637 = vpack.c.b16 %v6133, %v6125
          %v6638 = vpack.c.b16 %v6134, %v6126
          %v6639 = vpack.c.b16 %v6135, %v6127
          %v6640 = vpack.c.b16 %v6136, %v6128
          %v6641 = vpack.c.b16 %v6137, %v6129
          %v6642 = vpack.c.b16 %v6138, %v6130
          %v6643 = vpack.c.b16 %v6139, %v6131
          %v6644 = vpack.c.b16 %v6140, %v6132
          %v6645 = vpack.c.b16 %v6149, %v6141
          %v6646 = vpack.c.b16 %v6150, %v6142
          %v6647 = vpack.c.b16 %v6151, %v6143
          %v6648 = vpack.c.b16 %v6152, %v6144
          %v6649 = vpack.c.b16 %v6153, %v6145
          %v6650 = vpack.c.b16 %v6154, %v6146
          %v6651 = vpack.c.b16 %v6155, %v6147
          %v6652 = vpack.c.b16 %v6156, %v6148
          %v6653 = vpack.c.b16 %v6165, %v6157
          %v6654 = vpack.c.b16 %v6166, %v6158
          %v6655 = vpack.c.b16 %v6167, %v6159
          %v6656 = vpack.c.b16 %v6168, %v6160
          %v6657 = vpack.c.b16 %v6169, %v6161
          %v6658 = vpack.c.b16 %v6170, %v6162
          %v6659 = vpack.c.b16 %v6171, %v6163
          %v6660 = vpack.c.b16 %v6172, %v6164
          %v6661 = vpack.c.b16 %v6181, %v6173
          %v6662 = vpack.c.b16 %v6182, %v6174
          %v6663 = vpack.c.b16 %v6183, %v6175
          %v6664 = vpack.c.b16 %v6184, %v6176
          %v6665 = vpack.c.b16 %v6185, %v6177
          %v6666 = vpack.c.b16 %v6186, %v6178
          %v6667 = vpack.c.b16 %v6187, %v6179
          %v6668 = vpack.c.b16 %v6188, %v6180
          %v6669 = vpack.c.b16 %v6197, %v6189
          %v6670 = vpack.c.b16 %v6198, %v6190
          %v6671 = vpack.c.b16 %v6199, %v6191
          %v6672 = vpack.c.b16 %v6200, %v6192
          %v6673 = vpack.c.b16 %v6201, %v6193
          %v6674 = vpack.c.b16 %v6202, %v6194
          %v6675 = vpack.c.b16 %v6203, %v6195
          %v6676 = vpack.c.b16 %v6204, %v6196
          %v6677 = vpack.c.b16 %v6213, %v6205
          %v6678 = vpack.c.b16 %v6214, %v6206
          %v6679 = vpack.c.b16 %v6215, %v6207
          %v6680 = vpack.c.b16 %v6216, %v6208
          %v6681 = vpack.c.b16 %v6217, %v6209
          %v6682 = vpack.c.b16 %v6218, %v6210
          %v6683 = vpack.c.b16 %v6219, %v6211
          %v6684 = vpack.c.b16 %v6220, %v6212
          %v6685 = vpack.c.b16 %v6229, %v6221
          %v6686 = vpack.c.b16 %v6230, %v6222
          %v6687 = vpack.c.b16 %v6231, %v6223
          %v6688 = vpack.c.b16 %v6232, %v6224
          %v6689 = vpack.c.b16 %v6233, %v6225
          %v6690 = vpack.c.b16 %v6234, %v6226
          %v6691 = vpack.c.b16 %v6235, %v6227
          %v6692 = vpack.c.b16 %v6236, %v6228
          %v6693 = vpack.c.b16 %v6245, %v6237
          %v6694 = vpack.c.b16 %v6246, %v6238
          %v6695 = vpack.c.b16 %v6247, %v6239
          %v6696 = vpack.c.b16 %v6248, %v6240
          %v6697 = vpack.c.b16 %v6249, %v6241
          %v6698 = vpack.c.b16 %v6250, %v6242
          %v6699 = vpack.c.b16 %v6251, %v6243
          %v6700 = vpack.c.b16 %v6252, %v6244
          %v6701 = vpack.c.b16 %v6261, %v6253
          %v6702 = vpack.c.b16 %v6262, %v6254
          %v6703 = vpack.c.b16 %v6263, %v6255
          %v6704 = vpack.c.b16 %v6264, %v6256
          %v6705 = vpack.c.b16 %v6265, %v6257
          %v6706 = vpack.c.b16 %v6266, %v6258
          %v6707 = vpack.c.b16 %v6267, %v6259
          %v6708 = vpack.c.b16 %v6268, %v6260
          %v6709 = vpack.c.b16 %v6277, %v6269
          %v6710 = vpack.c.b16 %v6278, %v6270
          %v6711 = vpack.c.b16 %v6279, %v6271
          %v6712 = vpack.c.b16 %v6280, %v6272
          %v6713 = vpack.c.b16 %v6281, %v6273
          %v6714 = vpack.c.b16 %v6282, %v6274
          %v6715 = vpack.c.b16 %v6283, %v6275
          %v6716 = vpack.c.b16 %v6284, %v6276
          %v6717 = vpack.c.b16 %v6293, %v6285
          %v6718 = vpack.c.b16 %v6294, %v6286
          %v6719 = vpack.c.b16 %v6295, %v6287
          %v6720 = vpack.c.b16 %v6296, %v6288
          %v6721 = vpack.c.b16 %v6297, %v6289
          %v6722 = vpack.c.b16 %v6298, %v6290
          %v6723 = vpack.c.b16 %v6299, %v6291
          %v6724 = vpack.c.b16 %v6300, %v6292
          %v6725 = vpack.c.b16 %v6309, %v6301
          %v6726 = vpack.c.b16 %v6310, %v6302
          %v6727 = vpack.c.b16 %v6311, %v6303
          %v6728 = vpack.c.b16 %v6312, %v6304
          %v6729 = vpack.c.b16 %v6313, %v6305
          %v6730 = vpack.c.b16 %v6314, %v6306
          %v6731 = vpack.c.b16 %v6315, %v6307
          %v6732 = vpack.c.b16 %v6316, %v6308
          %v6733 = vpack.c.b16 %v6325, %v6317
          %v6734 = vpack.c.b16 %v6326, %v6318
          %v6735 = vpack.c.b16 %v6327, %v6319
          %v6736 = vpack.c.b16 %v6328, %v6320
          %v6737 = vpack.c.b16 %v6329, %v6321
          %v6738 = vpack.c.b16 %v6330, %v6322
          %v6739 = vpack.c.b16 %v6331, %v6323
          %v6740 = vpack.c.b16 %v6332, %v6324
          %v6741 = vpack.c.b16 %v6341, %v6333
          %v6742 = vpack.c.b16 %v6342, %v6334
          %v6743 = vpack.c.b16 %v6343, %v6335
          %v6744 = vpack.c.b16 %v6344, %v6336
          %v6745 = vpack.c.b16 %v6345, %v6337
          %v6746 = vpack.c.b16 %v6346, %v6338
          %v6747 = vpack.c.b16 %v6347, %v6339
          %v6748 = vpack.c.b16 %v6348, %v6340
          %v6749 = vpack.c.b16 %v6357, %v6349
          %v6750 = vpack.c.b16 %v6358, %v6350
          %v6751 = vpack.c.b16 %v6359, %v6351
          %v6752 = vpack.c.b16 %v6360, %v6352
          %v6753 = vpack.c.b16 %v6361, %v6353
          %v6754 = vpack.c.b16 %v6362, %v6354
          %v6755 = vpack.c.b16 %v6363, %v6355
          %v6756 = vpack.c.b16 %v6364, %v6356
          %v6757 = vpack.c.b16 %v6373, %v6365
          %v6758 = vpack.c.b16 %v6374, %v6366
          %v6759 = vpack.c.b16 %v6375, %v6367
          %v6760 = vpack.c.b16 %v6376, %v6368
          %v6761 = vpack.c.b16 %v6377, %v6369
          %v6762 = vpack.c.b16 %v6378, %v6370
          %v6763 = vpack.c.b16 %v6379, %v6371
          %v6764 = vpack.c.b16 %v6380, %v6372
          %v6765 = vpack.c.b16 %v6389, %v6381
          %v6766 = vpack.c.b16 %v6390, %v6382
          %v6767 = vpack.c.b16 %v6391, %v6383
          %v6768 = vpack.c.b16 %v6392, %v6384
          %v6769 = vpack.c.b16 %v6393, %v6385
          %v6770 = vpack.c.b16 %v6394, %v6386
          %v6771 = vpack.c.b16 %v6395, %v6387
          %v6772 = vpack.c.b16 %v6396, %v6388
          %v6773 = vpack.c.b16 %v6405, %v6397
          %v6774 = vpack.c.b16 %v6406, %v6398
          %v6775 = vpack.c.b16 %v6407, %v6399
          %v6776 = vpack.c.b16 %v6408, %v6400
          %v6777 = vpack.c.b16 %v6409, %v6401
          %v6778 = vpack.c.b16 %v6410, %v6402
          %v6779 = vpack.c.b16 %v6411, %v6403
          %v6780 = vpack.c.b16 %v6412, %v6404
          %v6781 = vpack.c.b16 %v6421, %v6413
          %v6782 = vpack.c.b16 %v6422, %v6414
          %v6783 = vpack.c.b16 %v6423, %v6415
          %v6784 = vpack.c.b16 %v6424, %v6416
          %v6785 = vpack.c.b16 %v6425, %v6417
          %v6786 = vpack.c.b16 %v6426, %v6418
          %v6787 = vpack.c.b16 %v6427, %v6419
          %v6788 = vpack.c.b16 %v6428, %v6420
          %v6789 = vpack.c.b16 %v6437, %v6429
          %v6790 = vpack.c.b16 %v6438, %v6430
          %v6791 = vpack.c.b16 %v6439, %v6431
          %v6792 = vpack.c.b16 %v6440, %v6432
          %v6793 = vpack.c.b16 %v6441, %v6433
          %v6794 = vpack.c.b16 %v6442, %v6434
          %v6795 = vpack.c.b16 %v6443, %v6435
          %v6796 = vpack.c.b16 %v6444, %v6436
          %v6797 = vpack.c.b16 %v6453, %v6445
          %v6798 = vpack.c.b16 %v6454, %v6446
          %v6799 = vpack.c.b16 %v6455, %v6447
          %v6800 = vpack.c.b16 %v6456, %v6448
          %v6801 = vpack.c.b16 %v6457, %v6449
          %v6802 = vpack.c.b16 %v6458, %v6450
          %v6803 = vpack.c.b16 %v6459, %v6451
          %v6804 = vpack.c.b16 %v6460, %v6452
          %v6805 = vpack.c.b16 %v6469, %v6461
          %v6806 = vpack.c.b16 %v6470, %v6462
          %v6807 = vpack.c.b16 %v6471, %v6463
          %v6808 = vpack.c.b16 %v6472, %v6464
          %v6809 = vpack.c.b16 %v6473, %v6465
          %v6810 = vpack.c.b16 %v6474, %v6466
          %v6811 = vpack.c.b16 %v6475, %v6467
          %v6812 = vpack.c.b16 %v6476, %v6468
          %v6813 = vpack.c.b16 %v6485, %v6477
          %v6814 = vpack.c.b16 %v6486, %v6478
          %v6815 = vpack.c.b16 %v6487, %v6479
          %v6816 = vpack.c.b16 %v6488, %v6480
          %v6817 = vpack.c.b16 %v6489, %v6481
          %v6818 = vpack.c.b16 %v6490, %v6482
          %v6819 = vpack.c.b16 %v6491, %v6483
          %v6820 = vpack.c.b16 %v6492, %v6484
          %v6821 = vpack.c.b16 %v6501, %v6493
          %v6822 = vpack.c.b16 %v6502, %v6494
          %v6823 = vpack.c.b16 %v6503, %v6495
          %v6824 = vpack.c.b16 %v6504, %v6496
          %v6825 = vpack.c.b16 %v6505, %v6497
          %v6826 = vpack.c.b16 %v6506, %v6498
          %v6827 = vpack.c.b16 %v6507, %v6499
          %v6828 = vpack.c.b16 %v6508, %v6500
          %v6829 = vpack.c.b16 %v6517, %v6509
          %v6830 = vpack.c.b16 %v6518, %v6510
          %v6831 = vpack.c.b16 %v6519, %v6511
          %v6832 = vpack.c.b16 %v6520, %v6512
          %v6833 = vpack.c.b16 %v6521, %v6513
          %v6834 = vpack.c.b16 %v6522, %v6514
          %v6835 = vpack.c.b16 %v6523, %v6515
          %v6836 = vpack.c.b16 %v6524, %v6516
          %v6837 = vpack.c.b16 %v6533, %v6525
          %v6838 = vpack.c.b16 %v6534, %v6526
          %v6839 = vpack.c.b16 %v6535, %v6527
          %v6840 = vpack.c.b16 %v6536, %v6528
          %v6841 = vpack.c.b16 %v6537, %v6529
          %v6842 = vpack.c.b16 %v6538, %v6530
          %v6843 = vpack.c.b16 %v6539, %v6531
          %v6844 = vpack.c.b16 %v6540, %v6532
          %v6845 = vpack.c.b16 %v6549, %v6541
          %v6846 = vpack.c.b16 %v6550, %v6542
          %v6847 = vpack.c.b16 %v6551, %v6543
          %v6848 = vpack.c.b16 %v6552, %v6544
          %v6849 = vpack.c.b16 %v6553, %v6545
          %v6850 = vpack.c.b16 %v6554, %v6546
          %v6851 = vpack.c.b16 %v6555, %v6547
          %v6852 = vpack.c.b16 %v6556, %v6548
          %v6853 = vpack.c.b16 %v6565, %v6557
          %v6854 = vpack.c.b16 %v6566, %v6558
          %v6855 = vpack.c.b16 %v6567, %v6559
          %v6856 = vpack.c.b16 %v6568, %v6560
          %v6857 = vpack.c.b16 %v6569, %v6561
          %v6858 = vpack.c.b16 %v6570, %v6562
          %v6859 = vpack.c.b16 %v6571, %v6563
          %v6860 = vpack.c.b16 %v6572, %v6564
          %v6861 = vpack.c.b16 %v6581, %v6573
          %v6862 = vpack.c.b16 %v6582, %v6574
          %v6863 = vpack.c.b16 %v6583, %v6575
          %v6864 = vpack.c.b16 %v6584, %v6576
          %v6865 = vpack.c.b16 %v6585, %v6577
          %v6866 = vpack.c.b16 %v6586, %v6578
          %v6867 = vpack.c.b16 %v6587, %v6579
          %v6868 = vpack.c.b16 %v6588, %v6580
          %v6869 = vpack.c.b16 %v6597, %v6589
          %v6870 = vpack.c.b16 %v6598, %v6590
          %v6871 = vpack.c.b16 %v6599, %v6591
          %v6872 = vpack.c.b16 %v6600, %v6592
          %v6873 = vpack.c.b16 %v6601, %v6593
          %v6874 = vpack.c.b16 %v6602, %v6594
          %v6875 = vpack.c.b16 %v6603, %v6595
          %v6876 = vpack.c.b16 %v6604, %v6596
          %v6877 = vpack.c.b16 %v6613, %v6605
          %v6878 = vpack.c.b16 %v6614, %v6606
          %v6879 = vpack.c.b16 %v6615, %v6607
          %v6880 = vpack.c.b16 %v6616, %v6608
          %v6881 = vpack.c.b16 %v6617, %v6609
          %v6882 = vpack.c.b16 %v6618, %v6610
          %v6883 = vpack.c.b16 %v6619, %v6611
          %v6884 = vpack.c.b16 %v6620, %v6612
          %v6885 = vpack.c.b16 %v6629, %v6621
          %v6886 = vpack.c.b16 %v6630, %v6622
          %v6887 = vpack.c.b16 %v6631, %v6623
          %v6888 = vpack.c.b16 %v6632, %v6624
          %v6889 = vpack.c.b16 %v6633, %v6625
          %v6890 = vpack.c.b16 %v6634, %v6626
          %v6891 = vpack.c.b16 %v6635, %v6627
          %v6892 = vpack.c.b16 %v6636, %v6628
          %7149 = vmatprep.subr.bf16.mxu0 %v6638
          %7150 = vmatpush1.bf16.msra.mxu0 %v6637
          %7151 = vmatprep.subr.bf16.mxu0 %v6646
          %7152 = vmatpush1.bf16.msra.mxu0 %v6645
          %7153 = vmatprep.subr.bf16.mxu0 %v6654
          %7154 = vmatpush1.bf16.msra.mxu0 %v6653
          %7155 = vmatprep.subr.bf16.mxu0 %v6662
          %7156 = vmatpush1.bf16.msra.mxu0 %v6661
          %7157 = vmatprep.subr.bf16.mxu0 %v6670
          %7158 = vmatpush1.bf16.msra.mxu0 %v6669
          %7159 = vmatprep.subr.bf16.mxu0 %v6678
          %7160 = vmatpush1.bf16.msra.mxu0 %v6677
          %7161 = vmatprep.subr.bf16.mxu0 %v6686
          %7162 = vmatpush1.bf16.msra.mxu0 %v6685
          %7163 = vmatprep.subr.bf16.mxu0 %v6694
          %7164 = vmatpush1.bf16.msra.mxu0 %v6693
          %7165 = vmatprep.subr.bf16.mxu0 %v6702
          %7166 = vmatpush1.bf16.msra.mxu0 %v6701
          %7167 = vmatprep.subr.bf16.mxu0 %v6710
          %7168 = vmatpush1.bf16.msra.mxu0 %v6709
          %7169 = vmatprep.subr.bf16.mxu0 %v6718
          %7170 = vmatpush1.bf16.msra.mxu0 %v6717
          %7171 = vmatprep.subr.bf16.mxu0 %v6726
          %7172 = vmatpush1.bf16.msra.mxu0 %v6725
          %7173 = vmatprep.subr.bf16.mxu0 %v6734
          %7174 = vmatpush1.bf16.msra.mxu0 %v6733
          %7175 = vmatprep.subr.bf16.mxu0 %v6742
          %7176 = vmatpush1.bf16.msra.mxu0 %v6741
          %7177 = vmatprep.subr.bf16.mxu0 %v6750
          %7178 = vmatpush1.bf16.msra.mxu0 %v6749
          %7179 = vmatprep.subr.bf16.mxu0 %v6758
          %7180 = vmatpush1.bf16.msra.mxu0 %v6757
          %7181 = vmatprep.mubr.bf16.mxu0 %v5568
          %7182 = vmatmul.mubr.bf16.gmra.mrb[0].mxu0 %v5567
          %v7183 = vpop.f32.mrb[0].mxu0
          %v7184 = vadd.f32 %v5832, %v7183
          %v7185 = vpop.f32.mrb[0].mxu0
          %v7186 = vadd.f32 %v5836, %v7185
          %v7187 = vpop.f32.mrb[0].mxu0
          %v7188 = vpop.f32.mrb[0].mxu0
          %7189 = vdwg.mxu0
          %7190 = vmatprep.subr.bf16.mxu0 %v6766
          %7191 = vmatpush1.bf16.msra.mxu0 %v6765
          %7192 = vmatprep.subr.bf16.mxu0 %v6774
          %7193 = vmatpush1.bf16.msra.mxu0 %v6773
          %7194 = vmatprep.subr.bf16.mxu0 %v6782
          %7195 = vmatpush1.bf16.msra.mxu0 %v6781
          %7196 = vmatprep.subr.bf16.mxu0 %v6790
          %7197 = vmatpush1.bf16.msra.mxu0 %v6789
          %7198 = vmatprep.subr.bf16.mxu0 %v6798
          %7199 = vmatpush1.bf16.msra.mxu0 %v6797
          %7200 = vmatprep.subr.bf16.mxu0 %v6806
          %7201 = vmatpush1.bf16.msra.mxu0 %v6805
          %7202 = vmatprep.subr.bf16.mxu0 %v6814
          %7203 = vmatpush1.bf16.msra.mxu0 %v6813
          %7204 = vmatprep.subr.bf16.mxu0 %v6822
          %7205 = vmatpush1.bf16.msra.mxu0 %v6821
          %7206 = vmatprep.subr.bf16.mxu0 %v6830
          %7207 = vmatpush1.bf16.msra.mxu0 %v6829
          %7208 = vmatprep.subr.bf16.mxu0 %v6838
          %7209 = vmatpush1.bf16.msra.mxu0 %v6837
          %7210 = vmatprep.subr.bf16.mxu0 %v6846
          %7211 = vmatpush1.bf16.msra.mxu0 %v6845
          %7212 = vmatprep.subr.bf16.mxu0 %v6854
          %7213 = vmatpush1.bf16.msra.mxu0 %v6853
          %7214 = vmatprep.subr.bf16.mxu0 %v6862
          %7215 = vmatpush1.bf16.msra.mxu0 %v6861
          %7216 = vmatprep.subr.bf16.mxu0 %v6870
          %7217 = vmatpush1.bf16.msra.mxu0 %v6869
          %7218 = vmatprep.subr.bf16.mxu0 %v6878
          %7219 = vmatpush1.bf16.msra.mxu0 %v6877
          %7220 = vmatprep.subr.bf16.mxu0 %v6886
          %7221 = vmatpush1.bf16.msra.mxu0 %v6885
          %7222 = vmatprep.mubr.bf16.mxu0 %v5570
          %7223 = vmatmul.mubr.bf16.gmra.mrb[0].mxu0 %v5569
          %v7224 = vpop.f32.mrb[0].mxu0
          %v7225 = vadd.f32 %v7184, %v7224
          %v7226 = vpop.f32.mrb[0].mxu0
          %v7227 = vadd.f32 %v7186, %v7226
          %v7228 = vpop.f32.mrb[0].mxu0
          %v7229 = vpop.f32.mrb[0].mxu0
          %7230 = vdwg.mxu0
          %7231 = vmatprep.subr.bf16.mxu0 %v6640
          %7232 = vmatpush1.bf16.msra.mxu0 %v6639
          %7233 = vmatprep.subr.bf16.mxu0 %v6648
          %7234 = vmatpush1.bf16.msra.mxu0 %v6647
          %7235 = vmatprep.subr.bf16.mxu0 %v6656
          %7236 = vmatpush1.bf16.msra.mxu0 %v6655
          %7237 = vmatprep.subr.bf16.mxu0 %v6664
          %7238 = vmatpush1.bf16.msra.mxu0 %v6663
          %7239 = vmatprep.subr.bf16.mxu0 %v6672
          %7240 = vmatpush1.bf16.msra.mxu0 %v6671
          %7241 = vmatprep.subr.bf16.mxu0 %v6680
          %7242 = vmatpush1.bf16.msra.mxu0 %v6679
          %7243 = vmatprep.subr.bf16.mxu0 %v6688
          %7244 = vmatpush1.bf16.msra.mxu0 %v6687
          %7245 = vmatprep.subr.bf16.mxu0 %v6696
          %7246 = vmatpush1.bf16.msra.mxu0 %v6695
          %7247 = vmatprep.subr.bf16.mxu0 %v6704
          %7248 = vmatpush1.bf16.msra.mxu0 %v6703
          %7249 = vmatprep.subr.bf16.mxu0 %v6712
          %7250 = vmatpush1.bf16.msra.mxu0 %v6711
          %7251 = vmatprep.subr.bf16.mxu0 %v6720
          %7252 = vmatpush1.bf16.msra.mxu0 %v6719
          %7253 = vmatprep.subr.bf16.mxu0 %v6728
          %7254 = vmatpush1.bf16.msra.mxu0 %v6727
          %7255 = vmatprep.subr.bf16.mxu0 %v6736
          %7256 = vmatpush1.bf16.msra.mxu0 %v6735
          %7257 = vmatprep.subr.bf16.mxu0 %v6744
          %7258 = vmatpush1.bf16.msra.mxu0 %v6743
          %7259 = vmatprep.subr.bf16.mxu0 %v6752
          %7260 = vmatpush1.bf16.msra.mxu0 %v6751
          %7261 = vmatprep.subr.bf16.mxu0 %v6760
          %7262 = vmatpush1.bf16.msra.mxu0 %v6759
          %7263 = vmatprep.mubr.bf16.mxu0 %v5568
          %7264 = vmatmul.mubr.bf16.gmra.mrb[0].mxu0 %v5567
          %v7265 = vpop.f32.mrb[0].mxu0
          %v7266 = vadd.f32 %v5840, %v7265
          %v7267 = vpop.f32.mrb[0].mxu0
          %v7268 = vadd.f32 %v5844, %v7267
          %v7269 = vpop.f32.mrb[0].mxu0
          %v7270 = vpop.f32.mrb[0].mxu0
          %7271 = vdwg.mxu0
          %7272 = vmatprep.subr.bf16.mxu0 %v6768
          %7273 = vmatpush1.bf16.msra.mxu0 %v6767
          %7274 = vmatprep.subr.bf16.mxu0 %v6776
          %7275 = vmatpush1.bf16.msra.mxu0 %v6775
          %7276 = vmatprep.subr.bf16.mxu0 %v6784
          %7277 = vmatpush1.bf16.msra.mxu0 %v6783
          %7278 = vmatprep.subr.bf16.mxu0 %v6792
          %7279 = vmatpush1.bf16.msra.mxu0 %v6791
          %7280 = vmatprep.subr.bf16.mxu0 %v6800
          %7281 = vmatpush1.bf16.msra.mxu0 %v6799
          %7282 = vmatprep.subr.bf16.mxu0 %v6808
          %7283 = vmatpush1.bf16.msra.mxu0 %v6807
          %7284 = vmatprep.subr.bf16.mxu0 %v6816
          %7285 = vmatpush1.bf16.msra.mxu0 %v6815
          %7286 = vmatprep.subr.bf16.mxu0 %v6824
          %7287 = vmatpush1.bf16.msra.mxu0 %v6823
          %7288 = vmatprep.subr.bf16.mxu0 %v6832
          %7289 = vmatpush1.bf16.msra.mxu0 %v6831
          %7290 = vmatprep.subr.bf16.mxu0 %v6840
          %7291 = vmatpush1.bf16.msra.mxu0 %v6839
          %7292 = vmatprep.subr.bf16.mxu0 %v6848
          %7293 = vmatpush1.bf16.msra.mxu0 %v6847
          %7294 = vmatprep.subr.bf16.mxu0 %v6856
          %7295 = vmatpush1.bf16.msra.mxu0 %v6855
          %7296 = vmatprep.subr.bf16.mxu0 %v6864
          %7297 = vmatpush1.bf16.msra.mxu0 %v6863
          %7298 = vmatprep.subr.bf16.mxu0 %v6872
          %7299 = vmatpush1.bf16.msra.mxu0 %v6871
          %7300 = vmatprep.subr.bf16.mxu0 %v6880
          %7301 = vmatpush1.bf16.msra.mxu0 %v6879
          %7302 = vmatprep.subr.bf16.mxu0 %v6888
          %7303 = vmatpush1.bf16.msra.mxu0 %v6887
          %7304 = vmatprep.mubr.bf16.mxu0 %v5570
          %7305 = vmatmul.mubr.bf16.gmra.mrb[0].mxu0 %v5569
          %v7306 = vpop.f32.mrb[0].mxu0
          %v7307 = vadd.f32 %v7266, %v7306
          %v7308 = vpop.f32.mrb[0].mxu0
          %v7309 = vadd.f32 %v7268, %v7308
          %v7310 = vpop.f32.mrb[0].mxu0
          %v7311 = vpop.f32.mrb[0].mxu0
          %7312 = vdwg.mxu0
          %7313 = vmatprep.subr.bf16.mxu0 %v6642
          %7314 = vmatpush1.bf16.msra.mxu0 %v6641
          %7315 = vmatprep.subr.bf16.mxu0 %v6650
          %7316 = vmatpush1.bf16.msra.mxu0 %v6649
          %7317 = vmatprep.subr.bf16.mxu0 %v6658
          %7318 = vmatpush1.bf16.msra.mxu0 %v6657
          %7319 = vmatprep.subr.bf16.mxu0 %v6666
          %7320 = vmatpush1.bf16.msra.mxu0 %v6665
          %7321 = vmatprep.subr.bf16.mxu0 %v6674
          %7322 = vmatpush1.bf16.msra.mxu0 %v6673
          %7323 = vmatprep.subr.bf16.mxu0 %v6682
          %7324 = vmatpush1.bf16.msra.mxu0 %v6681
          %7325 = vmatprep.subr.bf16.mxu0 %v6690
          %7326 = vmatpush1.bf16.msra.mxu0 %v6689
          %7327 = vmatprep.subr.bf16.mxu0 %v6698
          %7328 = vmatpush1.bf16.msra.mxu0 %v6697
          %7329 = vmatprep.subr.bf16.mxu0 %v6706
          %7330 = vmatpush1.bf16.msra.mxu0 %v6705
          %7331 = vmatprep.subr.bf16.mxu0 %v6714
          %7332 = vmatpush1.bf16.msra.mxu0 %v6713
          %7333 = vmatprep.subr.bf16.mxu0 %v6722
          %7334 = vmatpush1.bf16.msra.mxu0 %v6721
          %7335 = vmatprep.subr.bf16.mxu0 %v6730
          %7336 = vmatpush1.bf16.msra.mxu0 %v6729
          %7337 = vmatprep.subr.bf16.mxu0 %v6738
          %7338 = vmatpush1.bf16.msra.mxu0 %v6737
          %7339 = vmatprep.subr.bf16.mxu0 %v6746
          %7340 = vmatpush1.bf16.msra.mxu0 %v6745
          %7341 = vmatprep.subr.bf16.mxu0 %v6754
          %7342 = vmatpush1.bf16.msra.mxu0 %v6753
          %7343 = vmatprep.subr.bf16.mxu0 %v6762
          %7344 = vmatpush1.bf16.msra.mxu0 %v6761
          %7345 = vmatprep.mubr.bf16.mxu0 %v5568
          %7346 = vmatmul.mubr.bf16.gmra.mrb[0].mxu0 %v5567
          %v7347 = vpop.f32.mrb[0].mxu0
          %v7348 = vadd.f32 %v5848, %v7347
          %v7349 = vpop.f32.mrb[0].mxu0
          %v7350 = vadd.f32 %v5852, %v7349
          %v7351 = vpop.f32.mrb[0].mxu0
          %v7352 = vpop.f32.mrb[0].mxu0
          %7353 = vdwg.mxu0
          %7354 = vmatprep.subr.bf16.mxu0 %v6770
          %7355 = vmatpush1.bf16.msra.mxu0 %v6769
          %7356 = vmatprep.subr.bf16.mxu0 %v6778
          %7357 = vmatpush1.bf16.msra.mxu0 %v6777
          %7358 = vmatprep.subr.bf16.mxu0 %v6786
          %7359 = vmatpush1.bf16.msra.mxu0 %v6785
          %7360 = vmatprep.subr.bf16.mxu0 %v6794
          %7361 = vmatpush1.bf16.msra.mxu0 %v6793
          %7362 = vmatprep.subr.bf16.mxu0 %v6802
          %7363 = vmatpush1.bf16.msra.mxu0 %v6801
          %7364 = vmatprep.subr.bf16.mxu0 %v6810
          %7365 = vmatpush1.bf16.msra.mxu0 %v6809
          %7366 = vmatprep.subr.bf16.mxu0 %v6818
          %7367 = vmatpush1.bf16.msra.mxu0 %v6817
          %7368 = vmatprep.subr.bf16.mxu0 %v6826
          %7369 = vmatpush1.bf16.msra.mxu0 %v6825
          %7370 = vmatprep.subr.bf16.mxu0 %v6834
          %7371 = vmatpush1.bf16.msra.mxu0 %v6833
          %7372 = vmatprep.subr.bf16.mxu0 %v6842
          %7373 = vmatpush1.bf16.msra.mxu0 %v6841
          %7374 = vmatprep.subr.bf16.mxu0 %v6850
          %7375 = vmatpush1.bf16.msra.mxu0 %v6849
          %7376 = vmatprep.subr.bf16.mxu0 %v6858
          %7377 = vmatpush1.bf16.msra.mxu0 %v6857
          %7378 = vmatprep.subr.bf16.mxu0 %v6866
          %7379 = vmatpush1.bf16.msra.mxu0 %v6865
          %7380 = vmatprep.subr.bf16.mxu0 %v6874
          %7381 = vmatpush1.bf16.msra.mxu0 %v6873
          %7382 = vmatprep.subr.bf16.mxu0 %v6882
          %7383 = vmatpush1.bf16.msra.mxu0 %v6881
          %7384 = vmatprep.subr.bf16.mxu0 %v6890
          %7385 = vmatpush1.bf16.msra.mxu0 %v6889
          %7386 = vmatprep.mubr.bf16.mxu0 %v5570
          %7387 = vmatmul.mubr.bf16.gmra.mrb[0].mxu0 %v5569
          %v7388 = vpop.f32.mrb[0].mxu0
          %v7389 = vadd.f32 %v7348, %v7388
          %v7390 = vpop.f32.mrb[0].mxu0
          %v7391 = vadd.f32 %v7350, %v7390
          %v7392 = vpop.f32.mrb[0].mxu0
          %v7393 = vpop.f32.mrb[0].mxu0
          %7394 = vdwg.mxu0
          %7395 = vmatprep.subr.bf16.mxu0 %v6644
          %7396 = vmatpush1.bf16.msra.mxu0 %v6643
          %7397 = vmatprep.subr.bf16.mxu0 %v6652
          %7398 = vmatpush1.bf16.msra.mxu0 %v6651
          %7399 = vmatprep.subr.bf16.mxu0 %v6660
          %7400 = vmatpush1.bf16.msra.mxu0 %v6659
          %7401 = vmatprep.subr.bf16.mxu0 %v6668
          %7402 = vmatpush1.bf16.msra.mxu0 %v6667
          %7403 = vmatprep.subr.bf16.mxu0 %v6676
          %7404 = vmatpush1.bf16.msra.mxu0 %v6675
          %7405 = vmatprep.subr.bf16.mxu0 %v6684
          %7406 = vmatpush1.bf16.msra.mxu0 %v6683
          %7407 = vmatprep.subr.bf16.mxu0 %v6692
          %7408 = vmatpush1.bf16.msra.mxu0 %v6691
          %7409 = vmatprep.subr.bf16.mxu0 %v6700
          %7410 = vmatpush1.bf16.msra.mxu0 %v6699
          %7411 = vmatprep.subr.bf16.mxu0 %v6708
          %7412 = vmatpush1.bf16.msra.mxu0 %v6707
          %7413 = vmatprep.subr.bf16.mxu0 %v6716
          %7414 = vmatpush1.bf16.msra.mxu0 %v6715
          %7415 = vmatprep.subr.bf16.mxu0 %v6724
          %7416 = vmatpush1.bf16.msra.mxu0 %v6723
          %7417 = vmatprep.subr.bf16.mxu0 %v6732
          %7418 = vmatpush1.bf16.msra.mxu0 %v6731
          %7419 = vmatprep.subr.bf16.mxu0 %v6740
          %7420 = vmatpush1.bf16.msra.mxu0 %v6739
          %7421 = vmatprep.subr.bf16.mxu0 %v6748
          %7422 = vmatpush1.bf16.msra.mxu0 %v6747
          %7423 = vmatprep.subr.bf16.mxu0 %v6756
          %7424 = vmatpush1.bf16.msra.mxu0 %v6755
          %7425 = vmatprep.subr.bf16.mxu0 %v6764
          %7426 = vmatpush1.bf16.msra.mxu0 %v6763
          %7427 = vmatprep.mubr.bf16.mxu0 %v5568
          %7428 = vmatmul.mubr.bf16.gmra.mrb[0].mxu0 %v5567
          %v7429 = vpop.f32.mrb[0].mxu0
          %v7430 = vadd.f32 %v5856, %v7429
          %v7431 = vpop.f32.mrb[0].mxu0
          %v7432 = vadd.f32 %v5860, %v7431
          %v7433 = vpop.f32.mrb[0].mxu0
          %v7434 = vpop.f32.mrb[0].mxu0
          %7435 = vdwg.mxu0
          %7436 = vmatprep.subr.bf16.mxu0 %v6772
          %7437 = vmatpush1.bf16.msra.mxu0 %v6771
          %7438 = vmatprep.subr.bf16.mxu0 %v6780
          %7439 = vmatpush1.bf16.msra.mxu0 %v6779
          %7440 = vmatprep.subr.bf16.mxu0 %v6788
          %7441 = vmatpush1.bf16.msra.mxu0 %v6787
          %7442 = vmatprep.subr.bf16.mxu0 %v6796
          %7443 = vmatpush1.bf16.msra.mxu0 %v6795
          %7444 = vmatprep.subr.bf16.mxu0 %v6804
          %7445 = vmatpush1.bf16.msra.mxu0 %v6803
          %7446 = vmatprep.subr.bf16.mxu0 %v6812
          %7447 = vmatpush1.bf16.msra.mxu0 %v6811
          %7448 = vmatprep.subr.bf16.mxu0 %v6820
          %7449 = vmatpush1.bf16.msra.mxu0 %v6819
          %7450 = vmatprep.subr.bf16.mxu0 %v6828
          %7451 = vmatpush1.bf16.msra.mxu0 %v6827
          %7452 = vmatprep.subr.bf16.mxu0 %v6836
          %7453 = vmatpush1.bf16.msra.mxu0 %v6835
          %7454 = vmatprep.subr.bf16.mxu0 %v6844
          %7455 = vmatpush1.bf16.msra.mxu0 %v6843
          %7456 = vmatprep.subr.bf16.mxu0 %v6852
          %7457 = vmatpush1.bf16.msra.mxu0 %v6851
          %7458 = vmatprep.subr.bf16.mxu0 %v6860
          %7459 = vmatpush1.bf16.msra.mxu0 %v6859
          %7460 = vmatprep.subr.bf16.mxu0 %v6868
          %7461 = vmatpush1.bf16.msra.mxu0 %v6867
          %7462 = vmatprep.subr.bf16.mxu0 %v6876
          %7463 = vmatpush1.bf16.msra.mxu0 %v6875
          %7464 = vmatprep.subr.bf16.mxu0 %v6884
          %7465 = vmatpush1.bf16.msra.mxu0 %v6883
          %7466 = vmatprep.subr.bf16.mxu0 %v6892
          %7467 = vmatpush1.bf16.msra.mxu0 %v6891
          %7468 = vmatprep.mubr.bf16.mxu0 %v5570
          %7469 = vmatmul.mubr.bf16.gmra.mrb[0].mxu0 %v5569
          %v7470 = vpop.f32.mrb[0].mxu0
          %v7471 = vadd.f32 %v7430, %v7470
          %v7472 = vpop.f32.mrb[0].mxu0
          %v7473 = vadd.f32 %v7432, %v7472
          %v7474 = vpop.f32.mrb[0].mxu0
          %v7475 = vpop.f32.mrb[0].mxu0
          %7476 = vdwg.mxu0
          %v7477 = vpack.c.bf16 %v7225, %v7225
          %v7478 = vpack.c.bf16 %v7227, %v7227
          %v7479 = vpack.c.bf16 %v7307, %v7307
          %v7480 = vpack.c.bf16 %v7309, %v7309
          %v7481 = vpack.c.bf16 %v7389, %v7389
          %v7482 = vpack.c.bf16 %v7391, %v7391
          %v7483 = vpack.c.bf16 %v7471, %v7471
          %v7484 = vpack.c.bf16 %v7473, %v7473
          %v7493 = vunpack.c.l.b16 %v7477
          %v7494 = vunpack.c.l.b16 %v7478
          %v7495 = vunpack.c.l.b16 %v7479
          %v7496 = vunpack.c.l.b16 %v7480
          %v7497 = vunpack.c.l.b16 %v7481
          %v7498 = vunpack.c.l.b16 %v7482
          %v7499 = vunpack.c.l.b16 %v7483
          %v7500 = vunpack.c.l.b16 %v7484
          %v7501 = vpack.c.b16 %v7494, %v7493
          %v7502 = vpack.c.b16 %v7496, %v7495
          %v7503 = vpack.c.b16 %v7498, %v7497
          %v7504 = vpack.c.b16 %v7500, %v7499
          %7509 = vst [vmem:[%s294] sm:$0xff] %v7501
          %7510 = vst [vmem:[%s294 + $0x8] sm:$0xff] %v7502
          %7511 = vst [vmem:[%s294 + $0x10] sm:$0xff] %v7503
          %7512 = vst [vmem:[%s294 + $0x18] sm:$0xff] %v7504
        $region52: #{_forward.3} parent=39 // pred_fallthru
          _
        %p7513 = scmp.lt.s32.totalorder %s23, 0
        %s7514 = scalar_select %p7513, %s23, 0
        %s7515 = smul.addr %s7514, 8
        %s7516 = smul.addr %s7515, 4
        %s7517 = scalar_lea.vmem %s5, %s7516
        // Predicated region
        $region53: #{_forward.3} parent=39 // pred_check
          %p7518 = pneg %p166
        $region54: #{_forward.3} parent=39 // pred_check_branch
          %7520 = sbr.rel (%p7518) target = $region56
        $region55: #{_forward.3} parent=39 // pred_region
          _
        $region56: #{_forward.3} parent=39 // pred_fallthru
          _
        // Predicated region
        $region57: #{_forward.3} parent=39 // pred_check
          %p7521 = pneg %p166
        $region58: #{_forward.3} parent=39 // pred_check_branch
          %7523 = sbr.rel (%p7521) target = $region60
        $region59: #{_forward.3} parent=39 // pred_region
          %p7524 = scmp.lt.s32.totalorder %s23, 0
          %s7525 = scalar_select %p7524, %s23, 0
          %s7526 = smul.addr %s7525, 8
          %s7527 = smul.addr %s7526, 4
          %s7528 = scalar_lea.vmem %s5, %s7527
        $region60: #{_forward.3} parent=39 // pred_fallthru
          _
      $region40: #{_forward.3} parent=5 // pred_fallthru
        _
      %p7529 = scmp.le.s32.totalorder 2, %s14
      // Predicated region
      $region61: #{_forward.3} parent=5 // pred_check
        %p7530 = pneg %p7529
      $region62: #{_forward.3} parent=5 // pred_check_branch
        %7532 = sbr.rel (%p7530) target = $region64
      $region63: #{_forward.3} parent=5 // pred_region
        %s7533 = ssub.s32 %s14, 2
      $region64: #{_forward.3} parent=5 // pred_fallthru
        _
    $region6: #{_forward.3} parent=1 // loop_footer
      %s18 = sadd.s32 1, %s14
    $region7: #{_forward.3} parent=1 // loop_footer_branch
      %13 = sbr.rel target = $region3
    $region8: #{_forward.3} parent=1 // loop_exit
      _
    %7534 = vsyncpa [#allocation4], 1
    %s7535 = scalar_lea.sflag [#allocation4], 1
    %7536 = vsyncpa %s7535, 1

</llo_original>
